<compile_context>
chip_gen: v7x
topology: tpu7x:2x2x1
jax: 0.10.0
libtpu: 0.0.40
codegen_flags: <defaults>
</compile_context>

<pallas_src>
import functools
import math

import jax
import jax.numpy as jnp
import numpy as np
from jax.experimental import pallas as pl
from jax.experimental.pallas import tpu as pltpu


# =============================================================================
# Pallas kernel: one ResidualBlock(residual=True) on NHWC data, concat fused.
# Grid: (N,) over the batch; inside, three row-block passes
#   (BN -> padded bf16 scratch)  (im2col + conv1 + SiLU)  (im2col + conv2+res)
# =============================================================================
def _residual_block_kernel(x_ref, s_ref, scale_ref, shift_ref, w1_ref, w2_ref,
                           out_ref, xpad_ref, hpad_ref, col1_ref, col2_ref):
    H, W, Cx = x_ref.shape
    Cs = s_ref.shape[2]
    Cin = Cx + Cs
    Cmid = hpad_ref.shape[2]
    Cout_p = out_ref.shape[2]
    PB = col1_ref.shape[0]          # pixels per row block
    TH = PB // W                    # rows per row block (divides H)
    nR = H // TH
    K2 = 9 * Cmid
    bf16 = jnp.bfloat16
    f32 = jnp.float32
    unroll = nR <= 8                # short, static trip counts -> unroll for LLO

    # ---- zero only the 1-pixel halo of the padded scratch buffers ----------
    # (Re-done each grid step: tiny O((H+W)*C) cost and safe when the batch
    #  axis is sharded across TensorCores.)
    xpad_ref[0:1, :, :] = jnp.zeros((1, W + 2, Cin), bf16)
    xpad_ref[H + 1:H + 2, :, :] = jnp.zeros((1, W + 2, Cin), bf16)
    xpad_ref[:, 0:1, :] = jnp.zeros((H + 2, 1, Cin), bf16)
    xpad_ref[:, W + 1:W + 2, :] = jnp.zeros((H + 2, 1, Cin), bf16)
    hpad_ref[0:1, :, :] = jnp.zeros((1, W + 2, Cmid), bf16)
    hpad_ref[H + 1:H + 2, :, :] = jnp.zeros((1, W + 2, Cmid), bf16)
    hpad_ref[:, 0:1, :] = jnp.zeros((H + 2, 1, Cmid), bf16)
    hpad_ref[:, W + 1:W + 2, :] = jnp.zeros((H + 2, 1, Cmid), bf16)

    # ---- precomputed BatchNorm scale/shift (f32); concat is fused -----------
    sc = scale_ref[...]                                   # (1, Cin) f32
    sh = shift_ref[...]
    sc_x = sc[:, :Cx].reshape(1, 1, Cx)
    sh_x = sh[:, :Cx].reshape(1, 1, Cx)
    sc_s = sc[:, Cx:].reshape(1, 1, Cs)
    sh_s = sh[:, Cx:].reshape(1, 1, Cs)

    # ---- pass 1: BatchNorm -> bf16, write padded-buffer interior ------------
    def bn_body(r, carry):
        row0 = pl.multiple_of(r * TH, TH)
        xr = x_ref[pl.ds(row0, TH), :, :]                 # (TH, W, Cx) f32
        sr = s_ref[pl.ds(row0, TH), :, :]                 # (TH, W, Cs) f32
        xpad_ref[pl.ds(row0 + 1, TH), 1:W + 1, 0:Cx] = (xr * sc_x + sh_x).astype(bf16)
        xpad_ref[pl.ds(row0 + 1, TH), 1:W + 1, Cx:Cin] = (sr * sc_s + sh_s).astype(bf16)
        return carry

    jax.lax.fori_loop(0, nR, bn_body, 0, unroll=unroll)

    # ---- pass 2: conv1 (3x3) as ONE deep-K matmul per row block, then SiLU --
    w1 = w1_ref[...]                                      # (9*Cin, Cmid) bf16

    def conv1_body(r, carry):
        row0 = pl.multiple_of(r * TH, TH)
        for k in range(9):                                # build (PB, 9*Cin) im2col
            ky, kx = k // 3, k % 3
            col1_ref[:, k * Cin:(k + 1) * Cin] = (
                xpad_ref[pl.ds(row0 + ky, TH), kx:kx + W, :].reshape(PB, Cin))
        h = jnp.dot(col1_ref[...], w1, preferred_element_type=f32)   # (PB, Cmid)
        h = h * jax.nn.sigmoid(h)                                    # SiLU in f32
        hpad_ref[pl.ds(row0 + 1, TH), 1:W + 1, :] = (
            h.astype(bf16).reshape(TH, W, Cmid))
        return carry

    jax.lax.fori_loop(0, nR, conv1_body, 0, unroll=unroll)

    # ---- pass 3: conv2 (3x3) + folded 1x1 residual, ONE matmul per block ----
    w2 = w2_ref[...]                                      # (9*Cmid + Cin, Cout_p) bf16

    def conv2_body(r, carry):
        row0 = pl.multiple_of(r * TH, TH)
        for k in range(9):
            ky, kx = k // 3, k % 3
            col2_ref[:, k * Cmid:(k + 1) * Cmid] = (
                hpad_ref[pl.ds(row0 + ky, TH), kx:kx + W, :].reshape(PB, Cmid))
        # residual branch: raw (pre-BN) input appended as extra K columns
        col2_ref[:, K2:K2 + Cx] = (
            x_ref[pl.ds(row0, TH), :, :].astype(bf16).reshape(PB, Cx))
        col2_ref[:, K2 + Cx:K2 + Cin] = (
            s_ref[pl.ds(row0, TH), :, :].astype(bf16).reshape(PB, Cs))
        acc = jnp.dot(col2_ref[...], w2, preferred_element_type=f32)  # (PB, Cout_p)
        out_ref[pl.ds(row0, TH), :, :] = (
            acc.reshape(TH, W, Cout_p).astype(out_ref.dtype))
        return carry

    jax.lax.fori_loop(0, nR, conv2_body, 0, unroll=unroll)


# =============================================================================
# Wrapper for one residual block.
# =============================================================================
def _bn_scale_shift(x, s, gamma, beta, eps=1e-5):
    """Training-mode (biased) batch stats of concat([x, s], channel axis),
    computed per channel group without materializing the concat.  One cheap
    fused XLA reduction pass (hoisted out of the tiled kernel); f32."""
    mean = jnp.concatenate([jnp.mean(x, axis=(0, 1, 2)),
                            jnp.mean(s, axis=(0, 1, 2))])
    var = jnp.concatenate([jnp.var(x, axis=(0, 1, 2)),
                           jnp.var(s, axis=(0, 1, 2))])
    scale = gamma.reshape(-1) * jax.lax.rsqrt(var + eps)
    shift = beta.reshape(-1) - mean * scale
    return (scale.reshape(1, -1).astype(jnp.float32),
            shift.reshape(1, -1).astype(jnp.float32))


def _round_up(v, m):
    return ((v + m - 1) // m) * m


def residual_block_pallas(x, s, gamma, beta, w1, w2, wres, *, row_block=8):
    """One ResidualBlock(residual=True).  x: running NHWC feature map,
    s: NHWC skip connection (concat is fused inside the kernel)."""
    N, H, W, Cx = x.shape
    Cs = s.shape[-1]
    Cin = Cx + Cs
    Cmid = w1.shape[1]
    Cout = w2.shape[1]
    Cout_p = _round_up(Cout, 128)          # lane-dense HBM write-back
    TH = math.gcd(H, row_block)            # in-kernel row-block height
    PB = TH * W

    scale, shift = _bn_scale_shift(x, s, gamma, beta)

    w1_b = w1.astype(jnp.bfloat16)                              # (9*Cin, Cmid)
    w2_ext = jnp.concatenate([w2, wres], axis=0)                # fold 1x1 residual
    w2_ext = jnp.pad(w2_ext, ((0, 0), (0, Cout_p - Cout))).astype(jnp.bfloat16)

    out = pl.pallas_call(
        _residual_block_kernel,
        out_shape=jax.ShapeDtypeStruct((N, H, W, Cout_p), jnp.float32),
        grid=(N,),
        in_specs=[
            pl.BlockSpec((None, H, W, Cx), lambda n: (n, 0, 0, 0)),      # x
            pl.BlockSpec((None, H, W, Cs), lambda n: (n, 0, 0, 0)),      # skip
            pl.BlockSpec((1, Cin), lambda n: (0, 0)),                    # BN scale
            pl.BlockSpec((1, Cin), lambda n: (0, 0)),                    # BN shift
            pl.BlockSpec((9 * Cin, Cmid), lambda n: (0, 0)),             # w1 (bf16)
            pl.BlockSpec((9 * Cmid + Cin, Cout_p), lambda n: (0, 0)),    # w2|wres (bf16)
        ],
        out_specs=pl.BlockSpec((None, H, W, Cout_p), lambda n: (n, 0, 0, 0)),
        scratch_shapes=[
            pltpu.VMEM((H + 2, W + 2, Cin), jnp.bfloat16),    # padded BN(x||skip)
            pltpu.VMEM((H + 2, W + 2, Cmid), jnp.bfloat16),   # padded SiLU(conv1)
            pltpu.VMEM((PB, 9 * Cin), jnp.bfloat16),          # im2col for conv1
            pltpu.VMEM((PB, 9 * Cmid + Cin), jnp.bfloat16),   # im2col for conv2 (+raw)
        ],
        compiler_params=pltpu.CompilerParams(
            dimension_semantics=("parallel",),
            vmem_limit_bytes=64 * 1024 * 1024,
        ),
    )(x, s, scale, shift, w1_b, w2_ext)
    return out[..., :Cout]          # drop lane padding (no-op when Cout % 128 == 0)


# =============================================================================
# Plain-JAX glue: bilinear 2x upsample matching nn.Upsample(scale_factor=2,
# mode='bilinear', align_corners=False), in NHWC.
# TODO(synk): fuse this fixed-weight gather/lerp (and the boundary transposes)
#             into the first residual-block kernel via row index gathers.
# =============================================================================
def upsample2x_bilinear_nhwc(x):
    N, H, W, C = x.shape

    def src(size):
        o = jnp.arange(2 * size, dtype=jnp.float32)
        s = jnp.clip((o + 0.5) / 2.0 - 0.5, 0.0, float(size - 1))
        i0 = jnp.floor(s).astype(jnp.int32)
        i1 = jnp.minimum(i0 + 1, size - 1)
        f = s - i0.astype(jnp.float32)
        return i0, i1, f

    i0, i1, fh = src(H)
    x = (x[:, i0] * (1.0 - fh)[None, :, None, None]
         + x[:, i1] * fh[None, :, None, None])
    j0, j1, fw = src(W)
    x = (x[:, :, j0] * (1.0 - fw)[None, None, :, None]
         + x[:, :, j1] * fw[None, None, :, None])
    return x


# =============================================================================
# UpBlock forward (NCHW boundary, NHWC inside; shared glue for ref & kernel).
# =============================================================================
def _upblock_apply(x_nchw, skip_inputs_nchw, params, block_fn):
    x = jnp.transpose(x_nchw, (0, 2, 3, 1))                     # -> NHWC once
    x = upsample2x_bilinear_nhwc(x)
    skips = [jnp.transpose(s, (0, 2, 3, 1)) for s in skip_inputs_nchw]
    for (gamma, beta, w1, w2, wres) in params:
        s = skips.pop()                                         # LIFO, like torch
        x = block_fn(x, s, gamma, beta, w1, w2, wres)
    return jnp.transpose(x, (0, 3, 1, 2))                       # -> NCHW once


def upblock_forward(x_nchw, skip_inputs_nchw, params):
    return _upblock_apply(x_nchw, skip_inputs_nchw, params, residual_block_pallas)


# =============================================================================
# Pure-JAX/XLA reference for numerical validation.
#   mxu_dtype=float32  -> exact torch-style f32 math
#   mxu_dtype=bfloat16 -> mimics the kernel's bf16 MXU operands (tight check)
# =============================================================================
def _ref_residual_block_nhwc(x, s, gamma, beta, w1, w2, wres,
                             mxu_dtype=jnp.float32, eps=1e-5):
    xin = jnp.concatenate([x, s], axis=-1)
    Cin = xin.shape[-1]
    Cmid = w1.shape[1]
    Cout = w2.shape[1]
    mean = jnp.mean(xin, axis=(0, 1, 2), keepdims=True)
    var = jnp.var(xin, axis=(0, 1, 2), keepdims=True)
    xn = ((xin - mean) * jax.lax.rsqrt(var + eps) * gamma.reshape(1, 1, 1, Cin)
          + beta.reshape(1, 1, 1, Cin))
    dn = ('NHWC', 'HWIO', 'NHWC')

    def conv(a, w, kh, kw, ci, co):
        return jax.lax.conv_general_dilated(
            a.astype(mxu_dtype), w.reshape(kh, kw, ci, co).astype(mxu_dtype),
            (1, 1), 'SAME', dimension_numbers=dn,
            preferred_element_type=jnp.float32)

    h = conv(xn, w1, 3, 3, Cin, Cmid)
    h = h * jax.nn.sigmoid(h)
    y = conv(h, w2, 3, 3, Cmid, Cout)
    res = conv(xin, wres, 1, 1, Cin, Cout)
    return y + res


def upblock_reference(x_nchw, skip_inputs_nchw, params, mxu_dtype=jnp.float32):
    fn = functools.partial(_ref_residual_block_nhwc, mxu_dtype=mxu_dtype)
    return _upblock_apply(x_nchw, skip_inputs_nchw, params, fn)


# =============================================================================
# Deterministic parameter init.  Weight layouts used by the kernel:
#   w1   : (9*Cin, Cmid)   == torch (Cmid, Cin, 3, 3) -> (ky, kx, Cin, Cmid) flat
#   w2   : (9*Cmid, Cout)
#   wres : (Cin, Cout)     == torch 1x1 conv weight transposed
#   gamma, beta : (1, Cin) BatchNorm2d affine parameters
# =============================================================================
def init_upblock_params(key, in_channels, out_channels, skip_channels, block_depth):
    params = []
    for i in range(block_depth):
        cin = (in_channels if i == 0 else out_channels) + skip_channels
        cmid = out_channels
        cout = out_channels
        key, k1, k2, k3, k4, k5 = jax.random.split(key, 6)
        w1 = jax.random.normal(k1, (9 * cin, cmid), jnp.float32) / math.sqrt(9 * cin)
        w2 = jax.random.normal(k2, (9 * cmid, cout), jnp.float32) / math.sqrt(9 * cmid)
        wres = jax.random.normal(k3, (cin, cout), jnp.float32) / math.sqrt(cin)
        gamma = 1.0 + 0.1 * jax.random.normal(k4, (1, cin), jnp.float32)
        beta = 0.1 * jax.random.normal(k5, (1, cin), jnp.float32)
        params.append((gamma, beta, w1, w2, wres))
    return params


if __name__ == "__main__":
    # UpBlock(in_channels=4, out_channels=4, skip_channels=4, block_depth=2)
    B, C_IN, C_OUT, C_SKIP, DEPTH = 2, 4, 4, 4, 2
    H = W = 8                       # x is at half resolution; skips at 2H x 2W

    key = jax.random.PRNGKey(0)
    k_x, k_s, k_p = jax.random.split(key, 3)
    x = jax.random.normal(k_x, (B, C_IN, H, W), jnp.float32)
    skip_keys = jax.random.split(k_s, DEPTH)
    skip_inputs = [jax.random.normal(k, (B, C_SKIP, 2 * H, 2 * W), jnp.float32)
                   for k in skip_keys]
    params = init_upblock_params(k_p, C_IN, C_OUT, C_SKIP, DEPTH)

    out = jax.jit(upblock_forward)(x, skip_inputs, params)
    out = jax.block_until_ready(out)
    assert out.shape == (B, C_OUT, 2 * H, 2 * W), out.shape

    # Tight structural check against an XLA reference that also feeds the MXU
    # bf16 operands (isolates layout/indexing bugs from precision).
    ref_bf16 = upblock_reference(x, skip_inputs, params, mxu_dtype=jnp.bfloat16)
    np.testing.assert_allclose(np.asarray(out), np.asarray(ref_bf16),
                               rtol=1e-2, atol=1e-2)
    # Looser check against the pure-f32 reference (kernel uses bf16 MXU inputs
    # with f32 accumulation and f32 BatchNorm statistics).
    ref_f32 = upblock_reference(x, skip_inputs, params, mxu_dtype=jnp.float32)
    np.testing.assert_allclose(np.asarray(out), np.asarray(ref_f32),
                               rtol=5e-2, atol=5e-2)

    print("KERNEL_OK")
</pallas_src>

<mosaic_0001>
module attributes {stable_mosaic.version = 11 : i64} {
  func.func @_residual_block_kernel(%arg0: i32, %arg1: memref<1x16x16x4xf32, #tpu.memory_space<vmem>>, %arg2: memref<1x16x16x4xf32, #tpu.memory_space<vmem>>, %arg3: memref<1x8xf32, #tpu.memory_space<vmem>>, %arg4: memref<1x8xf32, #tpu.memory_space<vmem>>, %arg5: memref<72x4xbf16, #tpu.memory_space<vmem>>, %arg6: memref<44x128xbf16, #tpu.memory_space<vmem>>, %arg7: memref<1x16x16x128xf32, #tpu.memory_space<vmem>>, %arg8: memref<18x18x8xbf16, #tpu.memory_space<vmem>>, %arg9: memref<18x18x4xbf16, #tpu.memory_space<vmem>>, %arg10: memref<128x72xbf16, #tpu.memory_space<vmem>>, %arg11: memref<128x44xbf16, #tpu.memory_space<vmem>>) attributes {dimension_semantics = [#tpu.dimension_semantics<parallel>], iteration_bounds = array<i64: 2>, scalar_prefetch = 0 : i64, scratch_operands = 4 : i64, tpu.core_type = #tpu.core_type<tc>, window_params = [{transform_indices = @transform_0, window_bounds = array<i64: 1, 16, 16, 4>}, {transform_indices = @transform_1, window_bounds = array<i64: 1, 16, 16, 4>}, {pipeline_mode = #tpu.pipeline_mode<synchronous>, transform_indices = @transform_2, window_bounds = array<i64: 1, 8>}, {pipeline_mode = #tpu.pipeline_mode<synchronous>, transform_indices = @transform_3, window_bounds = array<i64: 1, 8>}, {pipeline_mode = #tpu.pipeline_mode<synchronous>, transform_indices = @transform_4, window_bounds = array<i64: 72, 4>}, {pipeline_mode = #tpu.pipeline_mode<synchronous>, transform_indices = @transform_5, window_bounds = array<i64: 44, 128>}, {transform_indices = @transform_6, window_bounds = array<i64: 1, 16, 16, 128>}]} {
    %cst = arith.constant 0.000000e+00 : bf16
    %0 = vector.broadcast %cst : bf16 to vector<1x18x8xbf16>
    %c0 = arith.constant 0 : index
    %c0_0 = arith.constant 0 : index
    %c0_1 = arith.constant 0 : index
    %1 = vector.load %arg8[%c0, %c0_0, %c0_1] : memref<18x18x8xbf16, #tpu.memory_space<vmem>>, vector<1x18x8xbf16>
    tpu.vector_store %arg8[%c0, %c0_0, %c0_1], %0 {strides = array<i32>} : memref<18x18x8xbf16, #tpu.memory_space<vmem>>, vector<1x18x8xbf16>,
    %cst_2 = arith.constant 0.000000e+00 : bf16
    %2 = vector.broadcast %cst_2 : bf16 to vector<1x18x8xbf16>
    %c17 = arith.constant 17 : index
    %c0_3 = arith.constant 0 : index
    %c0_4 = arith.constant 0 : index
    %3 = vector.load %arg8[%c17, %c0_3, %c0_4] : memref<18x18x8xbf16, #tpu.memory_space<vmem>>, vector<1x18x8xbf16>
    tpu.vector_store %arg8[%c17, %c0_3, %c0_4], %2 {strides = array<i32>} : memref<18x18x8xbf16, #tpu.memory_space<vmem>>, vector<1x18x8xbf16>,
    %cst_5 = arith.constant 0.000000e+00 : bf16
    %4 = vector.broadcast %cst_5 : bf16 to vector<18x1x8xbf16>
    %c0_6 = arith.constant 0 : index
    %c0_7 = arith.constant 0 : index
    %c0_8 = arith.constant 0 : index
    %5 = vector.load %arg8[%c0_6, %c0_7, %c0_8] : memref<18x18x8xbf16, #tpu.memory_space<vmem>>, vector<18x1x8xbf16>
    tpu.vector_store %arg8[%c0_6, %c0_7, %c0_8], %4 {strides = array<i32>} : memref<18x18x8xbf16, #tpu.memory_space<vmem>>, vector<18x1x8xbf16>,
    %cst_9 = arith.constant 0.000000e+00 : bf16
    %6 = vector.broadcast %cst_9 : bf16 to vector<18x1x8xbf16>
    %c0_10 = arith.constant 0 : index
    %c17_11 = arith.constant 17 : index
    %c0_12 = arith.constant 0 : index
    %7 = vector.load %arg8[%c0_10, %c17_11, %c0_12] : memref<18x18x8xbf16, #tpu.memory_space<vmem>>, vector<18x1x8xbf16>
    tpu.vector_store %arg8[%c0_10, %c17_11, %c0_12], %6 {strides = array<i32>} : memref<18x18x8xbf16, #tpu.memory_space<vmem>>, vector<18x1x8xbf16>,
    %cst_13 = arith.constant 0.000000e+00 : bf16
    %8 = vector.broadcast %cst_13 : bf16 to vector<1x18x4xbf16>
    %c0_14 = arith.constant 0 : index
    %c0_15 = arith.constant 0 : index
    %c0_16 = arith.constant 0 : index
    %9 = vector.load %arg9[%c0_14, %c0_15, %c0_16] : memref<18x18x4xbf16, #tpu.memory_space<vmem>>, vector<1x18x4xbf16>
    tpu.vector_store %arg9[%c0_14, %c0_15, %c0_16], %8 {strides = array<i32>} : memref<18x18x4xbf16, #tpu.memory_space<vmem>>, vector<1x18x4xbf16>,
    %cst_17 = arith.constant 0.000000e+00 : bf16
    %10 = vector.broadcast %cst_17 : bf16 to vector<1x18x4xbf16>
    %c17_18 = arith.constant 17 : index
    %c0_19 = arith.constant 0 : index
    %c0_20 = arith.constant 0 : index
    %11 = vector.load %arg9[%c17_18, %c0_19, %c0_20] : memref<18x18x4xbf16, #tpu.memory_space<vmem>>, vector<1x18x4xbf16>
    tpu.vector_store %arg9[%c17_18, %c0_19, %c0_20], %10 {strides = array<i32>} : memref<18x18x4xbf16, #tpu.memory_space<vmem>>, vector<1x18x4xbf16>,
    %cst_21 = arith.constant 0.000000e+00 : bf16
    %12 = vector.broadcast %cst_21 : bf16 to vector<18x1x4xbf16>
    %c0_22 = arith.constant 0 : index
    %c0_23 = arith.constant 0 : index
    %c0_24 = arith.constant 0 : index
    %13 = vector.load %arg9[%c0_22, %c0_23, %c0_24] : memref<18x18x4xbf16, #tpu.memory_space<vmem>>, vector<18x1x4xbf16>
    tpu.vector_store %arg9[%c0_22, %c0_23, %c0_24], %12 {strides = array<i32>} : memref<18x18x4xbf16, #tpu.memory_space<vmem>>, vector<18x1x4xbf16>,
    %cst_25 = arith.constant 0.000000e+00 : bf16
    %14 = vector.broadcast %cst_25 : bf16 to vector<18x1x4xbf16>
    %c0_26 = arith.constant 0 : index
    %c17_27 = arith.constant 17 : index
    %c0_28 = arith.constant 0 : index
    %15 = vector.load %arg9[%c0_26, %c17_27, %c0_28] : memref<18x18x4xbf16, #tpu.memory_space<vmem>>, vector<18x1x4xbf16>
    tpu.vector_store %arg9[%c0_26, %c17_27, %c0_28], %14 {strides = array<i32>} : memref<18x18x4xbf16, #tpu.memory_space<vmem>>, vector<18x1x4xbf16>,
    %c0_29 = arith.constant 0 : index
    %c0_30 = arith.constant 0 : index
    %16 = vector.load %arg3[%c0_29, %c0_30] : memref<1x8xf32, #tpu.memory_space<vmem>>, vector<1x8xf32>
    %c0_31 = arith.constant 0 : index
    %c0_32 = arith.constant 0 : index
    %17 = vector.load %arg4[%c0_31, %c0_32] : memref<1x8xf32, #tpu.memory_space<vmem>>, vector<1x8xf32>
    %18 = vector.extract_strided_slice %16 {offsets = [0, 0], sizes = [1, 4], strides = [1, 1]} : vector<1x8xf32> to vector<1x4xf32>
    %19 = vector.shape_cast %18 : vector<1x4xf32> to vector<1x1x4xf32>
    %20 = vector.extract_strided_slice %17 {offsets = [0, 0], sizes = [1, 4], strides = [1, 1]} : vector<1x8xf32> to vector<1x4xf32>
    %21 = vector.shape_cast %20 : vector<1x4xf32> to vector<1x1x4xf32>
    %22 = vector.extract_strided_slice %16 {offsets = [0, 4], sizes = [1, 4], strides = [1, 1]} : vector<1x8xf32> to vector<1x4xf32>
    %23 = vector.shape_cast %22 : vector<1x4xf32> to vector<1x1x4xf32>
    %24 = vector.extract_strided_slice %17 {offsets = [0, 4], sizes = [1, 4], strides = [1, 1]} : vector<1x8xf32> to vector<1x4xf32>
    %25 = vector.shape_cast %24 : vector<1x4xf32> to vector<1x1x4xf32>
    %c0_i32 = arith.constant 0 : i32
    %c8_i32 = arith.constant 8 : i32
    %26 = arith.muli %c0_i32, %c8_i32 : i32
    %27 = tpu.assume_multiple %26, 8 : i32
    %c0_33 = arith.constant 0 : index
    %28 = arith.index_cast %27 : i32 to index
    %c0_34 = arith.constant 0 : index
    %c0_35 = arith.constant 0 : index
    %29 = vector.load %arg1[%c0_33, %28, %c0_34, %c0_35] : memref<1x16x16x4xf32, #tpu.memory_space<vmem>>, vector<1x8x16x4xf32>
    %30 = vector.shape_cast %29 : vector<1x8x16x4xf32> to vector<8x16x4xf32>
    %c0_36 = arith.constant 0 : index
    %31 = arith.index_cast %27 : i32 to index
    %c0_37 = arith.constant 0 : index
    %c0_38 = arith.constant 0 : index
    %32 = vector.load %arg2[%c0_36, %31, %c0_37, %c0_38] : memref<1x16x16x4xf32, #tpu.memory_space<vmem>>, vector<1x8x16x4xf32>
    %33 = vector.shape_cast %32 : vector<1x8x16x4xf32> to vector<8x16x4xf32>
    %34 = vector.broadcast %19 : vector<1x1x4xf32> to vector<8x16x4xf32>
    %35 = arith.mulf %30, %34 : vector<8x16x4xf32>
    %36 = vector.broadcast %21 : vector<1x1x4xf32> to vector<8x16x4xf32>
    %37 = arith.addf %35, %36 : vector<8x16x4xf32>
    %38 = arith.truncf %37 : vector<8x16x4xf32> to vector<8x16x4xbf16>
    %c1_i32 = arith.constant 1 : i32
    %39 = arith.addi %27, %c1_i32 : i32
    %40 = arith.index_cast %39 : i32 to index
    %c1 = arith.constant 1 : index
    %c0_39 = arith.constant 0 : index
    %41 = vector.load %arg8[%40, %c1, %c0_39] : memref<18x18x8xbf16, #tpu.memory_space<vmem>>, vector<8x16x4xbf16>
    tpu.vector_store %arg8[%40, %c1, %c0_39], %38 {strides = array<i32>} : memref<18x18x8xbf16, #tpu.memory_space<vmem>>, vector<8x16x4xbf16>,
    %42 = vector.broadcast %23 : vector<1x1x4xf32> to vector<8x16x4xf32>
    %43 = arith.mulf %33, %42 : vector<8x16x4xf32>
    %44 = vector.broadcast %25 : vector<1x1x4xf32> to vector<8x16x4xf32>
    %45 = arith.addf %43, %44 : vector<8x16x4xf32>
    %46 = arith.truncf %45 : vector<8x16x4xf32> to vector<8x16x4xbf16>
    %c1_i32_40 = arith.constant 1 : i32
    %47 = arith.addi %27, %c1_i32_40 : i32
    %48 = arith.index_cast %47 : i32 to index
    %c1_41 = arith.constant 1 : index
    %c4 = arith.constant 4 : index
    %49 = vector.load %arg8[%48, %c1_41, %c4] : memref<18x18x8xbf16, #tpu.memory_space<vmem>>, vector<8x16x4xbf16>
    tpu.vector_store %arg8[%48, %c1_41, %c4], %46 {strides = array<i32>} : memref<18x18x8xbf16, #tpu.memory_space<vmem>>, vector<8x16x4xbf16>,
    %c1_i32_42 = arith.constant 1 : i32
    %c8_i32_43 = arith.constant 8 : i32
    %50 = arith.muli %c1_i32_42, %c8_i32_43 : i32
    %51 = tpu.assume_multiple %50, 8 : i32
    %c0_44 = arith.constant 0 : index
    %52 = arith.index_cast %51 : i32 to index
    %c0_45 = arith.constant 0 : index
    %c0_46 = arith.constant 0 : index
    %53 = vector.load %arg1[%c0_44, %52, %c0_45, %c0_46] : memref<1x16x16x4xf32, #tpu.memory_space<vmem>>, vector<1x8x16x4xf32>
    %54 = vector.shape_cast %53 : vector<1x8x16x4xf32> to vector<8x16x4xf32>
    %c0_47 = arith.constant 0 : index
    %55 = arith.index_cast %51 : i32 to index
    %c0_48 = arith.constant 0 : index
    %c0_49 = arith.constant 0 : index
    %56 = vector.load %arg2[%c0_47, %55, %c0_48, %c0_49] : memref<1x16x16x4xf32, #tpu.memory_space<vmem>>, vector<1x8x16x4xf32>
    %57 = vector.shape_cast %56 : vector<1x8x16x4xf32> to vector<8x16x4xf32>
    %58 = vector.broadcast %19 : vector<1x1x4xf32> to vector<8x16x4xf32>
    %59 = arith.mulf %54, %58 : vector<8x16x4xf32>
    %60 = vector.broadcast %21 : vector<1x1x4xf32> to vector<8x16x4xf32>
    %61 = arith.addf %59, %60 : vector<8x16x4xf32>
    %62 = arith.truncf %61 : vector<8x16x4xf32> to vector<8x16x4xbf16>
    %c1_i32_50 = arith.constant 1 : i32
    %63 = arith.addi %51, %c1_i32_50 : i32
    %64 = arith.index_cast %63 : i32 to index
    %c1_51 = arith.constant 1 : index
    %c0_52 = arith.constant 0 : index
    %65 = vector.load %arg8[%64, %c1_51, %c0_52] : memref<18x18x8xbf16, #tpu.memory_space<vmem>>, vector<8x16x4xbf16>
    tpu.vector_store %arg8[%64, %c1_51, %c0_52], %62 {strides = array<i32>} : memref<18x18x8xbf16, #tpu.memory_space<vmem>>, vector<8x16x4xbf16>,
    %66 = vector.broadcast %23 : vector<1x1x4xf32> to vector<8x16x4xf32>
    %67 = arith.mulf %57, %66 : vector<8x16x4xf32>
    %68 = vector.broadcast %25 : vector<1x1x4xf32> to vector<8x16x4xf32>
    %69 = arith.addf %67, %68 : vector<8x16x4xf32>
    %70 = arith.truncf %69 : vector<8x16x4xf32> to vector<8x16x4xbf16>
    %c1_i32_53 = arith.constant 1 : i32
    %71 = arith.addi %51, %c1_i32_53 : i32
    %72 = arith.index_cast %71 : i32 to index
    %c1_54 = arith.constant 1 : index
    %c4_55 = arith.constant 4 : index
    %73 = vector.load %arg8[%72, %c1_54, %c4_55] : memref<18x18x8xbf16, #tpu.memory_space<vmem>>, vector<8x16x4xbf16>
    tpu.vector_store %arg8[%72, %c1_54, %c4_55], %70 {strides = array<i32>} : memref<18x18x8xbf16, #tpu.memory_space<vmem>>, vector<8x16x4xbf16>,
    %c2_i32 = arith.constant 2 : i32
    %c0_56 = arith.constant 0 : index
    %c0_57 = arith.constant 0 : index
    %74 = vector.load %arg5[%c0_56, %c0_57] : memref<72x4xbf16, #tpu.memory_space<vmem>>, vector<72x4xbf16>
    %c0_i32_58 = arith.constant 0 : i32
    %c8_i32_59 = arith.constant 8 : i32
    %75 = arith.muli %c0_i32_58, %c8_i32_59 : i32
    %76 = tpu.assume_multiple %75, 8 : i32
    %c0_i32_60 = arith.constant 0 : i32
    %77 = arith.addi %76, %c0_i32_60 : i32
    %78 = arith.index_cast %77 : i32 to index
    %c0_61 = arith.constant 0 : index
    %c0_62 = arith.constant 0 : index
    %79 = vector.load %arg8[%78, %c0_61, %c0_62] : memref<18x18x8xbf16, #tpu.memory_space<vmem>>, vector<8x16x8xbf16>
    %80 = vector.shape_cast %79 : vector<8x16x8xbf16> to vector<128x8xbf16>
    %c0_63 = arith.constant 0 : index
    %c0_64 = arith.constant 0 : index
    %81 = vector.load %arg10[%c0_63, %c0_64] : memref<128x72xbf16, #tpu.memory_space<vmem>>, vector<128x8xbf16>
    tpu.vector_store %arg10[%c0_63, %c0_64], %80 {strides = array<i32>} : memref<128x72xbf16, #tpu.memory_space<vmem>>, vector<128x8xbf16>,
    %c0_i32_65 = arith.constant 0 : i32
    %82 = arith.addi %76, %c0_i32_65 : i32
    %83 = arith.index_cast %82 : i32 to index
    %c1_66 = arith.constant 1 : index
    %c0_67 = arith.constant 0 : index
    %84 = vector.load %arg8[%83, %c1_66, %c0_67] : memref<18x18x8xbf16, #tpu.memory_space<vmem>>, vector<8x16x8xbf16>
    %85 = vector.shape_cast %84 : vector<8x16x8xbf16> to vector<128x8xbf16>
    %c0_68 = arith.constant 0 : index
    %c8 = arith.constant 8 : index
    %86 = vector.load %arg10[%c0_68, %c8] : memref<128x72xbf16, #tpu.memory_space<vmem>>, vector<128x8xbf16>
    tpu.vector_store %arg10[%c0_68, %c8], %85 {strides = array<i32>} : memref<128x72xbf16, #tpu.memory_space<vmem>>, vector<128x8xbf16>,
    %c0_i32_69 = arith.constant 0 : i32
    %87 = arith.addi %76, %c0_i32_69 : i32
    %88 = arith.index_cast %87 : i32 to index
    %c2 = arith.constant 2 : index
    %c0_70 = arith.constant 0 : index
    %89 = vector.load %arg8[%88, %c2, %c0_70] : memref<18x18x8xbf16, #tpu.memory_space<vmem>>, vector<8x16x8xbf16>
    %90 = vector.shape_cast %89 : vector<8x16x8xbf16> to vector<128x8xbf16>
    %c0_71 = arith.constant 0 : index
    %c16 = arith.constant 16 : index
    %91 = vector.load %arg10[%c0_71, %c16] : memref<128x72xbf16, #tpu.memory_space<vmem>>, vector<128x8xbf16>
    tpu.vector_store %arg10[%c0_71, %c16], %90 {strides = array<i32>} : memref<128x72xbf16, #tpu.memory_space<vmem>>, vector<128x8xbf16>,
    %c1_i32_72 = arith.constant 1 : i32
    %92 = arith.addi %76, %c1_i32_72 : i32
    %93 = arith.index_cast %92 : i32 to index
    %c0_73 = arith.constant 0 : index
    %c0_74 = arith.constant 0 : index
    %94 = vector.load %arg8[%93, %c0_73, %c0_74] : memref<18x18x8xbf16, #tpu.memory_space<vmem>>, vector<8x16x8xbf16>
    %95 = vector.shape_cast %94 : vector<8x16x8xbf16> to vector<128x8xbf16>
    %c0_75 = arith.constant 0 : index
    %c24 = arith.constant 24 : index
    %96 = vector.load %arg10[%c0_75, %c24] : memref<128x72xbf16, #tpu.memory_space<vmem>>, vector<128x8xbf16>
    tpu.vector_store %arg10[%c0_75, %c24], %95 {strides = array<i32>} : memref<128x72xbf16, #tpu.memory_space<vmem>>, vector<128x8xbf16>,
    %c1_i32_76 = arith.constant 1 : i32
    %97 = arith.addi %76, %c1_i32_76 : i32
    %98 = arith.index_cast %97 : i32 to index
    %c1_77 = arith.constant 1 : index
    %c0_78 = arith.constant 0 : index
    %99 = vector.load %arg8[%98, %c1_77, %c0_78] : memref<18x18x8xbf16, #tpu.memory_space<vmem>>, vector<8x16x8xbf16>
    %100 = vector.shape_cast %99 : vector<8x16x8xbf16> to vector<128x8xbf16>
    %c0_79 = arith.constant 0 : index
    %c32 = arith.constant 32 : index
    %101 = vector.load %arg10[%c0_79, %c32] : memref<128x72xbf16, #tpu.memory_space<vmem>>, vector<128x8xbf16>
    tpu.vector_store %arg10[%c0_79, %c32], %100 {strides = array<i32>} : memref<128x72xbf16, #tpu.memory_space<vmem>>, vector<128x8xbf16>,
    %c1_i32_80 = arith.constant 1 : i32
    %102 = arith.addi %76, %c1_i32_80 : i32
    %103 = arith.index_cast %102 : i32 to index
    %c2_81 = arith.constant 2 : index
    %c0_82 = arith.constant 0 : index
    %104 = vector.load %arg8[%103, %c2_81, %c0_82] : memref<18x18x8xbf16, #tpu.memory_space<vmem>>, vector<8x16x8xbf16>
    %105 = vector.shape_cast %104 : vector<8x16x8xbf16> to vector<128x8xbf16>
    %c0_83 = arith.constant 0 : index
    %c40 = arith.constant 40 : index
    %106 = vector.load %arg10[%c0_83, %c40] : memref<128x72xbf16, #tpu.memory_space<vmem>>, vector<128x8xbf16>
    tpu.vector_store %arg10[%c0_83, %c40], %105 {strides = array<i32>} : memref<128x72xbf16, #tpu.memory_space<vmem>>, vector<128x8xbf16>,
    %c2_i32_84 = arith.constant 2 : i32
    %107 = arith.addi %76, %c2_i32_84 : i32
    %108 = arith.index_cast %107 : i32 to index
    %c0_85 = arith.constant 0 : index
    %c0_86 = arith.constant 0 : index
    %109 = vector.load %arg8[%108, %c0_85, %c0_86] : memref<18x18x8xbf16, #tpu.memory_space<vmem>>, vector<8x16x8xbf16>
    %110 = vector.shape_cast %109 : vector<8x16x8xbf16> to vector<128x8xbf16>
    %c0_87 = arith.constant 0 : index
    %c48 = arith.constant 48 : index
    %111 = vector.load %arg10[%c0_87, %c48] : memref<128x72xbf16, #tpu.memory_space<vmem>>, vector<128x8xbf16>
    tpu.vector_store %arg10[%c0_87, %c48], %110 {strides = array<i32>} : memref<128x72xbf16, #tpu.memory_space<vmem>>, vector<128x8xbf16>,
    %c2_i32_88 = arith.constant 2 : i32
    %112 = arith.addi %76, %c2_i32_88 : i32
    %113 = arith.index_cast %112 : i32 to index
    %c1_89 = arith.constant 1 : index
    %c0_90 = arith.constant 0 : index
    %114 = vector.load %arg8[%113, %c1_89, %c0_90] : memref<18x18x8xbf16, #tpu.memory_space<vmem>>, vector<8x16x8xbf16>
    %115 = vector.shape_cast %114 : vector<8x16x8xbf16> to vector<128x8xbf16>
    %c0_91 = arith.constant 0 : index
    %c56 = arith.constant 56 : index
    %116 = vector.load %arg10[%c0_91, %c56] : memref<128x72xbf16, #tpu.memory_space<vmem>>, vector<128x8xbf16>
    tpu.vector_store %arg10[%c0_91, %c56], %115 {strides = array<i32>} : memref<128x72xbf16, #tpu.memory_space<vmem>>, vector<128x8xbf16>,
    %c2_i32_92 = arith.constant 2 : i32
    %117 = arith.addi %76, %c2_i32_92 : i32
    %118 = arith.index_cast %117 : i32 to index
    %c2_93 = arith.constant 2 : index
    %c0_94 = arith.constant 0 : index
    %119 = vector.load %arg8[%118, %c2_93, %c0_94] : memref<18x18x8xbf16, #tpu.memory_space<vmem>>, vector<8x16x8xbf16>
    %120 = vector.shape_cast %119 : vector<8x16x8xbf16> to vector<128x8xbf16>
    %c0_95 = arith.constant 0 : index
    %c64 = arith.constant 64 : index
    %121 = vector.load %arg10[%c0_95, %c64] : memref<128x72xbf16, #tpu.memory_space<vmem>>, vector<128x8xbf16>
    tpu.vector_store %arg10[%c0_95, %c64], %120 {strides = array<i32>} : memref<128x72xbf16, #tpu.memory_space<vmem>>, vector<128x8xbf16>,
    %c0_96 = arith.constant 0 : index
    %c0_97 = arith.constant 0 : index
    %122 = vector.load %arg10[%c0_96, %c0_97] : memref<128x72xbf16, #tpu.memory_space<vmem>>, vector<128x72xbf16>
    %cst_98 = arith.constant dense<0.000000e+00> : vector<128x4xf32>
    %123 = tpu.matmul %122, %74, %cst_98 {dimension_numbers = #tpu.dot_dimension_numbers<[1], [0], [0], [1], [0, 0, 1, 1], [], []>} : vector<128x72xbf16>, vector<72x4xbf16>, vector<128x4xf32> -> vector<128x4xf32>
    %124 = arith.negf %123 : vector<128x4xf32>
    %125 = math.exp %124 : vector<128x4xf32>
    %cst_99 = arith.constant 1.000000e+00 : f32
    %126 = vector.broadcast %cst_99 : f32 to vector<128x4xf32>
    %127 = arith.addf %126, %125 : vector<128x4xf32>
    %128 = arith.divf %126, %127 : vector<128x4xf32>
    %129 = arith.mulf %123, %128 : vector<128x4xf32>
    %130 = arith.truncf %129 : vector<128x4xf32> to vector<128x4xbf16>
    %131 = vector.shape_cast %130 : vector<128x4xbf16> to vector<8x16x4xbf16>
    %c1_i32_100 = arith.constant 1 : i32
    %132 = arith.addi %76, %c1_i32_100 : i32
    %133 = arith.index_cast %132 : i32 to index
    %c1_101 = arith.constant 1 : index
    %c0_102 = arith.constant 0 : index
    %134 = vector.load %arg9[%133, %c1_101, %c0_102] : memref<18x18x4xbf16, #tpu.memory_space<vmem>>, vector<8x16x4xbf16>
    tpu.vector_store %arg9[%133, %c1_101, %c0_102], %131 {strides = array<i32>} : memref<18x18x4xbf16, #tpu.memory_space<vmem>>, vector<8x16x4xbf16>,
    %c1_i32_103 = arith.constant 1 : i32
    %c8_i32_104 = arith.constant 8 : i32
    %135 = arith.muli %c1_i32_103, %c8_i32_104 : i32
    %136 = tpu.assume_multiple %135, 8 : i32
    %c0_i32_105 = arith.constant 0 : i32
    %137 = arith.addi %136, %c0_i32_105 : i32
    %138 = arith.index_cast %137 : i32 to index
    %c0_106 = arith.constant 0 : index
    %c0_107 = arith.constant 0 : index
    %139 = vector.load %arg8[%138, %c0_106, %c0_107] : memref<18x18x8xbf16, #tpu.memory_space<vmem>>, vector<8x16x8xbf16>
    %140 = vector.shape_cast %139 : vector<8x16x8xbf16> to vector<128x8xbf16>
    %c0_108 = arith.constant 0 : index
    %c0_109 = arith.constant 0 : index
    %141 = vector.load %arg10[%c0_108, %c0_109] : memref<128x72xbf16, #tpu.memory_space<vmem>>, vector<128x8xbf16>
    tpu.vector_store %arg10[%c0_108, %c0_109], %140 {strides = array<i32>} : memref<128x72xbf16, #tpu.memory_space<vmem>>, vector<128x8xbf16>,
    %c0_i32_110 = arith.constant 0 : i32
    %142 = arith.addi %136, %c0_i32_110 : i32
    %143 = arith.index_cast %142 : i32 to index
    %c1_111 = arith.constant 1 : index
    %c0_112 = arith.constant 0 : index
    %144 = vector.load %arg8[%143, %c1_111, %c0_112] : memref<18x18x8xbf16, #tpu.memory_space<vmem>>, vector<8x16x8xbf16>
    %145 = vector.shape_cast %144 : vector<8x16x8xbf16> to vector<128x8xbf16>
    %c0_113 = arith.constant 0 : index
    %c8_114 = arith.constant 8 : index
    %146 = vector.load %arg10[%c0_113, %c8_114] : memref<128x72xbf16, #tpu.memory_space<vmem>>, vector<128x8xbf16>
    tpu.vector_store %arg10[%c0_113, %c8_114], %145 {strides = array<i32>} : memref<128x72xbf16, #tpu.memory_space<vmem>>, vector<128x8xbf16>,
    %c0_i32_115 = arith.constant 0 : i32
    %147 = arith.addi %136, %c0_i32_115 : i32
    %148 = arith.index_cast %147 : i32 to index
    %c2_116 = arith.constant 2 : index
    %c0_117 = arith.constant 0 : index
    %149 = vector.load %arg8[%148, %c2_116, %c0_117] : memref<18x18x8xbf16, #tpu.memory_space<vmem>>, vector<8x16x8xbf16>
    %150 = vector.shape_cast %149 : vector<8x16x8xbf16> to vector<128x8xbf16>
    %c0_118 = arith.constant 0 : index
    %c16_119 = arith.constant 16 : index
    %151 = vector.load %arg10[%c0_118, %c16_119] : memref<128x72xbf16, #tpu.memory_space<vmem>>, vector<128x8xbf16>
    tpu.vector_store %arg10[%c0_118, %c16_119], %150 {strides = array<i32>} : memref<128x72xbf16, #tpu.memory_space<vmem>>, vector<128x8xbf16>,
    %c1_i32_120 = arith.constant 1 : i32
    %152 = arith.addi %136, %c1_i32_120 : i32
    %153 = arith.index_cast %152 : i32 to index
    %c0_121 = arith.constant 0 : index
    %c0_122 = arith.constant 0 : index
    %154 = vector.load %arg8[%153, %c0_121, %c0_122] : memref<18x18x8xbf16, #tpu.memory_space<vmem>>, vector<8x16x8xbf16>
    %155 = vector.shape_cast %154 : vector<8x16x8xbf16> to vector<128x8xbf16>
    %c0_123 = arith.constant 0 : index
    %c24_124 = arith.constant 24 : index
    %156 = vector.load %arg10[%c0_123, %c24_124] : memref<128x72xbf16, #tpu.memory_space<vmem>>, vector<128x8xbf16>
    tpu.vector_store %arg10[%c0_123, %c24_124], %155 {strides = array<i32>} : memref<128x72xbf16, #tpu.memory_space<vmem>>, vector<128x8xbf16>,
    %c1_i32_125 = arith.constant 1 : i32
    %157 = arith.addi %136, %c1_i32_125 : i32
    %158 = arith.index_cast %157 : i32 to index
    %c1_126 = arith.constant 1 : index
    %c0_127 = arith.constant 0 : index
    %159 = vector.load %arg8[%158, %c1_126, %c0_127] : memref<18x18x8xbf16, #tpu.memory_space<vmem>>, vector<8x16x8xbf16>
    %160 = vector.shape_cast %159 : vector<8x16x8xbf16> to vector<128x8xbf16>
    %c0_128 = arith.constant 0 : index
    %c32_129 = arith.constant 32 : index
    %161 = vector.load %arg10[%c0_128, %c32_129] : memref<128x72xbf16, #tpu.memory_space<vmem>>, vector<128x8xbf16>
    tpu.vector_store %arg10[%c0_128, %c32_129], %160 {strides = array<i32>} : memref<128x72xbf16, #tpu.memory_space<vmem>>, vector<128x8xbf16>,
    %c1_i32_130 = arith.constant 1 : i32
    %162 = arith.addi %136, %c1_i32_130 : i32
    %163 = arith.index_cast %162 : i32 to index
    %c2_131 = arith.constant 2 : index
    %c0_132 = arith.constant 0 : index
    %164 = vector.load %arg8[%163, %c2_131, %c0_132] : memref<18x18x8xbf16, #tpu.memory_space<vmem>>, vector<8x16x8xbf16>
    %165 = vector.shape_cast %164 : vector<8x16x8xbf16> to vector<128x8xbf16>
    %c0_133 = arith.constant 0 : index
    %c40_134 = arith.constant 40 : index
    %166 = vector.load %arg10[%c0_133, %c40_134] : memref<128x72xbf16, #tpu.memory_space<vmem>>, vector<128x8xbf16>
    tpu.vector_store %arg10[%c0_133, %c40_134], %165 {strides = array<i32>} : memref<128x72xbf16, #tpu.memory_space<vmem>>, vector<128x8xbf16>,
    %c2_i32_135 = arith.constant 2 : i32
    %167 = arith.addi %136, %c2_i32_135 : i32
    %168 = arith.index_cast %167 : i32 to index
    %c0_136 = arith.constant 0 : index
    %c0_137 = arith.constant 0 : index
    %169 = vector.load %arg8[%168, %c0_136, %c0_137] : memref<18x18x8xbf16, #tpu.memory_space<vmem>>, vector<8x16x8xbf16>
    %170 = vector.shape_cast %169 : vector<8x16x8xbf16> to vector<128x8xbf16>
    %c0_138 = arith.constant 0 : index
    %c48_139 = arith.constant 48 : index
    %171 = vector.load %arg10[%c0_138, %c48_139] : memref<128x72xbf16, #tpu.memory_space<vmem>>, vector<128x8xbf16>
    tpu.vector_store %arg10[%c0_138, %c48_139], %170 {strides = array<i32>} : memref<128x72xbf16, #tpu.memory_space<vmem>>, vector<128x8xbf16>,
    %c2_i32_140 = arith.constant 2 : i32
    %172 = arith.addi %136, %c2_i32_140 : i32
    %173 = arith.index_cast %172 : i32 to index
    %c1_141 = arith.constant 1 : index
    %c0_142 = arith.constant 0 : index
    %174 = vector.load %arg8[%173, %c1_141, %c0_142] : memref<18x18x8xbf16, #tpu.memory_space<vmem>>, vector<8x16x8xbf16>
    %175 = vector.shape_cast %174 : vector<8x16x8xbf16> to vector<128x8xbf16>
    %c0_143 = arith.constant 0 : index
    %c56_144 = arith.constant 56 : index
    %176 = vector.load %arg10[%c0_143, %c56_144] : memref<128x72xbf16, #tpu.memory_space<vmem>>, vector<128x8xbf16>
    tpu.vector_store %arg10[%c0_143, %c56_144], %175 {strides = array<i32>} : memref<128x72xbf16, #tpu.memory_space<vmem>>, vector<128x8xbf16>,
    %c2_i32_145 = arith.constant 2 : i32
    %177 = arith.addi %136, %c2_i32_145 : i32
    %178 = arith.index_cast %177 : i32 to index
    %c2_146 = arith.constant 2 : index
    %c0_147 = arith.constant 0 : index
    %179 = vector.load %arg8[%178, %c2_146, %c0_147] : memref<18x18x8xbf16, #tpu.memory_space<vmem>>, vector<8x16x8xbf16>
    %180 = vector.shape_cast %179 : vector<8x16x8xbf16> to vector<128x8xbf16>
    %c0_148 = arith.constant 0 : index
    %c64_149 = arith.constant 64 : index
    %181 = vector.load %arg10[%c0_148, %c64_149] : memref<128x72xbf16, #tpu.memory_space<vmem>>, vector<128x8xbf16>
    tpu.vector_store %arg10[%c0_148, %c64_149], %180 {strides = array<i32>} : memref<128x72xbf16, #tpu.memory_space<vmem>>, vector<128x8xbf16>,
    %c0_150 = arith.constant 0 : index
    %c0_151 = arith.constant 0 : index
    %182 = vector.load %arg10[%c0_150, %c0_151] : memref<128x72xbf16, #tpu.memory_space<vmem>>, vector<128x72xbf16>
    %cst_152 = arith.constant dense<0.000000e+00> : vector<128x4xf32>
    %183 = tpu.matmul %182, %74, %cst_152 {dimension_numbers = #tpu.dot_dimension_numbers<[1], [0], [0], [1], [0, 0, 1, 1], [], []>} : vector<128x72xbf16>, vector<72x4xbf16>, vector<128x4xf32> -> vector<128x4xf32>
    %184 = arith.negf %183 : vector<128x4xf32>
    %185 = math.exp %184 : vector<128x4xf32>
    %cst_153 = arith.constant 1.000000e+00 : f32
    %186 = vector.broadcast %cst_153 : f32 to vector<128x4xf32>
    %187 = arith.addf %186, %185 : vector<128x4xf32>
    %188 = arith.divf %186, %187 : vector<128x4xf32>
    %189 = arith.mulf %183, %188 : vector<128x4xf32>
    %190 = arith.truncf %189 : vector<128x4xf32> to vector<128x4xbf16>
    %191 = vector.shape_cast %190 : vector<128x4xbf16> to vector<8x16x4xbf16>
    %c1_i32_154 = arith.constant 1 : i32
    %192 = arith.addi %136, %c1_i32_154 : i32
    %193 = arith.index_cast %192 : i32 to index
    %c1_155 = arith.constant 1 : index
    %c0_156 = arith.constant 0 : index
    %194 = vector.load %arg9[%193, %c1_155, %c0_156] : memref<18x18x4xbf16, #tpu.memory_space<vmem>>, vector<8x16x4xbf16>
    tpu.vector_store %arg9[%193, %c1_155, %c0_156], %191 {strides = array<i32>} : memref<18x18x4xbf16, #tpu.memory_space<vmem>>, vector<8x16x4xbf16>,
    %c2_i32_157 = arith.constant 2 : i32
    %c0_158 = arith.constant 0 : index
    %c0_159 = arith.constant 0 : index
    %195 = vector.load %arg6[%c0_158, %c0_159] : memref<44x128xbf16, #tpu.memory_space<vmem>>, vector<44x128xbf16>
    %c0_i32_160 = arith.constant 0 : i32
    %c8_i32_161 = arith.constant 8 : i32
    %196 = arith.muli %c0_i32_160, %c8_i32_161 : i32
    %197 = tpu.assume_multiple %196, 8 : i32
    %c0_i32_162 = arith.constant 0 : i32
    %198 = arith.addi %197, %c0_i32_162 : i32
    %199 = arith.index_cast %198 : i32 to index
    %c0_163 = arith.constant 0 : index
    %c0_164 = arith.constant 0 : index
    %200 = vector.load %arg9[%199, %c0_163, %c0_164] : memref<18x18x4xbf16, #tpu.memory_space<vmem>>, vector<8x16x4xbf16>
    %201 = vector.shape_cast %200 : vector<8x16x4xbf16> to vector<128x4xbf16>
    %c0_165 = arith.constant 0 : index
    %c0_166 = arith.constant 0 : index
    %202 = vector.load %arg11[%c0_165, %c0_166] : memref<128x44xbf16, #tpu.memory_space<vmem>>, vector<128x4xbf16>
    tpu.vector_store %arg11[%c0_165, %c0_166], %201 {strides = array<i32>} : memref<128x44xbf16, #tpu.memory_space<vmem>>, vector<128x4xbf16>,
    %c0_i32_167 = arith.constant 0 : i32
    %203 = arith.addi %197, %c0_i32_167 : i32
    %204 = arith.index_cast %203 : i32 to index
    %c1_168 = arith.constant 1 : index
    %c0_169 = arith.constant 0 : index
    %205 = vector.load %arg9[%204, %c1_168, %c0_169] : memref<18x18x4xbf16, #tpu.memory_space<vmem>>, vector<8x16x4xbf16>
    %206 = vector.shape_cast %205 : vector<8x16x4xbf16> to vector<128x4xbf16>
    %c0_170 = arith.constant 0 : index
    %c4_171 = arith.constant 4 : index
    %207 = vector.load %arg11[%c0_170, %c4_171] : memref<128x44xbf16, #tpu.memory_space<vmem>>, vector<128x4xbf16>
    tpu.vector_store %arg11[%c0_170, %c4_171], %206 {strides = array<i32>} : memref<128x44xbf16, #tpu.memory_space<vmem>>, vector<128x4xbf16>,
    %c0_i32_172 = arith.constant 0 : i32
    %208 = arith.addi %197, %c0_i32_172 : i32
    %209 = arith.index_cast %208 : i32 to index
    %c2_173 = arith.constant 2 : index
    %c0_174 = arith.constant 0 : index
    %210 = vector.load %arg9[%209, %c2_173, %c0_174] : memref<18x18x4xbf16, #tpu.memory_space<vmem>>, vector<8x16x4xbf16>
    %211 = vector.shape_cast %210 : vector<8x16x4xbf16> to vector<128x4xbf16>
    %c0_175 = arith.constant 0 : index
    %c8_176 = arith.constant 8 : index
    %212 = vector.load %arg11[%c0_175, %c8_176] : memref<128x44xbf16, #tpu.memory_space<vmem>>, vector<128x4xbf16>
    tpu.vector_store %arg11[%c0_175, %c8_176], %211 {strides = array<i32>} : memref<128x44xbf16, #tpu.memory_space<vmem>>, vector<128x4xbf16>,
    %c1_i32_177 = arith.constant 1 : i32
    %213 = arith.addi %197, %c1_i32_177 : i32
    %214 = arith.index_cast %213 : i32 to index
    %c0_178 = arith.constant 0 : index
    %c0_179 = arith.constant 0 : index
    %215 = vector.load %arg9[%214, %c0_178, %c0_179] : memref<18x18x4xbf16, #tpu.memory_space<vmem>>, vector<8x16x4xbf16>
    %216 = vector.shape_cast %215 : vector<8x16x4xbf16> to vector<128x4xbf16>
    %c0_180 = arith.constant 0 : index
    %c12 = arith.constant 12 : index
    %217 = vector.load %arg11[%c0_180, %c12] : memref<128x44xbf16, #tpu.memory_space<vmem>>, vector<128x4xbf16>
    tpu.vector_store %arg11[%c0_180, %c12], %216 {strides = array<i32>} : memref<128x44xbf16, #tpu.memory_space<vmem>>, vector<128x4xbf16>,
    %c1_i32_181 = arith.constant 1 : i32
    %218 = arith.addi %197, %c1_i32_181 : i32
    %219 = arith.index_cast %218 : i32 to index
    %c1_182 = arith.constant 1 : index
    %c0_183 = arith.constant 0 : index
    %220 = vector.load %arg9[%219, %c1_182, %c0_183] : memref<18x18x4xbf16, #tpu.memory_space<vmem>>, vector<8x16x4xbf16>
    %221 = vector.shape_cast %220 : vector<8x16x4xbf16> to vector<128x4xbf16>
    %c0_184 = arith.constant 0 : index
    %c16_185 = arith.constant 16 : index
    %222 = vector.load %arg11[%c0_184, %c16_185] : memref<128x44xbf16, #tpu.memory_space<vmem>>, vector<128x4xbf16>
    tpu.vector_store %arg11[%c0_184, %c16_185], %221 {strides = array<i32>} : memref<128x44xbf16, #tpu.memory_space<vmem>>, vector<128x4xbf16>,
    %c1_i32_186 = arith.constant 1 : i32
    %223 = arith.addi %197, %c1_i32_186 : i32
    %224 = arith.index_cast %223 : i32 to index
    %c2_187 = arith.constant 2 : index
    %c0_188 = arith.constant 0 : index
    %225 = vector.load %arg9[%224, %c2_187, %c0_188] : memref<18x18x4xbf16, #tpu.memory_space<vmem>>, vector<8x16x4xbf16>
    %226 = vector.shape_cast %225 : vector<8x16x4xbf16> to vector<128x4xbf16>
    %c0_189 = arith.constant 0 : index
    %c20 = arith.constant 20 : index
    %227 = vector.load %arg11[%c0_189, %c20] : memref<128x44xbf16, #tpu.memory_space<vmem>>, vector<128x4xbf16>
    tpu.vector_store %arg11[%c0_189, %c20], %226 {strides = array<i32>} : memref<128x44xbf16, #tpu.memory_space<vmem>>, vector<128x4xbf16>,
    %c2_i32_190 = arith.constant 2 : i32
    %228 = arith.addi %197, %c2_i32_190 : i32
    %229 = arith.index_cast %228 : i32 to index
    %c0_191 = arith.constant 0 : index
    %c0_192 = arith.constant 0 : index
    %230 = vector.load %arg9[%229, %c0_191, %c0_192] : memref<18x18x4xbf16, #tpu.memory_space<vmem>>, vector<8x16x4xbf16>
    %231 = vector.shape_cast %230 : vector<8x16x4xbf16> to vector<128x4xbf16>
    %c0_193 = arith.constant 0 : index
    %c24_194 = arith.constant 24 : index
    %232 = vector.load %arg11[%c0_193, %c24_194] : memref<128x44xbf16, #tpu.memory_space<vmem>>, vector<128x4xbf16>
    tpu.vector_store %arg11[%c0_193, %c24_194], %231 {strides = array<i32>} : memref<128x44xbf16, #tpu.memory_space<vmem>>, vector<128x4xbf16>,
    %c2_i32_195 = arith.constant 2 : i32
    %233 = arith.addi %197, %c2_i32_195 : i32
    %234 = arith.index_cast %233 : i32 to index
    %c1_196 = arith.constant 1 : index
    %c0_197 = arith.constant 0 : index
    %235 = vector.load %arg9[%234, %c1_196, %c0_197] : memref<18x18x4xbf16, #tpu.memory_space<vmem>>, vector<8x16x4xbf16>
    %236 = vector.shape_cast %235 : vector<8x16x4xbf16> to vector<128x4xbf16>
    %c0_198 = arith.constant 0 : index
    %c28 = arith.constant 28 : index
    %237 = vector.load %arg11[%c0_198, %c28] : memref<128x44xbf16, #tpu.memory_space<vmem>>, vector<128x4xbf16>
    tpu.vector_store %arg11[%c0_198, %c28], %236 {strides = array<i32>} : memref<128x44xbf16, #tpu.memory_space<vmem>>, vector<128x4xbf16>,
    %c2_i32_199 = arith.constant 2 : i32
    %238 = arith.addi %197, %c2_i32_199 : i32
    %239 = arith.index_cast %238 : i32 to index
    %c2_200 = arith.constant 2 : index
    %c0_201 = arith.constant 0 : index
    %240 = vector.load %arg9[%239, %c2_200, %c0_201] : memref<18x18x4xbf16, #tpu.memory_space<vmem>>, vector<8x16x4xbf16>
    %241 = vector.shape_cast %240 : vector<8x16x4xbf16> to vector<128x4xbf16>
    %c0_202 = arith.constant 0 : index
    %c32_203 = arith.constant 32 : index
    %242 = vector.load %arg11[%c0_202, %c32_203] : memref<128x44xbf16, #tpu.memory_space<vmem>>, vector<128x4xbf16>
    tpu.vector_store %arg11[%c0_202, %c32_203], %241 {strides = array<i32>} : memref<128x44xbf16, #tpu.memory_space<vmem>>, vector<128x4xbf16>,
    %c0_204 = arith.constant 0 : index
    %243 = arith.index_cast %197 : i32 to index
    %c0_205 = arith.constant 0 : index
    %c0_206 = arith.constant 0 : index
    %244 = vector.load %arg1[%c0_204, %243, %c0_205, %c0_206] : memref<1x16x16x4xf32, #tpu.memory_space<vmem>>, vector<1x8x16x4xf32>
    %245 = vector.shape_cast %244 : vector<1x8x16x4xf32> to vector<8x16x4xf32>
    %246 = arith.truncf %245 : vector<8x16x4xf32> to vector<8x16x4xbf16>
    %247 = vector.shape_cast %246 : vector<8x16x4xbf16> to vector<128x4xbf16>
    %c0_207 = arith.constant 0 : index
    %c36 = arith.constant 36 : index
    %248 = vector.load %arg11[%c0_207, %c36] : memref<128x44xbf16, #tpu.memory_space<vmem>>, vector<128x4xbf16>
    tpu.vector_store %arg11[%c0_207, %c36], %247 {strides = array<i32>} : memref<128x44xbf16, #tpu.memory_space<vmem>>, vector<128x4xbf16>,
    %c0_208 = arith.constant 0 : index
    %249 = arith.index_cast %197 : i32 to index
    %c0_209 = arith.constant 0 : index
    %c0_210 = arith.constant 0 : index
    %250 = vector.load %arg2[%c0_208, %249, %c0_209, %c0_210] : memref<1x16x16x4xf32, #tpu.memory_space<vmem>>, vector<1x8x16x4xf32>
    %251 = vector.shape_cast %250 : vector<1x8x16x4xf32> to vector<8x16x4xf32>
    %252 = arith.truncf %251 : vector<8x16x4xf32> to vector<8x16x4xbf16>
    %253 = vector.shape_cast %252 : vector<8x16x4xbf16> to vector<128x4xbf16>
    %c0_211 = arith.constant 0 : index
    %c40_212 = arith.constant 40 : index
    %254 = vector.load %arg11[%c0_211, %c40_212] : memref<128x44xbf16, #tpu.memory_space<vmem>>, vector<128x4xbf16>
    tpu.vector_store %arg11[%c0_211, %c40_212], %253 {strides = array<i32>} : memref<128x44xbf16, #tpu.memory_space<vmem>>, vector<128x4xbf16>,
    %c0_213 = arith.constant 0 : index
    %c0_214 = arith.constant 0 : index
    %255 = vector.load %arg11[%c0_213, %c0_214] : memref<128x44xbf16, #tpu.memory_space<vmem>>, vector<128x44xbf16>
    %cst_215 = arith.constant dense<0.000000e+00> : vector<128x128xf32>
    %256 = tpu.matmul %255, %195, %cst_215 {dimension_numbers = #tpu.dot_dimension_numbers<[1], [0], [0], [1], [0, 0, 1, 1], [], []>} : vector<128x44xbf16>, vector<44x128xbf16>, vector<128x128xf32> -> vector<128x128xf32>
    %257 = vector.shape_cast %256 : vector<128x128xf32> to vector<8x16x128xf32>
    %c0_216 = arith.constant 0 : index
    %258 = arith.index_cast %197 : i32 to index
    %c0_217 = arith.constant 0 : index
    %c0_218 = arith.constant 0 : index
    %259 = vector.load %arg7[%c0_216, %258, %c0_217, %c0_218] : memref<1x16x16x128xf32, #tpu.memory_space<vmem>>, vector<1x8x16x128xf32>
    %260 = vector.shape_cast %259 : vector<1x8x16x128xf32> to vector<8x16x128xf32>
    %261 = vector.shape_cast %257 : vector<8x16x128xf32> to vector<1x8x16x128xf32>
    tpu.vector_store %arg7[%c0_216, %258, %c0_217, %c0_218], %261 {strides = array<i32>} : memref<1x16x16x128xf32, #tpu.memory_space<vmem>>, vector<1x8x16x128xf32>,
    %c1_i32_219 = arith.constant 1 : i32
    %c8_i32_220 = arith.constant 8 : i32
    %262 = arith.muli %c1_i32_219, %c8_i32_220 : i32
    %263 = tpu.assume_multiple %262, 8 : i32
    %c0_i32_221 = arith.constant 0 : i32
    %264 = arith.addi %263, %c0_i32_221 : i32
    %265 = arith.index_cast %264 : i32 to index
    %c0_222 = arith.constant 0 : index
    %c0_223 = arith.constant 0 : index
    %266 = vector.load %arg9[%265, %c0_222, %c0_223] : memref<18x18x4xbf16, #tpu.memory_space<vmem>>, vector<8x16x4xbf16>
    %267 = vector.shape_cast %266 : vector<8x16x4xbf16> to vector<128x4xbf16>
    %c0_224 = arith.constant 0 : index
    %c0_225 = arith.constant 0 : index
    %268 = vector.load %arg11[%c0_224, %c0_225] : memref<128x44xbf16, #tpu.memory_space<vmem>>, vector<128x4xbf16>
    tpu.vector_store %arg11[%c0_224, %c0_225], %267 {strides = array<i32>} : memref<128x44xbf16, #tpu.memory_space<vmem>>, vector<128x4xbf16>,
    %c0_i32_226 = arith.constant 0 : i32
    %269 = arith.addi %263, %c0_i32_226 : i32
    %270 = arith.index_cast %269 : i32 to index
    %c1_227 = arith.constant 1 : index
    %c0_228 = arith.constant 0 : index
    %271 = vector.load %arg9[%270, %c1_227, %c0_228] : memref<18x18x4xbf16, #tpu.memory_space<vmem>>, vector<8x16x4xbf16>
    %272 = vector.shape_cast %271 : vector<8x16x4xbf16> to vector<128x4xbf16>
    %c0_229 = arith.constant 0 : index
    %c4_230 = arith.constant 4 : index
    %273 = vector.load %arg11[%c0_229, %c4_230] : memref<128x44xbf16, #tpu.memory_space<vmem>>, vector<128x4xbf16>
    tpu.vector_store %arg11[%c0_229, %c4_230], %272 {strides = array<i32>} : memref<128x44xbf16, #tpu.memory_space<vmem>>, vector<128x4xbf16>,
    %c0_i32_231 = arith.constant 0 : i32
    %274 = arith.addi %263, %c0_i32_231 : i32
    %275 = arith.index_cast %274 : i32 to index
    %c2_232 = arith.constant 2 : index
    %c0_233 = arith.constant 0 : index
    %276 = vector.load %arg9[%275, %c2_232, %c0_233] : memref<18x18x4xbf16, #tpu.memory_space<vmem>>, vector<8x16x4xbf16>
    %277 = vector.shape_cast %276 : vector<8x16x4xbf16> to vector<128x4xbf16>
    %c0_234 = arith.constant 0 : index
    %c8_235 = arith.constant 8 : index
    %278 = vector.load %arg11[%c0_234, %c8_235] : memref<128x44xbf16, #tpu.memory_space<vmem>>, vector<128x4xbf16>
    tpu.vector_store %arg11[%c0_234, %c8_235], %277 {strides = array<i32>} : memref<128x44xbf16, #tpu.memory_space<vmem>>, vector<128x4xbf16>,
    %c1_i32_236 = arith.constant 1 : i32
    %279 = arith.addi %263, %c1_i32_236 : i32
    %280 = arith.index_cast %279 : i32 to index
    %c0_237 = arith.constant 0 : index
    %c0_238 = arith.constant 0 : index
    %281 = vector.load %arg9[%280, %c0_237, %c0_238] : memref<18x18x4xbf16, #tpu.memory_space<vmem>>, vector<8x16x4xbf16>
    %282 = vector.shape_cast %281 : vector<8x16x4xbf16> to vector<128x4xbf16>
    %c0_239 = arith.constant 0 : index
    %c12_240 = arith.constant 12 : index
    %283 = vector.load %arg11[%c0_239, %c12_240] : memref<128x44xbf16, #tpu.memory_space<vmem>>, vector<128x4xbf16>
    tpu.vector_store %arg11[%c0_239, %c12_240], %282 {strides = array<i32>} : memref<128x44xbf16, #tpu.memory_space<vmem>>, vector<128x4xbf16>,
    %c1_i32_241 = arith.constant 1 : i32
    %284 = arith.addi %263, %c1_i32_241 : i32
    %285 = arith.index_cast %284 : i32 to index
    %c1_242 = arith.constant 1 : index
    %c0_243 = arith.constant 0 : index
    %286 = vector.load %arg9[%285, %c1_242, %c0_243] : memref<18x18x4xbf16, #tpu.memory_space<vmem>>, vector<8x16x4xbf16>
    %287 = vector.shape_cast %286 : vector<8x16x4xbf16> to vector<128x4xbf16>
    %c0_244 = arith.constant 0 : index
    %c16_245 = arith.constant 16 : index
    %288 = vector.load %arg11[%c0_244, %c16_245] : memref<128x44xbf16, #tpu.memory_space<vmem>>, vector<128x4xbf16>
    tpu.vector_store %arg11[%c0_244, %c16_245], %287 {strides = array<i32>} : memref<128x44xbf16, #tpu.memory_space<vmem>>, vector<128x4xbf16>,
    %c1_i32_246 = arith.constant 1 : i32
    %289 = arith.addi %263, %c1_i32_246 : i32
    %290 = arith.index_cast %289 : i32 to index
    %c2_247 = arith.constant 2 : index
    %c0_248 = arith.constant 0 : index
    %291 = vector.load %arg9[%290, %c2_247, %c0_248] : memref<18x18x4xbf16, #tpu.memory_space<vmem>>, vector<8x16x4xbf16>
    %292 = vector.shape_cast %291 : vector<8x16x4xbf16> to vector<128x4xbf16>
    %c0_249 = arith.constant 0 : index
    %c20_250 = arith.constant 20 : index
    %293 = vector.load %arg11[%c0_249, %c20_250] : memref<128x44xbf16, #tpu.memory_space<vmem>>, vector<128x4xbf16>
    tpu.vector_store %arg11[%c0_249, %c20_250], %292 {strides = array<i32>} : memref<128x44xbf16, #tpu.memory_space<vmem>>, vector<128x4xbf16>,
    %c2_i32_251 = arith.constant 2 : i32
    %294 = arith.addi %263, %c2_i32_251 : i32
    %295 = arith.index_cast %294 : i32 to index
    %c0_252 = arith.constant 0 : index
    %c0_253 = arith.constant 0 : index
    %296 = vector.load %arg9[%295, %c0_252, %c0_253] : memref<18x18x4xbf16, #tpu.memory_space<vmem>>, vector<8x16x4xbf16>
    %297 = vector.shape_cast %296 : vector<8x16x4xbf16> to vector<128x4xbf16>
    %c0_254 = arith.constant 0 : index
    %c24_255 = arith.constant 24 : index
    %298 = vector.load %arg11[%c0_254, %c24_255] : memref<128x44xbf16, #tpu.memory_space<vmem>>, vector<128x4xbf16>
    tpu.vector_store %arg11[%c0_254, %c24_255], %297 {strides = array<i32>} : memref<128x44xbf16, #tpu.memory_space<vmem>>, vector<128x4xbf16>,
    %c2_i32_256 = arith.constant 2 : i32
    %299 = arith.addi %263, %c2_i32_256 : i32
    %300 = arith.index_cast %299 : i32 to index
    %c1_257 = arith.constant 1 : index
    %c0_258 = arith.constant 0 : index
    %301 = vector.load %arg9[%300, %c1_257, %c0_258] : memref<18x18x4xbf16, #tpu.memory_space<vmem>>, vector<8x16x4xbf16>
    %302 = vector.shape_cast %301 : vector<8x16x4xbf16> to vector<128x4xbf16>
    %c0_259 = arith.constant 0 : index
    %c28_260 = arith.constant 28 : index
    %303 = vector.load %arg11[%c0_259, %c28_260] : memref<128x44xbf16, #tpu.memory_space<vmem>>, vector<128x4xbf16>
    tpu.vector_store %arg11[%c0_259, %c28_260], %302 {strides = array<i32>} : memref<128x44xbf16, #tpu.memory_space<vmem>>, vector<128x4xbf16>,
    %c2_i32_261 = arith.constant 2 : i32
    %304 = arith.addi %263, %c2_i32_261 : i32
    %305 = arith.index_cast %304 : i32 to index
    %c2_262 = arith.constant 2 : index
    %c0_263 = arith.constant 0 : index
    %306 = vector.load %arg9[%305, %c2_262, %c0_263] : memref<18x18x4xbf16, #tpu.memory_space<vmem>>, vector<8x16x4xbf16>
    %307 = vector.shape_cast %306 : vector<8x16x4xbf16> to vector<128x4xbf16>
    %c0_264 = arith.constant 0 : index
    %c32_265 = arith.constant 32 : index
    %308 = vector.load %arg11[%c0_264, %c32_265] : memref<128x44xbf16, #tpu.memory_space<vmem>>, vector<128x4xbf16>
    tpu.vector_store %arg11[%c0_264, %c32_265], %307 {strides = array<i32>} : memref<128x44xbf16, #tpu.memory_space<vmem>>, vector<128x4xbf16>,
    %c0_266 = arith.constant 0 : index
    %309 = arith.index_cast %263 : i32 to index
    %c0_267 = arith.constant 0 : index
    %c0_268 = arith.constant 0 : index
    %310 = vector.load %arg1[%c0_266, %309, %c0_267, %c0_268] : memref<1x16x16x4xf32, #tpu.memory_space<vmem>>, vector<1x8x16x4xf32>
    %311 = vector.shape_cast %310 : vector<1x8x16x4xf32> to vector<8x16x4xf32>
    %312 = arith.truncf %311 : vector<8x16x4xf32> to vector<8x16x4xbf16>
    %313 = vector.shape_cast %312 : vector<8x16x4xbf16> to vector<128x4xbf16>
    %c0_269 = arith.constant 0 : index
    %c36_270 = arith.constant 36 : index
    %314 = vector.load %arg11[%c0_269, %c36_270] : memref<128x44xbf16, #tpu.memory_space<vmem>>, vector<128x4xbf16>
    tpu.vector_store %arg11[%c0_269, %c36_270], %313 {strides = array<i32>} : memref<128x44xbf16, #tpu.memory_space<vmem>>, vector<128x4xbf16>,
    %c0_271 = arith.constant 0 : index
    %315 = arith.index_cast %263 : i32 to index
    %c0_272 = arith.constant 0 : index
    %c0_273 = arith.constant 0 : index
    %316 = vector.load %arg2[%c0_271, %315, %c0_272, %c0_273] : memref<1x16x16x4xf32, #tpu.memory_space<vmem>>, vector<1x8x16x4xf32>
    %317 = vector.shape_cast %316 : vector<1x8x16x4xf32> to vector<8x16x4xf32>
    %318 = arith.truncf %317 : vector<8x16x4xf32> to vector<8x16x4xbf16>
    %319 = vector.shape_cast %318 : vector<8x16x4xbf16> to vector<128x4xbf16>
    %c0_274 = arith.constant 0 : index
    %c40_275 = arith.constant 40 : index
    %320 = vector.load %arg11[%c0_274, %c40_275] : memref<128x44xbf16, #tpu.memory_space<vmem>>, vector<128x4xbf16>
    tpu.vector_store %arg11[%c0_274, %c40_275], %319 {strides = array<i32>} : memref<128x44xbf16, #tpu.memory_space<vmem>>, vector<128x4xbf16>,
    %c0_276 = arith.constant 0 : index
    %c0_277 = arith.constant 0 : index
    %321 = vector.load %arg11[%c0_276, %c0_277] : memref<128x44xbf16, #tpu.memory_space<vmem>>, vector<128x44xbf16>
    %cst_278 = arith.constant dense<0.000000e+00> : vector<128x128xf32>
    %322 = tpu.matmul %321, %195, %cst_278 {dimension_numbers = #tpu.dot_dimension_numbers<[1], [0], [0], [1], [0, 0, 1, 1], [], []>} : vector<128x44xbf16>, vector<44x128xbf16>, vector<128x128xf32> -> vector<128x128xf32>
    %323 = vector.shape_cast %322 : vector<128x128xf32> to vector<8x16x128xf32>
    %c0_279 = arith.constant 0 : index
    %324 = arith.index_cast %263 : i32 to index
    %c0_280 = arith.constant 0 : index
    %c0_281 = arith.constant 0 : index
    %325 = vector.load %arg7[%c0_279, %324, %c0_280, %c0_281] : memref<1x16x16x128xf32, #tpu.memory_space<vmem>>, vector<1x8x16x128xf32>
    %326 = vector.shape_cast %325 : vector<1x8x16x128xf32> to vector<8x16x128xf32>
    %327 = vector.shape_cast %323 : vector<8x16x128xf32> to vector<1x8x16x128xf32>
    tpu.vector_store %arg7[%c0_279, %324, %c0_280, %c0_281], %327 {strides = array<i32>} : memref<1x16x16x128xf32, #tpu.memory_space<vmem>>, vector<1x8x16x128xf32>,
    %c2_i32_282 = arith.constant 2 : i32
    return
  }
  func.func @transform_0(%arg0: i32) -> (i32, i32, i32, i32) {
    %c0_i32 = arith.constant 0 : i32
    %c0_i32_0 = arith.constant 0 : i32
    %c0_i32_1 = arith.constant 0 : i32
    %c0_i32_2 = arith.constant 0 : i32
    return %arg0, %c0_i32, %c0_i32_0, %c0_i32_1 : i32, i32, i32, i32
  }
  func.func @transform_1(%arg0: i32) -> (i32, i32, i32, i32) {
    %c0_i32 = arith.constant 0 : i32
    %c0_i32_0 = arith.constant 0 : i32
    %c0_i32_1 = arith.constant 0 : i32
    %c0_i32_2 = arith.constant 0 : i32
    return %arg0, %c0_i32, %c0_i32_0, %c0_i32_1 : i32, i32, i32, i32
  }
  func.func @transform_2(%arg0: i32) -> (i32, i32) {
    %c0_i32 = arith.constant 0 : i32
    %c0_i32_0 = arith.constant 0 : i32
    %c0_i32_1 = arith.constant 0 : i32
    return %c0_i32, %c0_i32_0 : i32, i32
  }
  func.func @transform_3(%arg0: i32) -> (i32, i32) {
    %c0_i32 = arith.constant 0 : i32
    %c0_i32_0 = arith.constant 0 : i32
    %c0_i32_1 = arith.constant 0 : i32
    return %c0_i32, %c0_i32_0 : i32, i32
  }
  func.func @transform_4(%arg0: i32) -> (i32, i32) {
    %c0_i32 = arith.constant 0 : i32
    %c0_i32_0 = arith.constant 0 : i32
    %c0_i32_1 = arith.constant 0 : i32
    return %c0_i32, %c0_i32_0 : i32, i32
  }
  func.func @transform_5(%arg0: i32) -> (i32, i32) {
    %c0_i32 = arith.constant 0 : i32
    %c0_i32_0 = arith.constant 0 : i32
    %c0_i32_1 = arith.constant 0 : i32
    return %c0_i32, %c0_i32_0 : i32, i32
  }
  func.func @transform_6(%arg0: i32) -> (i32, i32, i32, i32) {
    %c0_i32 = arith.constant 0 : i32
    %c0_i32_0 = arith.constant 0 : i32
    %c0_i32_1 = arith.constant 0 : i32
    %c0_i32_2 = arith.constant 0 : i32
    return %arg0, %c0_i32, %c0_i32_0, %c0_i32_1 : i32, i32, i32, i32
  }
}

</mosaic_0001>

<llo_original>
// kernel: upblock_forward.2
$region0: #{upblock_forward.2}
  #allocation0 [shape = 'u32[]', space=smem, size = 0x4, offset = 0x4, fixed_abs, tag = 'smem constant byte address 0x4 - core index']
  #allocation1 [shape = 'u32[144,128]{1,0:T(1,128)}', space=vmem, size = 0x12000, scoped, tag = 'internal scratch']
  #allocation2 [shape = 'bf16[18,18,8]{2,1,0:T(8,128)(2,1)}', space=vmem, size = 0x1b000, scoped, tag = 'scratch operand']
  #allocation3 [shape = 'bf16[18,18,4]{2,1,0:T(8,128)(2,1)}', space=vmem, size = 0x1b000, scoped, tag = 'scratch operand']
  #allocation4 [shape = 'bf16[128,72]{1,0:T(16,128)(2,1)}', space=vmem, size = 0x8000, scoped, tag = 'scratch operand']
  #allocation5 [shape = 'bf16[128,44]{1,0:T(16,128)(2,1)}', space=vmem, size = 0x8000, scoped, tag = 'scratch operand']
  %s0 = inlined_call_operand.hbm [shape: f32[2,16,16,4], index: 0, kind: input, shape index: {}]
  %s1 = inlined_call_operand.hbm [shape: f32[2,16,16,4], index: 1, kind: input, shape index: {}]
  %s2 = inlined_call_operand.hbm [shape: f32[1,8], index: 2, kind: input, shape index: {}]
  %s3 = inlined_call_operand.hbm [shape: f32[1,8], index: 3, kind: input, shape index: {}]
  %s4 = inlined_call_operand.hbm [shape: bf16[72,4], index: 4, kind: input, shape index: {}]
  %s5 = inlined_call_operand.hbm [shape: bf16[44,128], index: 5, kind: input, shape index: {}]
  %s6 = inlined_call_operand.hbm [shape: f32[2,16,16,128], index: 6, kind: output, shape index: {}]
  %s7 = sld [smem:[#allocation0]]
  $region81: #{upblock_forward.2} parent=0
    _
  %s9 = ssub.s32 1, %s7
  %s10 = scalar_select 0, %s9, %s7
  $region1: #{upblock_forward.2} parent=0
    #allocation6 [shape = 'u8[262144]{0}', space=vmem, size = 0x40000, scoped, tag = 'input window, operand 0']
    #allocation7 [shape = 's32[2]{0}', space=sflag, size = 0x8, scoped, tag = 'scoped memory for upblock_forward.2']
    #allocation8 [shape = 's32[2]{0}', space=sflag, size = 0x8, scoped, tag = 'scoped memory for upblock_forward.2']
    #allocation9 [shape = 'u8[262144]{0}', space=vmem, size = 0x40000, scoped, tag = 'input window, operand 1']
    #allocation10 [shape = 's32[2]{0}', space=sflag, size = 0x8, scoped, tag = 'scoped memory for upblock_forward.2']
    #allocation11 [shape = 'u8[512]{0}', space=vmem, size = 0x400, scoped, tag = 'input window, operand 2, single buffered']
    #allocation12 [shape = 'u8[512]{0}', space=vmem, size = 0x400, scoped, tag = 'input window, operand 3, single buffered']
    #allocation13 [shape = 's32[1]{0}', space=sflag, size = 0x4, scoped, tag = 'scoped memory for upblock_forward.2']
    #allocation14 [shape = 'u8[18432]{0}', space=vmem, size = 0x4800, scoped, tag = 'input window, operand 4, single buffered']
    #allocation15 [shape = 'u8[12288]{0}', space=vmem, size = 0x3000, scoped, tag = 'input window, operand 5, single buffered']
    #allocation16 [shape = 's32[1]{0}', space=sflag, size = 0x4, scoped, tag = 'scoped memory for upblock_forward.2']
    #allocation17 [shape = 'u8[262144]{0}', space=vmem, size = 0x40000, scoped, tag = 'output window, operand 0']
    %11 = vsyncpa [#allocation7], 0
    %s12 = scalar_lea.sflag [#allocation7], 1
    %13 = vsyncpa %s12, 0
    %14 = vsyncpa [#allocation10], 0
    %s15 = scalar_lea.sflag [#allocation10], 1
    %16 = vsyncpa %s15, 0
    %17 = vsyncpa [#allocation13], 0
    %18 = vsyncpa [#allocation16], 0
    %19 = vsyncpa [#allocation8], 0
    %s20 = scalar_lea.sflag [#allocation8], 1
    %21 = vsyncpa %s20, 0
    loop: start=0, step=1, limit=4
    $region2: #{upblock_forward.2} parent=1 // loop_pre_header
      _
    $region3: #{upblock_forward.2} parent=1 // loop_header
      %s23 = sphi 0, %s27
      %p24 = scmp.ge.s32.totalorder %s23, 4
      %s33 = sphi 0, %s35
      %s36 = sphi 0, %s33
      %s37 = sphi 0, %s36
      %s53 = sphi 0, %s37
      %s59 = sphi 0, %s61
      %s62 = sphi 0, %s59
      %s63 = sphi 0, %s62
      %s79 = sphi 0, %s63
      %s83 = sphi 0, %s83
      %s85 = sphi 0, %s83
      %s86 = sphi 0, %s85
      %s100 = sphi 0, %s86
      %s104 = sphi 0, %s104
      %s106 = sphi 0, %s104
      %s107 = sphi 0, %s106
      %s121 = sphi 0, %s107
      %s125 = sphi 0, %s125
      %s127 = sphi 0, %s125
      %s128 = sphi 0, %s127
      %s142 = sphi 0, %s128
      %s146 = sphi 0, %s146
      %s148 = sphi 0, %s146
      %s149 = sphi 0, %s148
      %s163 = sphi 0, %s149
      %s169 = sphi 0, %s171
      %s172 = sphi 0, %s169
      %s173 = sphi 0, %s172
      %s189 = sphi 0, %s173
    $region4: #{upblock_forward.2} parent=1 // loop_header_branch
      %26 = sbr.rel (%p24) target = $region8
    $region5: #{upblock_forward.2} parent=1 // loop_body
      %s28 = ssub.s32 %s23, 1
      %s29 = ssub.s32 %s23, 2
      %s30 = sadd.s32 %s23, 1
      %s31 = ssub.s32 %s23, %s30
      %p32 = scmp.eq.s32.totalorder %s31, 0
      %s34 = sadd.s32 %s33, 1
      %s35 = scalar_select %p32, %s33, %s34
      %p38 = pneg %p32
      %p39 = scmp.eq.s32.totalorder %s23, 1
      %p40 = por %p38, %p39
      %p41 = scmp.ne.s32.totalorder %s33, %s36
      %p42 = scmp.eq.s32.totalorder %s23, 0
      %p43 = por %p41, %p42
      %p44 = scmp.ne.s32.totalorder %s33, %s36
      %p45 = scmp.eq.s32.totalorder %s28, 1
      %p46 = por %p44, %p45
      %p47 = scmp.ne.s32.totalorder %s36, %s37
      %p48 = scmp.eq.s32.totalorder %s28, 0
      %p49 = por %p47, %p48
      %p50 = scmp.ne.s32.totalorder %s36, %s37
      %p51 = scmp.eq.s32.totalorder %s29, 1
      %p52 = por %p50, %p51
      %p54 = scmp.ne.s32.totalorder %s37, %s53
      %p55 = scmp.eq.s32.totalorder %s29, 0
      %p56 = por %p54, %p55
      %s57 = ssub.s32 %s23, %s30
      %p58 = scmp.eq.s32.totalorder %s57, 0
      %s60 = sadd.s32 %s59, 1
      %s61 = scalar_select %p58, %s59, %s60
      %p64 = pneg %p58
      %p65 = scmp.eq.s32.totalorder %s23, 1
      %p66 = por %p64, %p65
      %p67 = scmp.ne.s32.totalorder %s59, %s62
      %p68 = scmp.eq.s32.totalorder %s23, 0
      %p69 = por %p67, %p68
      %p70 = scmp.ne.s32.totalorder %s59, %s62
      %p71 = scmp.eq.s32.totalorder %s28, 1
      %p72 = por %p70, %p71
      %p73 = scmp.ne.s32.totalorder %s62, %s63
      %p74 = scmp.eq.s32.totalorder %s28, 0
      %p75 = por %p73, %p74
      %p76 = scmp.ne.s32.totalorder %s62, %s63
      %p77 = scmp.eq.s32.totalorder %s29, 1
      %p78 = por %p76, %p77
      %p80 = scmp.ne.s32.totalorder %s63, %s79
      %p81 = scmp.eq.s32.totalorder %s29, 0
      %p82 = por %p80, %p81
      %s84 = sadd.s32 %s83, 1
      %p87 = scmp.eq.s32.totalorder %s23, 1
      %p88 = scmp.ne.s32.totalorder %s83, %s85
      %p89 = scmp.eq.s32.totalorder %s23, 0
      %p90 = por %p88, %p89
      %p91 = scmp.ne.s32.totalorder %s83, %s85
      %p92 = scmp.eq.s32.totalorder %s28, 1
      %p93 = por %p91, %p92
      %p94 = scmp.ne.s32.totalorder %s85, %s86
      %p95 = scmp.eq.s32.totalorder %s28, 0
      %p96 = por %p94, %p95
      %p97 = scmp.ne.s32.totalorder %s85, %s86
      %p98 = scmp.eq.s32.totalorder %s29, 1
      %p99 = por %p97, %p98
      %p101 = scmp.ne.s32.totalorder %s86, %s100
      %p102 = scmp.eq.s32.totalorder %s29, 0
      %p103 = por %p101, %p102
      %s105 = sadd.s32 %s104, 1
      %p108 = scmp.eq.s32.totalorder %s23, 1
      %p109 = scmp.ne.s32.totalorder %s104, %s106
      %p110 = scmp.eq.s32.totalorder %s23, 0
      %p111 = por %p109, %p110
      %p112 = scmp.ne.s32.totalorder %s104, %s106
      %p113 = scmp.eq.s32.totalorder %s28, 1
      %p114 = por %p112, %p113
      %p115 = scmp.ne.s32.totalorder %s106, %s107
      %p116 = scmp.eq.s32.totalorder %s28, 0
      %p117 = por %p115, %p116
      %p118 = scmp.ne.s32.totalorder %s106, %s107
      %p119 = scmp.eq.s32.totalorder %s29, 1
      %p120 = por %p118, %p119
      %p122 = scmp.ne.s32.totalorder %s107, %s121
      %p123 = scmp.eq.s32.totalorder %s29, 0
      %p124 = por %p122, %p123
      %s126 = sadd.s32 %s125, 1
      %p129 = scmp.eq.s32.totalorder %s23, 1
      %p130 = scmp.ne.s32.totalorder %s125, %s127
      %p131 = scmp.eq.s32.totalorder %s23, 0
      %p132 = por %p130, %p131
      %p133 = scmp.ne.s32.totalorder %s125, %s127
      %p134 = scmp.eq.s32.totalorder %s28, 1
      %p135 = por %p133, %p134
      %p136 = scmp.ne.s32.totalorder %s127, %s128
      %p137 = scmp.eq.s32.totalorder %s28, 0
      %p138 = por %p136, %p137
      %p139 = scmp.ne.s32.totalorder %s127, %s128
      %p140 = scmp.eq.s32.totalorder %s29, 1
      %p141 = por %p139, %p140
      %p143 = scmp.ne.s32.totalorder %s128, %s142
      %p144 = scmp.eq.s32.totalorder %s29, 0
      %p145 = por %p143, %p144
      %s147 = sadd.s32 %s146, 1
      %p150 = scmp.eq.s32.totalorder %s23, 1
      %p151 = scmp.ne.s32.totalorder %s146, %s148
      %p152 = scmp.eq.s32.totalorder %s23, 0
      %p153 = por %p151, %p152
      %p154 = scmp.ne.s32.totalorder %s146, %s148
      %p155 = scmp.eq.s32.totalorder %s28, 1
      %p156 = por %p154, %p155
      %p157 = scmp.ne.s32.totalorder %s148, %s149
      %p158 = scmp.eq.s32.totalorder %s28, 0
      %p159 = por %p157, %p158
      %p160 = scmp.ne.s32.totalorder %s148, %s149
      %p161 = scmp.eq.s32.totalorder %s29, 1
      %p162 = por %p160, %p161
      %p164 = scmp.ne.s32.totalorder %s149, %s163
      %p165 = scmp.eq.s32.totalorder %s29, 0
      %p166 = por %p164, %p165
      %s167 = ssub.s32 %s23, %s30
      %p168 = scmp.eq.s32.totalorder %s167, 0
      %s170 = sadd.s32 %s169, 1
      %s171 = scalar_select %p168, %s169, %s170
      %p174 = pneg %p168
      %p175 = scmp.eq.s32.totalorder %s23, 1
      %p176 = por %p174, %p175
      %p177 = scmp.ne.s32.totalorder %s169, %s172
      %p178 = scmp.eq.s32.totalorder %s23, 0
      %p179 = por %p177, %p178
      %p180 = scmp.ne.s32.totalorder %s169, %s172
      %p181 = scmp.eq.s32.totalorder %s28, 1
      %p182 = por %p180, %p181
      %p183 = scmp.ne.s32.totalorder %s172, %s173
      %p184 = scmp.eq.s32.totalorder %s28, 0
      %p185 = por %p183, %p184
      %p186 = scmp.ne.s32.totalorder %s172, %s173
      %p187 = scmp.eq.s32.totalorder %s29, 1
      %p188 = por %p186, %p187
      %p190 = scmp.ne.s32.totalorder %s173, %s189
      %p191 = scmp.eq.s32.totalorder %s29, 0
      %p192 = por %p190, %p191
      %p193 = scmp.le.s32.totalorder 1, %s23
      %p194 = scmp.lt.s32.totalorder %s23, 3
      %p195 = pnand %p193, %p194
      %p196 = pneg %p195
      // Predicated region
      $region9: #{upblock_forward.2} parent=5 // pred_check
        _
      $region10: #{upblock_forward.2} parent=5 // pred_check_branch
        %198 = sbr.rel (%p195) target = $region12
      $region11: #{upblock_forward.2} parent=5 // pred_region
        %s199 = ssub.s32 %s23, 1
        // Predicated region
        $region13: #{upblock_forward.2} parent=11 // pred_check
          %p200 = pneg %p96
        $region14: #{upblock_forward.2} parent=11 // pred_check_branch
          %202 = sbr.rel (%p200) target = $region16
        $region15: #{upblock_forward.2} parent=11 // pred_region
          %s204 = ssub.s32 16, 16
          %205 = vsyncadd [#allocation10], %s204
          %s207 = sshll.u32 [#allocation11], 4
          %s208 = int_to_ptr.vmem [resolvable:$true] %s207
          %210 = dma.hbm_to_vmem [thread:$0]  %s2, 16, %s208, [#allocation10]
        $region16: #{upblock_forward.2} parent=11 // pred_fallthru
          _
        // Predicated region
        $region17: #{upblock_forward.2} parent=11 // pred_check
          %p211 = pneg %p117
        $region18: #{upblock_forward.2} parent=11 // pred_check_branch
          %213 = sbr.rel (%p211) target = $region20
        $region19: #{upblock_forward.2} parent=11 // pred_region
          %s215 = ssub.s32 16, 16
          %216 = vsyncadd [#allocation13], %s215
          %s218 = sshll.u32 [#allocation12], 4
          %s219 = int_to_ptr.vmem [resolvable:$true] %s218
          %221 = dma.hbm_to_vmem [thread:$0]  %s3, 16, %s219, [#allocation13]
        $region20: #{upblock_forward.2} parent=11 // pred_fallthru
          _
        // Predicated region
        $region21: #{upblock_forward.2} parent=11 // pred_check
          %p222 = pneg %p138
        $region22: #{upblock_forward.2} parent=11 // pred_check_branch
          %224 = sbr.rel (%p222) target = $region24
        $region23: #{upblock_forward.2} parent=11 // pred_region
          %s226 = ssub.s32 576, 576
          %227 = vsyncadd [#allocation13], %s226
          %s228 = sshll.u32 [#allocation14], 4
          %s229 = int_to_ptr.vmem [resolvable:$true] %s228
          %234 = dma.hbm_to_vmem [thread:$0]  %s4, 576, %s229, [#allocation13], 64, 64, 4
        $region24: #{upblock_forward.2} parent=11 // pred_fallthru
          _
        // Predicated region
        $region25: #{upblock_forward.2} parent=11 // pred_check
          %p235 = pneg %p159
        $region26: #{upblock_forward.2} parent=11 // pred_check_branch
          %237 = sbr.rel (%p235) target = $region28
        $region27: #{upblock_forward.2} parent=11 // pred_region
          %s239 = ssub.s32 384, 384
          %240 = vsyncadd [#allocation16], %s239
          %s241 = sshll.u32 [#allocation15], 4
          %s242 = int_to_ptr.vmem [resolvable:$true] %s241
          %247 = dma.hbm_to_vmem [thread:$0]  %s5, 384, %s242, [#allocation16], 64, 64, 4
        $region28: #{upblock_forward.2} parent=11 // pred_fallthru
          _
      $region12: #{upblock_forward.2} parent=5 // pred_fallthru
        _
      %p248 = scmp.lt.s32.totalorder %s23, 2
      // Predicated region
      $region29: #{upblock_forward.2} parent=5 // pred_check
        %p249 = pneg %p248
      $region30: #{upblock_forward.2} parent=5 // pred_check_branch
        %251 = sbr.rel (%p249) target = $region32
      $region31: #{upblock_forward.2} parent=5 // pred_region
        // Predicated region
        $region33: #{upblock_forward.2} parent=31 // pred_check
          %p252 = pneg %p43
        $region34: #{upblock_forward.2} parent=31 // pred_check_branch
          %254 = sbr.rel (%p252) target = $region36
        $region35: #{upblock_forward.2} parent=31 // pred_region
          %s255 = sand.u32 %s33, 1
          %s256 = scalar_lea.sflag [#allocation7], %s255
          %s257 = sand.u32 %s33, 1
          %s258 = smul.addr %s257, 256
          %s259 = scalar_lea.vmem [#allocation6], %s258
          %s261 = ssub.s32 4096, 4096
          %262 = vsyncadd %s256, %s261
          %s263 = smul.addr %s23, 32
          %s264 = smul.addr %s263, 128
          %s265 = scalar_lea.hbm %s0, %s264
          %s266 = sshll.u32 %s259, 4
          %s267 = int_to_ptr.vmem [resolvable:$true] %s266
          %272 = dma.hbm_to_vmem [thread:$0]  %s265, 4096, %s267, %s256, 128, 128, 8
        $region36: #{upblock_forward.2} parent=31 // pred_fallthru
          _
        // Predicated region
        $region37: #{upblock_forward.2} parent=31 // pred_check
          %p273 = pneg %p69
        $region38: #{upblock_forward.2} parent=31 // pred_check_branch
          %275 = sbr.rel (%p273) target = $region40
        $region39: #{upblock_forward.2} parent=31 // pred_region
          %s276 = sand.u32 %s23, 1
          %s277 = scalar_lea.sflag [#allocation10], %s276
          %s278 = sand.u32 %s59, 1
          %s279 = smul.addr %s278, 256
          %s280 = scalar_lea.vmem [#allocation9], %s279
          %s282 = ssub.s32 4096, 4096
          %283 = vsyncadd %s277, %s282
          %s284 = smul.addr %s23, 32
          %s285 = smul.addr %s284, 128
          %s286 = scalar_lea.hbm %s1, %s285
          %s287 = sshll.u32 %s280, 4
          %s288 = int_to_ptr.vmem [resolvable:$true] %s287
          %293 = dma.hbm_to_vmem [thread:$0]  %s286, 4096, %s288, %s277, 128, 128, 8
        $region40: #{upblock_forward.2} parent=31 // pred_fallthru
          _
      $region32: #{upblock_forward.2} parent=5 // pred_fallthru
        _
      %p294 = scmp.le.s32.totalorder 1, %s23
      %p295 = scmp.lt.s32.totalorder %s23, 3
      %p296 = pnand %p294, %p295
      %p297 = pneg %p296
      // Predicated region
      $region41: #{upblock_forward.2} parent=5 // pred_check
        _
      $region42: #{upblock_forward.2} parent=5 // pred_check_branch
        %299 = sbr.rel (%p296) target = $region44
      $region43: #{upblock_forward.2} parent=5 // pred_region
        %s300 = ssub.s32 %s23, 1
        %s301 = sand.u32 %s36, 1
        %s302 = scalar_lea.sflag [#allocation7], %s301
        %s303 = sand.u32 %s36, 1
        %s304 = smul.addr %s303, 256
        %s305 = scalar_lea.vmem [#allocation6], %s304
        // Predicated region
        $region45: #{upblock_forward.2} parent=43 // pred_check
          %p306 = pneg %p49
        $region46: #{upblock_forward.2} parent=43 // pred_check_branch
          %308 = sbr.rel (%p306) target = $region48
        $region47: #{upblock_forward.2} parent=43 // pred_region
          %309 = dma.done %s302, 4096
        $region48: #{upblock_forward.2} parent=43 // pred_fallthru
          _
        %s310 = sand.u32 %s28, 1
        %s311 = scalar_lea.sflag [#allocation10], %s310
        %s312 = sand.u32 %s62, 1
        %s313 = smul.addr %s312, 256
        %s314 = scalar_lea.vmem [#allocation9], %s313
        // Predicated region
        $region49: #{upblock_forward.2} parent=43 // pred_check
          %p315 = pneg %p75
        $region50: #{upblock_forward.2} parent=43 // pred_check_branch
          %317 = sbr.rel (%p315) target = $region52
        $region51: #{upblock_forward.2} parent=43 // pred_region
          %318 = dma.done %s311, 4096
        $region52: #{upblock_forward.2} parent=43 // pred_fallthru
          _
        // Predicated region
        $region53: #{upblock_forward.2} parent=43 // pred_check
          %p319 = pneg %p96
        $region54: #{upblock_forward.2} parent=43 // pred_check_branch
          %321 = sbr.rel (%p319) target = $region56
        $region55: #{upblock_forward.2} parent=43 // pred_region
          %322 = dma.done [#allocation10], 16
        $region56: #{upblock_forward.2} parent=43 // pred_fallthru
          _
        // Predicated region
        $region57: #{upblock_forward.2} parent=43 // pred_check
          %p323 = pneg %p117
        $region58: #{upblock_forward.2} parent=43 // pred_check_branch
          %325 = sbr.rel (%p323) target = $region60
        $region59: #{upblock_forward.2} parent=43 // pred_region
          %326 = dma.done [#allocation13], 16
        $region60: #{upblock_forward.2} parent=43 // pred_fallthru
          _
        // Predicated region
        $region61: #{upblock_forward.2} parent=43 // pred_check
          %p327 = pneg %p138
        $region62: #{upblock_forward.2} parent=43 // pred_check_branch
          %329 = sbr.rel (%p327) target = $region64
        $region63: #{upblock_forward.2} parent=43 // pred_region
          %330 = dma.done [#allocation13], 576
        $region64: #{upblock_forward.2} parent=43 // pred_fallthru
          _
        // Predicated region
        $region65: #{upblock_forward.2} parent=43 // pred_check
          %p331 = pneg %p159
        $region66: #{upblock_forward.2} parent=43 // pred_check_branch
          %333 = sbr.rel (%p331) target = $region68
        $region67: #{upblock_forward.2} parent=43 // pred_region
          %334 = dma.done [#allocation16], 384
        $region68: #{upblock_forward.2} parent=43 // pred_fallthru
          _
        %s335 = sand.u32 %s36, 1
        %s336 = scalar_lea.sflag [#allocation7], %s335
        %s337 = sand.u32 %s36, 1
        %s338 = smul.addr %s337, 256
        %s339 = scalar_lea.vmem [#allocation6], %s338
        %p340 = pneg %p49
        %p341 = pneg %p46
        %s342 = sand.u32 %s28, 1
        %s343 = scalar_lea.sflag [#allocation10], %s342
        %s344 = sand.u32 %s62, 1
        %s345 = smul.addr %s344, 256
        %s346 = scalar_lea.vmem [#allocation9], %s345
        %p347 = pneg %p75
        %p348 = pneg %p72
        %p349 = pneg %p96
        %p350 = pneg %p93
        %p351 = pneg %p117
        %p352 = pneg %p114
        %p353 = pneg %p138
        %p354 = pneg %p135
        %p355 = pneg %p159
        %p356 = pneg %p156
        %p357 = pneg %p185
        %p358 = pneg %p182
        %s359 = sand.u32 %s172, 1
        %s360 = scalar_lea.sflag [#allocation8], %s359
        %s361 = sand.u32 %s172, 1
        %s362 = smul.addr %s361, 256
        %s363 = scalar_lea.vmem [#allocation17], %s362
        %vm365 = vcmask 60416
        %366 = vst.msk [vmem:[#allocation2] sm:$0xf] %vm365, 0
        %367 = vst.msk [vmem:[#allocation2 + $0x4] sm:$0xf] %vm365, 0
        %vm368 = vcmask 57344
        %369 = vst.msk [vmem:[#allocation2 + $0x8] sm:$0x1] %vm368, 0
        %s370 = scalar_lea.vmem [#allocation2], 204
        %371 = vst.msk [vmem:[%s370] sm:$0xf] %vm365, 0
        %372 = vst.msk [vmem:[%s370 + $0x4] sm:$0xf] %vm365, 0
        %373 = vst.msk [vmem:[%s370 + $0x8] sm:$0x1] %vm368, 0
        %vm374 = vcmask 57344
        %vm375 = vsmask.f32 256
        %vm376 = vmand %vm374, %vm375
        %v377 = vld [vmem:[#allocation2] sm:$0x1]
        %v378 = vsel %vm376, 0, %v377
        %379 = vst [vmem:[#allocation2] sm:$0x1] %v378
        %v380 = vld [vmem:[#allocation2 + $0xc] sm:$0x1]
        %v381 = vsel %vm376, 0, %v380
        %382 = vst [vmem:[#allocation2 + $0xc] sm:$0x1] %v381
        %v383 = vld [vmem:[#allocation2 + $0x18] sm:$0x1]
        %v384 = vsel %vm376, 0, %v383
        %385 = vst [vmem:[#allocation2 + $0x18] sm:$0x1] %v384
        %v386 = vld [vmem:[#allocation2 + $0x24] sm:$0x1]
        %v387 = vsel %vm376, 0, %v386
        %388 = vst [vmem:[#allocation2 + $0x24] sm:$0x1] %v387
        %v389 = vld [vmem:[#allocation2 + $0x30] sm:$0x1]
        %v390 = vsel %vm376, 0, %v389
        %391 = vst [vmem:[#allocation2 + $0x30] sm:$0x1] %v390
        %v392 = vld [vmem:[#allocation2 + $0x3c] sm:$0x1]
        %v393 = vsel %vm376, 0, %v392
        %394 = vst [vmem:[#allocation2 + $0x3c] sm:$0x1] %v393
        %v395 = vld [vmem:[#allocation2 + $0x48] sm:$0x1]
        %v396 = vsel %vm376, 0, %v395
        %397 = vst [vmem:[#allocation2 + $0x48] sm:$0x1] %v396
        %v398 = vld [vmem:[#allocation2 + $0x54] sm:$0x1]
        %v399 = vsel %vm376, 0, %v398
        %400 = vst [vmem:[#allocation2 + $0x54] sm:$0x1] %v399
        %v401 = vld [vmem:[#allocation2 + $0x60] sm:$0x1]
        %v402 = vsel %vm376, 0, %v401
        %403 = vst [vmem:[#allocation2 + $0x60] sm:$0x1] %v402
        %v404 = vld [vmem:[#allocation2 + $0x6c] sm:$0x1]
        %v405 = vsel %vm376, 0, %v404
        %406 = vst [vmem:[#allocation2 + $0x6c] sm:$0x1] %v405
        %v407 = vld [vmem:[#allocation2 + $0x78] sm:$0x1]
        %v408 = vsel %vm376, 0, %v407
        %409 = vst [vmem:[#allocation2 + $0x78] sm:$0x1] %v408
        %v410 = vld [vmem:[#allocation2 + $0x84] sm:$0x1]
        %v411 = vsel %vm376, 0, %v410
        %412 = vst [vmem:[#allocation2 + $0x84] sm:$0x1] %v411
        %v413 = vld [vmem:[#allocation2 + $0x90] sm:$0x1]
        %v414 = vsel %vm376, 0, %v413
        %415 = vst [vmem:[#allocation2 + $0x90] sm:$0x1] %v414
        %v416 = vld [vmem:[#allocation2 + $0x9c] sm:$0x1]
        %v417 = vsel %vm376, 0, %v416
        %418 = vst [vmem:[#allocation2 + $0x9c] sm:$0x1] %v417
        %v419 = vld [vmem:[#allocation2 + $0xa8] sm:$0x1]
        %v420 = vsel %vm376, 0, %v419
        %421 = vst [vmem:[#allocation2 + $0xa8] sm:$0x1] %v420
        %v422 = vld [vmem:[#allocation2 + $0xb4] sm:$0x1]
        %v423 = vsel %vm376, 0, %v422
        %424 = vst [vmem:[#allocation2 + $0xb4] sm:$0x1] %v423
        %v425 = vld [vmem:[#allocation2 + $0xc0] sm:$0x1]
        %v426 = vsel %vm376, 0, %v425
        %427 = vst [vmem:[#allocation2 + $0xc0] sm:$0x1] %v426
        %v428 = vld [vmem:[#allocation2 + $0xcc] sm:$0x1]
        %v429 = vsel %vm376, 0, %v428
        %430 = vst [vmem:[#allocation2 + $0xcc] sm:$0x1] %v429
        %vm431 = vsmask.f32 7938
        %vm432 = vmand %vm374, %vm431
        %v433 = vld [vmem:[#allocation2 + $0x8] sm:$0x1]
        %v434 = vsel %vm432, 0, %v433
        %435 = vst [vmem:[#allocation2 + $0x8] sm:$0x1] %v434
        %v436 = vld [vmem:[#allocation2 + $0x14] sm:$0x1]
        %v437 = vsel %vm432, 0, %v436
        %438 = vst [vmem:[#allocation2 + $0x14] sm:$0x1] %v437
        %v439 = vld [vmem:[#allocation2 + $0x20] sm:$0x1]
        %v440 = vsel %vm432, 0, %v439
        %441 = vst [vmem:[#allocation2 + $0x20] sm:$0x1] %v440
        %v442 = vld [vmem:[#allocation2 + $0x2c] sm:$0x1]
        %v443 = vsel %vm432, 0, %v442
        %444 = vst [vmem:[#allocation2 + $0x2c] sm:$0x1] %v443
        %v445 = vld [vmem:[#allocation2 + $0x38] sm:$0x1]
        %v446 = vsel %vm432, 0, %v445
        %447 = vst [vmem:[#allocation2 + $0x38] sm:$0x1] %v446
        %v448 = vld [vmem:[#allocation2 + $0x44] sm:$0x1]
        %v449 = vsel %vm432, 0, %v448
        %450 = vst [vmem:[#allocation2 + $0x44] sm:$0x1] %v449
        %v451 = vld [vmem:[#allocation2 + $0x50] sm:$0x1]
        %v452 = vsel %vm432, 0, %v451
        %453 = vst [vmem:[#allocation2 + $0x50] sm:$0x1] %v452
        %v454 = vld [vmem:[#allocation2 + $0x5c] sm:$0x1]
        %v455 = vsel %vm432, 0, %v454
        %456 = vst [vmem:[#allocation2 + $0x5c] sm:$0x1] %v455
        %v457 = vld [vmem:[#allocation2 + $0x68] sm:$0x1]
        %v458 = vsel %vm432, 0, %v457
        %459 = vst [vmem:[#allocation2 + $0x68] sm:$0x1] %v458
        %v460 = vld [vmem:[#allocation2 + $0x74] sm:$0x1]
        %v461 = vsel %vm432, 0, %v460
        %462 = vst [vmem:[#allocation2 + $0x74] sm:$0x1] %v461
        %v463 = vld [vmem:[#allocation2 + $0x80] sm:$0x1]
        %v464 = vsel %vm432, 0, %v463
        %465 = vst [vmem:[#allocation2 + $0x80] sm:$0x1] %v464
        %v466 = vld [vmem:[#allocation2 + $0x8c] sm:$0x1]
        %v467 = vsel %vm432, 0, %v466
        %468 = vst [vmem:[#allocation2 + $0x8c] sm:$0x1] %v467
        %v469 = vld [vmem:[#allocation2 + $0x98] sm:$0x1]
        %v470 = vsel %vm432, 0, %v469
        %471 = vst [vmem:[#allocation2 + $0x98] sm:$0x1] %v470
        %v472 = vld [vmem:[#allocation2 + $0xa4] sm:$0x1]
        %v473 = vsel %vm432, 0, %v472
        %474 = vst [vmem:[#allocation2 + $0xa4] sm:$0x1] %v473
        %v475 = vld [vmem:[#allocation2 + $0xb0] sm:$0x1]
        %v476 = vsel %vm432, 0, %v475
        %477 = vst [vmem:[#allocation2 + $0xb0] sm:$0x1] %v476
        %v478 = vld [vmem:[#allocation2 + $0xbc] sm:$0x1]
        %v479 = vsel %vm432, 0, %v478
        %480 = vst [vmem:[#allocation2 + $0xbc] sm:$0x1] %v479
        %v481 = vld [vmem:[#allocation2 + $0xc8] sm:$0x1]
        %v482 = vsel %vm432, 0, %v481
        %483 = vst [vmem:[#allocation2 + $0xc8] sm:$0x1] %v482
        %v484 = vld [vmem:[#allocation2 + $0xd4] sm:$0x1]
        %v485 = vsel %vm432, 0, %v484
        %486 = vst [vmem:[#allocation2 + $0xd4] sm:$0x1] %v485
        %vm487 = vcmask 27648
        %488 = vst.msk [vmem:[#allocation3] sm:$0xf] %vm487, 0
        %489 = vst.msk [vmem:[#allocation3 + $0x4] sm:$0xf] %vm487, 0
        %vm490 = vcmask 24576
        %491 = vst.msk [vmem:[#allocation3 + $0x8] sm:$0x1] %vm490, 0
        %s492 = scalar_lea.vmem [#allocation3], 204
        %493 = vst.msk [vmem:[%s492] sm:$0xf] %vm487, 0
        %494 = vst.msk [vmem:[%s492 + $0x4] sm:$0xf] %vm487, 0
        %495 = vst.msk [vmem:[%s492 + $0x8] sm:$0x1] %vm490, 0
        %vm496 = vcmask 24576
        %vm497 = vmand %vm496, %vm375
        %v498 = vld [vmem:[#allocation3] sm:$0x1]
        %v499 = vsel %vm497, 0, %v498
        %500 = vst [vmem:[#allocation3] sm:$0x1] %v499
        %v501 = vld [vmem:[#allocation3 + $0xc] sm:$0x1]
        %v502 = vsel %vm497, 0, %v501
        %503 = vst [vmem:[#allocation3 + $0xc] sm:$0x1] %v502
        %v504 = vld [vmem:[#allocation3 + $0x18] sm:$0x1]
        %v505 = vsel %vm497, 0, %v504
        %506 = vst [vmem:[#allocation3 + $0x18] sm:$0x1] %v505
        %v507 = vld [vmem:[#allocation3 + $0x24] sm:$0x1]
        %v508 = vsel %vm497, 0, %v507
        %509 = vst [vmem:[#allocation3 + $0x24] sm:$0x1] %v508
        %v510 = vld [vmem:[#allocation3 + $0x30] sm:$0x1]
        %v511 = vsel %vm497, 0, %v510
        %512 = vst [vmem:[#allocation3 + $0x30] sm:$0x1] %v511
        %v513 = vld [vmem:[#allocation3 + $0x3c] sm:$0x1]
        %v514 = vsel %vm497, 0, %v513
        %515 = vst [vmem:[#allocation3 + $0x3c] sm:$0x1] %v514
        %v516 = vld [vmem:[#allocation3 + $0x48] sm:$0x1]
        %v517 = vsel %vm497, 0, %v516
        %518 = vst [vmem:[#allocation3 + $0x48] sm:$0x1] %v517
        %v519 = vld [vmem:[#allocation3 + $0x54] sm:$0x1]
        %v520 = vsel %vm497, 0, %v519
        %521 = vst [vmem:[#allocation3 + $0x54] sm:$0x1] %v520
        %v522 = vld [vmem:[#allocation3 + $0x60] sm:$0x1]
        %v523 = vsel %vm497, 0, %v522
        %524 = vst [vmem:[#allocation3 + $0x60] sm:$0x1] %v523
        %v525 = vld [vmem:[#allocation3 + $0x6c] sm:$0x1]
        %v526 = vsel %vm497, 0, %v525
        %527 = vst [vmem:[#allocation3 + $0x6c] sm:$0x1] %v526
        %v528 = vld [vmem:[#allocation3 + $0x78] sm:$0x1]
        %v529 = vsel %vm497, 0, %v528
        %530 = vst [vmem:[#allocation3 + $0x78] sm:$0x1] %v529
        %v531 = vld [vmem:[#allocation3 + $0x84] sm:$0x1]
        %v532 = vsel %vm497, 0, %v531
        %533 = vst [vmem:[#allocation3 + $0x84] sm:$0x1] %v532
        %v534 = vld [vmem:[#allocation3 + $0x90] sm:$0x1]
        %v535 = vsel %vm497, 0, %v534
        %536 = vst [vmem:[#allocation3 + $0x90] sm:$0x1] %v535
        %v537 = vld [vmem:[#allocation3 + $0x9c] sm:$0x1]
        %v538 = vsel %vm497, 0, %v537
        %539 = vst [vmem:[#allocation3 + $0x9c] sm:$0x1] %v538
        %v540 = vld [vmem:[#allocation3 + $0xa8] sm:$0x1]
        %v541 = vsel %vm497, 0, %v540
        %542 = vst [vmem:[#allocation3 + $0xa8] sm:$0x1] %v541
        %v543 = vld [vmem:[#allocation3 + $0xb4] sm:$0x1]
        %v544 = vsel %vm497, 0, %v543
        %545 = vst [vmem:[#allocation3 + $0xb4] sm:$0x1] %v544
        %v546 = vld [vmem:[#allocation3 + $0xc0] sm:$0x1]
        %v547 = vsel %vm497, 0, %v546
        %548 = vst [vmem:[#allocation3 + $0xc0] sm:$0x1] %v547
        %v549 = vld [vmem:[#allocation3 + $0xcc] sm:$0x1]
        %v550 = vsel %vm497, 0, %v549
        %551 = vst [vmem:[#allocation3 + $0xcc] sm:$0x1] %v550
        %vm552 = vmand %vm496, %vm431
        %v553 = vld [vmem:[#allocation3 + $0x8] sm:$0x1]
        %v554 = vsel %vm552, 0, %v553
        %555 = vst [vmem:[#allocation3 + $0x8] sm:$0x1] %v554
        %v556 = vld [vmem:[#allocation3 + $0x14] sm:$0x1]
        %v557 = vsel %vm552, 0, %v556
        %558 = vst [vmem:[#allocation3 + $0x14] sm:$0x1] %v557
        %v559 = vld [vmem:[#allocation3 + $0x20] sm:$0x1]
        %v560 = vsel %vm552, 0, %v559
        %561 = vst [vmem:[#allocation3 + $0x20] sm:$0x1] %v560
        %v562 = vld [vmem:[#allocation3 + $0x2c] sm:$0x1]
        %v563 = vsel %vm552, 0, %v562
        %564 = vst [vmem:[#allocation3 + $0x2c] sm:$0x1] %v563
        %v565 = vld [vmem:[#allocation3 + $0x38] sm:$0x1]
        %v566 = vsel %vm552, 0, %v565
        %567 = vst [vmem:[#allocation3 + $0x38] sm:$0x1] %v566
        %v568 = vld [vmem:[#allocation3 + $0x44] sm:$0x1]
        %v569 = vsel %vm552, 0, %v568
        %570 = vst [vmem:[#allocation3 + $0x44] sm:$0x1] %v569
        %v571 = vld [vmem:[#allocation3 + $0x50] sm:$0x1]
        %v572 = vsel %vm552, 0, %v571
        %573 = vst [vmem:[#allocation3 + $0x50] sm:$0x1] %v572
        %v574 = vld [vmem:[#allocation3 + $0x5c] sm:$0x1]
        %v575 = vsel %vm552, 0, %v574
        %576 = vst [vmem:[#allocation3 + $0x5c] sm:$0x1] %v575
        %v577 = vld [vmem:[#allocation3 + $0x68] sm:$0x1]
        %v578 = vsel %vm552, 0, %v577
        %579 = vst [vmem:[#allocation3 + $0x68] sm:$0x1] %v578
        %v580 = vld [vmem:[#allocation3 + $0x74] sm:$0x1]
        %v581 = vsel %vm552, 0, %v580
        %582 = vst [vmem:[#allocation3 + $0x74] sm:$0x1] %v581
        %v583 = vld [vmem:[#allocation3 + $0x80] sm:$0x1]
        %v584 = vsel %vm552, 0, %v583
        %585 = vst [vmem:[#allocation3 + $0x80] sm:$0x1] %v584
        %v586 = vld [vmem:[#allocation3 + $0x8c] sm:$0x1]
        %v587 = vsel %vm552, 0, %v586
        %588 = vst [vmem:[#allocation3 + $0x8c] sm:$0x1] %v587
        %v589 = vld [vmem:[#allocation3 + $0x98] sm:$0x1]
        %v590 = vsel %vm552, 0, %v589
        %591 = vst [vmem:[#allocation3 + $0x98] sm:$0x1] %v590
        %v592 = vld [vmem:[#allocation3 + $0xa4] sm:$0x1]
        %v593 = vsel %vm552, 0, %v592
        %594 = vst [vmem:[#allocation3 + $0xa4] sm:$0x1] %v593
        %v595 = vld [vmem:[#allocation3 + $0xb0] sm:$0x1]
        %v596 = vsel %vm552, 0, %v595
        %597 = vst [vmem:[#allocation3 + $0xb0] sm:$0x1] %v596
        %v598 = vld [vmem:[#allocation3 + $0xbc] sm:$0x1]
        %v599 = vsel %vm552, 0, %v598
        %600 = vst [vmem:[#allocation3 + $0xbc] sm:$0x1] %v599
        %v601 = vld [vmem:[#allocation3 + $0xc8] sm:$0x1]
        %v602 = vsel %vm552, 0, %v601
        %603 = vst [vmem:[#allocation3 + $0xc8] sm:$0x1] %v602
        %v604 = vld [vmem:[#allocation3 + $0xd4] sm:$0x1]
        %v605 = vsel %vm552, 0, %v604
        %606 = vst [vmem:[#allocation3 + $0xd4] sm:$0x1] %v605
        %v607 = vld [vmem:[#allocation11] sm:$0x1]
        %v608 = vld [vmem:[#allocation12] sm:$0x1]
        %s609 = smul.u32 0, 16
        %s610 = scalar_lea.vmem %s305, %s609 [#allocation6]
        %v611 = vld [vmem:[%s610] sm:$0xff]
        %v612 = vld [vmem:[%s610 + $0x8] sm:$0xff]
        %v613 = vld [vmem:[%s610 + $0x10] sm:$0xff]
        %v614 = vld [vmem:[%s610 + $0x18] sm:$0xff]
        %v615 = vld [vmem:[%s610 + $0x20] sm:$0xff]
        %v616 = vld [vmem:[%s610 + $0x28] sm:$0xff]
        %v617 = vld [vmem:[%s610 + $0x30] sm:$0xff]
        %v618 = vld [vmem:[%s610 + $0x38] sm:$0xff]
        %v619 = vld [vmem:[%s610 + $0x40] sm:$0xff]
        %v620 = vld [vmem:[%s610 + $0x48] sm:$0xff]
        %v621 = vld [vmem:[%s610 + $0x50] sm:$0xff]
        %v622 = vld [vmem:[%s610 + $0x58] sm:$0xff]
        %v623 = vld [vmem:[%s610 + $0x60] sm:$0xff]
        %v624 = vld [vmem:[%s610 + $0x68] sm:$0xff]
        %v625 = vld [vmem:[%s610 + $0x70] sm:$0xff]
        %v626 = vld [vmem:[%s610 + $0x78] sm:$0xff]
        %s627 = scalar_lea.vmem %s314, %s609 [#allocation9]
        %v628 = vld [vmem:[%s627] sm:$0xff]
        %v629 = vld [vmem:[%s627 + $0x8] sm:$0xff]
        %v630 = vld [vmem:[%s627 + $0x10] sm:$0xff]
        %v631 = vld [vmem:[%s627 + $0x18] sm:$0xff]
        %v632 = vld [vmem:[%s627 + $0x20] sm:$0xff]
        %v633 = vld [vmem:[%s627 + $0x28] sm:$0xff]
        %v634 = vld [vmem:[%s627 + $0x30] sm:$0xff]
        %v635 = vld [vmem:[%s627 + $0x38] sm:$0xff]
        %v636 = vld [vmem:[%s627 + $0x40] sm:$0xff]
        %v637 = vld [vmem:[%s627 + $0x48] sm:$0xff]
        %v638 = vld [vmem:[%s627 + $0x50] sm:$0xff]
        %v639 = vld [vmem:[%s627 + $0x58] sm:$0xff]
        %v640 = vld [vmem:[%s627 + $0x60] sm:$0xff]
        %v641 = vld [vmem:[%s627 + $0x68] sm:$0xff]
        %v642 = vld [vmem:[%s627 + $0x70] sm:$0xff]
        %v643 = vld [vmem:[%s627 + $0x78] sm:$0xff]
        %v645 = vlaneseq
        %v646 = vshrl.u32 %v645, 7
        %v647 = vsub.s32 0, %v646
        %v648 = vrot.slane %v607, %v647
        %v650 = vmul.f32 %v611, %v648
        %v651 = vmul.f32 %v612, %v648
        %v652 = vmul.f32 %v613, %v648
        %v653 = vmul.f32 %v614, %v648
        %v654 = vmul.f32 %v615, %v648
        %v655 = vmul.f32 %v616, %v648
        %v656 = vmul.f32 %v617, %v648
        %v657 = vmul.f32 %v618, %v648
        %v658 = vmul.f32 %v619, %v648
        %v659 = vmul.f32 %v620, %v648
        %v660 = vmul.f32 %v621, %v648
        %v661 = vmul.f32 %v622, %v648
        %v662 = vmul.f32 %v623, %v648
        %v663 = vmul.f32 %v624, %v648
        %v664 = vmul.f32 %v625, %v648
        %v665 = vmul.f32 %v626, %v648
        %v667 = vlaneseq
        %v668 = vshrl.u32 %v667, 7
        %v669 = vsub.s32 0, %v668
        %v670 = vrot.slane %v608, %v669
        %v672 = vadd.f32 %v650, %v670
        %v673 = vadd.f32 %v651, %v670
        %v674 = vadd.f32 %v652, %v670
        %v675 = vadd.f32 %v653, %v670
        %v676 = vadd.f32 %v654, %v670
        %v677 = vadd.f32 %v655, %v670
        %v678 = vadd.f32 %v656, %v670
        %v679 = vadd.f32 %v657, %v670
        %v680 = vadd.f32 %v658, %v670
        %v681 = vadd.f32 %v659, %v670
        %v682 = vadd.f32 %v660, %v670
        %v683 = vadd.f32 %v661, %v670
        %v684 = vadd.f32 %v662, %v670
        %v685 = vadd.f32 %v663, %v670
        %v686 = vadd.f32 %v664, %v670
        %v687 = vadd.f32 %v665, %v670
        %v688 = vpack.c.bf16 %v673, %v672
        %v689 = vpack.c.bf16 %v675, %v674
        %v690 = vpack.c.bf16 %v677, %v676
        %v691 = vpack.c.bf16 %v679, %v678
        %v692 = vpack.c.bf16 %v681, %v680
        %v693 = vpack.c.bf16 %v683, %v682
        %v694 = vpack.c.bf16 %v685, %v684
        %v695 = vpack.c.bf16 %v687, %v686
        %s696 = sadd.s32 0, 1
        %v705 = vunpack.c.l.b16 %v688
        %v706 = vunpack.c.h.b16 %v688
        %v707 = vunpack.c.l.b16 %v689
        %v708 = vunpack.c.h.b16 %v689
        %v709 = vunpack.c.l.b16 %v690
        %v710 = vunpack.c.h.b16 %v690
        %v711 = vunpack.c.l.b16 %v691
        %v712 = vunpack.c.h.b16 %v691
        %v713 = vunpack.c.l.b16 %v692
        %v714 = vunpack.c.h.b16 %v692
        %v715 = vunpack.c.l.b16 %v693
        %v716 = vunpack.c.h.b16 %v693
        %v717 = vunpack.c.l.b16 %v694
        %v718 = vunpack.c.h.b16 %v694
        %v719 = vunpack.c.l.b16 %v695
        %v720 = vunpack.c.h.b16 %v695
        %v721 = vpack.c.b16 %v705, %v705
        %v722 = vpack.c.b16 %v706, %v706
        %v723 = vpack.c.b16 %v707, %v707
        %v724 = vpack.c.b16 %v708, %v708
        %v725 = vpack.c.b16 %v709, %v709
        %v726 = vpack.c.b16 %v710, %v710
        %v727 = vpack.c.b16 %v711, %v711
        %v728 = vpack.c.b16 %v712, %v712
        %v729 = vpack.c.b16 %v713, %v713
        %v730 = vpack.c.b16 %v714, %v714
        %v731 = vpack.c.b16 %v715, %v715
        %v732 = vpack.c.b16 %v716, %v716
        %v733 = vpack.c.b16 %v717, %v717
        %v734 = vpack.c.b16 %v718, %v718
        %v735 = vpack.c.b16 %v719, %v719
        %v736 = vpack.c.b16 %v720, %v720
        %vm737 = vsmask.f32 4368
        %vm738 = vmor %vm375, %vm737
        %v740 = vshrl.u32 %v721, 16
        %v742 = vrot.slane %v740, 7
        %v743 = vshll.u32 %v721, 16
        %v745 = vor.u32 %v742, %v743
        %v746 = vrot.slane %v742, 4
        %v748 = vshrl.u32 %v722, 16
        %v750 = vrot.slane %v748, 7
        %v751 = vshll.u32 %v722, 16
        %v753 = vor.u32 %v750, %v751
        %v754 = vsel %vm738, %v746, %v753
        %v755 = vrot.slane %v750, 4
        %v757 = vshrl.u32 %v723, 16
        %v759 = vrot.slane %v757, 7
        %v760 = vshll.u32 %v723, 16
        %v762 = vor.u32 %v759, %v760
        %v763 = vrot.slane %v759, 4
        %v765 = vshrl.u32 %v724, 16
        %v767 = vrot.slane %v765, 7
        %v768 = vshll.u32 %v724, 16
        %v770 = vor.u32 %v767, %v768
        %v771 = vsel %vm738, %v763, %v770
        %v772 = vrot.slane %v767, 4
        %v774 = vshrl.u32 %v725, 16
        %v776 = vrot.slane %v774, 7
        %v777 = vshll.u32 %v725, 16
        %v779 = vor.u32 %v776, %v777
        %v780 = vrot.slane %v776, 4
        %v782 = vshrl.u32 %v726, 16
        %v784 = vrot.slane %v782, 7
        %v785 = vshll.u32 %v726, 16
        %v787 = vor.u32 %v784, %v785
        %v788 = vsel %vm738, %v780, %v787
        %v789 = vrot.slane %v784, 4
        %v791 = vshrl.u32 %v727, 16
        %v793 = vrot.slane %v791, 7
        %v794 = vshll.u32 %v727, 16
        %v796 = vor.u32 %v793, %v794
        %v797 = vrot.slane %v793, 4
        %v799 = vshrl.u32 %v728, 16
        %v801 = vrot.slane %v799, 7
        %v802 = vshll.u32 %v728, 16
        %v804 = vor.u32 %v801, %v802
        %v805 = vsel %vm738, %v797, %v804
        %v806 = vrot.slane %v801, 4
        %v808 = vshrl.u32 %v729, 16
        %v810 = vrot.slane %v808, 7
        %v811 = vshll.u32 %v729, 16
        %v813 = vor.u32 %v810, %v811
        %v814 = vrot.slane %v810, 4
        %v816 = vshrl.u32 %v730, 16
        %v818 = vrot.slane %v816, 7
        %v819 = vshll.u32 %v730, 16
        %v821 = vor.u32 %v818, %v819
        %v822 = vsel %vm738, %v814, %v821
        %v823 = vrot.slane %v818, 4
        %v825 = vshrl.u32 %v731, 16
        %v827 = vrot.slane %v825, 7
        %v828 = vshll.u32 %v731, 16
        %v830 = vor.u32 %v827, %v828
        %v831 = vrot.slane %v827, 4
        %v833 = vshrl.u32 %v732, 16
        %v835 = vrot.slane %v833, 7
        %v836 = vshll.u32 %v732, 16
        %v838 = vor.u32 %v835, %v836
        %v839 = vsel %vm738, %v831, %v838
        %v840 = vrot.slane %v835, 4
        %v842 = vshrl.u32 %v733, 16
        %v844 = vrot.slane %v842, 7
        %v845 = vshll.u32 %v733, 16
        %v847 = vor.u32 %v844, %v845
        %v848 = vrot.slane %v844, 4
        %v850 = vshrl.u32 %v734, 16
        %v852 = vrot.slane %v850, 7
        %v853 = vshll.u32 %v734, 16
        %v855 = vor.u32 %v852, %v853
        %v856 = vsel %vm738, %v848, %v855
        %v857 = vrot.slane %v852, 4
        %v859 = vshrl.u32 %v735, 16
        %v861 = vrot.slane %v859, 7
        %v862 = vshll.u32 %v735, 16
        %v864 = vor.u32 %v861, %v862
        %v865 = vrot.slane %v861, 4
        %v867 = vshrl.u32 %v736, 16
        %v869 = vrot.slane %v867, 7
        %v870 = vshll.u32 %v736, 16
        %v872 = vor.u32 %v869, %v870
        %v873 = vsel %vm738, %v865, %v872
        %v874 = vrot.slane %v869, 4
        %s899 = smul.u32 %s696, 3
        %s900 = smul.addr %s899, 4
        %s901 = scalar_lea.vmem [#allocation2], %s900
        %vm902 = vcmask 27648
        %vm903 = vmand %vm902, %vm431
        %v904 = vld [vmem:[%s901] sm:$0xf]
        %v905 = vsel %vm903, %v745, %v904
        %906 = vst [vmem:[%s901] sm:$0xf] %v905
        %907 = vst.msk [vmem:[%s901 + $0x4] sm:$0xf] %vm487, %v754
        %v908 = vld [vmem:[%s901 + $0x8] sm:$0x1]
        %v909 = vsel %vm497, %v755, %v908
        %910 = vst [vmem:[%s901 + $0x8] sm:$0x1] %v909
        %v911 = vld [vmem:[%s901 + $0xc] sm:$0xf]
        %v912 = vsel %vm903, %v762, %v911
        %913 = vst [vmem:[%s901 + $0xc] sm:$0xf] %v912
        %914 = vst.msk [vmem:[%s901 + $0x10] sm:$0xf] %vm487, %v771
        %v915 = vld [vmem:[%s901 + $0x14] sm:$0x1]
        %v916 = vsel %vm497, %v772, %v915
        %917 = vst [vmem:[%s901 + $0x14] sm:$0x1] %v916
        %v918 = vld [vmem:[%s901 + $0x18] sm:$0xf]
        %v919 = vsel %vm903, %v779, %v918
        %920 = vst [vmem:[%s901 + $0x18] sm:$0xf] %v919
        %921 = vst.msk [vmem:[%s901 + $0x1c] sm:$0xf] %vm487, %v788
        %v922 = vld [vmem:[%s901 + $0x20] sm:$0x1]
        %v923 = vsel %vm497, %v789, %v922
        %924 = vst [vmem:[%s901 + $0x20] sm:$0x1] %v923
        %v925 = vld [vmem:[%s901 + $0x24] sm:$0xf]
        %v926 = vsel %vm903, %v796, %v925
        %927 = vst [vmem:[%s901 + $0x24] sm:$0xf] %v926
        %928 = vst.msk [vmem:[%s901 + $0x28] sm:$0xf] %vm487, %v805
        %v929 = vld [vmem:[%s901 + $0x2c] sm:$0x1]
        %v930 = vsel %vm497, %v806, %v929
        %931 = vst [vmem:[%s901 + $0x2c] sm:$0x1] %v930
        %v932 = vld [vmem:[%s901 + $0x30] sm:$0xf]
        %v933 = vsel %vm903, %v813, %v932
        %934 = vst [vmem:[%s901 + $0x30] sm:$0xf] %v933
        %935 = vst.msk [vmem:[%s901 + $0x34] sm:$0xf] %vm487, %v822
        %v936 = vld [vmem:[%s901 + $0x38] sm:$0x1]
        %v937 = vsel %vm497, %v823, %v936
        %938 = vst [vmem:[%s901 + $0x38] sm:$0x1] %v937
        %v939 = vld [vmem:[%s901 + $0x3c] sm:$0xf]
        %v940 = vsel %vm903, %v830, %v939
        %941 = vst [vmem:[%s901 + $0x3c] sm:$0xf] %v940
        %942 = vst.msk [vmem:[%s901 + $0x40] sm:$0xf] %vm487, %v839
        %v943 = vld [vmem:[%s901 + $0x44] sm:$0x1]
        %v944 = vsel %vm497, %v840, %v943
        %945 = vst [vmem:[%s901 + $0x44] sm:$0x1] %v944
        %v946 = vld [vmem:[%s901 + $0x48] sm:$0xf]
        %v947 = vsel %vm903, %v847, %v946
        %948 = vst [vmem:[%s901 + $0x48] sm:$0xf] %v947
        %949 = vst.msk [vmem:[%s901 + $0x4c] sm:$0xf] %vm487, %v856
        %v950 = vld [vmem:[%s901 + $0x50] sm:$0x1]
        %v951 = vsel %vm497, %v857, %v950
        %952 = vst [vmem:[%s901 + $0x50] sm:$0x1] %v951
        %v953 = vld [vmem:[%s901 + $0x54] sm:$0xf]
        %v954 = vsel %vm903, %v864, %v953
        %955 = vst [vmem:[%s901 + $0x54] sm:$0xf] %v954
        %956 = vst.msk [vmem:[%s901 + $0x58] sm:$0xf] %vm487, %v873
        %v957 = vld [vmem:[%s901 + $0x5c] sm:$0x1]
        %v958 = vsel %vm497, %v874, %v957
        %959 = vst [vmem:[%s901 + $0x5c] sm:$0x1] %v958
        %960 = vrot.lane.b32.xlu0 %v648, 124
        %v961 = vpop.permute.xlu0 %960
        %v963 = vmul.f32 %v628, %v961
        %v964 = vmul.f32 %v629, %v961
        %v965 = vmul.f32 %v630, %v961
        %v966 = vmul.f32 %v631, %v961
        %v967 = vmul.f32 %v632, %v961
        %v968 = vmul.f32 %v633, %v961
        %v969 = vmul.f32 %v634, %v961
        %v970 = vmul.f32 %v635, %v961
        %v971 = vmul.f32 %v636, %v961
        %v972 = vmul.f32 %v637, %v961
        %v973 = vmul.f32 %v638, %v961
        %v974 = vmul.f32 %v639, %v961
        %v975 = vmul.f32 %v640, %v961
        %v976 = vmul.f32 %v641, %v961
        %v977 = vmul.f32 %v642, %v961
        %v978 = vmul.f32 %v643, %v961
        %979 = vrot.lane.b32.xlu0 %v670, 124
        %v980 = vpop.permute.xlu0 %979
        %v982 = vadd.f32 %v963, %v980
        %v983 = vadd.f32 %v964, %v980
        %v984 = vadd.f32 %v965, %v980
        %v985 = vadd.f32 %v966, %v980
        %v986 = vadd.f32 %v967, %v980
        %v987 = vadd.f32 %v968, %v980
        %v988 = vadd.f32 %v969, %v980
        %v989 = vadd.f32 %v970, %v980
        %v990 = vadd.f32 %v971, %v980
        %v991 = vadd.f32 %v972, %v980
        %v992 = vadd.f32 %v973, %v980
        %v993 = vadd.f32 %v974, %v980
        %v994 = vadd.f32 %v975, %v980
        %v995 = vadd.f32 %v976, %v980
        %v996 = vadd.f32 %v977, %v980
        %v997 = vadd.f32 %v978, %v980
        %v998 = vpack.c.bf16 %v983, %v982
        %v999 = vpack.c.bf16 %v985, %v984
        %v1000 = vpack.c.bf16 %v987, %v986
        %v1001 = vpack.c.bf16 %v989, %v988
        %v1002 = vpack.c.bf16 %v991, %v990
        %v1003 = vpack.c.bf16 %v993, %v992
        %v1004 = vpack.c.bf16 %v995, %v994
        %v1005 = vpack.c.bf16 %v997, %v996
        %v1014 = vunpack.c.l.b16 %v998
        %v1015 = vunpack.c.h.b16 %v998
        %v1016 = vunpack.c.l.b16 %v999
        %v1017 = vunpack.c.h.b16 %v999
        %v1018 = vunpack.c.l.b16 %v1000
        %v1019 = vunpack.c.h.b16 %v1000
        %v1020 = vunpack.c.l.b16 %v1001
        %v1021 = vunpack.c.h.b16 %v1001
        %v1022 = vunpack.c.l.b16 %v1002
        %v1023 = vunpack.c.h.b16 %v1002
        %v1024 = vunpack.c.l.b16 %v1003
        %v1025 = vunpack.c.h.b16 %v1003
        %v1026 = vunpack.c.l.b16 %v1004
        %v1027 = vunpack.c.h.b16 %v1004
        %v1028 = vunpack.c.l.b16 %v1005
        %v1029 = vunpack.c.h.b16 %v1005
        %v1030 = vpack.c.b16 %v1014, %v1014
        %v1031 = vpack.c.b16 %v1015, %v1015
        %v1032 = vpack.c.b16 %v1016, %v1016
        %v1033 = vpack.c.b16 %v1017, %v1017
        %v1034 = vpack.c.b16 %v1018, %v1018
        %v1035 = vpack.c.b16 %v1019, %v1019
        %v1036 = vpack.c.b16 %v1020, %v1020
        %v1037 = vpack.c.b16 %v1021, %v1021
        %v1038 = vpack.c.b16 %v1022, %v1022
        %v1039 = vpack.c.b16 %v1023, %v1023
        %v1040 = vpack.c.b16 %v1024, %v1024
        %v1041 = vpack.c.b16 %v1025, %v1025
        %v1042 = vpack.c.b16 %v1026, %v1026
        %v1043 = vpack.c.b16 %v1027, %v1027
        %v1044 = vpack.c.b16 %v1028, %v1028
        %v1045 = vpack.c.b16 %v1029, %v1029
        %v1047 = vshrl.u32 %v1030, 16
        %v1049 = vrot.slane %v1047, 7
        %v1050 = vshll.u32 %v1030, 16
        %v1052 = vor.u32 %v1049, %v1050
        %v1053 = vrot.slane %v1049, 4
        %v1055 = vshrl.u32 %v1031, 16
        %v1057 = vrot.slane %v1055, 7
        %v1058 = vshll.u32 %v1031, 16
        %v1060 = vor.u32 %v1057, %v1058
        %v1061 = vsel %vm738, %v1053, %v1060
        %v1062 = vrot.slane %v1057, 4
        %v1064 = vshrl.u32 %v1032, 16
        %v1066 = vrot.slane %v1064, 7
        %v1067 = vshll.u32 %v1032, 16
        %v1069 = vor.u32 %v1066, %v1067
        %v1070 = vrot.slane %v1066, 4
        %v1072 = vshrl.u32 %v1033, 16
        %v1074 = vrot.slane %v1072, 7
        %v1075 = vshll.u32 %v1033, 16
        %v1077 = vor.u32 %v1074, %v1075
        %v1078 = vsel %vm738, %v1070, %v1077
        %v1079 = vrot.slane %v1074, 4
        %v1081 = vshrl.u32 %v1034, 16
        %v1083 = vrot.slane %v1081, 7
        %v1084 = vshll.u32 %v1034, 16
        %v1086 = vor.u32 %v1083, %v1084
        %v1087 = vrot.slane %v1083, 4
        %v1089 = vshrl.u32 %v1035, 16
        %v1091 = vrot.slane %v1089, 7
        %v1092 = vshll.u32 %v1035, 16
        %v1094 = vor.u32 %v1091, %v1092
        %v1095 = vsel %vm738, %v1087, %v1094
        %v1096 = vrot.slane %v1091, 4
        %v1098 = vshrl.u32 %v1036, 16
        %v1100 = vrot.slane %v1098, 7
        %v1101 = vshll.u32 %v1036, 16
        %v1103 = vor.u32 %v1100, %v1101
        %v1104 = vrot.slane %v1100, 4
        %v1106 = vshrl.u32 %v1037, 16
        %v1108 = vrot.slane %v1106, 7
        %v1109 = vshll.u32 %v1037, 16
        %v1111 = vor.u32 %v1108, %v1109
        %v1112 = vsel %vm738, %v1104, %v1111
        %v1113 = vrot.slane %v1108, 4
        %v1115 = vshrl.u32 %v1038, 16
        %v1117 = vrot.slane %v1115, 7
        %v1118 = vshll.u32 %v1038, 16
        %v1120 = vor.u32 %v1117, %v1118
        %v1121 = vrot.slane %v1117, 4
        %v1123 = vshrl.u32 %v1039, 16
        %v1125 = vrot.slane %v1123, 7
        %v1126 = vshll.u32 %v1039, 16
        %v1128 = vor.u32 %v1125, %v1126
        %v1129 = vsel %vm738, %v1121, %v1128
        %v1130 = vrot.slane %v1125, 4
        %v1132 = vshrl.u32 %v1040, 16
        %v1134 = vrot.slane %v1132, 7
        %v1135 = vshll.u32 %v1040, 16
        %v1137 = vor.u32 %v1134, %v1135
        %v1138 = vrot.slane %v1134, 4
        %v1140 = vshrl.u32 %v1041, 16
        %v1142 = vrot.slane %v1140, 7
        %v1143 = vshll.u32 %v1041, 16
        %v1145 = vor.u32 %v1142, %v1143
        %v1146 = vsel %vm738, %v1138, %v1145
        %v1147 = vrot.slane %v1142, 4
        %v1149 = vshrl.u32 %v1042, 16
        %v1151 = vrot.slane %v1149, 7
        %v1152 = vshll.u32 %v1042, 16
        %v1154 = vor.u32 %v1151, %v1152
        %v1155 = vrot.slane %v1151, 4
        %v1157 = vshrl.u32 %v1043, 16
        %v1159 = vrot.slane %v1157, 7
        %v1160 = vshll.u32 %v1043, 16
        %v1162 = vor.u32 %v1159, %v1160
        %v1163 = vsel %vm738, %v1155, %v1162
        %v1164 = vrot.slane %v1159, 4
        %v1166 = vshrl.u32 %v1044, 16
        %v1168 = vrot.slane %v1166, 7
        %v1169 = vshll.u32 %v1044, 16
        %v1171 = vor.u32 %v1168, %v1169
        %v1172 = vrot.slane %v1168, 4
        %v1174 = vshrl.u32 %v1045, 16
        %v1176 = vrot.slane %v1174, 7
        %v1177 = vshll.u32 %v1045, 16
        %v1179 = vor.u32 %v1176, %v1177
        %v1180 = vsel %vm738, %v1172, %v1179
        %v1181 = vrot.slane %v1176, 4
        %1182 = vrot.lane.b32.xlu0 %v1052, 4
        %v1183 = vpop.permute.xlu0 %1182
        %1184 = vrot.lane.b32.xlu0 %v1061, 4
        %v1185 = vpop.permute.xlu0 %1184
        %1186 = vrot.lane.b32.xlu0 %v1062, 4
        %v1187 = vpop.permute.xlu0 %1186
        %1188 = vrot.lane.b32.xlu0 %v1069, 4
        %v1189 = vpop.permute.xlu0 %1188
        %1190 = vrot.lane.b32.xlu0 %v1078, 4
        %v1191 = vpop.permute.xlu0 %1190
        %1192 = vrot.lane.b32.xlu0 %v1079, 4
        %v1193 = vpop.permute.xlu0 %1192
        %1194 = vrot.lane.b32.xlu0 %v1086, 4
        %v1195 = vpop.permute.xlu0 %1194
        %1196 = vrot.lane.b32.xlu0 %v1095, 4
        %v1197 = vpop.permute.xlu0 %1196
        %1198 = vrot.lane.b32.xlu0 %v1096, 4
        %v1199 = vpop.permute.xlu0 %1198
        %1200 = vrot.lane.b32.xlu0 %v1103, 4
        %v1201 = vpop.permute.xlu0 %1200
        %1202 = vrot.lane.b32.xlu0 %v1112, 4
        %v1203 = vpop.permute.xlu0 %1202
        %1204 = vrot.lane.b32.xlu0 %v1113, 4
        %v1205 = vpop.permute.xlu0 %1204
        %1206 = vrot.lane.b32.xlu0 %v1120, 4
        %v1207 = vpop.permute.xlu0 %1206
        %1208 = vrot.lane.b32.xlu0 %v1129, 4
        %v1209 = vpop.permute.xlu0 %1208
        %1210 = vrot.lane.b32.xlu0 %v1130, 4
        %v1211 = vpop.permute.xlu0 %1210
        %1212 = vrot.lane.b32.xlu0 %v1137, 4
        %v1213 = vpop.permute.xlu0 %1212
        %1214 = vrot.lane.b32.xlu0 %v1146, 4
        %v1215 = vpop.permute.xlu0 %1214
        %1216 = vrot.lane.b32.xlu0 %v1147, 4
        %v1217 = vpop.permute.xlu0 %1216
        %1218 = vrot.lane.b32.xlu0 %v1154, 4
        %v1219 = vpop.permute.xlu0 %1218
        %1220 = vrot.lane.b32.xlu0 %v1163, 4
        %v1221 = vpop.permute.xlu0 %1220
        %1222 = vrot.lane.b32.xlu0 %v1164, 4
        %v1223 = vpop.permute.xlu0 %1222
        %1224 = vrot.lane.b32.xlu0 %v1171, 4
        %v1225 = vpop.permute.xlu0 %1224
        %1226 = vrot.lane.b32.xlu0 %v1180, 4
        %v1227 = vpop.permute.xlu0 %1226
        %1228 = vrot.lane.b32.xlu0 %v1181, 4
        %v1229 = vpop.permute.xlu0 %1228
        %vm1254 = vcmask 60448
        %vm1255 = vmand %vm1254, %vm431
        %v1256 = vld [vmem:[%s901] sm:$0xf]
        %v1257 = vsel %vm1255, %v1183, %v1256
        %1258 = vst [vmem:[%s901] sm:$0xf] %v1257
        %vm1259 = vcmask 60448
        %1260 = vst.msk [vmem:[%s901 + $0x4] sm:$0xf] %vm1259, %v1185
        %vm1261 = vcmask 57376
        %vm1262 = vmand %vm1261, %vm375
        %v1263 = vld [vmem:[%s901 + $0x8] sm:$0x1]
        %v1264 = vsel %vm1262, %v1187, %v1263
        %1265 = vst [vmem:[%s901 + $0x8] sm:$0x1] %v1264
        %v1266 = vld [vmem:[%s901 + $0xc] sm:$0xf]
        %v1267 = vsel %vm1255, %v1189, %v1266
        %1268 = vst [vmem:[%s901 + $0xc] sm:$0xf] %v1267
        %1269 = vst.msk [vmem:[%s901 + $0x10] sm:$0xf] %vm1259, %v1191
        %v1270 = vld [vmem:[%s901 + $0x14] sm:$0x1]
        %v1271 = vsel %vm1262, %v1193, %v1270
        %1272 = vst [vmem:[%s901 + $0x14] sm:$0x1] %v1271
        %v1273 = vld [vmem:[%s901 + $0x18] sm:$0xf]
        %v1274 = vsel %vm1255, %v1195, %v1273
        %1275 = vst [vmem:[%s901 + $0x18] sm:$0xf] %v1274
        %1276 = vst.msk [vmem:[%s901 + $0x1c] sm:$0xf] %vm1259, %v1197
        %v1277 = vld [vmem:[%s901 + $0x20] sm:$0x1]
        %v1278 = vsel %vm1262, %v1199, %v1277
        %1279 = vst [vmem:[%s901 + $0x20] sm:$0x1] %v1278
        %v1280 = vld [vmem:[%s901 + $0x24] sm:$0xf]
        %v1281 = vsel %vm1255, %v1201, %v1280
        %1282 = vst [vmem:[%s901 + $0x24] sm:$0xf] %v1281
        %1283 = vst.msk [vmem:[%s901 + $0x28] sm:$0xf] %vm1259, %v1203
        %v1284 = vld [vmem:[%s901 + $0x2c] sm:$0x1]
        %v1285 = vsel %vm1262, %v1205, %v1284
        %1286 = vst [vmem:[%s901 + $0x2c] sm:$0x1] %v1285
        %v1287 = vld [vmem:[%s901 + $0x30] sm:$0xf]
        %v1288 = vsel %vm1255, %v1207, %v1287
        %1289 = vst [vmem:[%s901 + $0x30] sm:$0xf] %v1288
        %1290 = vst.msk [vmem:[%s901 + $0x34] sm:$0xf] %vm1259, %v1209
        %v1291 = vld [vmem:[%s901 + $0x38] sm:$0x1]
        %v1292 = vsel %vm1262, %v1211, %v1291
        %1293 = vst [vmem:[%s901 + $0x38] sm:$0x1] %v1292
        %v1294 = vld [vmem:[%s901 + $0x3c] sm:$0xf]
        %v1295 = vsel %vm1255, %v1213, %v1294
        %1296 = vst [vmem:[%s901 + $0x3c] sm:$0xf] %v1295
        %1297 = vst.msk [vmem:[%s901 + $0x40] sm:$0xf] %vm1259, %v1215
        %v1298 = vld [vmem:[%s901 + $0x44] sm:$0x1]
        %v1299 = vsel %vm1262, %v1217, %v1298
        %1300 = vst [vmem:[%s901 + $0x44] sm:$0x1] %v1299
        %v1301 = vld [vmem:[%s901 + $0x48] sm:$0xf]
        %v1302 = vsel %vm1255, %v1219, %v1301
        %1303 = vst [vmem:[%s901 + $0x48] sm:$0xf] %v1302
        %1304 = vst.msk [vmem:[%s901 + $0x4c] sm:$0xf] %vm1259, %v1221
        %v1305 = vld [vmem:[%s901 + $0x50] sm:$0x1]
        %v1306 = vsel %vm1262, %v1223, %v1305
        %1307 = vst [vmem:[%s901 + $0x50] sm:$0x1] %v1306
        %v1308 = vld [vmem:[%s901 + $0x54] sm:$0xf]
        %v1309 = vsel %vm1255, %v1225, %v1308
        %1310 = vst [vmem:[%s901 + $0x54] sm:$0xf] %v1309
        %1311 = vst.msk [vmem:[%s901 + $0x58] sm:$0xf] %vm1259, %v1227
        %v1312 = vld [vmem:[%s901 + $0x5c] sm:$0x1]
        %v1313 = vsel %vm1262, %v1229, %v1312
        %1314 = vst [vmem:[%s901 + $0x5c] sm:$0x1] %v1313
        %s1315 = smul.u32 8, 16
        %s1316 = scalar_lea.vmem %s305, %s1315 [#allocation6]
        %v1317 = vld [vmem:[%s1316] sm:$0xff]
        %v1318 = vld [vmem:[%s1316 + $0x8] sm:$0xff]
        %v1319 = vld [vmem:[%s1316 + $0x10] sm:$0xff]
        %v1320 = vld [vmem:[%s1316 + $0x18] sm:$0xff]
        %v1321 = vld [vmem:[%s1316 + $0x20] sm:$0xff]
        %v1322 = vld [vmem:[%s1316 + $0x28] sm:$0xff]
        %v1323 = vld [vmem:[%s1316 + $0x30] sm:$0xff]
        %v1324 = vld [vmem:[%s1316 + $0x38] sm:$0xff]
        %v1325 = vld [vmem:[%s1316 + $0x40] sm:$0xff]
        %v1326 = vld [vmem:[%s1316 + $0x48] sm:$0xff]
        %v1327 = vld [vmem:[%s1316 + $0x50] sm:$0xff]
        %v1328 = vld [vmem:[%s1316 + $0x58] sm:$0xff]
        %v1329 = vld [vmem:[%s1316 + $0x60] sm:$0xff]
        %v1330 = vld [vmem:[%s1316 + $0x68] sm:$0xff]
        %v1331 = vld [vmem:[%s1316 + $0x70] sm:$0xff]
        %v1332 = vld [vmem:[%s1316 + $0x78] sm:$0xff]
        %s1333 = scalar_lea.vmem %s314, %s1315 [#allocation9]
        %v1334 = vld [vmem:[%s1333] sm:$0xff]
        %v1335 = vld [vmem:[%s1333 + $0x8] sm:$0xff]
        %v1336 = vld [vmem:[%s1333 + $0x10] sm:$0xff]
        %v1337 = vld [vmem:[%s1333 + $0x18] sm:$0xff]
        %v1338 = vld [vmem:[%s1333 + $0x20] sm:$0xff]
        %v1339 = vld [vmem:[%s1333 + $0x28] sm:$0xff]
        %v1340 = vld [vmem:[%s1333 + $0x30] sm:$0xff]
        %v1341 = vld [vmem:[%s1333 + $0x38] sm:$0xff]
        %v1342 = vld [vmem:[%s1333 + $0x40] sm:$0xff]
        %v1343 = vld [vmem:[%s1333 + $0x48] sm:$0xff]
        %v1344 = vld [vmem:[%s1333 + $0x50] sm:$0xff]
        %v1345 = vld [vmem:[%s1333 + $0x58] sm:$0xff]
        %v1346 = vld [vmem:[%s1333 + $0x60] sm:$0xff]
        %v1347 = vld [vmem:[%s1333 + $0x68] sm:$0xff]
        %v1348 = vld [vmem:[%s1333 + $0x70] sm:$0xff]
        %v1349 = vld [vmem:[%s1333 + $0x78] sm:$0xff]
        %v1350 = vmul.f32 %v1317, %v648
        %v1351 = vmul.f32 %v1318, %v648
        %v1352 = vmul.f32 %v1319, %v648
        %v1353 = vmul.f32 %v1320, %v648
        %v1354 = vmul.f32 %v1321, %v648
        %v1355 = vmul.f32 %v1322, %v648
        %v1356 = vmul.f32 %v1323, %v648
        %v1357 = vmul.f32 %v1324, %v648
        %v1358 = vmul.f32 %v1325, %v648
        %v1359 = vmul.f32 %v1326, %v648
        %v1360 = vmul.f32 %v1327, %v648
        %v1361 = vmul.f32 %v1328, %v648
        %v1362 = vmul.f32 %v1329, %v648
        %v1363 = vmul.f32 %v1330, %v648
        %v1364 = vmul.f32 %v1331, %v648
        %v1365 = vmul.f32 %v1332, %v648
        %v1366 = vadd.f32 %v1350, %v670
        %v1367 = vadd.f32 %v1351, %v670
        %v1368 = vadd.f32 %v1352, %v670
        %v1369 = vadd.f32 %v1353, %v670
        %v1370 = vadd.f32 %v1354, %v670
        %v1371 = vadd.f32 %v1355, %v670
        %v1372 = vadd.f32 %v1356, %v670
        %v1373 = vadd.f32 %v1357, %v670
        %v1374 = vadd.f32 %v1358, %v670
        %v1375 = vadd.f32 %v1359, %v670
        %v1376 = vadd.f32 %v1360, %v670
        %v1377 = vadd.f32 %v1361, %v670
        %v1378 = vadd.f32 %v1362, %v670
        %v1379 = vadd.f32 %v1363, %v670
        %v1380 = vadd.f32 %v1364, %v670
        %v1381 = vadd.f32 %v1365, %v670
        %v1382 = vpack.c.bf16 %v1367, %v1366
        %v1383 = vpack.c.bf16 %v1369, %v1368
        %v1384 = vpack.c.bf16 %v1371, %v1370
        %v1385 = vpack.c.bf16 %v1373, %v1372
        %v1386 = vpack.c.bf16 %v1375, %v1374
        %v1387 = vpack.c.bf16 %v1377, %v1376
        %v1388 = vpack.c.bf16 %v1379, %v1378
        %v1389 = vpack.c.bf16 %v1381, %v1380
        %s1390 = sadd.s32 8, 1
        %v1399 = vunpack.c.l.b16 %v1382
        %v1400 = vunpack.c.h.b16 %v1382
        %v1401 = vunpack.c.l.b16 %v1383
        %v1402 = vunpack.c.h.b16 %v1383
        %v1403 = vunpack.c.l.b16 %v1384
        %v1404 = vunpack.c.h.b16 %v1384
        %v1405 = vunpack.c.l.b16 %v1385
        %v1406 = vunpack.c.h.b16 %v1385
        %v1407 = vunpack.c.l.b16 %v1386
        %v1408 = vunpack.c.h.b16 %v1386
        %v1409 = vunpack.c.l.b16 %v1387
        %v1410 = vunpack.c.h.b16 %v1387
        %v1411 = vunpack.c.l.b16 %v1388
        %v1412 = vunpack.c.h.b16 %v1388
        %v1413 = vunpack.c.l.b16 %v1389
        %v1414 = vunpack.c.h.b16 %v1389
        %v1415 = vpack.c.b16 %v1399, %v1399
        %v1416 = vpack.c.b16 %v1400, %v1400
        %v1417 = vpack.c.b16 %v1401, %v1401
        %v1418 = vpack.c.b16 %v1402, %v1402
        %v1419 = vpack.c.b16 %v1403, %v1403
        %v1420 = vpack.c.b16 %v1404, %v1404
        %v1421 = vpack.c.b16 %v1405, %v1405
        %v1422 = vpack.c.b16 %v1406, %v1406
        %v1423 = vpack.c.b16 %v1407, %v1407
        %v1424 = vpack.c.b16 %v1408, %v1408
        %v1425 = vpack.c.b16 %v1409, %v1409
        %v1426 = vpack.c.b16 %v1410, %v1410
        %v1427 = vpack.c.b16 %v1411, %v1411
        %v1428 = vpack.c.b16 %v1412, %v1412
        %v1429 = vpack.c.b16 %v1413, %v1413
        %v1430 = vpack.c.b16 %v1414, %v1414
        %v1432 = vshrl.u32 %v1415, 16
        %v1434 = vrot.slane %v1432, 7
        %v1435 = vshll.u32 %v1415, 16
        %v1437 = vor.u32 %v1434, %v1435
        %v1438 = vrot.slane %v1434, 4
        %v1440 = vshrl.u32 %v1416, 16
        %v1442 = vrot.slane %v1440, 7
        %v1443 = vshll.u32 %v1416, 16
        %v1445 = vor.u32 %v1442, %v1443
        %v1446 = vsel %vm738, %v1438, %v1445
        %v1447 = vrot.slane %v1442, 4
        %v1449 = vshrl.u32 %v1417, 16
        %v1451 = vrot.slane %v1449, 7
        %v1452 = vshll.u32 %v1417, 16
        %v1454 = vor.u32 %v1451, %v1452
        %v1455 = vrot.slane %v1451, 4
        %v1457 = vshrl.u32 %v1418, 16
        %v1459 = vrot.slane %v1457, 7
        %v1460 = vshll.u32 %v1418, 16
        %v1462 = vor.u32 %v1459, %v1460
        %v1463 = vsel %vm738, %v1455, %v1462
        %v1464 = vrot.slane %v1459, 4
        %v1466 = vshrl.u32 %v1419, 16
        %v1468 = vrot.slane %v1466, 7
        %v1469 = vshll.u32 %v1419, 16
        %v1471 = vor.u32 %v1468, %v1469
        %v1472 = vrot.slane %v1468, 4
        %v1474 = vshrl.u32 %v1420, 16
        %v1476 = vrot.slane %v1474, 7
        %v1477 = vshll.u32 %v1420, 16
        %v1479 = vor.u32 %v1476, %v1477
        %v1480 = vsel %vm738, %v1472, %v1479
        %v1481 = vrot.slane %v1476, 4
        %v1483 = vshrl.u32 %v1421, 16
        %v1485 = vrot.slane %v1483, 7
        %v1486 = vshll.u32 %v1421, 16
        %v1488 = vor.u32 %v1485, %v1486
        %v1489 = vrot.slane %v1485, 4
        %v1491 = vshrl.u32 %v1422, 16
        %v1493 = vrot.slane %v1491, 7
        %v1494 = vshll.u32 %v1422, 16
        %v1496 = vor.u32 %v1493, %v1494
        %v1497 = vsel %vm738, %v1489, %v1496
        %v1498 = vrot.slane %v1493, 4
        %v1500 = vshrl.u32 %v1423, 16
        %v1502 = vrot.slane %v1500, 7
        %v1503 = vshll.u32 %v1423, 16
        %v1505 = vor.u32 %v1502, %v1503
        %v1506 = vrot.slane %v1502, 4
        %v1508 = vshrl.u32 %v1424, 16
        %v1510 = vrot.slane %v1508, 7
        %v1511 = vshll.u32 %v1424, 16
        %v1513 = vor.u32 %v1510, %v1511
        %v1514 = vsel %vm738, %v1506, %v1513
        %v1515 = vrot.slane %v1510, 4
        %v1517 = vshrl.u32 %v1425, 16
        %v1519 = vrot.slane %v1517, 7
        %v1520 = vshll.u32 %v1425, 16
        %v1522 = vor.u32 %v1519, %v1520
        %v1523 = vrot.slane %v1519, 4
        %v1525 = vshrl.u32 %v1426, 16
        %v1527 = vrot.slane %v1525, 7
        %v1528 = vshll.u32 %v1426, 16
        %v1530 = vor.u32 %v1527, %v1528
        %v1531 = vsel %vm738, %v1523, %v1530
        %v1532 = vrot.slane %v1527, 4
        %v1534 = vshrl.u32 %v1427, 16
        %v1536 = vrot.slane %v1534, 7
        %v1537 = vshll.u32 %v1427, 16
        %v1539 = vor.u32 %v1536, %v1537
        %v1540 = vrot.slane %v1536, 4
        %v1542 = vshrl.u32 %v1428, 16
        %v1544 = vrot.slane %v1542, 7
        %v1545 = vshll.u32 %v1428, 16
        %v1547 = vor.u32 %v1544, %v1545
        %v1548 = vsel %vm738, %v1540, %v1547
        %v1549 = vrot.slane %v1544, 4
        %v1551 = vshrl.u32 %v1429, 16
        %v1553 = vrot.slane %v1551, 7
        %v1554 = vshll.u32 %v1429, 16
        %v1556 = vor.u32 %v1553, %v1554
        %v1557 = vrot.slane %v1553, 4
        %v1559 = vshrl.u32 %v1430, 16
        %v1561 = vrot.slane %v1559, 7
        %v1562 = vshll.u32 %v1430, 16
        %v1564 = vor.u32 %v1561, %v1562
        %v1565 = vsel %vm738, %v1557, %v1564
        %v1566 = vrot.slane %v1561, 4
        %s1591 = smul.u32 %s1390, 3
        %s1592 = smul.addr %s1591, 4
        %s1593 = scalar_lea.vmem [#allocation2], %s1592
        %v1594 = vld [vmem:[%s1593] sm:$0xf]
        %v1595 = vsel %vm903, %v1437, %v1594
        %1596 = vst [vmem:[%s1593] sm:$0xf] %v1595
        %1597 = vst.msk [vmem:[%s1593 + $0x4] sm:$0xf] %vm487, %v1446
        %v1598 = vld [vmem:[%s1593 + $0x8] sm:$0x1]
        %v1599 = vsel %vm497, %v1447, %v1598
        %1600 = vst [vmem:[%s1593 + $0x8] sm:$0x1] %v1599
        %v1601 = vld [vmem:[%s1593 + $0xc] sm:$0xf]
        %v1602 = vsel %vm903, %v1454, %v1601
        %1603 = vst [vmem:[%s1593 + $0xc] sm:$0xf] %v1602
        %1604 = vst.msk [vmem:[%s1593 + $0x10] sm:$0xf] %vm487, %v1463
        %v1605 = vld [vmem:[%s1593 + $0x14] sm:$0x1]
        %v1606 = vsel %vm497, %v1464, %v1605
        %1607 = vst [vmem:[%s1593 + $0x14] sm:$0x1] %v1606
        %v1608 = vld [vmem:[%s1593 + $0x18] sm:$0xf]
        %v1609 = vsel %vm903, %v1471, %v1608
        %1610 = vst [vmem:[%s1593 + $0x18] sm:$0xf] %v1609
        %1611 = vst.msk [vmem:[%s1593 + $0x1c] sm:$0xf] %vm487, %v1480
        %v1612 = vld [vmem:[%s1593 + $0x20] sm:$0x1]
        %v1613 = vsel %vm497, %v1481, %v1612
        %1614 = vst [vmem:[%s1593 + $0x20] sm:$0x1] %v1613
        %v1615 = vld [vmem:[%s1593 + $0x24] sm:$0xf]
        %v1616 = vsel %vm903, %v1488, %v1615
        %1617 = vst [vmem:[%s1593 + $0x24] sm:$0xf] %v1616
        %1618 = vst.msk [vmem:[%s1593 + $0x28] sm:$0xf] %vm487, %v1497
        %v1619 = vld [vmem:[%s1593 + $0x2c] sm:$0x1]
        %v1620 = vsel %vm497, %v1498, %v1619
        %1621 = vst [vmem:[%s1593 + $0x2c] sm:$0x1] %v1620
        %v1622 = vld [vmem:[%s1593 + $0x30] sm:$0xf]
        %v1623 = vsel %vm903, %v1505, %v1622
        %1624 = vst [vmem:[%s1593 + $0x30] sm:$0xf] %v1623
        %1625 = vst.msk [vmem:[%s1593 + $0x34] sm:$0xf] %vm487, %v1514
        %v1626 = vld [vmem:[%s1593 + $0x38] sm:$0x1]
        %v1627 = vsel %vm497, %v1515, %v1626
        %1628 = vst [vmem:[%s1593 + $0x38] sm:$0x1] %v1627
        %v1629 = vld [vmem:[%s1593 + $0x3c] sm:$0xf]
        %v1630 = vsel %vm903, %v1522, %v1629
        %1631 = vst [vmem:[%s1593 + $0x3c] sm:$0xf] %v1630
        %1632 = vst.msk [vmem:[%s1593 + $0x40] sm:$0xf] %vm487, %v1531
        %v1633 = vld [vmem:[%s1593 + $0x44] sm:$0x1]
        %v1634 = vsel %vm497, %v1532, %v1633
        %1635 = vst [vmem:[%s1593 + $0x44] sm:$0x1] %v1634
        %v1636 = vld [vmem:[%s1593 + $0x48] sm:$0xf]
        %v1637 = vsel %vm903, %v1539, %v1636
        %1638 = vst [vmem:[%s1593 + $0x48] sm:$0xf] %v1637
        %1639 = vst.msk [vmem:[%s1593 + $0x4c] sm:$0xf] %vm487, %v1548
        %v1640 = vld [vmem:[%s1593 + $0x50] sm:$0x1]
        %v1641 = vsel %vm497, %v1549, %v1640
        %1642 = vst [vmem:[%s1593 + $0x50] sm:$0x1] %v1641
        %v1643 = vld [vmem:[%s1593 + $0x54] sm:$0xf]
        %v1644 = vsel %vm903, %v1556, %v1643
        %1645 = vst [vmem:[%s1593 + $0x54] sm:$0xf] %v1644
        %1646 = vst.msk [vmem:[%s1593 + $0x58] sm:$0xf] %vm487, %v1565
        %v1647 = vld [vmem:[%s1593 + $0x5c] sm:$0x1]
        %v1648 = vsel %vm497, %v1566, %v1647
        %1649 = vst [vmem:[%s1593 + $0x5c] sm:$0x1] %v1648
        %v1650 = vmul.f32 %v1334, %v961
        %v1651 = vmul.f32 %v1335, %v961
        %v1652 = vmul.f32 %v1336, %v961
        %v1653 = vmul.f32 %v1337, %v961
        %v1654 = vmul.f32 %v1338, %v961
        %v1655 = vmul.f32 %v1339, %v961
        %v1656 = vmul.f32 %v1340, %v961
        %v1657 = vmul.f32 %v1341, %v961
        %v1658 = vmul.f32 %v1342, %v961
        %v1659 = vmul.f32 %v1343, %v961
        %v1660 = vmul.f32 %v1344, %v961
        %v1661 = vmul.f32 %v1345, %v961
        %v1662 = vmul.f32 %v1346, %v961
        %v1663 = vmul.f32 %v1347, %v961
        %v1664 = vmul.f32 %v1348, %v961
        %v1665 = vmul.f32 %v1349, %v961
        %v1666 = vadd.f32 %v1650, %v980
        %v1667 = vadd.f32 %v1651, %v980
        %v1668 = vadd.f32 %v1652, %v980
        %v1669 = vadd.f32 %v1653, %v980
        %v1670 = vadd.f32 %v1654, %v980
        %v1671 = vadd.f32 %v1655, %v980
        %v1672 = vadd.f32 %v1656, %v980
        %v1673 = vadd.f32 %v1657, %v980
        %v1674 = vadd.f32 %v1658, %v980
        %v1675 = vadd.f32 %v1659, %v980
        %v1676 = vadd.f32 %v1660, %v980
        %v1677 = vadd.f32 %v1661, %v980
        %v1678 = vadd.f32 %v1662, %v980
        %v1679 = vadd.f32 %v1663, %v980
        %v1680 = vadd.f32 %v1664, %v980
        %v1681 = vadd.f32 %v1665, %v980
        %v1682 = vpack.c.bf16 %v1667, %v1666
        %v1683 = vpack.c.bf16 %v1669, %v1668
        %v1684 = vpack.c.bf16 %v1671, %v1670
        %v1685 = vpack.c.bf16 %v1673, %v1672
        %v1686 = vpack.c.bf16 %v1675, %v1674
        %v1687 = vpack.c.bf16 %v1677, %v1676
        %v1688 = vpack.c.bf16 %v1679, %v1678
        %v1689 = vpack.c.bf16 %v1681, %v1680
        %v1698 = vunpack.c.l.b16 %v1682
        %v1699 = vunpack.c.h.b16 %v1682
        %v1700 = vunpack.c.l.b16 %v1683
        %v1701 = vunpack.c.h.b16 %v1683
        %v1702 = vunpack.c.l.b16 %v1684
        %v1703 = vunpack.c.h.b16 %v1684
        %v1704 = vunpack.c.l.b16 %v1685
        %v1705 = vunpack.c.h.b16 %v1685
        %v1706 = vunpack.c.l.b16 %v1686
        %v1707 = vunpack.c.h.b16 %v1686
        %v1708 = vunpack.c.l.b16 %v1687
        %v1709 = vunpack.c.h.b16 %v1687
        %v1710 = vunpack.c.l.b16 %v1688
        %v1711 = vunpack.c.h.b16 %v1688
        %v1712 = vunpack.c.l.b16 %v1689
        %v1713 = vunpack.c.h.b16 %v1689
        %v1714 = vpack.c.b16 %v1698, %v1698
        %v1715 = vpack.c.b16 %v1699, %v1699
        %v1716 = vpack.c.b16 %v1700, %v1700
        %v1717 = vpack.c.b16 %v1701, %v1701
        %v1718 = vpack.c.b16 %v1702, %v1702
        %v1719 = vpack.c.b16 %v1703, %v1703
        %v1720 = vpack.c.b16 %v1704, %v1704
        %v1721 = vpack.c.b16 %v1705, %v1705
        %v1722 = vpack.c.b16 %v1706, %v1706
        %v1723 = vpack.c.b16 %v1707, %v1707
        %v1724 = vpack.c.b16 %v1708, %v1708
        %v1725 = vpack.c.b16 %v1709, %v1709
        %v1726 = vpack.c.b16 %v1710, %v1710
        %v1727 = vpack.c.b16 %v1711, %v1711
        %v1728 = vpack.c.b16 %v1712, %v1712
        %v1729 = vpack.c.b16 %v1713, %v1713
        %v1731 = vshrl.u32 %v1714, 16
        %v1733 = vrot.slane %v1731, 7
        %v1734 = vshll.u32 %v1714, 16
        %v1736 = vor.u32 %v1733, %v1734
        %v1737 = vrot.slane %v1733, 4
        %v1739 = vshrl.u32 %v1715, 16
        %v1741 = vrot.slane %v1739, 7
        %v1742 = vshll.u32 %v1715, 16
        %v1744 = vor.u32 %v1741, %v1742
        %v1745 = vsel %vm738, %v1737, %v1744
        %v1746 = vrot.slane %v1741, 4
        %v1748 = vshrl.u32 %v1716, 16
        %v1750 = vrot.slane %v1748, 7
        %v1751 = vshll.u32 %v1716, 16
        %v1753 = vor.u32 %v1750, %v1751
        %v1754 = vrot.slane %v1750, 4
        %v1756 = vshrl.u32 %v1717, 16
        %v1758 = vrot.slane %v1756, 7
        %v1759 = vshll.u32 %v1717, 16
        %v1761 = vor.u32 %v1758, %v1759
        %v1762 = vsel %vm738, %v1754, %v1761
        %v1763 = vrot.slane %v1758, 4
        %v1765 = vshrl.u32 %v1718, 16
        %v1767 = vrot.slane %v1765, 7
        %v1768 = vshll.u32 %v1718, 16
        %v1770 = vor.u32 %v1767, %v1768
        %v1771 = vrot.slane %v1767, 4
        %v1773 = vshrl.u32 %v1719, 16
        %v1775 = vrot.slane %v1773, 7
        %v1776 = vshll.u32 %v1719, 16
        %v1778 = vor.u32 %v1775, %v1776
        %v1779 = vsel %vm738, %v1771, %v1778
        %v1780 = vrot.slane %v1775, 4
        %v1782 = vshrl.u32 %v1720, 16
        %v1784 = vrot.slane %v1782, 7
        %v1785 = vshll.u32 %v1720, 16
        %v1787 = vor.u32 %v1784, %v1785
        %v1788 = vrot.slane %v1784, 4
        %v1790 = vshrl.u32 %v1721, 16
        %v1792 = vrot.slane %v1790, 7
        %v1793 = vshll.u32 %v1721, 16
        %v1795 = vor.u32 %v1792, %v1793
        %v1796 = vsel %vm738, %v1788, %v1795
        %v1797 = vrot.slane %v1792, 4
        %v1799 = vshrl.u32 %v1722, 16
        %v1801 = vrot.slane %v1799, 7
        %v1802 = vshll.u32 %v1722, 16
        %v1804 = vor.u32 %v1801, %v1802
        %v1805 = vrot.slane %v1801, 4
        %v1807 = vshrl.u32 %v1723, 16
        %v1809 = vrot.slane %v1807, 7
        %v1810 = vshll.u32 %v1723, 16
        %v1812 = vor.u32 %v1809, %v1810
        %v1813 = vsel %vm738, %v1805, %v1812
        %v1814 = vrot.slane %v1809, 4
        %v1816 = vshrl.u32 %v1724, 16
        %v1818 = vrot.slane %v1816, 7
        %v1819 = vshll.u32 %v1724, 16
        %v1821 = vor.u32 %v1818, %v1819
        %v1822 = vrot.slane %v1818, 4
        %v1824 = vshrl.u32 %v1725, 16
        %v1826 = vrot.slane %v1824, 7
        %v1827 = vshll.u32 %v1725, 16
        %v1829 = vor.u32 %v1826, %v1827
        %v1830 = vsel %vm738, %v1822, %v1829
        %v1831 = vrot.slane %v1826, 4
        %v1833 = vshrl.u32 %v1726, 16
        %v1835 = vrot.slane %v1833, 7
        %v1836 = vshll.u32 %v1726, 16
        %v1838 = vor.u32 %v1835, %v1836
        %v1839 = vrot.slane %v1835, 4
        %v1841 = vshrl.u32 %v1727, 16
        %v1843 = vrot.slane %v1841, 7
        %v1844 = vshll.u32 %v1727, 16
        %v1846 = vor.u32 %v1843, %v1844
        %v1847 = vsel %vm738, %v1839, %v1846
        %v1848 = vrot.slane %v1843, 4
        %v1850 = vshrl.u32 %v1728, 16
        %v1852 = vrot.slane %v1850, 7
        %v1853 = vshll.u32 %v1728, 16
        %v1855 = vor.u32 %v1852, %v1853
        %v1856 = vrot.slane %v1852, 4
        %v1858 = vshrl.u32 %v1729, 16
        %v1860 = vrot.slane %v1858, 7
        %v1861 = vshll.u32 %v1729, 16
        %v1863 = vor.u32 %v1860, %v1861
        %v1864 = vsel %vm738, %v1856, %v1863
        %v1865 = vrot.slane %v1860, 4
        %1866 = vrot.lane.b32.xlu0 %v1736, 4
        %v1867 = vpop.permute.xlu0 %1866
        %1868 = vrot.lane.b32.xlu0 %v1745, 4
        %v1869 = vpop.permute.xlu0 %1868
        %1870 = vrot.lane.b32.xlu0 %v1746, 4
        %v1871 = vpop.permute.xlu0 %1870
        %1872 = vrot.lane.b32.xlu0 %v1753, 4
        %v1873 = vpop.permute.xlu0 %1872
        %1874 = vrot.lane.b32.xlu0 %v1762, 4
        %v1875 = vpop.permute.xlu0 %1874
        %1876 = vrot.lane.b32.xlu0 %v1763, 4
        %v1877 = vpop.permute.xlu0 %1876
        %1878 = vrot.lane.b32.xlu0 %v1770, 4
        %v1879 = vpop.permute.xlu0 %1878
        %1880 = vrot.lane.b32.xlu0 %v1779, 4
        %v1881 = vpop.permute.xlu0 %1880
        %1882 = vrot.lane.b32.xlu0 %v1780, 4
        %v1883 = vpop.permute.xlu0 %1882
        %1884 = vrot.lane.b32.xlu0 %v1787, 4
        %v1885 = vpop.permute.xlu0 %1884
        %1886 = vrot.lane.b32.xlu0 %v1796, 4
        %v1887 = vpop.permute.xlu0 %1886
        %1888 = vrot.lane.b32.xlu0 %v1797, 4
        %v1889 = vpop.permute.xlu0 %1888
        %1890 = vrot.lane.b32.xlu0 %v1804, 4
        %v1891 = vpop.permute.xlu0 %1890
        %1892 = vrot.lane.b32.xlu0 %v1813, 4
        %v1893 = vpop.permute.xlu0 %1892
        %1894 = vrot.lane.b32.xlu0 %v1814, 4
        %v1895 = vpop.permute.xlu0 %1894
        %1896 = vrot.lane.b32.xlu0 %v1821, 4
        %v1897 = vpop.permute.xlu0 %1896
        %1898 = vrot.lane.b32.xlu0 %v1830, 4
        %v1899 = vpop.permute.xlu0 %1898
        %1900 = vrot.lane.b32.xlu0 %v1831, 4
        %v1901 = vpop.permute.xlu0 %1900
        %1902 = vrot.lane.b32.xlu0 %v1838, 4
        %v1903 = vpop.permute.xlu0 %1902
        %1904 = vrot.lane.b32.xlu0 %v1847, 4
        %v1905 = vpop.permute.xlu0 %1904
        %1906 = vrot.lane.b32.xlu0 %v1848, 4
        %v1907 = vpop.permute.xlu0 %1906
        %1908 = vrot.lane.b32.xlu0 %v1855, 4
        %v1909 = vpop.permute.xlu0 %1908
        %1910 = vrot.lane.b32.xlu0 %v1864, 4
        %v1911 = vpop.permute.xlu0 %1910
        %1912 = vrot.lane.b32.xlu0 %v1865, 4
        %v1913 = vpop.permute.xlu0 %1912
        %v1938 = vld [vmem:[%s1593] sm:$0xf]
        %v1939 = vsel %vm1255, %v1867, %v1938
        %1940 = vst [vmem:[%s1593] sm:$0xf] %v1939
        %1941 = vst.msk [vmem:[%s1593 + $0x4] sm:$0xf] %vm1259, %v1869
        %v1942 = vld [vmem:[%s1593 + $0x8] sm:$0x1]
        %v1943 = vsel %vm1262, %v1871, %v1942
        %1944 = vst [vmem:[%s1593 + $0x8] sm:$0x1] %v1943
        %v1945 = vld [vmem:[%s1593 + $0xc] sm:$0xf]
        %v1946 = vsel %vm1255, %v1873, %v1945
        %1947 = vst [vmem:[%s1593 + $0xc] sm:$0xf] %v1946
        %1948 = vst.msk [vmem:[%s1593 + $0x10] sm:$0xf] %vm1259, %v1875
        %v1949 = vld [vmem:[%s1593 + $0x14] sm:$0x1]
        %v1950 = vsel %vm1262, %v1877, %v1949
        %1951 = vst [vmem:[%s1593 + $0x14] sm:$0x1] %v1950
        %v1952 = vld [vmem:[%s1593 + $0x18] sm:$0xf]
        %v1953 = vsel %vm1255, %v1879, %v1952
        %1954 = vst [vmem:[%s1593 + $0x18] sm:$0xf] %v1953
        %1955 = vst.msk [vmem:[%s1593 + $0x1c] sm:$0xf] %vm1259, %v1881
        %v1956 = vld [vmem:[%s1593 + $0x20] sm:$0x1]
        %v1957 = vsel %vm1262, %v1883, %v1956
        %1958 = vst [vmem:[%s1593 + $0x20] sm:$0x1] %v1957
        %v1959 = vld [vmem:[%s1593 + $0x24] sm:$0xf]
        %v1960 = vsel %vm1255, %v1885, %v1959
        %1961 = vst [vmem:[%s1593 + $0x24] sm:$0xf] %v1960
        %1962 = vst.msk [vmem:[%s1593 + $0x28] sm:$0xf] %vm1259, %v1887
        %v1963 = vld [vmem:[%s1593 + $0x2c] sm:$0x1]
        %v1964 = vsel %vm1262, %v1889, %v1963
        %1965 = vst [vmem:[%s1593 + $0x2c] sm:$0x1] %v1964
        %v1966 = vld [vmem:[%s1593 + $0x30] sm:$0xf]
        %v1967 = vsel %vm1255, %v1891, %v1966
        %1968 = vst [vmem:[%s1593 + $0x30] sm:$0xf] %v1967
        %1969 = vst.msk [vmem:[%s1593 + $0x34] sm:$0xf] %vm1259, %v1893
        %v1970 = vld [vmem:[%s1593 + $0x38] sm:$0x1]
        %v1971 = vsel %vm1262, %v1895, %v1970
        %1972 = vst [vmem:[%s1593 + $0x38] sm:$0x1] %v1971
        %v1973 = vld [vmem:[%s1593 + $0x3c] sm:$0xf]
        %v1974 = vsel %vm1255, %v1897, %v1973
        %1975 = vst [vmem:[%s1593 + $0x3c] sm:$0xf] %v1974
        %1976 = vst.msk [vmem:[%s1593 + $0x40] sm:$0xf] %vm1259, %v1899
        %v1977 = vld [vmem:[%s1593 + $0x44] sm:$0x1]
        %v1978 = vsel %vm1262, %v1901, %v1977
        %1979 = vst [vmem:[%s1593 + $0x44] sm:$0x1] %v1978
        %v1980 = vld [vmem:[%s1593 + $0x48] sm:$0xf]
        %v1981 = vsel %vm1255, %v1903, %v1980
        %1982 = vst [vmem:[%s1593 + $0x48] sm:$0xf] %v1981
        %1983 = vst.msk [vmem:[%s1593 + $0x4c] sm:$0xf] %vm1259, %v1905
        %v1984 = vld [vmem:[%s1593 + $0x50] sm:$0x1]
        %v1985 = vsel %vm1262, %v1907, %v1984
        %1986 = vst [vmem:[%s1593 + $0x50] sm:$0x1] %v1985
        %v1987 = vld [vmem:[%s1593 + $0x54] sm:$0xf]
        %v1988 = vsel %vm1255, %v1909, %v1987
        %1989 = vst [vmem:[%s1593 + $0x54] sm:$0xf] %v1988
        %1990 = vst.msk [vmem:[%s1593 + $0x58] sm:$0xf] %vm1259, %v1911
        %v1991 = vld [vmem:[%s1593 + $0x5c] sm:$0x1]
        %v1992 = vsel %vm1262, %v1913, %v1991
        %1993 = vst [vmem:[%s1593 + $0x5c] sm:$0x1] %v1992
        %v1994 = vld [vmem:[#allocation14] sm:$0xf]
        %v1995 = vld [vmem:[#allocation14 + $0x4] sm:$0xf]
        %v1996 = vld [vmem:[#allocation14 + $0x8] sm:$0xf]
        %v1997 = vld [vmem:[#allocation14 + $0xc] sm:$0xf]
        %v1998 = vld [vmem:[#allocation14 + $0x10] sm:$0xf]
        %v1999 = vld [vmem:[#allocation14 + $0x14] sm:$0xf]
        %v2000 = vld [vmem:[#allocation14 + $0x18] sm:$0xf]
        %v2001 = vld [vmem:[#allocation14 + $0x1c] sm:$0xf]
        %v2002 = vld [vmem:[#allocation14 + $0x20] sm:$0xf]
        %s2003 = smul.u32 0, 3
        %s2004 = smul.addr %s2003, 4
        %s2005 = scalar_lea.vmem [#allocation2], %s2004
        %v2006 = vld [vmem:[%s2005] sm:$0xf]
        %v2007 = vld [vmem:[%s2005 + $0x4] sm:$0xf]
        %v2008 = vld [vmem:[%s2005 + $0xc] sm:$0xf]
        %v2009 = vld [vmem:[%s2005 + $0x10] sm:$0xf]
        %v2010 = vld [vmem:[%s2005 + $0x18] sm:$0xf]
        %v2011 = vld [vmem:[%s2005 + $0x1c] sm:$0xf]
        %v2012 = vld [vmem:[%s2005 + $0x24] sm:$0xf]
        %v2013 = vld [vmem:[%s2005 + $0x28] sm:$0xf]
        %v2014 = vld [vmem:[%s2005 + $0x30] sm:$0xf]
        %v2015 = vld [vmem:[%s2005 + $0x34] sm:$0xf]
        %v2016 = vld [vmem:[%s2005 + $0x3c] sm:$0xf]
        %v2017 = vld [vmem:[%s2005 + $0x40] sm:$0xf]
        %v2018 = vld [vmem:[%s2005 + $0x48] sm:$0xf]
        %v2019 = vld [vmem:[%s2005 + $0x4c] sm:$0xf]
        %v2020 = vld [vmem:[%s2005 + $0x54] sm:$0xf]
        %v2021 = vld [vmem:[%s2005 + $0x58] sm:$0xf]
        %v2038 = vunpack.c.l.b16 %v2006
        %v2039 = vunpack.c.l.b16 %v2007
        %v2040 = vunpack.c.l.b16 %v2008
        %v2041 = vunpack.c.l.b16 %v2009
        %v2042 = vunpack.c.l.b16 %v2010
        %v2043 = vunpack.c.l.b16 %v2011
        %v2044 = vunpack.c.l.b16 %v2012
        %v2045 = vunpack.c.l.b16 %v2013
        %v2046 = vunpack.c.l.b16 %v2014
        %v2047 = vunpack.c.l.b16 %v2015
        %v2048 = vunpack.c.l.b16 %v2016
        %v2049 = vunpack.c.l.b16 %v2017
        %v2050 = vunpack.c.l.b16 %v2018
        %v2051 = vunpack.c.l.b16 %v2019
        %v2052 = vunpack.c.l.b16 %v2020
        %v2053 = vunpack.c.l.b16 %v2021
        %v2054 = vpack.c.b16 %v2039, %v2038
        %v2055 = vpack.c.b16 %v2041, %v2040
        %v2056 = vpack.c.b16 %v2043, %v2042
        %v2057 = vpack.c.b16 %v2045, %v2044
        %v2058 = vpack.c.b16 %v2047, %v2046
        %v2059 = vpack.c.b16 %v2049, %v2048
        %v2060 = vpack.c.b16 %v2051, %v2050
        %v2061 = vpack.c.b16 %v2053, %v2052
        %vm2070 = vcmask 64512
        %2071 = vst.msk [vmem:[#allocation4] sm:$0xff] %vm2070, %v2054
        %2072 = vst.msk [vmem:[#allocation4 + $0x8] sm:$0xff] %vm2070, %v2055
        %2073 = vst.msk [vmem:[#allocation4 + $0x10] sm:$0xff] %vm2070, %v2056
        %2074 = vst.msk [vmem:[#allocation4 + $0x18] sm:$0xff] %vm2070, %v2057
        %2075 = vst.msk [vmem:[#allocation4 + $0x20] sm:$0xff] %vm2070, %v2058
        %2076 = vst.msk [vmem:[#allocation4 + $0x28] sm:$0xff] %vm2070, %v2059
        %2077 = vst.msk [vmem:[#allocation4 + $0x30] sm:$0xff] %vm2070, %v2060
        %2078 = vst.msk [vmem:[#allocation4 + $0x38] sm:$0xff] %vm2070, %v2061
        %v2079 = vld [vmem:[%s2005] sm:$0xf]
        %v2080 = vld [vmem:[%s2005 + $0x4] sm:$0xf]
        %v2081 = vld [vmem:[%s2005 + $0x8] sm:$0x1]
        %v2082 = vld [vmem:[%s2005 + $0xc] sm:$0xf]
        %v2083 = vld [vmem:[%s2005 + $0x10] sm:$0xf]
        %v2084 = vld [vmem:[%s2005 + $0x14] sm:$0x1]
        %v2085 = vld [vmem:[%s2005 + $0x18] sm:$0xf]
        %v2086 = vld [vmem:[%s2005 + $0x1c] sm:$0xf]
        %v2087 = vld [vmem:[%s2005 + $0x20] sm:$0x1]
        %v2088 = vld [vmem:[%s2005 + $0x24] sm:$0xf]
        %v2089 = vld [vmem:[%s2005 + $0x28] sm:$0xf]
        %v2090 = vld [vmem:[%s2005 + $0x2c] sm:$0x1]
        %v2091 = vld [vmem:[%s2005 + $0x30] sm:$0xf]
        %v2092 = vld [vmem:[%s2005 + $0x34] sm:$0xf]
        %v2093 = vld [vmem:[%s2005 + $0x38] sm:$0x1]
        %v2094 = vld [vmem:[%s2005 + $0x3c] sm:$0xf]
        %v2095 = vld [vmem:[%s2005 + $0x40] sm:$0xf]
        %v2096 = vld [vmem:[%s2005 + $0x44] sm:$0x1]
        %v2097 = vld [vmem:[%s2005 + $0x48] sm:$0xf]
        %v2098 = vld [vmem:[%s2005 + $0x4c] sm:$0xf]
        %v2099 = vld [vmem:[%s2005 + $0x50] sm:$0x1]
        %v2100 = vld [vmem:[%s2005 + $0x54] sm:$0xf]
        %v2101 = vld [vmem:[%s2005 + $0x58] sm:$0xf]
        %v2102 = vld [vmem:[%s2005 + $0x5c] sm:$0x1]
        %vm2103 = vsmask.f32 3328
        %vm2104 = vsmask.f32 7440
        %vm2105 = vmor %vm2103, %vm2104
        %v2107 = vshrl.u32 %v2079, 16
        %v2109 = vrot.slane %v2107, 4
        %v2110 = vshll.u32 %v2079, 16
        %v2112 = vrot.slane %v2110, 5
        %v2113 = vor.u32 %v2109, %v2112
        %v2114 = vrot.slane %v2113, 4
        %v2116 = vshll.u32 %v2080, 16
        %v2118 = vrot.slane %v2116, 5
        %v2119 = vsel %vm2105, %v2114, %v2118
        %v2120 = vshrl.u32 %v2080, 16
        %v2122 = vrot.slane %v2120, 4
        %v2123 = vor.u32 %v2122, %v2118
        %v2124 = vrot.slane %v2123, 4
        %v2126 = vshll.u32 %v2081, 16
        %v2128 = vrot.slane %v2126, 5
        %v2129 = vsel %vm2105, %v2124, %v2128
        %v2131 = vshrl.u32 %v2082, 16
        %v2133 = vrot.slane %v2131, 4
        %v2134 = vshll.u32 %v2082, 16
        %v2136 = vrot.slane %v2134, 5
        %v2137 = vor.u32 %v2133, %v2136
        %v2138 = vrot.slane %v2137, 4
        %v2140 = vshll.u32 %v2083, 16
        %v2142 = vrot.slane %v2140, 5
        %v2143 = vsel %vm2105, %v2138, %v2142
        %v2144 = vshrl.u32 %v2083, 16
        %v2146 = vrot.slane %v2144, 4
        %v2147 = vor.u32 %v2146, %v2142
        %v2148 = vrot.slane %v2147, 4
        %v2150 = vshll.u32 %v2084, 16
        %v2152 = vrot.slane %v2150, 5
        %v2153 = vsel %vm2105, %v2148, %v2152
        %v2155 = vshrl.u32 %v2085, 16
        %v2157 = vrot.slane %v2155, 4
        %v2158 = vshll.u32 %v2085, 16
        %v2160 = vrot.slane %v2158, 5
        %v2161 = vor.u32 %v2157, %v2160
        %v2162 = vrot.slane %v2161, 4
        %v2164 = vshll.u32 %v2086, 16
        %v2166 = vrot.slane %v2164, 5
        %v2167 = vsel %vm2105, %v2162, %v2166
        %v2168 = vshrl.u32 %v2086, 16
        %v2170 = vrot.slane %v2168, 4
        %v2171 = vor.u32 %v2170, %v2166
        %v2172 = vrot.slane %v2171, 4
        %v2174 = vshll.u32 %v2087, 16
        %v2176 = vrot.slane %v2174, 5
        %v2177 = vsel %vm2105, %v2172, %v2176
        %v2179 = vshrl.u32 %v2088, 16
        %v2181 = vrot.slane %v2179, 4
        %v2182 = vshll.u32 %v2088, 16
        %v2184 = vrot.slane %v2182, 5
        %v2185 = vor.u32 %v2181, %v2184
        %v2186 = vrot.slane %v2185, 4
        %v2188 = vshll.u32 %v2089, 16
        %v2190 = vrot.slane %v2188, 5
        %v2191 = vsel %vm2105, %v2186, %v2190
        %v2192 = vshrl.u32 %v2089, 16
        %v2194 = vrot.slane %v2192, 4
        %v2195 = vor.u32 %v2194, %v2190
        %v2196 = vrot.slane %v2195, 4
        %v2198 = vshll.u32 %v2090, 16
        %v2200 = vrot.slane %v2198, 5
        %v2201 = vsel %vm2105, %v2196, %v2200
        %v2203 = vshrl.u32 %v2091, 16
        %v2205 = vrot.slane %v2203, 4
        %v2206 = vshll.u32 %v2091, 16
        %v2208 = vrot.slane %v2206, 5
        %v2209 = vor.u32 %v2205, %v2208
        %v2210 = vrot.slane %v2209, 4
        %v2212 = vshll.u32 %v2092, 16
        %v2214 = vrot.slane %v2212, 5
        %v2215 = vsel %vm2105, %v2210, %v2214
        %v2216 = vshrl.u32 %v2092, 16
        %v2218 = vrot.slane %v2216, 4
        %v2219 = vor.u32 %v2218, %v2214
        %v2220 = vrot.slane %v2219, 4
        %v2222 = vshll.u32 %v2093, 16
        %v2224 = vrot.slane %v2222, 5
        %v2225 = vsel %vm2105, %v2220, %v2224
        %v2227 = vshrl.u32 %v2094, 16
        %v2229 = vrot.slane %v2227, 4
        %v2230 = vshll.u32 %v2094, 16
        %v2232 = vrot.slane %v2230, 5
        %v2233 = vor.u32 %v2229, %v2232
        %v2234 = vrot.slane %v2233, 4
        %v2236 = vshll.u32 %v2095, 16
        %v2238 = vrot.slane %v2236, 5
        %v2239 = vsel %vm2105, %v2234, %v2238
        %v2240 = vshrl.u32 %v2095, 16
        %v2242 = vrot.slane %v2240, 4
        %v2243 = vor.u32 %v2242, %v2238
        %v2244 = vrot.slane %v2243, 4
        %v2246 = vshll.u32 %v2096, 16
        %v2248 = vrot.slane %v2246, 5
        %v2249 = vsel %vm2105, %v2244, %v2248
        %v2251 = vshrl.u32 %v2097, 16
        %v2253 = vrot.slane %v2251, 4
        %v2254 = vshll.u32 %v2097, 16
        %v2256 = vrot.slane %v2254, 5
        %v2257 = vor.u32 %v2253, %v2256
        %v2258 = vrot.slane %v2257, 4
        %v2260 = vshll.u32 %v2098, 16
        %v2262 = vrot.slane %v2260, 5
        %v2263 = vsel %vm2105, %v2258, %v2262
        %v2264 = vshrl.u32 %v2098, 16
        %v2266 = vrot.slane %v2264, 4
        %v2267 = vor.u32 %v2266, %v2262
        %v2268 = vrot.slane %v2267, 4
        %v2270 = vshll.u32 %v2099, 16
        %v2272 = vrot.slane %v2270, 5
        %v2273 = vsel %vm2105, %v2268, %v2272
        %v2275 = vshrl.u32 %v2100, 16
        %v2277 = vrot.slane %v2275, 4
        %v2278 = vshll.u32 %v2100, 16
        %v2280 = vrot.slane %v2278, 5
        %v2281 = vor.u32 %v2277, %v2280
        %v2282 = vrot.slane %v2281, 4
        %v2284 = vshll.u32 %v2101, 16
        %v2286 = vrot.slane %v2284, 5
        %v2287 = vsel %vm2105, %v2282, %v2286
        %v2288 = vshrl.u32 %v2101, 16
        %v2290 = vrot.slane %v2288, 4
        %v2291 = vor.u32 %v2290, %v2286
        %v2292 = vrot.slane %v2291, 4
        %v2294 = vshll.u32 %v2102, 16
        %v2296 = vrot.slane %v2294, 5
        %v2297 = vsel %vm2105, %v2292, %v2296
        %v2298 = vunpack.c.l.b16 %v2119
        %v2299 = vunpack.c.l.b16 %v2129
        %v2300 = vunpack.c.l.b16 %v2143
        %v2301 = vunpack.c.l.b16 %v2153
        %v2302 = vunpack.c.l.b16 %v2167
        %v2303 = vunpack.c.l.b16 %v2177
        %v2304 = vunpack.c.l.b16 %v2191
        %v2305 = vunpack.c.l.b16 %v2201
        %v2306 = vunpack.c.l.b16 %v2215
        %v2307 = vunpack.c.l.b16 %v2225
        %v2308 = vunpack.c.l.b16 %v2239
        %v2309 = vunpack.c.l.b16 %v2249
        %v2310 = vunpack.c.l.b16 %v2263
        %v2311 = vunpack.c.l.b16 %v2273
        %v2312 = vunpack.c.l.b16 %v2287
        %v2313 = vunpack.c.l.b16 %v2297
        %v2314 = vpack.c.b16 %v2299, %v2298
        %v2315 = vpack.c.b16 %v2301, %v2300
        %v2316 = vpack.c.b16 %v2303, %v2302
        %v2317 = vpack.c.b16 %v2305, %v2304
        %v2318 = vpack.c.b16 %v2307, %v2306
        %v2319 = vpack.c.b16 %v2309, %v2308
        %v2320 = vpack.c.b16 %v2311, %v2310
        %v2321 = vpack.c.b16 %v2313, %v2312
        %2322 = vrot.lane.b32.xlu0 %v2314, 8
        %v2323 = vpop.permute.xlu0 %2322
        %2324 = vrot.lane.b32.xlu0 %v2315, 8
        %v2325 = vpop.permute.xlu0 %2324
        %2326 = vrot.lane.b32.xlu0 %v2316, 8
        %v2327 = vpop.permute.xlu0 %2326
        %2328 = vrot.lane.b32.xlu0 %v2317, 8
        %v2329 = vpop.permute.xlu0 %2328
        %2330 = vrot.lane.b32.xlu0 %v2318, 8
        %v2331 = vpop.permute.xlu0 %2330
        %2332 = vrot.lane.b32.xlu0 %v2319, 8
        %v2333 = vpop.permute.xlu0 %2332
        %2334 = vrot.lane.b32.xlu0 %v2320, 8
        %v2335 = vpop.permute.xlu0 %2334
        %2336 = vrot.lane.b32.xlu0 %v2321, 8
        %v2337 = vpop.permute.xlu0 %2336
        %vm2346 = vcmask 130112
        %2347 = vst.msk [vmem:[#allocation4] sm:$0xff] %vm2346, %v2323
        %2348 = vst.msk [vmem:[#allocation4 + $0x8] sm:$0xff] %vm2346, %v2325
        %2349 = vst.msk [vmem:[#allocation4 + $0x10] sm:$0xff] %vm2346, %v2327
        %2350 = vst.msk [vmem:[#allocation4 + $0x18] sm:$0xff] %vm2346, %v2329
        %2351 = vst.msk [vmem:[#allocation4 + $0x20] sm:$0xff] %vm2346, %v2331
        %2352 = vst.msk [vmem:[#allocation4 + $0x28] sm:$0xff] %vm2346, %v2333
        %2353 = vst.msk [vmem:[#allocation4 + $0x30] sm:$0xff] %vm2346, %v2335
        %2354 = vst.msk [vmem:[#allocation4 + $0x38] sm:$0xff] %vm2346, %v2337
        %v2355 = vld [vmem:[%s2005] sm:$0xe]
        %v2356 = vld [vmem:[%s2005 + $0x4] sm:$0xf]
        %v2357 = vld [vmem:[%s2005 + $0x8] sm:$0x1]
        %v2358 = vld [vmem:[%s2005 + $0xc] sm:$0xe]
        %v2359 = vld [vmem:[%s2005 + $0x10] sm:$0xf]
        %v2360 = vld [vmem:[%s2005 + $0x14] sm:$0x1]
        %v2361 = vld [vmem:[%s2005 + $0x18] sm:$0xe]
        %v2362 = vld [vmem:[%s2005 + $0x1c] sm:$0xf]
        %v2363 = vld [vmem:[%s2005 + $0x20] sm:$0x1]
        %v2364 = vld [vmem:[%s2005 + $0x24] sm:$0xe]
        %v2365 = vld [vmem:[%s2005 + $0x28] sm:$0xf]
        %v2366 = vld [vmem:[%s2005 + $0x2c] sm:$0x1]
        %v2367 = vld [vmem:[%s2005 + $0x30] sm:$0xe]
        %v2368 = vld [vmem:[%s2005 + $0x34] sm:$0xf]
        %v2369 = vld [vmem:[%s2005 + $0x38] sm:$0x1]
        %v2370 = vld [vmem:[%s2005 + $0x3c] sm:$0xe]
        %v2371 = vld [vmem:[%s2005 + $0x40] sm:$0xf]
        %v2372 = vld [vmem:[%s2005 + $0x44] sm:$0x1]
        %v2373 = vld [vmem:[%s2005 + $0x48] sm:$0xe]
        %v2374 = vld [vmem:[%s2005 + $0x4c] sm:$0xf]
        %v2375 = vld [vmem:[%s2005 + $0x50] sm:$0x1]
        %v2376 = vld [vmem:[%s2005 + $0x54] sm:$0xe]
        %v2377 = vld [vmem:[%s2005 + $0x58] sm:$0xf]
        %v2378 = vld [vmem:[%s2005 + $0x5c] sm:$0x1]
        %vm2403 = vcmask 1042432
        %vm2404 = vcmask 1046532
        %vm2405 = vmor %vm2403, %vm2404
        %v2406 = vrot.slane %v2355, 5
        %v2407 = vrot.slane %v2406, 4
        %v2408 = vrot.slane %v2356, 5
        %v2409 = vsel %vm2405, %v2407, %v2408
        %v2410 = vrot.slane %v2408, 4
        %v2411 = vrot.slane %v2357, 5
        %v2412 = vsel %vm2405, %v2410, %v2411
        %v2413 = vrot.slane %v2358, 5
        %v2414 = vrot.slane %v2413, 4
        %v2415 = vrot.slane %v2359, 5
        %v2416 = vsel %vm2405, %v2414, %v2415
        %v2417 = vrot.slane %v2415, 4
        %v2418 = vrot.slane %v2360, 5
        %v2419 = vsel %vm2405, %v2417, %v2418
        %v2420 = vrot.slane %v2361, 5
        %v2421 = vrot.slane %v2420, 4
        %v2422 = vrot.slane %v2362, 5
        %v2423 = vsel %vm2405, %v2421, %v2422
        %v2424 = vrot.slane %v2422, 4
        %v2425 = vrot.slane %v2363, 5
        %v2426 = vsel %vm2405, %v2424, %v2425
        %v2427 = vrot.slane %v2364, 5
        %v2428 = vrot.slane %v2427, 4
        %v2429 = vrot.slane %v2365, 5
        %v2430 = vsel %vm2405, %v2428, %v2429
        %v2431 = vrot.slane %v2429, 4
        %v2432 = vrot.slane %v2366, 5
        %v2433 = vsel %vm2405, %v2431, %v2432
        %v2434 = vrot.slane %v2367, 5
        %v2435 = vrot.slane %v2434, 4
        %v2436 = vrot.slane %v2368, 5
        %v2437 = vsel %vm2405, %v2435, %v2436
        %v2438 = vrot.slane %v2436, 4
        %v2439 = vrot.slane %v2369, 5
        %v2440 = vsel %vm2405, %v2438, %v2439
        %v2441 = vrot.slane %v2370, 5
        %v2442 = vrot.slane %v2441, 4
        %v2443 = vrot.slane %v2371, 5
        %v2444 = vsel %vm2405, %v2442, %v2443
        %v2445 = vrot.slane %v2443, 4
        %v2446 = vrot.slane %v2372, 5
        %v2447 = vsel %vm2405, %v2445, %v2446
        %v2448 = vrot.slane %v2373, 5
        %v2449 = vrot.slane %v2448, 4
        %v2450 = vrot.slane %v2374, 5
        %v2451 = vsel %vm2405, %v2449, %v2450
        %v2452 = vrot.slane %v2450, 4
        %v2453 = vrot.slane %v2375, 5
        %v2454 = vsel %vm2405, %v2452, %v2453
        %v2455 = vrot.slane %v2376, 5
        %v2456 = vrot.slane %v2455, 4
        %v2457 = vrot.slane %v2377, 5
        %v2458 = vsel %vm2405, %v2456, %v2457
        %v2459 = vrot.slane %v2457, 4
        %v2460 = vrot.slane %v2378, 5
        %v2461 = vsel %vm2405, %v2459, %v2460
        %v2462 = vunpack.c.l.b16 %v2409
        %v2463 = vunpack.c.l.b16 %v2412
        %v2464 = vunpack.c.l.b16 %v2416
        %v2465 = vunpack.c.l.b16 %v2419
        %v2466 = vunpack.c.l.b16 %v2423
        %v2467 = vunpack.c.l.b16 %v2426
        %v2468 = vunpack.c.l.b16 %v2430
        %v2469 = vunpack.c.l.b16 %v2433
        %v2470 = vunpack.c.l.b16 %v2437
        %v2471 = vunpack.c.l.b16 %v2440
        %v2472 = vunpack.c.l.b16 %v2444
        %v2473 = vunpack.c.l.b16 %v2447
        %v2474 = vunpack.c.l.b16 %v2451
        %v2475 = vunpack.c.l.b16 %v2454
        %v2476 = vunpack.c.l.b16 %v2458
        %v2477 = vunpack.c.l.b16 %v2461
        %v2478 = vpack.c.b16 %v2463, %v2462
        %v2479 = vpack.c.b16 %v2465, %v2464
        %v2480 = vpack.c.b16 %v2467, %v2466
        %v2481 = vpack.c.b16 %v2469, %v2468
        %v2482 = vpack.c.b16 %v2471, %v2470
        %v2483 = vpack.c.b16 %v2473, %v2472
        %v2484 = vpack.c.b16 %v2475, %v2474
        %v2485 = vpack.c.b16 %v2477, %v2476
        %2486 = vrot.lane.b32.xlu0 %v2478, 16
        %v2487 = vpop.permute.xlu0 %2486
        %2488 = vrot.lane.b32.xlu0 %v2479, 16
        %v2489 = vpop.permute.xlu0 %2488
        %2490 = vrot.lane.b32.xlu0 %v2480, 16
        %v2491 = vpop.permute.xlu0 %2490
        %2492 = vrot.lane.b32.xlu0 %v2481, 16
        %v2493 = vpop.permute.xlu0 %2492
        %2494 = vrot.lane.b32.xlu0 %v2482, 16
        %v2495 = vpop.permute.xlu0 %2494
        %2496 = vrot.lane.b32.xlu0 %v2483, 16
        %v2497 = vpop.permute.xlu0 %2496
        %2498 = vrot.lane.b32.xlu0 %v2484, 16
        %v2499 = vpop.permute.xlu0 %2498
        %2500 = vrot.lane.b32.xlu0 %v2485, 16
        %v2501 = vpop.permute.xlu0 %2500
        %vm2510 = vcmask 195712
        %2511 = vst.msk [vmem:[#allocation4] sm:$0xff] %vm2510, %v2487
        %2512 = vst.msk [vmem:[#allocation4 + $0x8] sm:$0xff] %vm2510, %v2489
        %2513 = vst.msk [vmem:[#allocation4 + $0x10] sm:$0xff] %vm2510, %v2491
        %2514 = vst.msk [vmem:[#allocation4 + $0x18] sm:$0xff] %vm2510, %v2493
        %2515 = vst.msk [vmem:[#allocation4 + $0x20] sm:$0xff] %vm2510, %v2495
        %2516 = vst.msk [vmem:[#allocation4 + $0x28] sm:$0xff] %vm2510, %v2497
        %2517 = vst.msk [vmem:[#allocation4 + $0x30] sm:$0xff] %vm2510, %v2499
        %2518 = vst.msk [vmem:[#allocation4 + $0x38] sm:$0xff] %vm2510, %v2501
        %v2519 = vld [vmem:[%s901] sm:$0xf]
        %v2520 = vld [vmem:[%s901 + $0x4] sm:$0xf]
        %v2521 = vld [vmem:[%s901 + $0xc] sm:$0xf]
        %v2522 = vld [vmem:[%s901 + $0x10] sm:$0xf]
        %v2523 = vld [vmem:[%s901 + $0x18] sm:$0xf]
        %v2524 = vld [vmem:[%s901 + $0x1c] sm:$0xf]
        %v2525 = vld [vmem:[%s901 + $0x24] sm:$0xf]
        %v2526 = vld [vmem:[%s901 + $0x28] sm:$0xf]
        %v2527 = vld [vmem:[%s901 + $0x30] sm:$0xf]
        %v2528 = vld [vmem:[%s901 + $0x34] sm:$0xf]
        %v2529 = vld [vmem:[%s901 + $0x3c] sm:$0xf]
        %v2530 = vld [vmem:[%s901 + $0x40] sm:$0xf]
        %v2531 = vld [vmem:[%s901 + $0x48] sm:$0xf]
        %v2532 = vld [vmem:[%s901 + $0x4c] sm:$0xf]
        %v2533 = vld [vmem:[%s901 + $0x54] sm:$0xf]
        %v2534 = vld [vmem:[%s901 + $0x58] sm:$0xf]
        %v2551 = vunpack.c.l.b16 %v2519
        %v2552 = vunpack.c.l.b16 %v2520
        %v2553 = vunpack.c.l.b16 %v2521
        %v2554 = vunpack.c.l.b16 %v2522
        %v2555 = vunpack.c.l.b16 %v2523
        %v2556 = vunpack.c.l.b16 %v2524
        %v2557 = vunpack.c.l.b16 %v2525
        %v2558 = vunpack.c.l.b16 %v2526
        %v2559 = vunpack.c.l.b16 %v2527
        %v2560 = vunpack.c.l.b16 %v2528
        %v2561 = vunpack.c.l.b16 %v2529
        %v2562 = vunpack.c.l.b16 %v2530
        %v2563 = vunpack.c.l.b16 %v2531
        %v2564 = vunpack.c.l.b16 %v2532
        %v2565 = vunpack.c.l.b16 %v2533
        %v2566 = vunpack.c.l.b16 %v2534
        %v2567 = vpack.c.b16 %v2552, %v2551
        %v2568 = vpack.c.b16 %v2554, %v2553
        %v2569 = vpack.c.b16 %v2556, %v2555
        %v2570 = vpack.c.b16 %v2558, %v2557
        %v2571 = vpack.c.b16 %v2560, %v2559
        %v2572 = vpack.c.b16 %v2562, %v2561
        %v2573 = vpack.c.b16 %v2564, %v2563
        %v2574 = vpack.c.b16 %v2566, %v2565
        %2575 = vrot.lane.b32.xlu0 %v2567, 24
        %v2576 = vpop.permute.xlu0 %2575
        %2577 = vrot.lane.b32.xlu0 %v2568, 24
        %v2578 = vpop.permute.xlu0 %2577
        %2579 = vrot.lane.b32.xlu0 %v2569, 24
        %v2580 = vpop.permute.xlu0 %2579
        %2581 = vrot.lane.b32.xlu0 %v2570, 24
        %v2582 = vpop.permute.xlu0 %2581
        %2583 = vrot.lane.b32.xlu0 %v2571, 24
        %v2584 = vpop.permute.xlu0 %2583
        %2585 = vrot.lane.b32.xlu0 %v2572, 24
        %v2586 = vpop.permute.xlu0 %2585
        %2587 = vrot.lane.b32.xlu0 %v2573, 24
        %v2588 = vpop.permute.xlu0 %2587
        %2589 = vrot.lane.b32.xlu0 %v2574, 24
        %v2590 = vpop.permute.xlu0 %2589
        %vm2599 = vcmask 261312
        %2600 = vst.msk [vmem:[#allocation4] sm:$0xff] %vm2599, %v2576
        %2601 = vst.msk [vmem:[#allocation4 + $0x8] sm:$0xff] %vm2599, %v2578
        %2602 = vst.msk [vmem:[#allocation4 + $0x10] sm:$0xff] %vm2599, %v2580
        %2603 = vst.msk [vmem:[#allocation4 + $0x18] sm:$0xff] %vm2599, %v2582
        %2604 = vst.msk [vmem:[#allocation4 + $0x20] sm:$0xff] %vm2599, %v2584
        %2605 = vst.msk [vmem:[#allocation4 + $0x28] sm:$0xff] %vm2599, %v2586
        %2606 = vst.msk [vmem:[#allocation4 + $0x30] sm:$0xff] %vm2599, %v2588
        %2607 = vst.msk [vmem:[#allocation4 + $0x38] sm:$0xff] %vm2599, %v2590
        %v2608 = vld [vmem:[%s901] sm:$0xf]
        %v2609 = vld [vmem:[%s901 + $0x4] sm:$0xf]
        %v2610 = vld [vmem:[%s901 + $0x8] sm:$0x1]
        %v2611 = vld [vmem:[%s901 + $0xc] sm:$0xf]
        %v2612 = vld [vmem:[%s901 + $0x10] sm:$0xf]
        %v2613 = vld [vmem:[%s901 + $0x14] sm:$0x1]
        %v2614 = vld [vmem:[%s901 + $0x18] sm:$0xf]
        %v2615 = vld [vmem:[%s901 + $0x1c] sm:$0xf]
        %v2616 = vld [vmem:[%s901 + $0x20] sm:$0x1]
        %v2617 = vld [vmem:[%s901 + $0x24] sm:$0xf]
        %v2618 = vld [vmem:[%s901 + $0x28] sm:$0xf]
        %v2619 = vld [vmem:[%s901 + $0x2c] sm:$0x1]
        %v2620 = vld [vmem:[%s901 + $0x30] sm:$0xf]
        %v2621 = vld [vmem:[%s901 + $0x34] sm:$0xf]
        %v2622 = vld [vmem:[%s901 + $0x38] sm:$0x1]
        %v2623 = vld [vmem:[%s901 + $0x3c] sm:$0xf]
        %v2624 = vld [vmem:[%s901 + $0x40] sm:$0xf]
        %v2625 = vld [vmem:[%s901 + $0x44] sm:$0x1]
        %v2626 = vld [vmem:[%s901 + $0x48] sm:$0xf]
        %v2627 = vld [vmem:[%s901 + $0x4c] sm:$0xf]
        %v2628 = vld [vmem:[%s901 + $0x50] sm:$0x1]
        %v2629 = vld [vmem:[%s901 + $0x54] sm:$0xf]
        %v2630 = vld [vmem:[%s901 + $0x58] sm:$0xf]
        %v2631 = vld [vmem:[%s901 + $0x5c] sm:$0x1]
        %v2633 = vshrl.u32 %v2608, 16
        %v2635 = vrot.slane %v2633, 4
        %v2636 = vshll.u32 %v2608, 16
        %v2638 = vrot.slane %v2636, 5
        %v2639 = vor.u32 %v2635, %v2638
        %v2640 = vrot.slane %v2639, 4
        %v2642 = vshll.u32 %v2609, 16
        %v2644 = vrot.slane %v2642, 5
        %v2645 = vsel %vm2105, %v2640, %v2644
        %v2646 = vshrl.u32 %v2609, 16
        %v2648 = vrot.slane %v2646, 4
        %v2649 = vor.u32 %v2648, %v2644
        %v2650 = vrot.slane %v2649, 4
        %v2652 = vshll.u32 %v2610, 16
        %v2654 = vrot.slane %v2652, 5
        %v2655 = vsel %vm2105, %v2650, %v2654
        %v2657 = vshrl.u32 %v2611, 16
        %v2659 = vrot.slane %v2657, 4
        %v2660 = vshll.u32 %v2611, 16
        %v2662 = vrot.slane %v2660, 5
        %v2663 = vor.u32 %v2659, %v2662
        %v2664 = vrot.slane %v2663, 4
        %v2666 = vshll.u32 %v2612, 16
        %v2668 = vrot.slane %v2666, 5
        %v2669 = vsel %vm2105, %v2664, %v2668
        %v2670 = vshrl.u32 %v2612, 16
        %v2672 = vrot.slane %v2670, 4
        %v2673 = vor.u32 %v2672, %v2668
        %v2674 = vrot.slane %v2673, 4
        %v2676 = vshll.u32 %v2613, 16
        %v2678 = vrot.slane %v2676, 5
        %v2679 = vsel %vm2105, %v2674, %v2678
        %v2681 = vshrl.u32 %v2614, 16
        %v2683 = vrot.slane %v2681, 4
        %v2684 = vshll.u32 %v2614, 16
        %v2686 = vrot.slane %v2684, 5
        %v2687 = vor.u32 %v2683, %v2686
        %v2688 = vrot.slane %v2687, 4
        %v2690 = vshll.u32 %v2615, 16
        %v2692 = vrot.slane %v2690, 5
        %v2693 = vsel %vm2105, %v2688, %v2692
        %v2694 = vshrl.u32 %v2615, 16
        %v2696 = vrot.slane %v2694, 4
        %v2697 = vor.u32 %v2696, %v2692
        %v2698 = vrot.slane %v2697, 4
        %v2700 = vshll.u32 %v2616, 16
        %v2702 = vrot.slane %v2700, 5
        %v2703 = vsel %vm2105, %v2698, %v2702
        %v2705 = vshrl.u32 %v2617, 16
        %v2707 = vrot.slane %v2705, 4
        %v2708 = vshll.u32 %v2617, 16
        %v2710 = vrot.slane %v2708, 5
        %v2711 = vor.u32 %v2707, %v2710
        %v2712 = vrot.slane %v2711, 4
        %v2714 = vshll.u32 %v2618, 16
        %v2716 = vrot.slane %v2714, 5
        %v2717 = vsel %vm2105, %v2712, %v2716
        %v2718 = vshrl.u32 %v2618, 16
        %v2720 = vrot.slane %v2718, 4
        %v2721 = vor.u32 %v2720, %v2716
        %v2722 = vrot.slane %v2721, 4
        %v2724 = vshll.u32 %v2619, 16
        %v2726 = vrot.slane %v2724, 5
        %v2727 = vsel %vm2105, %v2722, %v2726
        %v2729 = vshrl.u32 %v2620, 16
        %v2731 = vrot.slane %v2729, 4
        %v2732 = vshll.u32 %v2620, 16
        %v2734 = vrot.slane %v2732, 5
        %v2735 = vor.u32 %v2731, %v2734
        %v2736 = vrot.slane %v2735, 4
        %v2738 = vshll.u32 %v2621, 16
        %v2740 = vrot.slane %v2738, 5
        %v2741 = vsel %vm2105, %v2736, %v2740
        %v2742 = vshrl.u32 %v2621, 16
        %v2744 = vrot.slane %v2742, 4
        %v2745 = vor.u32 %v2744, %v2740
        %v2746 = vrot.slane %v2745, 4
        %v2748 = vshll.u32 %v2622, 16
        %v2750 = vrot.slane %v2748, 5
        %v2751 = vsel %vm2105, %v2746, %v2750
        %v2753 = vshrl.u32 %v2623, 16
        %v2755 = vrot.slane %v2753, 4
        %v2756 = vshll.u32 %v2623, 16
        %v2758 = vrot.slane %v2756, 5
        %v2759 = vor.u32 %v2755, %v2758
        %v2760 = vrot.slane %v2759, 4
        %v2762 = vshll.u32 %v2624, 16
        %v2764 = vrot.slane %v2762, 5
        %v2765 = vsel %vm2105, %v2760, %v2764
        %v2766 = vshrl.u32 %v2624, 16
        %v2768 = vrot.slane %v2766, 4
        %v2769 = vor.u32 %v2768, %v2764
        %v2770 = vrot.slane %v2769, 4
        %v2772 = vshll.u32 %v2625, 16
        %v2774 = vrot.slane %v2772, 5
        %v2775 = vsel %vm2105, %v2770, %v2774
        %v2777 = vshrl.u32 %v2626, 16
        %v2779 = vrot.slane %v2777, 4
        %v2780 = vshll.u32 %v2626, 16
        %v2782 = vrot.slane %v2780, 5
        %v2783 = vor.u32 %v2779, %v2782
        %v2784 = vrot.slane %v2783, 4
        %v2786 = vshll.u32 %v2627, 16
        %v2788 = vrot.slane %v2786, 5
        %v2789 = vsel %vm2105, %v2784, %v2788
        %v2790 = vshrl.u32 %v2627, 16
        %v2792 = vrot.slane %v2790, 4
        %v2793 = vor.u32 %v2792, %v2788
        %v2794 = vrot.slane %v2793, 4
        %v2796 = vshll.u32 %v2628, 16
        %v2798 = vrot.slane %v2796, 5
        %v2799 = vsel %vm2105, %v2794, %v2798
        %v2801 = vshrl.u32 %v2629, 16
        %v2803 = vrot.slane %v2801, 4
        %v2804 = vshll.u32 %v2629, 16
        %v2806 = vrot.slane %v2804, 5
        %v2807 = vor.u32 %v2803, %v2806
        %v2808 = vrot.slane %v2807, 4
        %v2810 = vshll.u32 %v2630, 16
        %v2812 = vrot.slane %v2810, 5
        %v2813 = vsel %vm2105, %v2808, %v2812
        %v2814 = vshrl.u32 %v2630, 16
        %v2816 = vrot.slane %v2814, 4
        %v2817 = vor.u32 %v2816, %v2812
        %v2818 = vrot.slane %v2817, 4
        %v2820 = vshll.u32 %v2631, 16
        %v2822 = vrot.slane %v2820, 5
        %v2823 = vsel %vm2105, %v2818, %v2822
        %v2824 = vunpack.c.l.b16 %v2645
        %v2825 = vunpack.c.l.b16 %v2655
        %v2826 = vunpack.c.l.b16 %v2669
        %v2827 = vunpack.c.l.b16 %v2679
        %v2828 = vunpack.c.l.b16 %v2693
        %v2829 = vunpack.c.l.b16 %v2703
        %v2830 = vunpack.c.l.b16 %v2717
        %v2831 = vunpack.c.l.b16 %v2727
        %v2832 = vunpack.c.l.b16 %v2741
        %v2833 = vunpack.c.l.b16 %v2751
        %v2834 = vunpack.c.l.b16 %v2765
        %v2835 = vunpack.c.l.b16 %v2775
        %v2836 = vunpack.c.l.b16 %v2789
        %v2837 = vunpack.c.l.b16 %v2799
        %v2838 = vunpack.c.l.b16 %v2813
        %v2839 = vunpack.c.l.b16 %v2823
        %v2840 = vpack.c.b16 %v2825, %v2824
        %v2841 = vpack.c.b16 %v2827, %v2826
        %v2842 = vpack.c.b16 %v2829, %v2828
        %v2843 = vpack.c.b16 %v2831, %v2830
        %v2844 = vpack.c.b16 %v2833, %v2832
        %v2845 = vpack.c.b16 %v2835, %v2834
        %v2846 = vpack.c.b16 %v2837, %v2836
        %v2847 = vpack.c.b16 %v2839, %v2838
        %2848 = vrot.lane.b32.xlu0 %v2840, 32
        %v2849 = vpop.permute.xlu0 %2848
        %2850 = vrot.lane.b32.xlu0 %v2841, 32
        %v2851 = vpop.permute.xlu0 %2850
        %2852 = vrot.lane.b32.xlu0 %v2842, 32
        %v2853 = vpop.permute.xlu0 %2852
        %2854 = vrot.lane.b32.xlu0 %v2843, 32
        %v2855 = vpop.permute.xlu0 %2854
        %2856 = vrot.lane.b32.xlu0 %v2844, 32
        %v2857 = vpop.permute.xlu0 %2856
        %2858 = vrot.lane.b32.xlu0 %v2845, 32
        %v2859 = vpop.permute.xlu0 %2858
        %2860 = vrot.lane.b32.xlu0 %v2846, 32
        %v2861 = vpop.permute.xlu0 %2860
        %2862 = vrot.lane.b32.xlu0 %v2847, 32
        %v2863 = vpop.permute.xlu0 %2862
        %vm2872 = vcmask 326912
        %2873 = vst.msk [vmem:[#allocation4] sm:$0xff] %vm2872, %v2849
        %2874 = vst.msk [vmem:[#allocation4 + $0x8] sm:$0xff] %vm2872, %v2851
        %2875 = vst.msk [vmem:[#allocation4 + $0x10] sm:$0xff] %vm2872, %v2853
        %2876 = vst.msk [vmem:[#allocation4 + $0x18] sm:$0xff] %vm2872, %v2855
        %2877 = vst.msk [vmem:[#allocation4 + $0x20] sm:$0xff] %vm2872, %v2857
        %2878 = vst.msk [vmem:[#allocation4 + $0x28] sm:$0xff] %vm2872, %v2859
        %2879 = vst.msk [vmem:[#allocation4 + $0x30] sm:$0xff] %vm2872, %v2861
        %2880 = vst.msk [vmem:[#allocation4 + $0x38] sm:$0xff] %vm2872, %v2863
        %v2881 = vld [vmem:[%s901] sm:$0xe]
        %v2882 = vld [vmem:[%s901 + $0x4] sm:$0xf]
        %v2883 = vld [vmem:[%s901 + $0x8] sm:$0x1]
        %v2884 = vld [vmem:[%s901 + $0xc] sm:$0xe]
        %v2885 = vld [vmem:[%s901 + $0x10] sm:$0xf]
        %v2886 = vld [vmem:[%s901 + $0x14] sm:$0x1]
        %v2887 = vld [vmem:[%s901 + $0x18] sm:$0xe]
        %v2888 = vld [vmem:[%s901 + $0x1c] sm:$0xf]
        %v2889 = vld [vmem:[%s901 + $0x20] sm:$0x1]
        %v2890 = vld [vmem:[%s901 + $0x24] sm:$0xe]
        %v2891 = vld [vmem:[%s901 + $0x28] sm:$0xf]
        %v2892 = vld [vmem:[%s901 + $0x2c] sm:$0x1]
        %v2893 = vld [vmem:[%s901 + $0x30] sm:$0xe]
        %v2894 = vld [vmem:[%s901 + $0x34] sm:$0xf]
        %v2895 = vld [vmem:[%s901 + $0x38] sm:$0x1]
        %v2896 = vld [vmem:[%s901 + $0x3c] sm:$0xe]
        %v2897 = vld [vmem:[%s901 + $0x40] sm:$0xf]
        %v2898 = vld [vmem:[%s901 + $0x44] sm:$0x1]
        %v2899 = vld [vmem:[%s901 + $0x48] sm:$0xe]
        %v2900 = vld [vmem:[%s901 + $0x4c] sm:$0xf]
        %v2901 = vld [vmem:[%s901 + $0x50] sm:$0x1]
        %v2902 = vld [vmem:[%s901 + $0x54] sm:$0xe]
        %v2903 = vld [vmem:[%s901 + $0x58] sm:$0xf]
        %v2904 = vld [vmem:[%s901 + $0x5c] sm:$0x1]
        %v2929 = vrot.slane %v2881, 5
        %v2930 = vrot.slane %v2929, 4
        %v2931 = vrot.slane %v2882, 5
        %v2932 = vsel %vm2405, %v2930, %v2931
        %v2933 = vrot.slane %v2931, 4
        %v2934 = vrot.slane %v2883, 5
        %v2935 = vsel %vm2405, %v2933, %v2934
        %v2936 = vrot.slane %v2884, 5
        %v2937 = vrot.slane %v2936, 4
        %v2938 = vrot.slane %v2885, 5
        %v2939 = vsel %vm2405, %v2937, %v2938
        %v2940 = vrot.slane %v2938, 4
        %v2941 = vrot.slane %v2886, 5
        %v2942 = vsel %vm2405, %v2940, %v2941
        %v2943 = vrot.slane %v2887, 5
        %v2944 = vrot.slane %v2943, 4
        %v2945 = vrot.slane %v2888, 5
        %v2946 = vsel %vm2405, %v2944, %v2945
        %v2947 = vrot.slane %v2945, 4
        %v2948 = vrot.slane %v2889, 5
        %v2949 = vsel %vm2405, %v2947, %v2948
        %v2950 = vrot.slane %v2890, 5
        %v2951 = vrot.slane %v2950, 4
        %v2952 = vrot.slane %v2891, 5
        %v2953 = vsel %vm2405, %v2951, %v2952
        %v2954 = vrot.slane %v2952, 4
        %v2955 = vrot.slane %v2892, 5
        %v2956 = vsel %vm2405, %v2954, %v2955
        %v2957 = vrot.slane %v2893, 5
        %v2958 = vrot.slane %v2957, 4
        %v2959 = vrot.slane %v2894, 5
        %v2960 = vsel %vm2405, %v2958, %v2959
        %v2961 = vrot.slane %v2959, 4
        %v2962 = vrot.slane %v2895, 5
        %v2963 = vsel %vm2405, %v2961, %v2962
        %v2964 = vrot.slane %v2896, 5
        %v2965 = vrot.slane %v2964, 4
        %v2966 = vrot.slane %v2897, 5
        %v2967 = vsel %vm2405, %v2965, %v2966
        %v2968 = vrot.slane %v2966, 4
        %v2969 = vrot.slane %v2898, 5
        %v2970 = vsel %vm2405, %v2968, %v2969
        %v2971 = vrot.slane %v2899, 5
        %v2972 = vrot.slane %v2971, 4
        %v2973 = vrot.slane %v2900, 5
        %v2974 = vsel %vm2405, %v2972, %v2973
        %v2975 = vrot.slane %v2973, 4
        %v2976 = vrot.slane %v2901, 5
        %v2977 = vsel %vm2405, %v2975, %v2976
        %v2978 = vrot.slane %v2902, 5
        %v2979 = vrot.slane %v2978, 4
        %v2980 = vrot.slane %v2903, 5
        %v2981 = vsel %vm2405, %v2979, %v2980
        %v2982 = vrot.slane %v2980, 4
        %v2983 = vrot.slane %v2904, 5
        %v2984 = vsel %vm2405, %v2982, %v2983
        %v2985 = vunpack.c.l.b16 %v2932
        %v2986 = vunpack.c.l.b16 %v2935
        %v2987 = vunpack.c.l.b16 %v2939
        %v2988 = vunpack.c.l.b16 %v2942
        %v2989 = vunpack.c.l.b16 %v2946
        %v2990 = vunpack.c.l.b16 %v2949
        %v2991 = vunpack.c.l.b16 %v2953
        %v2992 = vunpack.c.l.b16 %v2956
        %v2993 = vunpack.c.l.b16 %v2960
        %v2994 = vunpack.c.l.b16 %v2963
        %v2995 = vunpack.c.l.b16 %v2967
        %v2996 = vunpack.c.l.b16 %v2970
        %v2997 = vunpack.c.l.b16 %v2974
        %v2998 = vunpack.c.l.b16 %v2977
        %v2999 = vunpack.c.l.b16 %v2981
        %v3000 = vunpack.c.l.b16 %v2984
        %v3001 = vpack.c.b16 %v2986, %v2985
        %v3002 = vpack.c.b16 %v2988, %v2987
        %v3003 = vpack.c.b16 %v2990, %v2989
        %v3004 = vpack.c.b16 %v2992, %v2991
        %v3005 = vpack.c.b16 %v2994, %v2993
        %v3006 = vpack.c.b16 %v2996, %v2995
        %v3007 = vpack.c.b16 %v2998, %v2997
        %v3008 = vpack.c.b16 %v3000, %v2999
        %3009 = vrot.lane.b32.xlu0 %v3001, 40
        %v3010 = vpop.permute.xlu0 %3009
        %3011 = vrot.lane.b32.xlu0 %v3002, 40
        %v3012 = vpop.permute.xlu0 %3011
        %3013 = vrot.lane.b32.xlu0 %v3003, 40
        %v3014 = vpop.permute.xlu0 %3013
        %3015 = vrot.lane.b32.xlu0 %v3004, 40
        %v3016 = vpop.permute.xlu0 %3015
        %3017 = vrot.lane.b32.xlu0 %v3005, 40
        %v3018 = vpop.permute.xlu0 %3017
        %3019 = vrot.lane.b32.xlu0 %v3006, 40
        %v3020 = vpop.permute.xlu0 %3019
        %3021 = vrot.lane.b32.xlu0 %v3007, 40
        %v3022 = vpop.permute.xlu0 %3021
        %3023 = vrot.lane.b32.xlu0 %v3008, 40
        %v3024 = vpop.permute.xlu0 %3023
        %vm3033 = vcmask 392512
        %3034 = vst.msk [vmem:[#allocation4] sm:$0xff] %vm3033, %v3010
        %3035 = vst.msk [vmem:[#allocation4 + $0x8] sm:$0xff] %vm3033, %v3012
        %3036 = vst.msk [vmem:[#allocation4 + $0x10] sm:$0xff] %vm3033, %v3014
        %3037 = vst.msk [vmem:[#allocation4 + $0x18] sm:$0xff] %vm3033, %v3016
        %3038 = vst.msk [vmem:[#allocation4 + $0x20] sm:$0xff] %vm3033, %v3018
        %3039 = vst.msk [vmem:[#allocation4 + $0x28] sm:$0xff] %vm3033, %v3020
        %3040 = vst.msk [vmem:[#allocation4 + $0x30] sm:$0xff] %vm3033, %v3022
        %3041 = vst.msk [vmem:[#allocation4 + $0x38] sm:$0xff] %vm3033, %v3024
        %s3042 = sadd.s32 0, 2
        %s3043 = smul.u32 %s3042, 3
        %s3044 = smul.addr %s3043, 4
        %s3045 = scalar_lea.vmem [#allocation2], %s3044
        %v3046 = vld [vmem:[%s3045] sm:$0xf]
        %v3047 = vld [vmem:[%s3045 + $0x4] sm:$0xf]
        %v3048 = vld [vmem:[%s3045 + $0xc] sm:$0xf]
        %v3049 = vld [vmem:[%s3045 + $0x10] sm:$0xf]
        %v3050 = vld [vmem:[%s3045 + $0x18] sm:$0xf]
        %v3051 = vld [vmem:[%s3045 + $0x1c] sm:$0xf]
        %v3052 = vld [vmem:[%s3045 + $0x24] sm:$0xf]
        %v3053 = vld [vmem:[%s3045 + $0x28] sm:$0xf]
        %v3054 = vld [vmem:[%s3045 + $0x30] sm:$0xf]
        %v3055 = vld [vmem:[%s3045 + $0x34] sm:$0xf]
        %v3056 = vld [vmem:[%s3045 + $0x3c] sm:$0xf]
        %v3057 = vld [vmem:[%s3045 + $0x40] sm:$0xf]
        %v3058 = vld [vmem:[%s3045 + $0x48] sm:$0xf]
        %v3059 = vld [vmem:[%s3045 + $0x4c] sm:$0xf]
        %v3060 = vld [vmem:[%s3045 + $0x54] sm:$0xf]
        %v3061 = vld [vmem:[%s3045 + $0x58] sm:$0xf]
        %v3078 = vunpack.c.l.b16 %v3046
        %v3079 = vunpack.c.l.b16 %v3047
        %v3080 = vunpack.c.l.b16 %v3048
        %v3081 = vunpack.c.l.b16 %v3049
        %v3082 = vunpack.c.l.b16 %v3050
        %v3083 = vunpack.c.l.b16 %v3051
        %v3084 = vunpack.c.l.b16 %v3052
        %v3085 = vunpack.c.l.b16 %v3053
        %v3086 = vunpack.c.l.b16 %v3054
        %v3087 = vunpack.c.l.b16 %v3055
        %v3088 = vunpack.c.l.b16 %v3056
        %v3089 = vunpack.c.l.b16 %v3057
        %v3090 = vunpack.c.l.b16 %v3058
        %v3091 = vunpack.c.l.b16 %v3059
        %v3092 = vunpack.c.l.b16 %v3060
        %v3093 = vunpack.c.l.b16 %v3061
        %v3094 = vpack.c.b16 %v3079, %v3078
        %v3095 = vpack.c.b16 %v3081, %v3080
        %v3096 = vpack.c.b16 %v3083, %v3082
        %v3097 = vpack.c.b16 %v3085, %v3084
        %v3098 = vpack.c.b16 %v3087, %v3086
        %v3099 = vpack.c.b16 %v3089, %v3088
        %v3100 = vpack.c.b16 %v3091, %v3090
        %v3101 = vpack.c.b16 %v3093, %v3092
        %3102 = vrot.lane.b32.xlu0 %v3094, 48
        %v3103 = vpop.permute.xlu0 %3102
        %3104 = vrot.lane.b32.xlu0 %v3095, 48
        %v3105 = vpop.permute.xlu0 %3104
        %3106 = vrot.lane.b32.xlu0 %v3096, 48
        %v3107 = vpop.permute.xlu0 %3106
        %3108 = vrot.lane.b32.xlu0 %v3097, 48
        %v3109 = vpop.permute.xlu0 %3108
        %3110 = vrot.lane.b32.xlu0 %v3098, 48
        %v3111 = vpop.permute.xlu0 %3110
        %3112 = vrot.lane.b32.xlu0 %v3099, 48
        %v3113 = vpop.permute.xlu0 %3112
        %3114 = vrot.lane.b32.xlu0 %v3100, 48
        %v3115 = vpop.permute.xlu0 %3114
        %3116 = vrot.lane.b32.xlu0 %v3101, 48
        %v3117 = vpop.permute.xlu0 %3116
        %vm3126 = vcmask 458112
        %3127 = vst.msk [vmem:[#allocation4] sm:$0xff] %vm3126, %v3103
        %3128 = vst.msk [vmem:[#allocation4 + $0x8] sm:$0xff] %vm3126, %v3105
        %3129 = vst.msk [vmem:[#allocation4 + $0x10] sm:$0xff] %vm3126, %v3107
        %3130 = vst.msk [vmem:[#allocation4 + $0x18] sm:$0xff] %vm3126, %v3109
        %3131 = vst.msk [vmem:[#allocation4 + $0x20] sm:$0xff] %vm3126, %v3111
        %3132 = vst.msk [vmem:[#allocation4 + $0x28] sm:$0xff] %vm3126, %v3113
        %3133 = vst.msk [vmem:[#allocation4 + $0x30] sm:$0xff] %vm3126, %v3115
        %3134 = vst.msk [vmem:[#allocation4 + $0x38] sm:$0xff] %vm3126, %v3117
        %v3135 = vld [vmem:[%s3045] sm:$0xf]
        %v3136 = vld [vmem:[%s3045 + $0x4] sm:$0xf]
        %v3137 = vld [vmem:[%s3045 + $0x8] sm:$0x1]
        %v3138 = vld [vmem:[%s3045 + $0xc] sm:$0xf]
        %v3139 = vld [vmem:[%s3045 + $0x10] sm:$0xf]
        %v3140 = vld [vmem:[%s3045 + $0x14] sm:$0x1]
        %v3141 = vld [vmem:[%s3045 + $0x18] sm:$0xf]
        %v3142 = vld [vmem:[%s3045 + $0x1c] sm:$0xf]
        %v3143 = vld [vmem:[%s3045 + $0x20] sm:$0x1]
        %v3144 = vld [vmem:[%s3045 + $0x24] sm:$0xf]
        %v3145 = vld [vmem:[%s3045 + $0x28] sm:$0xf]
        %v3146 = vld [vmem:[%s3045 + $0x2c] sm:$0x1]
        %v3147 = vld [vmem:[%s3045 + $0x30] sm:$0xf]
        %v3148 = vld [vmem:[%s3045 + $0x34] sm:$0xf]
        %v3149 = vld [vmem:[%s3045 + $0x38] sm:$0x1]
        %v3150 = vld [vmem:[%s3045 + $0x3c] sm:$0xf]
        %v3151 = vld [vmem:[%s3045 + $0x40] sm:$0xf]
        %v3152 = vld [vmem:[%s3045 + $0x44] sm:$0x1]
        %v3153 = vld [vmem:[%s3045 + $0x48] sm:$0xf]
        %v3154 = vld [vmem:[%s3045 + $0x4c] sm:$0xf]
        %v3155 = vld [vmem:[%s3045 + $0x50] sm:$0x1]
        %v3156 = vld [vmem:[%s3045 + $0x54] sm:$0xf]
        %v3157 = vld [vmem:[%s3045 + $0x58] sm:$0xf]
        %v3158 = vld [vmem:[%s3045 + $0x5c] sm:$0x1]
        %v3160 = vshrl.u32 %v3135, 16
        %v3162 = vrot.slane %v3160, 4
        %v3163 = vshll.u32 %v3135, 16
        %v3165 = vrot.slane %v3163, 5
        %v3166 = vor.u32 %v3162, %v3165
        %v3167 = vrot.slane %v3166, 4
        %v3169 = vshll.u32 %v3136, 16
        %v3171 = vrot.slane %v3169, 5
        %v3172 = vsel %vm2105, %v3167, %v3171
        %v3173 = vshrl.u32 %v3136, 16
        %v3175 = vrot.slane %v3173, 4
        %v3176 = vor.u32 %v3175, %v3171
        %v3177 = vrot.slane %v3176, 4
        %v3179 = vshll.u32 %v3137, 16
        %v3181 = vrot.slane %v3179, 5
        %v3182 = vsel %vm2105, %v3177, %v3181
        %v3184 = vshrl.u32 %v3138, 16
        %v3186 = vrot.slane %v3184, 4
        %v3187 = vshll.u32 %v3138, 16
        %v3189 = vrot.slane %v3187, 5
        %v3190 = vor.u32 %v3186, %v3189
        %v3191 = vrot.slane %v3190, 4
        %v3193 = vshll.u32 %v3139, 16
        %v3195 = vrot.slane %v3193, 5
        %v3196 = vsel %vm2105, %v3191, %v3195
        %v3197 = vshrl.u32 %v3139, 16
        %v3199 = vrot.slane %v3197, 4
        %v3200 = vor.u32 %v3199, %v3195
        %v3201 = vrot.slane %v3200, 4
        %v3203 = vshll.u32 %v3140, 16
        %v3205 = vrot.slane %v3203, 5
        %v3206 = vsel %vm2105, %v3201, %v3205
        %v3208 = vshrl.u32 %v3141, 16
        %v3210 = vrot.slane %v3208, 4
        %v3211 = vshll.u32 %v3141, 16
        %v3213 = vrot.slane %v3211, 5
        %v3214 = vor.u32 %v3210, %v3213
        %v3215 = vrot.slane %v3214, 4
        %v3217 = vshll.u32 %v3142, 16
        %v3219 = vrot.slane %v3217, 5
        %v3220 = vsel %vm2105, %v3215, %v3219
        %v3221 = vshrl.u32 %v3142, 16
        %v3223 = vrot.slane %v3221, 4
        %v3224 = vor.u32 %v3223, %v3219
        %v3225 = vrot.slane %v3224, 4
        %v3227 = vshll.u32 %v3143, 16
        %v3229 = vrot.slane %v3227, 5
        %v3230 = vsel %vm2105, %v3225, %v3229
        %v3232 = vshrl.u32 %v3144, 16
        %v3234 = vrot.slane %v3232, 4
        %v3235 = vshll.u32 %v3144, 16
        %v3237 = vrot.slane %v3235, 5
        %v3238 = vor.u32 %v3234, %v3237
        %v3239 = vrot.slane %v3238, 4
        %v3241 = vshll.u32 %v3145, 16
        %v3243 = vrot.slane %v3241, 5
        %v3244 = vsel %vm2105, %v3239, %v3243
        %v3245 = vshrl.u32 %v3145, 16
        %v3247 = vrot.slane %v3245, 4
        %v3248 = vor.u32 %v3247, %v3243
        %v3249 = vrot.slane %v3248, 4
        %v3251 = vshll.u32 %v3146, 16
        %v3253 = vrot.slane %v3251, 5
        %v3254 = vsel %vm2105, %v3249, %v3253
        %v3256 = vshrl.u32 %v3147, 16
        %v3258 = vrot.slane %v3256, 4
        %v3259 = vshll.u32 %v3147, 16
        %v3261 = vrot.slane %v3259, 5
        %v3262 = vor.u32 %v3258, %v3261
        %v3263 = vrot.slane %v3262, 4
        %v3265 = vshll.u32 %v3148, 16
        %v3267 = vrot.slane %v3265, 5
        %v3268 = vsel %vm2105, %v3263, %v3267
        %v3269 = vshrl.u32 %v3148, 16
        %v3271 = vrot.slane %v3269, 4
        %v3272 = vor.u32 %v3271, %v3267
        %v3273 = vrot.slane %v3272, 4
        %v3275 = vshll.u32 %v3149, 16
        %v3277 = vrot.slane %v3275, 5
        %v3278 = vsel %vm2105, %v3273, %v3277
        %v3280 = vshrl.u32 %v3150, 16
        %v3282 = vrot.slane %v3280, 4
        %v3283 = vshll.u32 %v3150, 16
        %v3285 = vrot.slane %v3283, 5
        %v3286 = vor.u32 %v3282, %v3285
        %v3287 = vrot.slane %v3286, 4
        %v3289 = vshll.u32 %v3151, 16
        %v3291 = vrot.slane %v3289, 5
        %v3292 = vsel %vm2105, %v3287, %v3291
        %v3293 = vshrl.u32 %v3151, 16
        %v3295 = vrot.slane %v3293, 4
        %v3296 = vor.u32 %v3295, %v3291
        %v3297 = vrot.slane %v3296, 4
        %v3299 = vshll.u32 %v3152, 16
        %v3301 = vrot.slane %v3299, 5
        %v3302 = vsel %vm2105, %v3297, %v3301
        %v3304 = vshrl.u32 %v3153, 16
        %v3306 = vrot.slane %v3304, 4
        %v3307 = vshll.u32 %v3153, 16
        %v3309 = vrot.slane %v3307, 5
        %v3310 = vor.u32 %v3306, %v3309
        %v3311 = vrot.slane %v3310, 4
        %v3313 = vshll.u32 %v3154, 16
        %v3315 = vrot.slane %v3313, 5
        %v3316 = vsel %vm2105, %v3311, %v3315
        %v3317 = vshrl.u32 %v3154, 16
        %v3319 = vrot.slane %v3317, 4
        %v3320 = vor.u32 %v3319, %v3315
        %v3321 = vrot.slane %v3320, 4
        %v3323 = vshll.u32 %v3155, 16
        %v3325 = vrot.slane %v3323, 5
        %v3326 = vsel %vm2105, %v3321, %v3325
        %v3328 = vshrl.u32 %v3156, 16
        %v3330 = vrot.slane %v3328, 4
        %v3331 = vshll.u32 %v3156, 16
        %v3333 = vrot.slane %v3331, 5
        %v3334 = vor.u32 %v3330, %v3333
        %v3335 = vrot.slane %v3334, 4
        %v3337 = vshll.u32 %v3157, 16
        %v3339 = vrot.slane %v3337, 5
        %v3340 = vsel %vm2105, %v3335, %v3339
        %v3341 = vshrl.u32 %v3157, 16
        %v3343 = vrot.slane %v3341, 4
        %v3344 = vor.u32 %v3343, %v3339
        %v3345 = vrot.slane %v3344, 4
        %v3347 = vshll.u32 %v3158, 16
        %v3349 = vrot.slane %v3347, 5
        %v3350 = vsel %vm2105, %v3345, %v3349
        %v3351 = vunpack.c.l.b16 %v3172
        %v3352 = vunpack.c.l.b16 %v3182
        %v3353 = vunpack.c.l.b16 %v3196
        %v3354 = vunpack.c.l.b16 %v3206
        %v3355 = vunpack.c.l.b16 %v3220
        %v3356 = vunpack.c.l.b16 %v3230
        %v3357 = vunpack.c.l.b16 %v3244
        %v3358 = vunpack.c.l.b16 %v3254
        %v3359 = vunpack.c.l.b16 %v3268
        %v3360 = vunpack.c.l.b16 %v3278
        %v3361 = vunpack.c.l.b16 %v3292
        %v3362 = vunpack.c.l.b16 %v3302
        %v3363 = vunpack.c.l.b16 %v3316
        %v3364 = vunpack.c.l.b16 %v3326
        %v3365 = vunpack.c.l.b16 %v3340
        %v3366 = vunpack.c.l.b16 %v3350
        %v3367 = vpack.c.b16 %v3352, %v3351
        %v3368 = vpack.c.b16 %v3354, %v3353
        %v3369 = vpack.c.b16 %v3356, %v3355
        %v3370 = vpack.c.b16 %v3358, %v3357
        %v3371 = vpack.c.b16 %v3360, %v3359
        %v3372 = vpack.c.b16 %v3362, %v3361
        %v3373 = vpack.c.b16 %v3364, %v3363
        %v3374 = vpack.c.b16 %v3366, %v3365
        %3375 = vrot.lane.b32.xlu0 %v3367, 56
        %v3376 = vpop.permute.xlu0 %3375
        %3377 = vrot.lane.b32.xlu0 %v3368, 56
        %v3378 = vpop.permute.xlu0 %3377
        %3379 = vrot.lane.b32.xlu0 %v3369, 56
        %v3380 = vpop.permute.xlu0 %3379
        %3381 = vrot.lane.b32.xlu0 %v3370, 56
        %v3382 = vpop.permute.xlu0 %3381
        %3383 = vrot.lane.b32.xlu0 %v3371, 56
        %v3384 = vpop.permute.xlu0 %3383
        %3385 = vrot.lane.b32.xlu0 %v3372, 56
        %v3386 = vpop.permute.xlu0 %3385
        %3387 = vrot.lane.b32.xlu0 %v3373, 56
        %v3388 = vpop.permute.xlu0 %3387
        %3389 = vrot.lane.b32.xlu0 %v3374, 56
        %v3390 = vpop.permute.xlu0 %3389
        %vm3399 = vcmask 523712
        %3400 = vst.msk [vmem:[#allocation4] sm:$0xff] %vm3399, %v3376
        %3401 = vst.msk [vmem:[#allocation4 + $0x8] sm:$0xff] %vm3399, %v3378
        %3402 = vst.msk [vmem:[#allocation4 + $0x10] sm:$0xff] %vm3399, %v3380
        %3403 = vst.msk [vmem:[#allocation4 + $0x18] sm:$0xff] %vm3399, %v3382
        %3404 = vst.msk [vmem:[#allocation4 + $0x20] sm:$0xff] %vm3399, %v3384
        %3405 = vst.msk [vmem:[#allocation4 + $0x28] sm:$0xff] %vm3399, %v3386
        %3406 = vst.msk [vmem:[#allocation4 + $0x30] sm:$0xff] %vm3399, %v3388
        %3407 = vst.msk [vmem:[#allocation4 + $0x38] sm:$0xff] %vm3399, %v3390
        %v3408 = vld [vmem:[%s3045] sm:$0xe]
        %v3409 = vld [vmem:[%s3045 + $0x4] sm:$0xf]
        %v3410 = vld [vmem:[%s3045 + $0x8] sm:$0x1]
        %v3411 = vld [vmem:[%s3045 + $0xc] sm:$0xe]
        %v3412 = vld [vmem:[%s3045 + $0x10] sm:$0xf]
        %v3413 = vld [vmem:[%s3045 + $0x14] sm:$0x1]
        %v3414 = vld [vmem:[%s3045 + $0x18] sm:$0xe]
        %v3415 = vld [vmem:[%s3045 + $0x1c] sm:$0xf]
        %v3416 = vld [vmem:[%s3045 + $0x20] sm:$0x1]
        %v3417 = vld [vmem:[%s3045 + $0x24] sm:$0xe]
        %v3418 = vld [vmem:[%s3045 + $0x28] sm:$0xf]
        %v3419 = vld [vmem:[%s3045 + $0x2c] sm:$0x1]
        %v3420 = vld [vmem:[%s3045 + $0x30] sm:$0xe]
        %v3421 = vld [vmem:[%s3045 + $0x34] sm:$0xf]
        %v3422 = vld [vmem:[%s3045 + $0x38] sm:$0x1]
        %v3423 = vld [vmem:[%s3045 + $0x3c] sm:$0xe]
        %v3424 = vld [vmem:[%s3045 + $0x40] sm:$0xf]
        %v3425 = vld [vmem:[%s3045 + $0x44] sm:$0x1]
        %v3426 = vld [vmem:[%s3045 + $0x48] sm:$0xe]
        %v3427 = vld [vmem:[%s3045 + $0x4c] sm:$0xf]
        %v3428 = vld [vmem:[%s3045 + $0x50] sm:$0x1]
        %v3429 = vld [vmem:[%s3045 + $0x54] sm:$0xe]
        %v3430 = vld [vmem:[%s3045 + $0x58] sm:$0xf]
        %v3431 = vld [vmem:[%s3045 + $0x5c] sm:$0x1]
        %v3456 = vrot.slane %v3408, 5
        %v3457 = vrot.slane %v3456, 4
        %v3458 = vrot.slane %v3409, 5
        %v3459 = vsel %vm2405, %v3457, %v3458
        %v3460 = vrot.slane %v3458, 4
        %v3461 = vrot.slane %v3410, 5
        %v3462 = vsel %vm2405, %v3460, %v3461
        %v3463 = vrot.slane %v3411, 5
        %v3464 = vrot.slane %v3463, 4
        %v3465 = vrot.slane %v3412, 5
        %v3466 = vsel %vm2405, %v3464, %v3465
        %v3467 = vrot.slane %v3465, 4
        %v3468 = vrot.slane %v3413, 5
        %v3469 = vsel %vm2405, %v3467, %v3468
        %v3470 = vrot.slane %v3414, 5
        %v3471 = vrot.slane %v3470, 4
        %v3472 = vrot.slane %v3415, 5
        %v3473 = vsel %vm2405, %v3471, %v3472
        %v3474 = vrot.slane %v3472, 4
        %v3475 = vrot.slane %v3416, 5
        %v3476 = vsel %vm2405, %v3474, %v3475
        %v3477 = vrot.slane %v3417, 5
        %v3478 = vrot.slane %v3477, 4
        %v3479 = vrot.slane %v3418, 5
        %v3480 = vsel %vm2405, %v3478, %v3479
        %v3481 = vrot.slane %v3479, 4
        %v3482 = vrot.slane %v3419, 5
        %v3483 = vsel %vm2405, %v3481, %v3482
        %v3484 = vrot.slane %v3420, 5
        %v3485 = vrot.slane %v3484, 4
        %v3486 = vrot.slane %v3421, 5
        %v3487 = vsel %vm2405, %v3485, %v3486
        %v3488 = vrot.slane %v3486, 4
        %v3489 = vrot.slane %v3422, 5
        %v3490 = vsel %vm2405, %v3488, %v3489
        %v3491 = vrot.slane %v3423, 5
        %v3492 = vrot.slane %v3491, 4
        %v3493 = vrot.slane %v3424, 5
        %v3494 = vsel %vm2405, %v3492, %v3493
        %v3495 = vrot.slane %v3493, 4
        %v3496 = vrot.slane %v3425, 5
        %v3497 = vsel %vm2405, %v3495, %v3496
        %v3498 = vrot.slane %v3426, 5
        %v3499 = vrot.slane %v3498, 4
        %v3500 = vrot.slane %v3427, 5
        %v3501 = vsel %vm2405, %v3499, %v3500
        %v3502 = vrot.slane %v3500, 4
        %v3503 = vrot.slane %v3428, 5
        %v3504 = vsel %vm2405, %v3502, %v3503
        %v3505 = vrot.slane %v3429, 5
        %v3506 = vrot.slane %v3505, 4
        %v3507 = vrot.slane %v3430, 5
        %v3508 = vsel %vm2405, %v3506, %v3507
        %v3509 = vrot.slane %v3507, 4
        %v3510 = vrot.slane %v3431, 5
        %v3511 = vsel %vm2405, %v3509, %v3510
        %v3512 = vunpack.c.l.b16 %v3459
        %v3513 = vunpack.c.l.b16 %v3462
        %v3514 = vunpack.c.l.b16 %v3466
        %v3515 = vunpack.c.l.b16 %v3469
        %v3516 = vunpack.c.l.b16 %v3473
        %v3517 = vunpack.c.l.b16 %v3476
        %v3518 = vunpack.c.l.b16 %v3480
        %v3519 = vunpack.c.l.b16 %v3483
        %v3520 = vunpack.c.l.b16 %v3487
        %v3521 = vunpack.c.l.b16 %v3490
        %v3522 = vunpack.c.l.b16 %v3494
        %v3523 = vunpack.c.l.b16 %v3497
        %v3524 = vunpack.c.l.b16 %v3501
        %v3525 = vunpack.c.l.b16 %v3504
        %v3526 = vunpack.c.l.b16 %v3508
        %v3527 = vunpack.c.l.b16 %v3511
        %v3528 = vpack.c.b16 %v3513, %v3512
        %v3529 = vpack.c.b16 %v3515, %v3514
        %v3530 = vpack.c.b16 %v3517, %v3516
        %v3531 = vpack.c.b16 %v3519, %v3518
        %v3532 = vpack.c.b16 %v3521, %v3520
        %v3533 = vpack.c.b16 %v3523, %v3522
        %v3534 = vpack.c.b16 %v3525, %v3524
        %v3535 = vpack.c.b16 %v3527, %v3526
        %3536 = vrot.lane.b32.xlu0 %v3528, 64
        %v3537 = vpop.permute.xlu0 %3536
        %3538 = vrot.lane.b32.xlu0 %v3529, 64
        %v3539 = vpop.permute.xlu0 %3538
        %3540 = vrot.lane.b32.xlu0 %v3530, 64
        %v3541 = vpop.permute.xlu0 %3540
        %3542 = vrot.lane.b32.xlu0 %v3531, 64
        %v3543 = vpop.permute.xlu0 %3542
        %3544 = vrot.lane.b32.xlu0 %v3532, 64
        %v3545 = vpop.permute.xlu0 %3544
        %3546 = vrot.lane.b32.xlu0 %v3533, 64
        %v3547 = vpop.permute.xlu0 %3546
        %3548 = vrot.lane.b32.xlu0 %v3534, 64
        %v3549 = vpop.permute.xlu0 %3548
        %3550 = vrot.lane.b32.xlu0 %v3535, 64
        %v3551 = vpop.permute.xlu0 %3550
        %vm3560 = vcmask 589312
        %3561 = vst.msk [vmem:[#allocation4] sm:$0xff] %vm3560, %v3537
        %3562 = vst.msk [vmem:[#allocation4 + $0x8] sm:$0xff] %vm3560, %v3539
        %3563 = vst.msk [vmem:[#allocation4 + $0x10] sm:$0xff] %vm3560, %v3541
        %3564 = vst.msk [vmem:[#allocation4 + $0x18] sm:$0xff] %vm3560, %v3543
        %3565 = vst.msk [vmem:[#allocation4 + $0x20] sm:$0xff] %vm3560, %v3545
        %3566 = vst.msk [vmem:[#allocation4 + $0x28] sm:$0xff] %vm3560, %v3547
        %3567 = vst.msk [vmem:[#allocation4 + $0x30] sm:$0xff] %vm3560, %v3549
        %3568 = vst.msk [vmem:[#allocation4 + $0x38] sm:$0xff] %vm3560, %v3551
        %v3569 = vld [vmem:[#allocation4] sm:$0xff]
        %v3570 = vld [vmem:[#allocation4 + $0x8] sm:$0xff]
        %v3571 = vld [vmem:[#allocation4 + $0x10] sm:$0xff]
        %v3572 = vld [vmem:[#allocation4 + $0x18] sm:$0xff]
        %v3573 = vld [vmem:[#allocation4 + $0x20] sm:$0xff]
        %v3574 = vld [vmem:[#allocation4 + $0x28] sm:$0xff]
        %v3575 = vld [vmem:[#allocation4 + $0x30] sm:$0xff]
        %v3576 = vld [vmem:[#allocation4 + $0x38] sm:$0xff]
        %v3586 = vunpack.c.l.b16 %v1994
        %v3587 = vunpack.c.l.b16 %v1995
        %v3588 = vunpack.c.l.b16 %v1996
        %v3589 = vunpack.c.l.b16 %v1997
        %v3590 = vunpack.c.l.b16 %v1998
        %v3591 = vunpack.c.l.b16 %v1999
        %v3592 = vunpack.c.l.b16 %v2000
        %v3593 = vunpack.c.l.b16 %v2001
        %v3594 = vunpack.c.l.b16 %v2002
        %v3595 = vpack.c.b16 %v3587, %v3586
        %v3596 = vpack.c.b16 %v3589, %v3588
        %v3597 = vpack.c.b16 %v3591, %v3590
        %v3598 = vpack.c.b16 %v3593, %v3592
        %v3599 = vpack.c.b16 %v3594, %v3594
        %vm3604 = vcmask 588800
        %v3606 = vsel %vm3604, %v3569, 0
        %v3609 = vsel %vm3604, %v3570, 0
        %v3612 = vsel %vm3604, %v3571, 0
        %v3615 = vsel %vm3604, %v3572, 0
        %v3618 = vsel %vm3604, %v3573, 0
        %v3621 = vsel %vm3604, %v3574, 0
        %v3624 = vsel %vm3604, %v3575, 0
        %v3627 = vsel %vm3604, %v3576, 0
        %vm3629 = vcmask 1043456
        %v3631 = vsel %vm3629, %v3599, 0
        %3633 = vmatprep.subr.bf16.mxu0 0
        %3634 = vmatpush1.bf16.msra.mxu0 %v3595
        %3635 = vmatprep.subr.bf16.mxu0 0
        %3636 = vmatpush1.bf16.msra.mxu0 %v3596
        %3637 = vmatprep.subr.bf16.mxu0 0
        %3638 = vmatpush1.bf16.msra.mxu0 %v3597
        %3639 = vmatprep.subr.bf16.mxu0 0
        %3640 = vmatpush1.bf16.msra.mxu0 %v3598
        %3641 = vmatprep.subr.bf16.mxu0 0
        %3642 = vmatpush1.bf16.msra.mxu0 %v3631
        %3643 = vmatprep.subr.bf16.mxu0 0
        %3644 = vmatpush1.bf16.msra.mxu0 0
        %3645 = vmatprep.subr.bf16.mxu0 0
        %3646 = vmatpush1.bf16.msra.mxu0 0
        %3647 = vmatprep.subr.bf16.mxu0 0
        %3648 = vmatpush1.bf16.msra.mxu0 0
        %3649 = vmatprep.subr.bf16.mxu0 0
        %3650 = vmatpush1.bf16.msra.mxu0 0
        %3651 = vmatprep.subr.bf16.mxu0 0
        %3652 = vmatpush1.bf16.msra.mxu0 0
        %3653 = vmatprep.subr.bf16.mxu0 0
        %3654 = vmatpush1.bf16.msra.mxu0 0
        %3655 = vmatprep.subr.bf16.mxu0 0
        %3656 = vmatpush1.bf16.msra.mxu0 0
        %3657 = vmatprep.subr.bf16.mxu0 0
        %3658 = vmatpush1.bf16.msra.mxu0 0
        %3659 = vmatprep.subr.bf16.mxu0 0
        %3660 = vmatpush1.bf16.msra.mxu0 0
        %3661 = vmatprep.subr.bf16.mxu0 0
        %3662 = vmatpush1.bf16.msra.mxu0 0
        %3663 = vmatprep.subr.bf16.mxu0 0
        %3664 = vmatpush1.bf16.msra.mxu0 0
        %3665 = vmatprep.mubr.bf16.mxu0 0
        %3666 = vmatmul.mubr.bf16.gmra.mrb[0].mxu0 %v3606
        %v3667 = vpop.f32.mrb[0].mxu0
        %v3668 = vadd.f32 0.0, %v3667
        %v3669 = vpop.f32.mrb[0].mxu0
        %v3670 = vpop.f32.mrb[0].mxu0
        %v3671 = vadd.f32 0.0, %v3670
        %v3672 = vpop.f32.mrb[0].mxu0
        %3673 = vmatprep.mubr.bf16.mxu0 0
        %3674 = vmatmul.mubr.bf16.gmra.mrb[0].mxu0 %v3609
        %v3675 = vpop.f32.mrb[0].mxu0
        %v3676 = vadd.f32 0.0, %v3675
        %v3677 = vpop.f32.mrb[0].mxu0
        %v3678 = vpop.f32.mrb[0].mxu0
        %v3679 = vadd.f32 0.0, %v3678
        %v3680 = vpop.f32.mrb[0].mxu0
        %3681 = vmatprep.mubr.bf16.mxu0 0
        %3682 = vmatmul.mubr.bf16.gmra.mrb[0].mxu0 %v3612
        %v3683 = vpop.f32.mrb[0].mxu0
        %v3684 = vadd.f32 0.0, %v3683
        %v3685 = vpop.f32.mrb[0].mxu0
        %v3686 = vpop.f32.mrb[0].mxu0
        %v3687 = vadd.f32 0.0, %v3686
        %v3688 = vpop.f32.mrb[0].mxu0
        %3689 = vmatprep.mubr.bf16.mxu0 0
        %3690 = vmatmul.mubr.bf16.gmra.mrb[0].mxu0 %v3615
        %v3691 = vpop.f32.mrb[0].mxu0
        %v3692 = vadd.f32 0.0, %v3691
        %v3693 = vpop.f32.mrb[0].mxu0
        %v3694 = vpop.f32.mrb[0].mxu0
        %v3695 = vadd.f32 0.0, %v3694
        %v3696 = vpop.f32.mrb[0].mxu0
        %3697 = vmatprep.mubr.bf16.mxu0 0
        %3698 = vmatmul.mubr.bf16.gmra.mrb[0].mxu0 %v3618
        %v3699 = vpop.f32.mrb[0].mxu0
        %v3700 = vadd.f32 0.0, %v3699
        %v3701 = vpop.f32.mrb[0].mxu0
        %v3702 = vpop.f32.mrb[0].mxu0
        %v3703 = vadd.f32 0.0, %v3702
        %v3704 = vpop.f32.mrb[0].mxu0
        %3705 = vmatprep.mubr.bf16.mxu0 0
        %3706 = vmatmul.mubr.bf16.gmra.mrb[0].mxu0 %v3621
        %v3707 = vpop.f32.mrb[0].mxu0
        %v3708 = vadd.f32 0.0, %v3707
        %v3709 = vpop.f32.mrb[0].mxu0
        %v3710 = vpop.f32.mrb[0].mxu0
        %v3711 = vadd.f32 0.0, %v3710
        %v3712 = vpop.f32.mrb[0].mxu0
        %3713 = vmatprep.mubr.bf16.mxu0 0
        %3714 = vmatmul.mubr.bf16.gmra.mrb[0].mxu0 %v3624
        %v3715 = vpop.f32.mrb[0].mxu0
        %v3716 = vadd.f32 0.0, %v3715
        %v3717 = vpop.f32.mrb[0].mxu0
        %v3718 = vpop.f32.mrb[0].mxu0
        %v3719 = vadd.f32 0.0, %v3718
        %v3720 = vpop.f32.mrb[0].mxu0
        %3721 = vmatprep.mubr.bf16.mxu0 0
        %3722 = vmatmul.mubr.bf16.gmra.mrb[0].mxu0 %v3627
        %v3723 = vpop.f32.mrb[0].mxu0
        %v3724 = vadd.f32 0.0, %v3723
        %v3725 = vpop.f32.mrb[0].mxu0
        %v3726 = vpop.f32.mrb[0].mxu0
        %v3727 = vadd.f32 0.0, %v3726
        %v3728 = vpop.f32.mrb[0].mxu0
        %3729 = vdwg.mxu0
        %v3730 = vxor.u32 %v3668, 2147483648
        %v3731 = vxor.u32 %v3671, 2147483648
        %v3732 = vxor.u32 %v3676, 2147483648
        %v3733 = vxor.u32 %v3679, 2147483648
        %v3734 = vxor.u32 %v3684, 2147483648
        %v3735 = vxor.u32 %v3687, 2147483648
        %v3736 = vxor.u32 %v3692, 2147483648
        %v3737 = vxor.u32 %v3695, 2147483648
        %v3738 = vxor.u32 %v3700, 2147483648
        %v3739 = vxor.u32 %v3703, 2147483648
        %v3740 = vxor.u32 %v3708, 2147483648
        %v3741 = vxor.u32 %v3711, 2147483648
        %v3742 = vxor.u32 %v3716, 2147483648
        %v3743 = vxor.u32 %v3719, 2147483648
        %v3744 = vxor.u32 %v3724, 2147483648
        %v3745 = vxor.u32 %v3727, 2147483648
        %v3746 = vmul.f32 %v3730, 1.442695
        %v3747 = vpow.pop %v3746
        %v3748 = vmul.f32 %v3731, 1.442695
        %v3749 = vpow.pop %v3748
        %v3750 = vmul.f32 %v3732, 1.442695
        %v3751 = vpow.pop %v3750
        %v3752 = vmul.f32 %v3733, 1.442695
        %v3753 = vpow.pop %v3752
        %v3754 = vmul.f32 %v3734, 1.442695
        %v3755 = vpow.pop %v3754
        %v3756 = vmul.f32 %v3735, 1.442695
        %v3757 = vpow.pop %v3756
        %v3758 = vmul.f32 %v3736, 1.442695
        %v3759 = vpow.pop %v3758
        %v3760 = vmul.f32 %v3737, 1.442695
        %v3761 = vpow.pop %v3760
        %v3762 = vmul.f32 %v3738, 1.442695
        %v3763 = vpow.pop %v3762
        %v3764 = vmul.f32 %v3739, 1.442695
        %v3765 = vpow.pop %v3764
        %v3766 = vmul.f32 %v3740, 1.442695
        %v3767 = vpow.pop %v3766
        %v3768 = vmul.f32 %v3741, 1.442695
        %v3769 = vpow.pop %v3768
        %v3770 = vmul.f32 %v3742, 1.442695
        %v3771 = vpow.pop %v3770
        %v3772 = vmul.f32 %v3743, 1.442695
        %v3773 = vpow.pop %v3772
        %v3774 = vmul.f32 %v3744, 1.442695
        %v3775 = vpow.pop %v3774
        %v3776 = vmul.f32 %v3745, 1.442695
        %v3777 = vpow.pop %v3776
        %v3778 = vadd.f32 %v3747, 1.0
        %v3779 = vadd.f32 %v3749, 1.0
        %v3780 = vadd.f32 %v3751, 1.0
        %v3781 = vadd.f32 %v3753, 1.0
        %v3782 = vadd.f32 %v3755, 1.0
        %v3783 = vadd.f32 %v3757, 1.0
        %v3784 = vadd.f32 %v3759, 1.0
        %v3785 = vadd.f32 %v3761, 1.0
        %v3786 = vadd.f32 %v3763, 1.0
        %v3787 = vadd.f32 %v3765, 1.0
        %v3788 = vadd.f32 %v3767, 1.0
        %v3789 = vadd.f32 %v3769, 1.0
        %v3790 = vadd.f32 %v3771, 1.0
        %v3791 = vadd.f32 %v3773, 1.0
        %v3792 = vadd.f32 %v3775, 1.0
        %v3793 = vadd.f32 %v3777, 1.0
        %v3794 = vrcp.pop %v3778
        %v3795 = vmul.f32 1.0, %v3794
        %v3796 = vrcp.pop %v3779
        %v3797 = vmul.f32 1.0, %v3796
        %v3798 = vrcp.pop %v3780
        %v3799 = vmul.f32 1.0, %v3798
        %v3800 = vrcp.pop %v3781
        %v3801 = vmul.f32 1.0, %v3800
        %v3802 = vrcp.pop %v3782
        %v3803 = vmul.f32 1.0, %v3802
        %v3804 = vrcp.pop %v3783
        %v3805 = vmul.f32 1.0, %v3804
        %v3806 = vrcp.pop %v3784
        %v3807 = vmul.f32 1.0, %v3806
        %v3808 = vrcp.pop %v3785
        %v3809 = vmul.f32 1.0, %v3808
        %v3810 = vrcp.pop %v3786
        %v3811 = vmul.f32 1.0, %v3810
        %v3812 = vrcp.pop %v3787
        %v3813 = vmul.f32 1.0, %v3812
        %v3814 = vrcp.pop %v3788
        %v3815 = vmul.f32 1.0, %v3814
        %v3816 = vrcp.pop %v3789
        %v3817 = vmul.f32 1.0, %v3816
        %v3818 = vrcp.pop %v3790
        %v3819 = vmul.f32 1.0, %v3818
        %v3820 = vrcp.pop %v3791
        %v3821 = vmul.f32 1.0, %v3820
        %v3822 = vrcp.pop %v3792
        %v3823 = vmul.f32 1.0, %v3822
        %v3824 = vrcp.pop %v3793
        %v3825 = vmul.f32 1.0, %v3824
        %v3826 = vmul.f32 %v3668, %v3795
        %v3827 = vmul.f32 %v3671, %v3797
        %v3828 = vmul.f32 %v3676, %v3799
        %v3829 = vmul.f32 %v3679, %v3801
        %v3830 = vmul.f32 %v3684, %v3803
        %v3831 = vmul.f32 %v3687, %v3805
        %v3832 = vmul.f32 %v3692, %v3807
        %v3833 = vmul.f32 %v3695, %v3809
        %v3834 = vmul.f32 %v3700, %v3811
        %v3835 = vmul.f32 %v3703, %v3813
        %v3836 = vmul.f32 %v3708, %v3815
        %v3837 = vmul.f32 %v3711, %v3817
        %v3838 = vmul.f32 %v3716, %v3819
        %v3839 = vmul.f32 %v3719, %v3821
        %v3840 = vmul.f32 %v3724, %v3823
        %v3841 = vmul.f32 %v3727, %v3825
        %v3842 = vpack.c.bf16 %v3827, %v3826
        %v3843 = vpack.c.bf16 %v3829, %v3828
        %v3844 = vpack.c.bf16 %v3831, %v3830
        %v3845 = vpack.c.bf16 %v3833, %v3832
        %v3846 = vpack.c.bf16 %v3835, %v3834
        %v3847 = vpack.c.bf16 %v3837, %v3836
        %v3848 = vpack.c.bf16 %v3839, %v3838
        %v3849 = vpack.c.bf16 %v3841, %v3840
        %v3858 = vunpack.c.l.b16 %v3842
        %v3859 = vunpack.c.h.b16 %v3842
        %v3860 = vunpack.c.l.b16 %v3843
        %v3861 = vunpack.c.h.b16 %v3843
        %v3862 = vunpack.c.l.b16 %v3844
        %v3863 = vunpack.c.h.b16 %v3844
        %v3864 = vunpack.c.l.b16 %v3845
        %v3865 = vunpack.c.h.b16 %v3845
        %v3866 = vunpack.c.l.b16 %v3846
        %v3867 = vunpack.c.h.b16 %v3846
        %v3868 = vunpack.c.l.b16 %v3847
        %v3869 = vunpack.c.h.b16 %v3847
        %v3870 = vunpack.c.l.b16 %v3848
        %v3871 = vunpack.c.h.b16 %v3848
        %v3872 = vunpack.c.l.b16 %v3849
        %v3873 = vunpack.c.h.b16 %v3849
        %v3874 = vpack.c.b16 %v3858, %v3858
        %v3875 = vpack.c.b16 %v3859, %v3859
        %v3876 = vpack.c.b16 %v3860, %v3860
        %v3877 = vpack.c.b16 %v3861, %v3861
        %v3878 = vpack.c.b16 %v3862, %v3862
        %v3879 = vpack.c.b16 %v3863, %v3863
        %v3880 = vpack.c.b16 %v3864, %v3864
        %v3881 = vpack.c.b16 %v3865, %v3865
        %v3882 = vpack.c.b16 %v3866, %v3866
        %v3883 = vpack.c.b16 %v3867, %v3867
        %v3884 = vpack.c.b16 %v3868, %v3868
        %v3885 = vpack.c.b16 %v3869, %v3869
        %v3886 = vpack.c.b16 %v3870, %v3870
        %v3887 = vpack.c.b16 %v3871, %v3871
        %v3888 = vpack.c.b16 %v3872, %v3872
        %v3889 = vpack.c.b16 %v3873, %v3873
        %v3891 = vshrl.u32 %v3874, 16
        %v3893 = vrot.slane %v3891, 7
        %v3894 = vshll.u32 %v3874, 16
        %v3896 = vor.u32 %v3893, %v3894
        %v3897 = vrot.slane %v3893, 4
        %v3899 = vshrl.u32 %v3875, 16
        %v3901 = vrot.slane %v3899, 7
        %v3902 = vshll.u32 %v3875, 16
        %v3904 = vor.u32 %v3901, %v3902
        %v3905 = vsel %vm738, %v3897, %v3904
        %v3906 = vrot.slane %v3901, 4
        %v3908 = vshrl.u32 %v3876, 16
        %v3910 = vrot.slane %v3908, 7
        %v3911 = vshll.u32 %v3876, 16
        %v3913 = vor.u32 %v3910, %v3911
        %v3914 = vrot.slane %v3910, 4
        %v3916 = vshrl.u32 %v3877, 16
        %v3918 = vrot.slane %v3916, 7
        %v3919 = vshll.u32 %v3877, 16
        %v3921 = vor.u32 %v3918, %v3919
        %v3922 = vsel %vm738, %v3914, %v3921
        %v3923 = vrot.slane %v3918, 4
        %v3925 = vshrl.u32 %v3878, 16
        %v3927 = vrot.slane %v3925, 7
        %v3928 = vshll.u32 %v3878, 16
        %v3930 = vor.u32 %v3927, %v3928
        %v3931 = vrot.slane %v3927, 4
        %v3933 = vshrl.u32 %v3879, 16
        %v3935 = vrot.slane %v3933, 7
        %v3936 = vshll.u32 %v3879, 16
        %v3938 = vor.u32 %v3935, %v3936
        %v3939 = vsel %vm738, %v3931, %v3938
        %v3940 = vrot.slane %v3935, 4
        %v3942 = vshrl.u32 %v3880, 16
        %v3944 = vrot.slane %v3942, 7
        %v3945 = vshll.u32 %v3880, 16
        %v3947 = vor.u32 %v3944, %v3945
        %v3948 = vrot.slane %v3944, 4
        %v3950 = vshrl.u32 %v3881, 16
        %v3952 = vrot.slane %v3950, 7
        %v3953 = vshll.u32 %v3881, 16
        %v3955 = vor.u32 %v3952, %v3953
        %v3956 = vsel %vm738, %v3948, %v3955
        %v3957 = vrot.slane %v3952, 4
        %v3959 = vshrl.u32 %v3882, 16
        %v3961 = vrot.slane %v3959, 7
        %v3962 = vshll.u32 %v3882, 16
        %v3964 = vor.u32 %v3961, %v3962
        %v3965 = vrot.slane %v3961, 4
        %v3967 = vshrl.u32 %v3883, 16
        %v3969 = vrot.slane %v3967, 7
        %v3970 = vshll.u32 %v3883, 16
        %v3972 = vor.u32 %v3969, %v3970
        %v3973 = vsel %vm738, %v3965, %v3972
        %v3974 = vrot.slane %v3969, 4
        %v3976 = vshrl.u32 %v3884, 16
        %v3978 = vrot.slane %v3976, 7
        %v3979 = vshll.u32 %v3884, 16
        %v3981 = vor.u32 %v3978, %v3979
        %v3982 = vrot.slane %v3978, 4
        %v3984 = vshrl.u32 %v3885, 16
        %v3986 = vrot.slane %v3984, 7
        %v3987 = vshll.u32 %v3885, 16
        %v3989 = vor.u32 %v3986, %v3987
        %v3990 = vsel %vm738, %v3982, %v3989
        %v3991 = vrot.slane %v3986, 4
        %v3993 = vshrl.u32 %v3886, 16
        %v3995 = vrot.slane %v3993, 7
        %v3996 = vshll.u32 %v3886, 16
        %v3998 = vor.u32 %v3995, %v3996
        %v3999 = vrot.slane %v3995, 4
        %v4001 = vshrl.u32 %v3887, 16
        %v4003 = vrot.slane %v4001, 7
        %v4004 = vshll.u32 %v3887, 16
        %v4006 = vor.u32 %v4003, %v4004
        %v4007 = vsel %vm738, %v3999, %v4006
        %v4008 = vrot.slane %v4003, 4
        %v4010 = vshrl.u32 %v3888, 16
        %v4012 = vrot.slane %v4010, 7
        %v4013 = vshll.u32 %v3888, 16
        %v4015 = vor.u32 %v4012, %v4013
        %v4016 = vrot.slane %v4012, 4
        %v4018 = vshrl.u32 %v3889, 16
        %v4020 = vrot.slane %v4018, 7
        %v4021 = vshll.u32 %v3889, 16
        %v4023 = vor.u32 %v4020, %v4021
        %v4024 = vsel %vm738, %v4016, %v4023
        %v4025 = vrot.slane %v4020, 4
        %s4050 = smul.addr %s899, 4
        %s4051 = scalar_lea.vmem [#allocation3], %s4050
        %v4052 = vld [vmem:[%s4051] sm:$0xf]
        %v4053 = vsel %vm903, %v3896, %v4052
        %4054 = vst [vmem:[%s4051] sm:$0xf] %v4053
        %4055 = vst.msk [vmem:[%s4051 + $0x4] sm:$0xf] %vm487, %v3905
        %v4056 = vld [vmem:[%s4051 + $0x8] sm:$0x1]
        %v4057 = vsel %vm497, %v3906, %v4056
        %4058 = vst [vmem:[%s4051 + $0x8] sm:$0x1] %v4057
        %v4059 = vld [vmem:[%s4051 + $0xc] sm:$0xf]
        %v4060 = vsel %vm903, %v3913, %v4059
        %4061 = vst [vmem:[%s4051 + $0xc] sm:$0xf] %v4060
        %4062 = vst.msk [vmem:[%s4051 + $0x10] sm:$0xf] %vm487, %v3922
        %v4063 = vld [vmem:[%s4051 + $0x14] sm:$0x1]
        %v4064 = vsel %vm497, %v3923, %v4063
        %4065 = vst [vmem:[%s4051 + $0x14] sm:$0x1] %v4064
        %v4066 = vld [vmem:[%s4051 + $0x18] sm:$0xf]
        %v4067 = vsel %vm903, %v3930, %v4066
        %4068 = vst [vmem:[%s4051 + $0x18] sm:$0xf] %v4067
        %4069 = vst.msk [vmem:[%s4051 + $0x1c] sm:$0xf] %vm487, %v3939
        %v4070 = vld [vmem:[%s4051 + $0x20] sm:$0x1]
        %v4071 = vsel %vm497, %v3940, %v4070
        %4072 = vst [vmem:[%s4051 + $0x20] sm:$0x1] %v4071
        %v4073 = vld [vmem:[%s4051 + $0x24] sm:$0xf]
        %v4074 = vsel %vm903, %v3947, %v4073
        %4075 = vst [vmem:[%s4051 + $0x24] sm:$0xf] %v4074
        %4076 = vst.msk [vmem:[%s4051 + $0x28] sm:$0xf] %vm487, %v3956
        %v4077 = vld [vmem:[%s4051 + $0x2c] sm:$0x1]
        %v4078 = vsel %vm497, %v3957, %v4077
        %4079 = vst [vmem:[%s4051 + $0x2c] sm:$0x1] %v4078
        %v4080 = vld [vmem:[%s4051 + $0x30] sm:$0xf]
        %v4081 = vsel %vm903, %v3964, %v4080
        %4082 = vst [vmem:[%s4051 + $0x30] sm:$0xf] %v4081
        %4083 = vst.msk [vmem:[%s4051 + $0x34] sm:$0xf] %vm487, %v3973
        %v4084 = vld [vmem:[%s4051 + $0x38] sm:$0x1]
        %v4085 = vsel %vm497, %v3974, %v4084
        %4086 = vst [vmem:[%s4051 + $0x38] sm:$0x1] %v4085
        %v4087 = vld [vmem:[%s4051 + $0x3c] sm:$0xf]
        %v4088 = vsel %vm903, %v3981, %v4087
        %4089 = vst [vmem:[%s4051 + $0x3c] sm:$0xf] %v4088
        %4090 = vst.msk [vmem:[%s4051 + $0x40] sm:$0xf] %vm487, %v3990
        %v4091 = vld [vmem:[%s4051 + $0x44] sm:$0x1]
        %v4092 = vsel %vm497, %v3991, %v4091
        %4093 = vst [vmem:[%s4051 + $0x44] sm:$0x1] %v4092
        %v4094 = vld [vmem:[%s4051 + $0x48] sm:$0xf]
        %v4095 = vsel %vm903, %v3998, %v4094
        %4096 = vst [vmem:[%s4051 + $0x48] sm:$0xf] %v4095
        %4097 = vst.msk [vmem:[%s4051 + $0x4c] sm:$0xf] %vm487, %v4007
        %v4098 = vld [vmem:[%s4051 + $0x50] sm:$0x1]
        %v4099 = vsel %vm497, %v4008, %v4098
        %4100 = vst [vmem:[%s4051 + $0x50] sm:$0x1] %v4099
        %v4101 = vld [vmem:[%s4051 + $0x54] sm:$0xf]
        %v4102 = vsel %vm903, %v4015, %v4101
        %4103 = vst [vmem:[%s4051 + $0x54] sm:$0xf] %v4102
        %4104 = vst.msk [vmem:[%s4051 + $0x58] sm:$0xf] %vm487, %v4024
        %v4105 = vld [vmem:[%s4051 + $0x5c] sm:$0x1]
        %v4106 = vsel %vm497, %v4025, %v4105
        %4107 = vst [vmem:[%s4051 + $0x5c] sm:$0x1] %v4106
        %s4108 = smul.u32 8, 3
        %s4109 = smul.addr %s4108, 4
        %s4110 = scalar_lea.vmem [#allocation2], %s4109
        %v4111 = vld [vmem:[%s4110] sm:$0xf]
        %v4112 = vld [vmem:[%s4110 + $0x4] sm:$0xf]
        %v4113 = vld [vmem:[%s4110 + $0xc] sm:$0xf]
        %v4114 = vld [vmem:[%s4110 + $0x10] sm:$0xf]
        %v4115 = vld [vmem:[%s4110 + $0x18] sm:$0xf]
        %v4116 = vld [vmem:[%s4110 + $0x1c] sm:$0xf]
        %v4117 = vld [vmem:[%s4110 + $0x24] sm:$0xf]
        %v4118 = vld [vmem:[%s4110 + $0x28] sm:$0xf]
        %v4119 = vld [vmem:[%s4110 + $0x30] sm:$0xf]
        %v4120 = vld [vmem:[%s4110 + $0x34] sm:$0xf]
        %v4121 = vld [vmem:[%s4110 + $0x3c] sm:$0xf]
        %v4122 = vld [vmem:[%s4110 + $0x40] sm:$0xf]
        %v4123 = vld [vmem:[%s4110 + $0x48] sm:$0xf]
        %v4124 = vld [vmem:[%s4110 + $0x4c] sm:$0xf]
        %v4125 = vld [vmem:[%s4110 + $0x54] sm:$0xf]
        %v4126 = vld [vmem:[%s4110 + $0x58] sm:$0xf]
        %v4143 = vunpack.c.l.b16 %v4111
        %v4144 = vunpack.c.l.b16 %v4112
        %v4145 = vunpack.c.l.b16 %v4113
        %v4146 = vunpack.c.l.b16 %v4114
        %v4147 = vunpack.c.l.b16 %v4115
        %v4148 = vunpack.c.l.b16 %v4116
        %v4149 = vunpack.c.l.b16 %v4117
        %v4150 = vunpack.c.l.b16 %v4118
        %v4151 = vunpack.c.l.b16 %v4119
        %v4152 = vunpack.c.l.b16 %v4120
        %v4153 = vunpack.c.l.b16 %v4121
        %v4154 = vunpack.c.l.b16 %v4122
        %v4155 = vunpack.c.l.b16 %v4123
        %v4156 = vunpack.c.l.b16 %v4124
        %v4157 = vunpack.c.l.b16 %v4125
        %v4158 = vunpack.c.l.b16 %v4126
        %v4159 = vpack.c.b16 %v4144, %v4143
        %v4160 = vpack.c.b16 %v4146, %v4145
        %v4161 = vpack.c.b16 %v4148, %v4147
        %v4162 = vpack.c.b16 %v4150, %v4149
        %v4163 = vpack.c.b16 %v4152, %v4151
        %v4164 = vpack.c.b16 %v4154, %v4153
        %v4165 = vpack.c.b16 %v4156, %v4155
        %v4166 = vpack.c.b16 %v4158, %v4157
        %4175 = vst.msk [vmem:[#allocation4] sm:$0xff] %vm2070, %v4159
        %4176 = vst.msk [vmem:[#allocation4 + $0x8] sm:$0xff] %vm2070, %v4160
        %4177 = vst.msk [vmem:[#allocation4 + $0x10] sm:$0xff] %vm2070, %v4161
        %4178 = vst.msk [vmem:[#allocation4 + $0x18] sm:$0xff] %vm2070, %v4162
        %4179 = vst.msk [vmem:[#allocation4 + $0x20] sm:$0xff] %vm2070, %v4163
        %4180 = vst.msk [vmem:[#allocation4 + $0x28] sm:$0xff] %vm2070, %v4164
        %4181 = vst.msk [vmem:[#allocation4 + $0x30] sm:$0xff] %vm2070, %v4165
        %4182 = vst.msk [vmem:[#allocation4 + $0x38] sm:$0xff] %vm2070, %v4166
        %v4183 = vld [vmem:[%s4110] sm:$0xf]
        %v4184 = vld [vmem:[%s4110 + $0x4] sm:$0xf]
        %v4185 = vld [vmem:[%s4110 + $0x8] sm:$0x1]
        %v4186 = vld [vmem:[%s4110 + $0xc] sm:$0xf]
        %v4187 = vld [vmem:[%s4110 + $0x10] sm:$0xf]
        %v4188 = vld [vmem:[%s4110 + $0x14] sm:$0x1]
        %v4189 = vld [vmem:[%s4110 + $0x18] sm:$0xf]
        %v4190 = vld [vmem:[%s4110 + $0x1c] sm:$0xf]
        %v4191 = vld [vmem:[%s4110 + $0x20] sm:$0x1]
        %v4192 = vld [vmem:[%s4110 + $0x24] sm:$0xf]
        %v4193 = vld [vmem:[%s4110 + $0x28] sm:$0xf]
        %v4194 = vld [vmem:[%s4110 + $0x2c] sm:$0x1]
        %v4195 = vld [vmem:[%s4110 + $0x30] sm:$0xf]
        %v4196 = vld [vmem:[%s4110 + $0x34] sm:$0xf]
        %v4197 = vld [vmem:[%s4110 + $0x38] sm:$0x1]
        %v4198 = vld [vmem:[%s4110 + $0x3c] sm:$0xf]
        %v4199 = vld [vmem:[%s4110 + $0x40] sm:$0xf]
        %v4200 = vld [vmem:[%s4110 + $0x44] sm:$0x1]
        %v4201 = vld [vmem:[%s4110 + $0x48] sm:$0xf]
        %v4202 = vld [vmem:[%s4110 + $0x4c] sm:$0xf]
        %v4203 = vld [vmem:[%s4110 + $0x50] sm:$0x1]
        %v4204 = vld [vmem:[%s4110 + $0x54] sm:$0xf]
        %v4205 = vld [vmem:[%s4110 + $0x58] sm:$0xf]
        %v4206 = vld [vmem:[%s4110 + $0x5c] sm:$0x1]
        %v4208 = vshrl.u32 %v4183, 16
        %v4210 = vrot.slane %v4208, 4
        %v4211 = vshll.u32 %v4183, 16
        %v4213 = vrot.slane %v4211, 5
        %v4214 = vor.u32 %v4210, %v4213
        %v4215 = vrot.slane %v4214, 4
        %v4217 = vshll.u32 %v4184, 16
        %v4219 = vrot.slane %v4217, 5
        %v4220 = vsel %vm2105, %v4215, %v4219
        %v4221 = vshrl.u32 %v4184, 16
        %v4223 = vrot.slane %v4221, 4
        %v4224 = vor.u32 %v4223, %v4219
        %v4225 = vrot.slane %v4224, 4
        %v4227 = vshll.u32 %v4185, 16
        %v4229 = vrot.slane %v4227, 5
        %v4230 = vsel %vm2105, %v4225, %v4229
        %v4232 = vshrl.u32 %v4186, 16
        %v4234 = vrot.slane %v4232, 4
        %v4235 = vshll.u32 %v4186, 16
        %v4237 = vrot.slane %v4235, 5
        %v4238 = vor.u32 %v4234, %v4237
        %v4239 = vrot.slane %v4238, 4
        %v4241 = vshll.u32 %v4187, 16
        %v4243 = vrot.slane %v4241, 5
        %v4244 = vsel %vm2105, %v4239, %v4243
        %v4245 = vshrl.u32 %v4187, 16
        %v4247 = vrot.slane %v4245, 4
        %v4248 = vor.u32 %v4247, %v4243
        %v4249 = vrot.slane %v4248, 4
        %v4251 = vshll.u32 %v4188, 16
        %v4253 = vrot.slane %v4251, 5
        %v4254 = vsel %vm2105, %v4249, %v4253
        %v4256 = vshrl.u32 %v4189, 16
        %v4258 = vrot.slane %v4256, 4
        %v4259 = vshll.u32 %v4189, 16
        %v4261 = vrot.slane %v4259, 5
        %v4262 = vor.u32 %v4258, %v4261
        %v4263 = vrot.slane %v4262, 4
        %v4265 = vshll.u32 %v4190, 16
        %v4267 = vrot.slane %v4265, 5
        %v4268 = vsel %vm2105, %v4263, %v4267
        %v4269 = vshrl.u32 %v4190, 16
        %v4271 = vrot.slane %v4269, 4
        %v4272 = vor.u32 %v4271, %v4267
        %v4273 = vrot.slane %v4272, 4
        %v4275 = vshll.u32 %v4191, 16
        %v4277 = vrot.slane %v4275, 5
        %v4278 = vsel %vm2105, %v4273, %v4277
        %v4280 = vshrl.u32 %v4192, 16
        %v4282 = vrot.slane %v4280, 4
        %v4283 = vshll.u32 %v4192, 16
        %v4285 = vrot.slane %v4283, 5
        %v4286 = vor.u32 %v4282, %v4285
        %v4287 = vrot.slane %v4286, 4
        %v4289 = vshll.u32 %v4193, 16
        %v4291 = vrot.slane %v4289, 5
        %v4292 = vsel %vm2105, %v4287, %v4291
        %v4293 = vshrl.u32 %v4193, 16
        %v4295 = vrot.slane %v4293, 4
        %v4296 = vor.u32 %v4295, %v4291
        %v4297 = vrot.slane %v4296, 4
        %v4299 = vshll.u32 %v4194, 16
        %v4301 = vrot.slane %v4299, 5
        %v4302 = vsel %vm2105, %v4297, %v4301
        %v4304 = vshrl.u32 %v4195, 16
        %v4306 = vrot.slane %v4304, 4
        %v4307 = vshll.u32 %v4195, 16
        %v4309 = vrot.slane %v4307, 5
        %v4310 = vor.u32 %v4306, %v4309
        %v4311 = vrot.slane %v4310, 4
        %v4313 = vshll.u32 %v4196, 16
        %v4315 = vrot.slane %v4313, 5
        %v4316 = vsel %vm2105, %v4311, %v4315
        %v4317 = vshrl.u32 %v4196, 16
        %v4319 = vrot.slane %v4317, 4
        %v4320 = vor.u32 %v4319, %v4315
        %v4321 = vrot.slane %v4320, 4
        %v4323 = vshll.u32 %v4197, 16
        %v4325 = vrot.slane %v4323, 5
        %v4326 = vsel %vm2105, %v4321, %v4325
        %v4328 = vshrl.u32 %v4198, 16
        %v4330 = vrot.slane %v4328, 4
        %v4331 = vshll.u32 %v4198, 16
        %v4333 = vrot.slane %v4331, 5
        %v4334 = vor.u32 %v4330, %v4333
        %v4335 = vrot.slane %v4334, 4
        %v4337 = vshll.u32 %v4199, 16
        %v4339 = vrot.slane %v4337, 5
        %v4340 = vsel %vm2105, %v4335, %v4339
        %v4341 = vshrl.u32 %v4199, 16
        %v4343 = vrot.slane %v4341, 4
        %v4344 = vor.u32 %v4343, %v4339
        %v4345 = vrot.slane %v4344, 4
        %v4347 = vshll.u32 %v4200, 16
        %v4349 = vrot.slane %v4347, 5
        %v4350 = vsel %vm2105, %v4345, %v4349
        %v4352 = vshrl.u32 %v4201, 16
        %v4354 = vrot.slane %v4352, 4
        %v4355 = vshll.u32 %v4201, 16
        %v4357 = vrot.slane %v4355, 5
        %v4358 = vor.u32 %v4354, %v4357
        %v4359 = vrot.slane %v4358, 4
        %v4361 = vshll.u32 %v4202, 16
        %v4363 = vrot.slane %v4361, 5
        %v4364 = vsel %vm2105, %v4359, %v4363
        %v4365 = vshrl.u32 %v4202, 16
        %v4367 = vrot.slane %v4365, 4
        %v4368 = vor.u32 %v4367, %v4363
        %v4369 = vrot.slane %v4368, 4
        %v4371 = vshll.u32 %v4203, 16
        %v4373 = vrot.slane %v4371, 5
        %v4374 = vsel %vm2105, %v4369, %v4373
        %v4376 = vshrl.u32 %v4204, 16
        %v4378 = vrot.slane %v4376, 4
        %v4379 = vshll.u32 %v4204, 16
        %v4381 = vrot.slane %v4379, 5
        %v4382 = vor.u32 %v4378, %v4381
        %v4383 = vrot.slane %v4382, 4
        %v4385 = vshll.u32 %v4205, 16
        %v4387 = vrot.slane %v4385, 5
        %v4388 = vsel %vm2105, %v4383, %v4387
        %v4389 = vshrl.u32 %v4205, 16
        %v4391 = vrot.slane %v4389, 4
        %v4392 = vor.u32 %v4391, %v4387
        %v4393 = vrot.slane %v4392, 4
        %v4395 = vshll.u32 %v4206, 16
        %v4397 = vrot.slane %v4395, 5
        %v4398 = vsel %vm2105, %v4393, %v4397
        %v4399 = vunpack.c.l.b16 %v4220
        %v4400 = vunpack.c.l.b16 %v4230
        %v4401 = vunpack.c.l.b16 %v4244
        %v4402 = vunpack.c.l.b16 %v4254
        %v4403 = vunpack.c.l.b16 %v4268
        %v4404 = vunpack.c.l.b16 %v4278
        %v4405 = vunpack.c.l.b16 %v4292
        %v4406 = vunpack.c.l.b16 %v4302
        %v4407 = vunpack.c.l.b16 %v4316
        %v4408 = vunpack.c.l.b16 %v4326
        %v4409 = vunpack.c.l.b16 %v4340
        %v4410 = vunpack.c.l.b16 %v4350
        %v4411 = vunpack.c.l.b16 %v4364
        %v4412 = vunpack.c.l.b16 %v4374
        %v4413 = vunpack.c.l.b16 %v4388
        %v4414 = vunpack.c.l.b16 %v4398
        %v4415 = vpack.c.b16 %v4400, %v4399
        %v4416 = vpack.c.b16 %v4402, %v4401
        %v4417 = vpack.c.b16 %v4404, %v4403
        %v4418 = vpack.c.b16 %v4406, %v4405
        %v4419 = vpack.c.b16 %v4408, %v4407
        %v4420 = vpack.c.b16 %v4410, %v4409
        %v4421 = vpack.c.b16 %v4412, %v4411
        %v4422 = vpack.c.b16 %v4414, %v4413
        %4423 = vrot.lane.b32.xlu0 %v4415, 8
        %v4424 = vpop.permute.xlu0 %4423
        %4425 = vrot.lane.b32.xlu0 %v4416, 8
        %v4426 = vpop.permute.xlu0 %4425
        %4427 = vrot.lane.b32.xlu0 %v4417, 8
        %v4428 = vpop.permute.xlu0 %4427
        %4429 = vrot.lane.b32.xlu0 %v4418, 8
        %v4430 = vpop.permute.xlu0 %4429
        %4431 = vrot.lane.b32.xlu0 %v4419, 8
        %v4432 = vpop.permute.xlu0 %4431
        %4433 = vrot.lane.b32.xlu0 %v4420, 8
        %v4434 = vpop.permute.xlu0 %4433
        %4435 = vrot.lane.b32.xlu0 %v4421, 8
        %v4436 = vpop.permute.xlu0 %4435
        %4437 = vrot.lane.b32.xlu0 %v4422, 8
        %v4438 = vpop.permute.xlu0 %4437
        %4447 = vst.msk [vmem:[#allocation4] sm:$0xff] %vm2346, %v4424
        %4448 = vst.msk [vmem:[#allocation4 + $0x8] sm:$0xff] %vm2346, %v4426
        %4449 = vst.msk [vmem:[#allocation4 + $0x10] sm:$0xff] %vm2346, %v4428
        %4450 = vst.msk [vmem:[#allocation4 + $0x18] sm:$0xff] %vm2346, %v4430
        %4451 = vst.msk [vmem:[#allocation4 + $0x20] sm:$0xff] %vm2346, %v4432
        %4452 = vst.msk [vmem:[#allocation4 + $0x28] sm:$0xff] %vm2346, %v4434
        %4453 = vst.msk [vmem:[#allocation4 + $0x30] sm:$0xff] %vm2346, %v4436
        %4454 = vst.msk [vmem:[#allocation4 + $0x38] sm:$0xff] %vm2346, %v4438
        %v4455 = vld [vmem:[%s4110] sm:$0xe]
        %v4456 = vld [vmem:[%s4110 + $0x4] sm:$0xf]
        %v4457 = vld [vmem:[%s4110 + $0x8] sm:$0x1]
        %v4458 = vld [vmem:[%s4110 + $0xc] sm:$0xe]
        %v4459 = vld [vmem:[%s4110 + $0x10] sm:$0xf]
        %v4460 = vld [vmem:[%s4110 + $0x14] sm:$0x1]
        %v4461 = vld [vmem:[%s4110 + $0x18] sm:$0xe]
        %v4462 = vld [vmem:[%s4110 + $0x1c] sm:$0xf]
        %v4463 = vld [vmem:[%s4110 + $0x20] sm:$0x1]
        %v4464 = vld [vmem:[%s4110 + $0x24] sm:$0xe]
        %v4465 = vld [vmem:[%s4110 + $0x28] sm:$0xf]
        %v4466 = vld [vmem:[%s4110 + $0x2c] sm:$0x1]
        %v4467 = vld [vmem:[%s4110 + $0x30] sm:$0xe]
        %v4468 = vld [vmem:[%s4110 + $0x34] sm:$0xf]
        %v4469 = vld [vmem:[%s4110 + $0x38] sm:$0x1]
        %v4470 = vld [vmem:[%s4110 + $0x3c] sm:$0xe]
        %v4471 = vld [vmem:[%s4110 + $0x40] sm:$0xf]
        %v4472 = vld [vmem:[%s4110 + $0x44] sm:$0x1]
        %v4473 = vld [vmem:[%s4110 + $0x48] sm:$0xe]
        %v4474 = vld [vmem:[%s4110 + $0x4c] sm:$0xf]
        %v4475 = vld [vmem:[%s4110 + $0x50] sm:$0x1]
        %v4476 = vld [vmem:[%s4110 + $0x54] sm:$0xe]
        %v4477 = vld [vmem:[%s4110 + $0x58] sm:$0xf]
        %v4478 = vld [vmem:[%s4110 + $0x5c] sm:$0x1]
        %v4503 = vrot.slane %v4455, 5
        %v4504 = vrot.slane %v4503, 4
        %v4505 = vrot.slane %v4456, 5
        %v4506 = vsel %vm2405, %v4504, %v4505
        %v4507 = vrot.slane %v4505, 4
        %v4508 = vrot.slane %v4457, 5
        %v4509 = vsel %vm2405, %v4507, %v4508
        %v4510 = vrot.slane %v4458, 5
        %v4511 = vrot.slane %v4510, 4
        %v4512 = vrot.slane %v4459, 5
        %v4513 = vsel %vm2405, %v4511, %v4512
        %v4514 = vrot.slane %v4512, 4
        %v4515 = vrot.slane %v4460, 5
        %v4516 = vsel %vm2405, %v4514, %v4515
        %v4517 = vrot.slane %v4461, 5
        %v4518 = vrot.slane %v4517, 4
        %v4519 = vrot.slane %v4462, 5
        %v4520 = vsel %vm2405, %v4518, %v4519
        %v4521 = vrot.slane %v4519, 4
        %v4522 = vrot.slane %v4463, 5
        %v4523 = vsel %vm2405, %v4521, %v4522
        %v4524 = vrot.slane %v4464, 5
        %v4525 = vrot.slane %v4524, 4
        %v4526 = vrot.slane %v4465, 5
        %v4527 = vsel %vm2405, %v4525, %v4526
        %v4528 = vrot.slane %v4526, 4
        %v4529 = vrot.slane %v4466, 5
        %v4530 = vsel %vm2405, %v4528, %v4529
        %v4531 = vrot.slane %v4467, 5
        %v4532 = vrot.slane %v4531, 4
        %v4533 = vrot.slane %v4468, 5
        %v4534 = vsel %vm2405, %v4532, %v4533
        %v4535 = vrot.slane %v4533, 4
        %v4536 = vrot.slane %v4469, 5
        %v4537 = vsel %vm2405, %v4535, %v4536
        %v4538 = vrot.slane %v4470, 5
        %v4539 = vrot.slane %v4538, 4
        %v4540 = vrot.slane %v4471, 5
        %v4541 = vsel %vm2405, %v4539, %v4540
        %v4542 = vrot.slane %v4540, 4
        %v4543 = vrot.slane %v4472, 5
        %v4544 = vsel %vm2405, %v4542, %v4543
        %v4545 = vrot.slane %v4473, 5
        %v4546 = vrot.slane %v4545, 4
        %v4547 = vrot.slane %v4474, 5
        %v4548 = vsel %vm2405, %v4546, %v4547
        %v4549 = vrot.slane %v4547, 4
        %v4550 = vrot.slane %v4475, 5
        %v4551 = vsel %vm2405, %v4549, %v4550
        %v4552 = vrot.slane %v4476, 5
        %v4553 = vrot.slane %v4552, 4
        %v4554 = vrot.slane %v4477, 5
        %v4555 = vsel %vm2405, %v4553, %v4554
        %v4556 = vrot.slane %v4554, 4
        %v4557 = vrot.slane %v4478, 5
        %v4558 = vsel %vm2405, %v4556, %v4557
        %v4559 = vunpack.c.l.b16 %v4506
        %v4560 = vunpack.c.l.b16 %v4509
        %v4561 = vunpack.c.l.b16 %v4513
        %v4562 = vunpack.c.l.b16 %v4516
        %v4563 = vunpack.c.l.b16 %v4520
        %v4564 = vunpack.c.l.b16 %v4523
        %v4565 = vunpack.c.l.b16 %v4527
        %v4566 = vunpack.c.l.b16 %v4530
        %v4567 = vunpack.c.l.b16 %v4534
        %v4568 = vunpack.c.l.b16 %v4537
        %v4569 = vunpack.c.l.b16 %v4541
        %v4570 = vunpack.c.l.b16 %v4544
        %v4571 = vunpack.c.l.b16 %v4548
        %v4572 = vunpack.c.l.b16 %v4551
        %v4573 = vunpack.c.l.b16 %v4555
        %v4574 = vunpack.c.l.b16 %v4558
        %v4575 = vpack.c.b16 %v4560, %v4559
        %v4576 = vpack.c.b16 %v4562, %v4561
        %v4577 = vpack.c.b16 %v4564, %v4563
        %v4578 = vpack.c.b16 %v4566, %v4565
        %v4579 = vpack.c.b16 %v4568, %v4567
        %v4580 = vpack.c.b16 %v4570, %v4569
        %v4581 = vpack.c.b16 %v4572, %v4571
        %v4582 = vpack.c.b16 %v4574, %v4573
        %4583 = vrot.lane.b32.xlu0 %v4575, 16
        %v4584 = vpop.permute.xlu0 %4583
        %4585 = vrot.lane.b32.xlu0 %v4576, 16
        %v4586 = vpop.permute.xlu0 %4585
        %4587 = vrot.lane.b32.xlu0 %v4577, 16
        %v4588 = vpop.permute.xlu0 %4587
        %4589 = vrot.lane.b32.xlu0 %v4578, 16
        %v4590 = vpop.permute.xlu0 %4589
        %4591 = vrot.lane.b32.xlu0 %v4579, 16
        %v4592 = vpop.permute.xlu0 %4591
        %4593 = vrot.lane.b32.xlu0 %v4580, 16
        %v4594 = vpop.permute.xlu0 %4593
        %4595 = vrot.lane.b32.xlu0 %v4581, 16
        %v4596 = vpop.permute.xlu0 %4595
        %4597 = vrot.lane.b32.xlu0 %v4582, 16
        %v4598 = vpop.permute.xlu0 %4597
        %4607 = vst.msk [vmem:[#allocation4] sm:$0xff] %vm2510, %v4584
        %4608 = vst.msk [vmem:[#allocation4 + $0x8] sm:$0xff] %vm2510, %v4586
        %4609 = vst.msk [vmem:[#allocation4 + $0x10] sm:$0xff] %vm2510, %v4588
        %4610 = vst.msk [vmem:[#allocation4 + $0x18] sm:$0xff] %vm2510, %v4590
        %4611 = vst.msk [vmem:[#allocation4 + $0x20] sm:$0xff] %vm2510, %v4592
        %4612 = vst.msk [vmem:[#allocation4 + $0x28] sm:$0xff] %vm2510, %v4594
        %4613 = vst.msk [vmem:[#allocation4 + $0x30] sm:$0xff] %vm2510, %v4596
        %4614 = vst.msk [vmem:[#allocation4 + $0x38] sm:$0xff] %vm2510, %v4598
        %v4615 = vld [vmem:[%s1593] sm:$0xf]
        %v4616 = vld [vmem:[%s1593 + $0x4] sm:$0xf]
        %v4617 = vld [vmem:[%s1593 + $0xc] sm:$0xf]
        %v4618 = vld [vmem:[%s1593 + $0x10] sm:$0xf]
        %v4619 = vld [vmem:[%s1593 + $0x18] sm:$0xf]
        %v4620 = vld [vmem:[%s1593 + $0x1c] sm:$0xf]
        %v4621 = vld [vmem:[%s1593 + $0x24] sm:$0xf]
        %v4622 = vld [vmem:[%s1593 + $0x28] sm:$0xf]
        %v4623 = vld [vmem:[%s1593 + $0x30] sm:$0xf]
        %v4624 = vld [vmem:[%s1593 + $0x34] sm:$0xf]
        %v4625 = vld [vmem:[%s1593 + $0x3c] sm:$0xf]
        %v4626 = vld [vmem:[%s1593 + $0x40] sm:$0xf]
        %v4627 = vld [vmem:[%s1593 + $0x48] sm:$0xf]
        %v4628 = vld [vmem:[%s1593 + $0x4c] sm:$0xf]
        %v4629 = vld [vmem:[%s1593 + $0x54] sm:$0xf]
        %v4630 = vld [vmem:[%s1593 + $0x58] sm:$0xf]
        %v4647 = vunpack.c.l.b16 %v4615
        %v4648 = vunpack.c.l.b16 %v4616
        %v4649 = vunpack.c.l.b16 %v4617
        %v4650 = vunpack.c.l.b16 %v4618
        %v4651 = vunpack.c.l.b16 %v4619
        %v4652 = vunpack.c.l.b16 %v4620
        %v4653 = vunpack.c.l.b16 %v4621
        %v4654 = vunpack.c.l.b16 %v4622
        %v4655 = vunpack.c.l.b16 %v4623
        %v4656 = vunpack.c.l.b16 %v4624
        %v4657 = vunpack.c.l.b16 %v4625
        %v4658 = vunpack.c.l.b16 %v4626
        %v4659 = vunpack.c.l.b16 %v4627
        %v4660 = vunpack.c.l.b16 %v4628
        %v4661 = vunpack.c.l.b16 %v4629
        %v4662 = vunpack.c.l.b16 %v4630
        %v4663 = vpack.c.b16 %v4648, %v4647
        %v4664 = vpack.c.b16 %v4650, %v4649
        %v4665 = vpack.c.b16 %v4652, %v4651
        %v4666 = vpack.c.b16 %v4654, %v4653
        %v4667 = vpack.c.b16 %v4656, %v4655
        %v4668 = vpack.c.b16 %v4658, %v4657
        %v4669 = vpack.c.b16 %v4660, %v4659
        %v4670 = vpack.c.b16 %v4662, %v4661
        %4671 = vrot.lane.b32.xlu0 %v4663, 24
        %v4672 = vpop.permute.xlu0 %4671
        %4673 = vrot.lane.b32.xlu0 %v4664, 24
        %v4674 = vpop.permute.xlu0 %4673
        %4675 = vrot.lane.b32.xlu0 %v4665, 24
        %v4676 = vpop.permute.xlu0 %4675
        %4677 = vrot.lane.b32.xlu0 %v4666, 24
        %v4678 = vpop.permute.xlu0 %4677
        %4679 = vrot.lane.b32.xlu0 %v4667, 24
        %v4680 = vpop.permute.xlu0 %4679
        %4681 = vrot.lane.b32.xlu0 %v4668, 24
        %v4682 = vpop.permute.xlu0 %4681
        %4683 = vrot.lane.b32.xlu0 %v4669, 24
        %v4684 = vpop.permute.xlu0 %4683
        %4685 = vrot.lane.b32.xlu0 %v4670, 24
        %v4686 = vpop.permute.xlu0 %4685
        %4695 = vst.msk [vmem:[#allocation4] sm:$0xff] %vm2599, %v4672
        %4696 = vst.msk [vmem:[#allocation4 + $0x8] sm:$0xff] %vm2599, %v4674
        %4697 = vst.msk [vmem:[#allocation4 + $0x10] sm:$0xff] %vm2599, %v4676
        %4698 = vst.msk [vmem:[#allocation4 + $0x18] sm:$0xff] %vm2599, %v4678
        %4699 = vst.msk [vmem:[#allocation4 + $0x20] sm:$0xff] %vm2599, %v4680
        %4700 = vst.msk [vmem:[#allocation4 + $0x28] sm:$0xff] %vm2599, %v4682
        %4701 = vst.msk [vmem:[#allocation4 + $0x30] sm:$0xff] %vm2599, %v4684
        %4702 = vst.msk [vmem:[#allocation4 + $0x38] sm:$0xff] %vm2599, %v4686
        %v4703 = vld [vmem:[%s1593] sm:$0xf]
        %v4704 = vld [vmem:[%s1593 + $0x4] sm:$0xf]
        %v4705 = vld [vmem:[%s1593 + $0x8] sm:$0x1]
        %v4706 = vld [vmem:[%s1593 + $0xc] sm:$0xf]
        %v4707 = vld [vmem:[%s1593 + $0x10] sm:$0xf]
        %v4708 = vld [vmem:[%s1593 + $0x14] sm:$0x1]
        %v4709 = vld [vmem:[%s1593 + $0x18] sm:$0xf]
        %v4710 = vld [vmem:[%s1593 + $0x1c] sm:$0xf]
        %v4711 = vld [vmem:[%s1593 + $0x20] sm:$0x1]
        %v4712 = vld [vmem:[%s1593 + $0x24] sm:$0xf]
        %v4713 = vld [vmem:[%s1593 + $0x28] sm:$0xf]
        %v4714 = vld [vmem:[%s1593 + $0x2c] sm:$0x1]
        %v4715 = vld [vmem:[%s1593 + $0x30] sm:$0xf]
        %v4716 = vld [vmem:[%s1593 + $0x34] sm:$0xf]
        %v4717 = vld [vmem:[%s1593 + $0x38] sm:$0x1]
        %v4718 = vld [vmem:[%s1593 + $0x3c] sm:$0xf]
        %v4719 = vld [vmem:[%s1593 + $0x40] sm:$0xf]
        %v4720 = vld [vmem:[%s1593 + $0x44] sm:$0x1]
        %v4721 = vld [vmem:[%s1593 + $0x48] sm:$0xf]
        %v4722 = vld [vmem:[%s1593 + $0x4c] sm:$0xf]
        %v4723 = vld [vmem:[%s1593 + $0x50] sm:$0x1]
        %v4724 = vld [vmem:[%s1593 + $0x54] sm:$0xf]
        %v4725 = vld [vmem:[%s1593 + $0x58] sm:$0xf]
        %v4726 = vld [vmem:[%s1593 + $0x5c] sm:$0x1]
        %v4728 = vshrl.u32 %v4703, 16
        %v4730 = vrot.slane %v4728, 4
        %v4731 = vshll.u32 %v4703, 16
        %v4733 = vrot.slane %v4731, 5
        %v4734 = vor.u32 %v4730, %v4733
        %v4735 = vrot.slane %v4734, 4
        %v4737 = vshll.u32 %v4704, 16
        %v4739 = vrot.slane %v4737, 5
        %v4740 = vsel %vm2105, %v4735, %v4739
        %v4741 = vshrl.u32 %v4704, 16
        %v4743 = vrot.slane %v4741, 4
        %v4744 = vor.u32 %v4743, %v4739
        %v4745 = vrot.slane %v4744, 4
        %v4747 = vshll.u32 %v4705, 16
        %v4749 = vrot.slane %v4747, 5
        %v4750 = vsel %vm2105, %v4745, %v4749
        %v4752 = vshrl.u32 %v4706, 16
        %v4754 = vrot.slane %v4752, 4
        %v4755 = vshll.u32 %v4706, 16
        %v4757 = vrot.slane %v4755, 5
        %v4758 = vor.u32 %v4754, %v4757
        %v4759 = vrot.slane %v4758, 4
        %v4761 = vshll.u32 %v4707, 16
        %v4763 = vrot.slane %v4761, 5
        %v4764 = vsel %vm2105, %v4759, %v4763
        %v4765 = vshrl.u32 %v4707, 16
        %v4767 = vrot.slane %v4765, 4
        %v4768 = vor.u32 %v4767, %v4763
        %v4769 = vrot.slane %v4768, 4
        %v4771 = vshll.u32 %v4708, 16
        %v4773 = vrot.slane %v4771, 5
        %v4774 = vsel %vm2105, %v4769, %v4773
        %v4776 = vshrl.u32 %v4709, 16
        %v4778 = vrot.slane %v4776, 4
        %v4779 = vshll.u32 %v4709, 16
        %v4781 = vrot.slane %v4779, 5
        %v4782 = vor.u32 %v4778, %v4781
        %v4783 = vrot.slane %v4782, 4
        %v4785 = vshll.u32 %v4710, 16
        %v4787 = vrot.slane %v4785, 5
        %v4788 = vsel %vm2105, %v4783, %v4787
        %v4789 = vshrl.u32 %v4710, 16
        %v4791 = vrot.slane %v4789, 4
        %v4792 = vor.u32 %v4791, %v4787
        %v4793 = vrot.slane %v4792, 4
        %v4795 = vshll.u32 %v4711, 16
        %v4797 = vrot.slane %v4795, 5
        %v4798 = vsel %vm2105, %v4793, %v4797
        %v4800 = vshrl.u32 %v4712, 16
        %v4802 = vrot.slane %v4800, 4
        %v4803 = vshll.u32 %v4712, 16
        %v4805 = vrot.slane %v4803, 5
        %v4806 = vor.u32 %v4802, %v4805
        %v4807 = vrot.slane %v4806, 4
        %v4809 = vshll.u32 %v4713, 16
        %v4811 = vrot.slane %v4809, 5
        %v4812 = vsel %vm2105, %v4807, %v4811
        %v4813 = vshrl.u32 %v4713, 16
        %v4815 = vrot.slane %v4813, 4
        %v4816 = vor.u32 %v4815, %v4811
        %v4817 = vrot.slane %v4816, 4
        %v4819 = vshll.u32 %v4714, 16
        %v4821 = vrot.slane %v4819, 5
        %v4822 = vsel %vm2105, %v4817, %v4821
        %v4824 = vshrl.u32 %v4715, 16
        %v4826 = vrot.slane %v4824, 4
        %v4827 = vshll.u32 %v4715, 16
        %v4829 = vrot.slane %v4827, 5
        %v4830 = vor.u32 %v4826, %v4829
        %v4831 = vrot.slane %v4830, 4
        %v4833 = vshll.u32 %v4716, 16
        %v4835 = vrot.slane %v4833, 5
        %v4836 = vsel %vm2105, %v4831, %v4835
        %v4837 = vshrl.u32 %v4716, 16
        %v4839 = vrot.slane %v4837, 4
        %v4840 = vor.u32 %v4839, %v4835
        %v4841 = vrot.slane %v4840, 4
        %v4843 = vshll.u32 %v4717, 16
        %v4845 = vrot.slane %v4843, 5
        %v4846 = vsel %vm2105, %v4841, %v4845
        %v4848 = vshrl.u32 %v4718, 16
        %v4850 = vrot.slane %v4848, 4
        %v4851 = vshll.u32 %v4718, 16
        %v4853 = vrot.slane %v4851, 5
        %v4854 = vor.u32 %v4850, %v4853
        %v4855 = vrot.slane %v4854, 4
        %v4857 = vshll.u32 %v4719, 16
        %v4859 = vrot.slane %v4857, 5
        %v4860 = vsel %vm2105, %v4855, %v4859
        %v4861 = vshrl.u32 %v4719, 16
        %v4863 = vrot.slane %v4861, 4
        %v4864 = vor.u32 %v4863, %v4859
        %v4865 = vrot.slane %v4864, 4
        %v4867 = vshll.u32 %v4720, 16
        %v4869 = vrot.slane %v4867, 5
        %v4870 = vsel %vm2105, %v4865, %v4869
        %v4872 = vshrl.u32 %v4721, 16
        %v4874 = vrot.slane %v4872, 4
        %v4875 = vshll.u32 %v4721, 16
        %v4877 = vrot.slane %v4875, 5
        %v4878 = vor.u32 %v4874, %v4877
        %v4879 = vrot.slane %v4878, 4
        %v4881 = vshll.u32 %v4722, 16
        %v4883 = vrot.slane %v4881, 5
        %v4884 = vsel %vm2105, %v4879, %v4883
        %v4885 = vshrl.u32 %v4722, 16
        %v4887 = vrot.slane %v4885, 4
        %v4888 = vor.u32 %v4887, %v4883
        %v4889 = vrot.slane %v4888, 4
        %v4891 = vshll.u32 %v4723, 16
        %v4893 = vrot.slane %v4891, 5
        %v4894 = vsel %vm2105, %v4889, %v4893
        %v4896 = vshrl.u32 %v4724, 16
        %v4898 = vrot.slane %v4896, 4
        %v4899 = vshll.u32 %v4724, 16
        %v4901 = vrot.slane %v4899, 5
        %v4902 = vor.u32 %v4898, %v4901
        %v4903 = vrot.slane %v4902, 4
        %v4905 = vshll.u32 %v4725, 16
        %v4907 = vrot.slane %v4905, 5
        %v4908 = vsel %vm2105, %v4903, %v4907
        %v4909 = vshrl.u32 %v4725, 16
        %v4911 = vrot.slane %v4909, 4
        %v4912 = vor.u32 %v4911, %v4907
        %v4913 = vrot.slane %v4912, 4
        %v4915 = vshll.u32 %v4726, 16
        %v4917 = vrot.slane %v4915, 5
        %v4918 = vsel %vm2105, %v4913, %v4917
        %v4919 = vunpack.c.l.b16 %v4740
        %v4920 = vunpack.c.l.b16 %v4750
        %v4921 = vunpack.c.l.b16 %v4764
        %v4922 = vunpack.c.l.b16 %v4774
        %v4923 = vunpack.c.l.b16 %v4788
        %v4924 = vunpack.c.l.b16 %v4798
        %v4925 = vunpack.c.l.b16 %v4812
        %v4926 = vunpack.c.l.b16 %v4822
        %v4927 = vunpack.c.l.b16 %v4836
        %v4928 = vunpack.c.l.b16 %v4846
        %v4929 = vunpack.c.l.b16 %v4860
        %v4930 = vunpack.c.l.b16 %v4870
        %v4931 = vunpack.c.l.b16 %v4884
        %v4932 = vunpack.c.l.b16 %v4894
        %v4933 = vunpack.c.l.b16 %v4908
        %v4934 = vunpack.c.l.b16 %v4918
        %v4935 = vpack.c.b16 %v4920, %v4919
        %v4936 = vpack.c.b16 %v4922, %v4921
        %v4937 = vpack.c.b16 %v4924, %v4923
        %v4938 = vpack.c.b16 %v4926, %v4925
        %v4939 = vpack.c.b16 %v4928, %v4927
        %v4940 = vpack.c.b16 %v4930, %v4929
        %v4941 = vpack.c.b16 %v4932, %v4931
        %v4942 = vpack.c.b16 %v4934, %v4933
        %4943 = vrot.lane.b32.xlu0 %v4935, 32
        %v4944 = vpop.permute.xlu0 %4943
        %4945 = vrot.lane.b32.xlu0 %v4936, 32
        %v4946 = vpop.permute.xlu0 %4945
        %4947 = vrot.lane.b32.xlu0 %v4937, 32
        %v4948 = vpop.permute.xlu0 %4947
        %4949 = vrot.lane.b32.xlu0 %v4938, 32
        %v4950 = vpop.permute.xlu0 %4949
        %4951 = vrot.lane.b32.xlu0 %v4939, 32
        %v4952 = vpop.permute.xlu0 %4951
        %4953 = vrot.lane.b32.xlu0 %v4940, 32
        %v4954 = vpop.permute.xlu0 %4953
        %4955 = vrot.lane.b32.xlu0 %v4941, 32
        %v4956 = vpop.permute.xlu0 %4955
        %4957 = vrot.lane.b32.xlu0 %v4942, 32
        %v4958 = vpop.permute.xlu0 %4957
        %4967 = vst.msk [vmem:[#allocation4] sm:$0xff] %vm2872, %v4944
        %4968 = vst.msk [vmem:[#allocation4 + $0x8] sm:$0xff] %vm2872, %v4946
        %4969 = vst.msk [vmem:[#allocation4 + $0x10] sm:$0xff] %vm2872, %v4948
        %4970 = vst.msk [vmem:[#allocation4 + $0x18] sm:$0xff] %vm2872, %v4950
        %4971 = vst.msk [vmem:[#allocation4 + $0x20] sm:$0xff] %vm2872, %v4952
        %4972 = vst.msk [vmem:[#allocation4 + $0x28] sm:$0xff] %vm2872, %v4954
        %4973 = vst.msk [vmem:[#allocation4 + $0x30] sm:$0xff] %vm2872, %v4956
        %4974 = vst.msk [vmem:[#allocation4 + $0x38] sm:$0xff] %vm2872, %v4958
        %v4975 = vld [vmem:[%s1593] sm:$0xe]
        %v4976 = vld [vmem:[%s1593 + $0x4] sm:$0xf]
        %v4977 = vld [vmem:[%s1593 + $0x8] sm:$0x1]
        %v4978 = vld [vmem:[%s1593 + $0xc] sm:$0xe]
        %v4979 = vld [vmem:[%s1593 + $0x10] sm:$0xf]
        %v4980 = vld [vmem:[%s1593 + $0x14] sm:$0x1]
        %v4981 = vld [vmem:[%s1593 + $0x18] sm:$0xe]
        %v4982 = vld [vmem:[%s1593 + $0x1c] sm:$0xf]
        %v4983 = vld [vmem:[%s1593 + $0x20] sm:$0x1]
        %v4984 = vld [vmem:[%s1593 + $0x24] sm:$0xe]
        %v4985 = vld [vmem:[%s1593 + $0x28] sm:$0xf]
        %v4986 = vld [vmem:[%s1593 + $0x2c] sm:$0x1]
        %v4987 = vld [vmem:[%s1593 + $0x30] sm:$0xe]
        %v4988 = vld [vmem:[%s1593 + $0x34] sm:$0xf]
        %v4989 = vld [vmem:[%s1593 + $0x38] sm:$0x1]
        %v4990 = vld [vmem:[%s1593 + $0x3c] sm:$0xe]
        %v4991 = vld [vmem:[%s1593 + $0x40] sm:$0xf]
        %v4992 = vld [vmem:[%s1593 + $0x44] sm:$0x1]
        %v4993 = vld [vmem:[%s1593 + $0x48] sm:$0xe]
        %v4994 = vld [vmem:[%s1593 + $0x4c] sm:$0xf]
        %v4995 = vld [vmem:[%s1593 + $0x50] sm:$0x1]
        %v4996 = vld [vmem:[%s1593 + $0x54] sm:$0xe]
        %v4997 = vld [vmem:[%s1593 + $0x58] sm:$0xf]
        %v4998 = vld [vmem:[%s1593 + $0x5c] sm:$0x1]
        %v5023 = vrot.slane %v4975, 5
        %v5024 = vrot.slane %v5023, 4
        %v5025 = vrot.slane %v4976, 5
        %v5026 = vsel %vm2405, %v5024, %v5025
        %v5027 = vrot.slane %v5025, 4
        %v5028 = vrot.slane %v4977, 5
        %v5029 = vsel %vm2405, %v5027, %v5028
        %v5030 = vrot.slane %v4978, 5
        %v5031 = vrot.slane %v5030, 4
        %v5032 = vrot.slane %v4979, 5
        %v5033 = vsel %vm2405, %v5031, %v5032
        %v5034 = vrot.slane %v5032, 4
        %v5035 = vrot.slane %v4980, 5
        %v5036 = vsel %vm2405, %v5034, %v5035
        %v5037 = vrot.slane %v4981, 5
        %v5038 = vrot.slane %v5037, 4
        %v5039 = vrot.slane %v4982, 5
        %v5040 = vsel %vm2405, %v5038, %v5039
        %v5041 = vrot.slane %v5039, 4
        %v5042 = vrot.slane %v4983, 5
        %v5043 = vsel %vm2405, %v5041, %v5042
        %v5044 = vrot.slane %v4984, 5
        %v5045 = vrot.slane %v5044, 4
        %v5046 = vrot.slane %v4985, 5
        %v5047 = vsel %vm2405, %v5045, %v5046
        %v5048 = vrot.slane %v5046, 4
        %v5049 = vrot.slane %v4986, 5
        %v5050 = vsel %vm2405, %v5048, %v5049
        %v5051 = vrot.slane %v4987, 5
        %v5052 = vrot.slane %v5051, 4
        %v5053 = vrot.slane %v4988, 5
        %v5054 = vsel %vm2405, %v5052, %v5053
        %v5055 = vrot.slane %v5053, 4
        %v5056 = vrot.slane %v4989, 5
        %v5057 = vsel %vm2405, %v5055, %v5056
        %v5058 = vrot.slane %v4990, 5
        %v5059 = vrot.slane %v5058, 4
        %v5060 = vrot.slane %v4991, 5
        %v5061 = vsel %vm2405, %v5059, %v5060
        %v5062 = vrot.slane %v5060, 4
        %v5063 = vrot.slane %v4992, 5
        %v5064 = vsel %vm2405, %v5062, %v5063
        %v5065 = vrot.slane %v4993, 5
        %v5066 = vrot.slane %v5065, 4
        %v5067 = vrot.slane %v4994, 5
        %v5068 = vsel %vm2405, %v5066, %v5067
        %v5069 = vrot.slane %v5067, 4
        %v5070 = vrot.slane %v4995, 5
        %v5071 = vsel %vm2405, %v5069, %v5070
        %v5072 = vrot.slane %v4996, 5
        %v5073 = vrot.slane %v5072, 4
        %v5074 = vrot.slane %v4997, 5
        %v5075 = vsel %vm2405, %v5073, %v5074
        %v5076 = vrot.slane %v5074, 4
        %v5077 = vrot.slane %v4998, 5
        %v5078 = vsel %vm2405, %v5076, %v5077
        %v5079 = vunpack.c.l.b16 %v5026
        %v5080 = vunpack.c.l.b16 %v5029
        %v5081 = vunpack.c.l.b16 %v5033
        %v5082 = vunpack.c.l.b16 %v5036
        %v5083 = vunpack.c.l.b16 %v5040
        %v5084 = vunpack.c.l.b16 %v5043
        %v5085 = vunpack.c.l.b16 %v5047
        %v5086 = vunpack.c.l.b16 %v5050
        %v5087 = vunpack.c.l.b16 %v5054
        %v5088 = vunpack.c.l.b16 %v5057
        %v5089 = vunpack.c.l.b16 %v5061
        %v5090 = vunpack.c.l.b16 %v5064
        %v5091 = vunpack.c.l.b16 %v5068
        %v5092 = vunpack.c.l.b16 %v5071
        %v5093 = vunpack.c.l.b16 %v5075
        %v5094 = vunpack.c.l.b16 %v5078
        %v5095 = vpack.c.b16 %v5080, %v5079
        %v5096 = vpack.c.b16 %v5082, %v5081
        %v5097 = vpack.c.b16 %v5084, %v5083
        %v5098 = vpack.c.b16 %v5086, %v5085
        %v5099 = vpack.c.b16 %v5088, %v5087
        %v5100 = vpack.c.b16 %v5090, %v5089
        %v5101 = vpack.c.b16 %v5092, %v5091
        %v5102 = vpack.c.b16 %v5094, %v5093
        %5103 = vrot.lane.b32.xlu0 %v5095, 40
        %v5104 = vpop.permute.xlu0 %5103
        %5105 = vrot.lane.b32.xlu0 %v5096, 40
        %v5106 = vpop.permute.xlu0 %5105
        %5107 = vrot.lane.b32.xlu0 %v5097, 40
        %v5108 = vpop.permute.xlu0 %5107
        %5109 = vrot.lane.b32.xlu0 %v5098, 40
        %v5110 = vpop.permute.xlu0 %5109
        %5111 = vrot.lane.b32.xlu0 %v5099, 40
        %v5112 = vpop.permute.xlu0 %5111
        %5113 = vrot.lane.b32.xlu0 %v5100, 40
        %v5114 = vpop.permute.xlu0 %5113
        %5115 = vrot.lane.b32.xlu0 %v5101, 40
        %v5116 = vpop.permute.xlu0 %5115
        %5117 = vrot.lane.b32.xlu0 %v5102, 40
        %v5118 = vpop.permute.xlu0 %5117
        %5127 = vst.msk [vmem:[#allocation4] sm:$0xff] %vm3033, %v5104
        %5128 = vst.msk [vmem:[#allocation4 + $0x8] sm:$0xff] %vm3033, %v5106
        %5129 = vst.msk [vmem:[#allocation4 + $0x10] sm:$0xff] %vm3033, %v5108
        %5130 = vst.msk [vmem:[#allocation4 + $0x18] sm:$0xff] %vm3033, %v5110
        %5131 = vst.msk [vmem:[#allocation4 + $0x20] sm:$0xff] %vm3033, %v5112
        %5132 = vst.msk [vmem:[#allocation4 + $0x28] sm:$0xff] %vm3033, %v5114
        %5133 = vst.msk [vmem:[#allocation4 + $0x30] sm:$0xff] %vm3033, %v5116
        %5134 = vst.msk [vmem:[#allocation4 + $0x38] sm:$0xff] %vm3033, %v5118
        %s5135 = sadd.s32 8, 2
        %s5136 = smul.u32 %s5135, 3
        %s5137 = smul.addr %s5136, 4
        %s5138 = scalar_lea.vmem [#allocation2], %s5137
        %v5139 = vld [vmem:[%s5138] sm:$0xf]
        %v5140 = vld [vmem:[%s5138 + $0x4] sm:$0xf]
        %v5141 = vld [vmem:[%s5138 + $0xc] sm:$0xf]
        %v5142 = vld [vmem:[%s5138 + $0x10] sm:$0xf]
        %v5143 = vld [vmem:[%s5138 + $0x18] sm:$0xf]
        %v5144 = vld [vmem:[%s5138 + $0x1c] sm:$0xf]
        %v5145 = vld [vmem:[%s5138 + $0x24] sm:$0xf]
        %v5146 = vld [vmem:[%s5138 + $0x28] sm:$0xf]
        %v5147 = vld [vmem:[%s5138 + $0x30] sm:$0xf]
        %v5148 = vld [vmem:[%s5138 + $0x34] sm:$0xf]
        %v5149 = vld [vmem:[%s5138 + $0x3c] sm:$0xf]
        %v5150 = vld [vmem:[%s5138 + $0x40] sm:$0xf]
        %v5151 = vld [vmem:[%s5138 + $0x48] sm:$0xf]
        %v5152 = vld [vmem:[%s5138 + $0x4c] sm:$0xf]
        %v5153 = vld [vmem:[%s5138 + $0x54] sm:$0xf]
        %v5154 = vld [vmem:[%s5138 + $0x58] sm:$0xf]
        %v5171 = vunpack.c.l.b16 %v5139
        %v5172 = vunpack.c.l.b16 %v5140
        %v5173 = vunpack.c.l.b16 %v5141
        %v5174 = vunpack.c.l.b16 %v5142
        %v5175 = vunpack.c.l.b16 %v5143
        %v5176 = vunpack.c.l.b16 %v5144
        %v5177 = vunpack.c.l.b16 %v5145
        %v5178 = vunpack.c.l.b16 %v5146
        %v5179 = vunpack.c.l.b16 %v5147
        %v5180 = vunpack.c.l.b16 %v5148
        %v5181 = vunpack.c.l.b16 %v5149
        %v5182 = vunpack.c.l.b16 %v5150
        %v5183 = vunpack.c.l.b16 %v5151
        %v5184 = vunpack.c.l.b16 %v5152
        %v5185 = vunpack.c.l.b16 %v5153
        %v5186 = vunpack.c.l.b16 %v5154
        %v5187 = vpack.c.b16 %v5172, %v5171
        %v5188 = vpack.c.b16 %v5174, %v5173
        %v5189 = vpack.c.b16 %v5176, %v5175
        %v5190 = vpack.c.b16 %v5178, %v5177
        %v5191 = vpack.c.b16 %v5180, %v5179
        %v5192 = vpack.c.b16 %v5182, %v5181
        %v5193 = vpack.c.b16 %v5184, %v5183
        %v5194 = vpack.c.b16 %v5186, %v5185
        %5195 = vrot.lane.b32.xlu0 %v5187, 48
        %v5196 = vpop.permute.xlu0 %5195
        %5197 = vrot.lane.b32.xlu0 %v5188, 48
        %v5198 = vpop.permute.xlu0 %5197
        %5199 = vrot.lane.b32.xlu0 %v5189, 48
        %v5200 = vpop.permute.xlu0 %5199
        %5201 = vrot.lane.b32.xlu0 %v5190, 48
        %v5202 = vpop.permute.xlu0 %5201
        %5203 = vrot.lane.b32.xlu0 %v5191, 48
        %v5204 = vpop.permute.xlu0 %5203
        %5205 = vrot.lane.b32.xlu0 %v5192, 48
        %v5206 = vpop.permute.xlu0 %5205
        %5207 = vrot.lane.b32.xlu0 %v5193, 48
        %v5208 = vpop.permute.xlu0 %5207
        %5209 = vrot.lane.b32.xlu0 %v5194, 48
        %v5210 = vpop.permute.xlu0 %5209
        %5219 = vst.msk [vmem:[#allocation4] sm:$0xff] %vm3126, %v5196
        %5220 = vst.msk [vmem:[#allocation4 + $0x8] sm:$0xff] %vm3126, %v5198
        %5221 = vst.msk [vmem:[#allocation4 + $0x10] sm:$0xff] %vm3126, %v5200
        %5222 = vst.msk [vmem:[#allocation4 + $0x18] sm:$0xff] %vm3126, %v5202
        %5223 = vst.msk [vmem:[#allocation4 + $0x20] sm:$0xff] %vm3126, %v5204
        %5224 = vst.msk [vmem:[#allocation4 + $0x28] sm:$0xff] %vm3126, %v5206
        %5225 = vst.msk [vmem:[#allocation4 + $0x30] sm:$0xff] %vm3126, %v5208
        %5226 = vst.msk [vmem:[#allocation4 + $0x38] sm:$0xff] %vm3126, %v5210
        %v5227 = vld [vmem:[%s5138] sm:$0xf]
        %v5228 = vld [vmem:[%s5138 + $0x4] sm:$0xf]
        %v5229 = vld [vmem:[%s5138 + $0x8] sm:$0x1]
        %v5230 = vld [vmem:[%s5138 + $0xc] sm:$0xf]
        %v5231 = vld [vmem:[%s5138 + $0x10] sm:$0xf]
        %v5232 = vld [vmem:[%s5138 + $0x14] sm:$0x1]
        %v5233 = vld [vmem:[%s5138 + $0x18] sm:$0xf]
        %v5234 = vld [vmem:[%s5138 + $0x1c] sm:$0xf]
        %v5235 = vld [vmem:[%s5138 + $0x20] sm:$0x1]
        %v5236 = vld [vmem:[%s5138 + $0x24] sm:$0xf]
        %v5237 = vld [vmem:[%s5138 + $0x28] sm:$0xf]
        %v5238 = vld [vmem:[%s5138 + $0x2c] sm:$0x1]
        %v5239 = vld [vmem:[%s5138 + $0x30] sm:$0xf]
        %v5240 = vld [vmem:[%s5138 + $0x34] sm:$0xf]
        %v5241 = vld [vmem:[%s5138 + $0x38] sm:$0x1]
        %v5242 = vld [vmem:[%s5138 + $0x3c] sm:$0xf]
        %v5243 = vld [vmem:[%s5138 + $0x40] sm:$0xf]
        %v5244 = vld [vmem:[%s5138 + $0x44] sm:$0x1]
        %v5245 = vld [vmem:[%s5138 + $0x48] sm:$0xf]
        %v5246 = vld [vmem:[%s5138 + $0x4c] sm:$0xf]
        %v5247 = vld [vmem:[%s5138 + $0x50] sm:$0x1]
        %v5248 = vld [vmem:[%s5138 + $0x54] sm:$0xf]
        %v5249 = vld [vmem:[%s5138 + $0x58] sm:$0xf]
        %v5250 = vld [vmem:[%s5138 + $0x5c] sm:$0x1]
        %v5252 = vshrl.u32 %v5227, 16
        %v5254 = vrot.slane %v5252, 4
        %v5255 = vshll.u32 %v5227, 16
        %v5257 = vrot.slane %v5255, 5
        %v5258 = vor.u32 %v5254, %v5257
        %v5259 = vrot.slane %v5258, 4
        %v5261 = vshll.u32 %v5228, 16
        %v5263 = vrot.slane %v5261, 5
        %v5264 = vsel %vm2105, %v5259, %v5263
        %v5265 = vshrl.u32 %v5228, 16
        %v5267 = vrot.slane %v5265, 4
        %v5268 = vor.u32 %v5267, %v5263
        %v5269 = vrot.slane %v5268, 4
        %v5271 = vshll.u32 %v5229, 16
        %v5273 = vrot.slane %v5271, 5
        %v5274 = vsel %vm2105, %v5269, %v5273
        %v5276 = vshrl.u32 %v5230, 16
        %v5278 = vrot.slane %v5276, 4
        %v5279 = vshll.u32 %v5230, 16
        %v5281 = vrot.slane %v5279, 5
        %v5282 = vor.u32 %v5278, %v5281
        %v5283 = vrot.slane %v5282, 4
        %v5285 = vshll.u32 %v5231, 16
        %v5287 = vrot.slane %v5285, 5
        %v5288 = vsel %vm2105, %v5283, %v5287
        %v5289 = vshrl.u32 %v5231, 16
        %v5291 = vrot.slane %v5289, 4
        %v5292 = vor.u32 %v5291, %v5287
        %v5293 = vrot.slane %v5292, 4
        %v5295 = vshll.u32 %v5232, 16
        %v5297 = vrot.slane %v5295, 5
        %v5298 = vsel %vm2105, %v5293, %v5297
        %v5300 = vshrl.u32 %v5233, 16
        %v5302 = vrot.slane %v5300, 4
        %v5303 = vshll.u32 %v5233, 16
        %v5305 = vrot.slane %v5303, 5
        %v5306 = vor.u32 %v5302, %v5305
        %v5307 = vrot.slane %v5306, 4
        %v5309 = vshll.u32 %v5234, 16
        %v5311 = vrot.slane %v5309, 5
        %v5312 = vsel %vm2105, %v5307, %v5311
        %v5313 = vshrl.u32 %v5234, 16
        %v5315 = vrot.slane %v5313, 4
        %v5316 = vor.u32 %v5315, %v5311
        %v5317 = vrot.slane %v5316, 4
        %v5319 = vshll.u32 %v5235, 16
        %v5321 = vrot.slane %v5319, 5
        %v5322 = vsel %vm2105, %v5317, %v5321
        %v5324 = vshrl.u32 %v5236, 16
        %v5326 = vrot.slane %v5324, 4
        %v5327 = vshll.u32 %v5236, 16
        %v5329 = vrot.slane %v5327, 5
        %v5330 = vor.u32 %v5326, %v5329
        %v5331 = vrot.slane %v5330, 4
        %v5333 = vshll.u32 %v5237, 16
        %v5335 = vrot.slane %v5333, 5
        %v5336 = vsel %vm2105, %v5331, %v5335
        %v5337 = vshrl.u32 %v5237, 16
        %v5339 = vrot.slane %v5337, 4
        %v5340 = vor.u32 %v5339, %v5335
        %v5341 = vrot.slane %v5340, 4
        %v5343 = vshll.u32 %v5238, 16
        %v5345 = vrot.slane %v5343, 5
        %v5346 = vsel %vm2105, %v5341, %v5345
        %v5348 = vshrl.u32 %v5239, 16
        %v5350 = vrot.slane %v5348, 4
        %v5351 = vshll.u32 %v5239, 16
        %v5353 = vrot.slane %v5351, 5
        %v5354 = vor.u32 %v5350, %v5353
        %v5355 = vrot.slane %v5354, 4
        %v5357 = vshll.u32 %v5240, 16
        %v5359 = vrot.slane %v5357, 5
        %v5360 = vsel %vm2105, %v5355, %v5359
        %v5361 = vshrl.u32 %v5240, 16
        %v5363 = vrot.slane %v5361, 4
        %v5364 = vor.u32 %v5363, %v5359
        %v5365 = vrot.slane %v5364, 4
        %v5367 = vshll.u32 %v5241, 16
        %v5369 = vrot.slane %v5367, 5
        %v5370 = vsel %vm2105, %v5365, %v5369
        %v5372 = vshrl.u32 %v5242, 16
        %v5374 = vrot.slane %v5372, 4
        %v5375 = vshll.u32 %v5242, 16
        %v5377 = vrot.slane %v5375, 5
        %v5378 = vor.u32 %v5374, %v5377
        %v5379 = vrot.slane %v5378, 4
        %v5381 = vshll.u32 %v5243, 16
        %v5383 = vrot.slane %v5381, 5
        %v5384 = vsel %vm2105, %v5379, %v5383
        %v5385 = vshrl.u32 %v5243, 16
        %v5387 = vrot.slane %v5385, 4
        %v5388 = vor.u32 %v5387, %v5383
        %v5389 = vrot.slane %v5388, 4
        %v5391 = vshll.u32 %v5244, 16
        %v5393 = vrot.slane %v5391, 5
        %v5394 = vsel %vm2105, %v5389, %v5393
        %v5396 = vshrl.u32 %v5245, 16
        %v5398 = vrot.slane %v5396, 4
        %v5399 = vshll.u32 %v5245, 16
        %v5401 = vrot.slane %v5399, 5
        %v5402 = vor.u32 %v5398, %v5401
        %v5403 = vrot.slane %v5402, 4
        %v5405 = vshll.u32 %v5246, 16
        %v5407 = vrot.slane %v5405, 5
        %v5408 = vsel %vm2105, %v5403, %v5407
        %v5409 = vshrl.u32 %v5246, 16
        %v5411 = vrot.slane %v5409, 4
        %v5412 = vor.u32 %v5411, %v5407
        %v5413 = vrot.slane %v5412, 4
        %v5415 = vshll.u32 %v5247, 16
        %v5417 = vrot.slane %v5415, 5
        %v5418 = vsel %vm2105, %v5413, %v5417
        %v5420 = vshrl.u32 %v5248, 16
        %v5422 = vrot.slane %v5420, 4
        %v5423 = vshll.u32 %v5248, 16
        %v5425 = vrot.slane %v5423, 5
        %v5426 = vor.u32 %v5422, %v5425
        %v5427 = vrot.slane %v5426, 4
        %v5429 = vshll.u32 %v5249, 16
        %v5431 = vrot.slane %v5429, 5
        %v5432 = vsel %vm2105, %v5427, %v5431
        %v5433 = vshrl.u32 %v5249, 16
        %v5435 = vrot.slane %v5433, 4
        %v5436 = vor.u32 %v5435, %v5431
        %v5437 = vrot.slane %v5436, 4
        %v5439 = vshll.u32 %v5250, 16
        %v5441 = vrot.slane %v5439, 5
        %v5442 = vsel %vm2105, %v5437, %v5441
        %v5443 = vunpack.c.l.b16 %v5264
        %v5444 = vunpack.c.l.b16 %v5274
        %v5445 = vunpack.c.l.b16 %v5288
        %v5446 = vunpack.c.l.b16 %v5298
        %v5447 = vunpack.c.l.b16 %v5312
        %v5448 = vunpack.c.l.b16 %v5322
        %v5449 = vunpack.c.l.b16 %v5336
        %v5450 = vunpack.c.l.b16 %v5346
        %v5451 = vunpack.c.l.b16 %v5360
        %v5452 = vunpack.c.l.b16 %v5370
        %v5453 = vunpack.c.l.b16 %v5384
        %v5454 = vunpack.c.l.b16 %v5394
        %v5455 = vunpack.c.l.b16 %v5408
        %v5456 = vunpack.c.l.b16 %v5418
        %v5457 = vunpack.c.l.b16 %v5432
        %v5458 = vunpack.c.l.b16 %v5442
        %v5459 = vpack.c.b16 %v5444, %v5443
        %v5460 = vpack.c.b16 %v5446, %v5445
        %v5461 = vpack.c.b16 %v5448, %v5447
        %v5462 = vpack.c.b16 %v5450, %v5449
        %v5463 = vpack.c.b16 %v5452, %v5451
        %v5464 = vpack.c.b16 %v5454, %v5453
        %v5465 = vpack.c.b16 %v5456, %v5455
        %v5466 = vpack.c.b16 %v5458, %v5457
        %5467 = vrot.lane.b32.xlu0 %v5459, 56
        %v5468 = vpop.permute.xlu0 %5467
        %5469 = vrot.lane.b32.xlu0 %v5460, 56
        %v5470 = vpop.permute.xlu0 %5469
        %5471 = vrot.lane.b32.xlu0 %v5461, 56
        %v5472 = vpop.permute.xlu0 %5471
        %5473 = vrot.lane.b32.xlu0 %v5462, 56
        %v5474 = vpop.permute.xlu0 %5473
        %5475 = vrot.lane.b32.xlu0 %v5463, 56
        %v5476 = vpop.permute.xlu0 %5475
        %5477 = vrot.lane.b32.xlu0 %v5464, 56
        %v5478 = vpop.permute.xlu0 %5477
        %5479 = vrot.lane.b32.xlu0 %v5465, 56
        %v5480 = vpop.permute.xlu0 %5479
        %5481 = vrot.lane.b32.xlu0 %v5466, 56
        %v5482 = vpop.permute.xlu0 %5481
        %5491 = vst.msk [vmem:[#allocation4] sm:$0xff] %vm3399, %v5468
        %5492 = vst.msk [vmem:[#allocation4 + $0x8] sm:$0xff] %vm3399, %v5470
        %5493 = vst.msk [vmem:[#allocation4 + $0x10] sm:$0xff] %vm3399, %v5472
        %5494 = vst.msk [vmem:[#allocation4 + $0x18] sm:$0xff] %vm3399, %v5474
        %5495 = vst.msk [vmem:[#allocation4 + $0x20] sm:$0xff] %vm3399, %v5476
        %5496 = vst.msk [vmem:[#allocation4 + $0x28] sm:$0xff] %vm3399, %v5478
        %5497 = vst.msk [vmem:[#allocation4 + $0x30] sm:$0xff] %vm3399, %v5480
        %5498 = vst.msk [vmem:[#allocation4 + $0x38] sm:$0xff] %vm3399, %v5482
        %v5499 = vld [vmem:[%s5138] sm:$0xe]
        %v5500 = vld [vmem:[%s5138 + $0x4] sm:$0xf]
        %v5501 = vld [vmem:[%s5138 + $0x8] sm:$0x1]
        %v5502 = vld [vmem:[%s5138 + $0xc] sm:$0xe]
        %v5503 = vld [vmem:[%s5138 + $0x10] sm:$0xf]
        %v5504 = vld [vmem:[%s5138 + $0x14] sm:$0x1]
        %v5505 = vld [vmem:[%s5138 + $0x18] sm:$0xe]
        %v5506 = vld [vmem:[%s5138 + $0x1c] sm:$0xf]
        %v5507 = vld [vmem:[%s5138 + $0x20] sm:$0x1]
        %v5508 = vld [vmem:[%s5138 + $0x24] sm:$0xe]
        %v5509 = vld [vmem:[%s5138 + $0x28] sm:$0xf]
        %v5510 = vld [vmem:[%s5138 + $0x2c] sm:$0x1]
        %v5511 = vld [vmem:[%s5138 + $0x30] sm:$0xe]
        %v5512 = vld [vmem:[%s5138 + $0x34] sm:$0xf]
        %v5513 = vld [vmem:[%s5138 + $0x38] sm:$0x1]
        %v5514 = vld [vmem:[%s5138 + $0x3c] sm:$0xe]
        %v5515 = vld [vmem:[%s5138 + $0x40] sm:$0xf]
        %v5516 = vld [vmem:[%s5138 + $0x44] sm:$0x1]
        %v5517 = vld [vmem:[%s5138 + $0x48] sm:$0xe]
        %v5518 = vld [vmem:[%s5138 + $0x4c] sm:$0xf]
        %v5519 = vld [vmem:[%s5138 + $0x50] sm:$0x1]
        %v5520 = vld [vmem:[%s5138 + $0x54] sm:$0xe]
        %v5521 = vld [vmem:[%s5138 + $0x58] sm:$0xf]
        %v5522 = vld [vmem:[%s5138 + $0x5c] sm:$0x1]
        %v5547 = vrot.slane %v5499, 5
        %v5548 = vrot.slane %v5547, 4
        %v5549 = vrot.slane %v5500, 5
        %v5550 = vsel %vm2405, %v5548, %v5549
        %v5551 = vrot.slane %v5549, 4
        %v5552 = vrot.slane %v5501, 5
        %v5553 = vsel %vm2405, %v5551, %v5552
        %v5554 = vrot.slane %v5502, 5
        %v5555 = vrot.slane %v5554, 4
        %v5556 = vrot.slane %v5503, 5
        %v5557 = vsel %vm2405, %v5555, %v5556
        %v5558 = vrot.slane %v5556, 4
        %v5559 = vrot.slane %v5504, 5
        %v5560 = vsel %vm2405, %v5558, %v5559
        %v5561 = vrot.slane %v5505, 5
        %v5562 = vrot.slane %v5561, 4
        %v5563 = vrot.slane %v5506, 5
        %v5564 = vsel %vm2405, %v5562, %v5563
        %v5565 = vrot.slane %v5563, 4
        %v5566 = vrot.slane %v5507, 5
        %v5567 = vsel %vm2405, %v5565, %v5566
        %v5568 = vrot.slane %v5508, 5
        %v5569 = vrot.slane %v5568, 4
        %v5570 = vrot.slane %v5509, 5
        %v5571 = vsel %vm2405, %v5569, %v5570
        %v5572 = vrot.slane %v5570, 4
        %v5573 = vrot.slane %v5510, 5
        %v5574 = vsel %vm2405, %v5572, %v5573
        %v5575 = vrot.slane %v5511, 5
        %v5576 = vrot.slane %v5575, 4
        %v5577 = vrot.slane %v5512, 5
        %v5578 = vsel %vm2405, %v5576, %v5577
        %v5579 = vrot.slane %v5577, 4
        %v5580 = vrot.slane %v5513, 5
        %v5581 = vsel %vm2405, %v5579, %v5580
        %v5582 = vrot.slane %v5514, 5
        %v5583 = vrot.slane %v5582, 4
        %v5584 = vrot.slane %v5515, 5
        %v5585 = vsel %vm2405, %v5583, %v5584
        %v5586 = vrot.slane %v5584, 4
        %v5587 = vrot.slane %v5516, 5
        %v5588 = vsel %vm2405, %v5586, %v5587
        %v5589 = vrot.slane %v5517, 5
        %v5590 = vrot.slane %v5589, 4
        %v5591 = vrot.slane %v5518, 5
        %v5592 = vsel %vm2405, %v5590, %v5591
        %v5593 = vrot.slane %v5591, 4
        %v5594 = vrot.slane %v5519, 5
        %v5595 = vsel %vm2405, %v5593, %v5594
        %v5596 = vrot.slane %v5520, 5
        %v5597 = vrot.slane %v5596, 4
        %v5598 = vrot.slane %v5521, 5
        %v5599 = vsel %vm2405, %v5597, %v5598
        %v5600 = vrot.slane %v5598, 4
        %v5601 = vrot.slane %v5522, 5
        %v5602 = vsel %vm2405, %v5600, %v5601
        %v5603 = vunpack.c.l.b16 %v5550
        %v5604 = vunpack.c.l.b16 %v5553
        %v5605 = vunpack.c.l.b16 %v5557
        %v5606 = vunpack.c.l.b16 %v5560
        %v5607 = vunpack.c.l.b16 %v5564
        %v5608 = vunpack.c.l.b16 %v5567
        %v5609 = vunpack.c.l.b16 %v5571
        %v5610 = vunpack.c.l.b16 %v5574
        %v5611 = vunpack.c.l.b16 %v5578
        %v5612 = vunpack.c.l.b16 %v5581
        %v5613 = vunpack.c.l.b16 %v5585
        %v5614 = vunpack.c.l.b16 %v5588
        %v5615 = vunpack.c.l.b16 %v5592
        %v5616 = vunpack.c.l.b16 %v5595
        %v5617 = vunpack.c.l.b16 %v5599
        %v5618 = vunpack.c.l.b16 %v5602
        %v5619 = vpack.c.b16 %v5604, %v5603
        %v5620 = vpack.c.b16 %v5606, %v5605
        %v5621 = vpack.c.b16 %v5608, %v5607
        %v5622 = vpack.c.b16 %v5610, %v5609
        %v5623 = vpack.c.b16 %v5612, %v5611
        %v5624 = vpack.c.b16 %v5614, %v5613
        %v5625 = vpack.c.b16 %v5616, %v5615
        %v5626 = vpack.c.b16 %v5618, %v5617
        %5627 = vrot.lane.b32.xlu0 %v5619, 64
        %v5628 = vpop.permute.xlu0 %5627
        %5629 = vrot.lane.b32.xlu0 %v5620, 64
        %v5630 = vpop.permute.xlu0 %5629
        %5631 = vrot.lane.b32.xlu0 %v5621, 64
        %v5632 = vpop.permute.xlu0 %5631
        %5633 = vrot.lane.b32.xlu0 %v5622, 64
        %v5634 = vpop.permute.xlu0 %5633
        %5635 = vrot.lane.b32.xlu0 %v5623, 64
        %v5636 = vpop.permute.xlu0 %5635
        %5637 = vrot.lane.b32.xlu0 %v5624, 64
        %v5638 = vpop.permute.xlu0 %5637
        %5639 = vrot.lane.b32.xlu0 %v5625, 64
        %v5640 = vpop.permute.xlu0 %5639
        %5641 = vrot.lane.b32.xlu0 %v5626, 64
        %v5642 = vpop.permute.xlu0 %5641
        %5651 = vst.msk [vmem:[#allocation4] sm:$0xff] %vm3560, %v5628
        %5652 = vst.msk [vmem:[#allocation4 + $0x8] sm:$0xff] %vm3560, %v5630
        %5653 = vst.msk [vmem:[#allocation4 + $0x10] sm:$0xff] %vm3560, %v5632
        %5654 = vst.msk [vmem:[#allocation4 + $0x18] sm:$0xff] %vm3560, %v5634
        %5655 = vst.msk [vmem:[#allocation4 + $0x20] sm:$0xff] %vm3560, %v5636
        %5656 = vst.msk [vmem:[#allocation4 + $0x28] sm:$0xff] %vm3560, %v5638
        %5657 = vst.msk [vmem:[#allocation4 + $0x30] sm:$0xff] %vm3560, %v5640
        %5658 = vst.msk [vmem:[#allocation4 + $0x38] sm:$0xff] %vm3560, %v5642
        %v5659 = vld [vmem:[#allocation4] sm:$0xff]
        %v5660 = vld [vmem:[#allocation4 + $0x8] sm:$0xff]
        %v5661 = vld [vmem:[#allocation4 + $0x10] sm:$0xff]
        %v5662 = vld [vmem:[#allocation4 + $0x18] sm:$0xff]
        %v5663 = vld [vmem:[#allocation4 + $0x20] sm:$0xff]
        %v5664 = vld [vmem:[#allocation4 + $0x28] sm:$0xff]
        %v5665 = vld [vmem:[#allocation4 + $0x30] sm:$0xff]
        %v5666 = vld [vmem:[#allocation4 + $0x38] sm:$0xff]
        %v5668 = vsel %vm3604, %v5659, 0
        %v5671 = vsel %vm3604, %v5660, 0
        %v5674 = vsel %vm3604, %v5661, 0
        %v5677 = vsel %vm3604, %v5662, 0
        %v5680 = vsel %vm3604, %v5663, 0
        %v5683 = vsel %vm3604, %v5664, 0
        %v5686 = vsel %vm3604, %v5665, 0
        %v5689 = vsel %vm3604, %v5666, 0
        %5691 = vmatprep.subr.bf16.mxu0 0
        %5692 = vmatpush1.bf16.msra.mxu0 %v3595
        %5693 = vmatprep.subr.bf16.mxu0 0
        %5694 = vmatpush1.bf16.msra.mxu0 %v3596
        %5695 = vmatprep.subr.bf16.mxu0 0
        %5696 = vmatpush1.bf16.msra.mxu0 %v3597
        %5697 = vmatprep.subr.bf16.mxu0 0
        %5698 = vmatpush1.bf16.msra.mxu0 %v3598
        %5699 = vmatprep.subr.bf16.mxu0 0
        %5700 = vmatpush1.bf16.msra.mxu0 %v3631
        %5701 = vmatprep.subr.bf16.mxu0 0
        %5702 = vmatpush1.bf16.msra.mxu0 0
        %5703 = vmatprep.subr.bf16.mxu0 0
        %5704 = vmatpush1.bf16.msra.mxu0 0
        %5705 = vmatprep.subr.bf16.mxu0 0
        %5706 = vmatpush1.bf16.msra.mxu0 0
        %5707 = vmatprep.subr.bf16.mxu0 0
        %5708 = vmatpush1.bf16.msra.mxu0 0
        %5709 = vmatprep.subr.bf16.mxu0 0
        %5710 = vmatpush1.bf16.msra.mxu0 0
        %5711 = vmatprep.subr.bf16.mxu0 0
        %5712 = vmatpush1.bf16.msra.mxu0 0
        %5713 = vmatprep.subr.bf16.mxu0 0
        %5714 = vmatpush1.bf16.msra.mxu0 0
        %5715 = vmatprep.subr.bf16.mxu0 0
        %5716 = vmatpush1.bf16.msra.mxu0 0
        %5717 = vmatprep.subr.bf16.mxu0 0
        %5718 = vmatpush1.bf16.msra.mxu0 0
        %5719 = vmatprep.subr.bf16.mxu0 0
        %5720 = vmatpush1.bf16.msra.mxu0 0
        %5721 = vmatprep.subr.bf16.mxu0 0
        %5722 = vmatpush1.bf16.msra.mxu0 0
        %5723 = vmatprep.mubr.bf16.mxu0 0
        %5724 = vmatmul.mubr.bf16.gmra.mrb[0].mxu0 %v5668
        %v5725 = vpop.f32.mrb[0].mxu0
        %v5726 = vadd.f32 0.0, %v5725
        %v5727 = vpop.f32.mrb[0].mxu0
        %v5728 = vpop.f32.mrb[0].mxu0
        %v5729 = vadd.f32 0.0, %v5728
        %v5730 = vpop.f32.mrb[0].mxu0
        %5731 = vmatprep.mubr.bf16.mxu0 0
        %5732 = vmatmul.mubr.bf16.gmra.mrb[0].mxu0 %v5671
        %v5733 = vpop.f32.mrb[0].mxu0
        %v5734 = vadd.f32 0.0, %v5733
        %v5735 = vpop.f32.mrb[0].mxu0
        %v5736 = vpop.f32.mrb[0].mxu0
        %v5737 = vadd.f32 0.0, %v5736
        %v5738 = vpop.f32.mrb[0].mxu0
        %5739 = vmatprep.mubr.bf16.mxu0 0
        %5740 = vmatmul.mubr.bf16.gmra.mrb[0].mxu0 %v5674
        %v5741 = vpop.f32.mrb[0].mxu0
        %v5742 = vadd.f32 0.0, %v5741
        %v5743 = vpop.f32.mrb[0].mxu0
        %v5744 = vpop.f32.mrb[0].mxu0
        %v5745 = vadd.f32 0.0, %v5744
        %v5746 = vpop.f32.mrb[0].mxu0
        %5747 = vmatprep.mubr.bf16.mxu0 0
        %5748 = vmatmul.mubr.bf16.gmra.mrb[0].mxu0 %v5677
        %v5749 = vpop.f32.mrb[0].mxu0
        %v5750 = vadd.f32 0.0, %v5749
        %v5751 = vpop.f32.mrb[0].mxu0
        %v5752 = vpop.f32.mrb[0].mxu0
        %v5753 = vadd.f32 0.0, %v5752
        %v5754 = vpop.f32.mrb[0].mxu0
        %5755 = vmatprep.mubr.bf16.mxu0 0
        %5756 = vmatmul.mubr.bf16.gmra.mrb[0].mxu0 %v5680
        %v5757 = vpop.f32.mrb[0].mxu0
        %v5758 = vadd.f32 0.0, %v5757
        %v5759 = vpop.f32.mrb[0].mxu0
        %v5760 = vpop.f32.mrb[0].mxu0
        %v5761 = vadd.f32 0.0, %v5760
        %v5762 = vpop.f32.mrb[0].mxu0
        %5763 = vmatprep.mubr.bf16.mxu0 0
        %5764 = vmatmul.mubr.bf16.gmra.mrb[0].mxu0 %v5683
        %v5765 = vpop.f32.mrb[0].mxu0
        %v5766 = vadd.f32 0.0, %v5765
        %v5767 = vpop.f32.mrb[0].mxu0
        %v5768 = vpop.f32.mrb[0].mxu0
        %v5769 = vadd.f32 0.0, %v5768
        %v5770 = vpop.f32.mrb[0].mxu0
        %5771 = vmatprep.mubr.bf16.mxu0 0
        %5772 = vmatmul.mubr.bf16.gmra.mrb[0].mxu0 %v5686
        %v5773 = vpop.f32.mrb[0].mxu0
        %v5774 = vadd.f32 0.0, %v5773
        %v5775 = vpop.f32.mrb[0].mxu0
        %v5776 = vpop.f32.mrb[0].mxu0
        %v5777 = vadd.f32 0.0, %v5776
        %v5778 = vpop.f32.mrb[0].mxu0
        %5779 = vmatprep.mubr.bf16.mxu0 0
        %5780 = vmatmul.mubr.bf16.gmra.mrb[0].mxu0 %v5689
        %v5781 = vpop.f32.mrb[0].mxu0
        %v5782 = vadd.f32 0.0, %v5781
        %v5783 = vpop.f32.mrb[0].mxu0
        %v5784 = vpop.f32.mrb[0].mxu0
        %v5785 = vadd.f32 0.0, %v5784
        %v5786 = vpop.f32.mrb[0].mxu0
        %5787 = vdwg.mxu0
        %v5788 = vxor.u32 %v5726, 2147483648
        %v5789 = vxor.u32 %v5729, 2147483648
        %v5790 = vxor.u32 %v5734, 2147483648
        %v5791 = vxor.u32 %v5737, 2147483648
        %v5792 = vxor.u32 %v5742, 2147483648
        %v5793 = vxor.u32 %v5745, 2147483648
        %v5794 = vxor.u32 %v5750, 2147483648
        %v5795 = vxor.u32 %v5753, 2147483648
        %v5796 = vxor.u32 %v5758, 2147483648
        %v5797 = vxor.u32 %v5761, 2147483648
        %v5798 = vxor.u32 %v5766, 2147483648
        %v5799 = vxor.u32 %v5769, 2147483648
        %v5800 = vxor.u32 %v5774, 2147483648
        %v5801 = vxor.u32 %v5777, 2147483648
        %v5802 = vxor.u32 %v5782, 2147483648
        %v5803 = vxor.u32 %v5785, 2147483648
        %v5804 = vmul.f32 %v5788, 1.442695
        %v5805 = vpow.pop %v5804
        %v5806 = vmul.f32 %v5789, 1.442695
        %v5807 = vpow.pop %v5806
        %v5808 = vmul.f32 %v5790, 1.442695
        %v5809 = vpow.pop %v5808
        %v5810 = vmul.f32 %v5791, 1.442695
        %v5811 = vpow.pop %v5810
        %v5812 = vmul.f32 %v5792, 1.442695
        %v5813 = vpow.pop %v5812
        %v5814 = vmul.f32 %v5793, 1.442695
        %v5815 = vpow.pop %v5814
        %v5816 = vmul.f32 %v5794, 1.442695
        %v5817 = vpow.pop %v5816
        %v5818 = vmul.f32 %v5795, 1.442695
        %v5819 = vpow.pop %v5818
        %v5820 = vmul.f32 %v5796, 1.442695
        %v5821 = vpow.pop %v5820
        %v5822 = vmul.f32 %v5797, 1.442695
        %v5823 = vpow.pop %v5822
        %v5824 = vmul.f32 %v5798, 1.442695
        %v5825 = vpow.pop %v5824
        %v5826 = vmul.f32 %v5799, 1.442695
        %v5827 = vpow.pop %v5826
        %v5828 = vmul.f32 %v5800, 1.442695
        %v5829 = vpow.pop %v5828
        %v5830 = vmul.f32 %v5801, 1.442695
        %v5831 = vpow.pop %v5830
        %v5832 = vmul.f32 %v5802, 1.442695
        %v5833 = vpow.pop %v5832
        %v5834 = vmul.f32 %v5803, 1.442695
        %v5835 = vpow.pop %v5834
        %v5836 = vadd.f32 %v5805, 1.0
        %v5837 = vadd.f32 %v5807, 1.0
        %v5838 = vadd.f32 %v5809, 1.0
        %v5839 = vadd.f32 %v5811, 1.0
        %v5840 = vadd.f32 %v5813, 1.0
        %v5841 = vadd.f32 %v5815, 1.0
        %v5842 = vadd.f32 %v5817, 1.0
        %v5843 = vadd.f32 %v5819, 1.0
        %v5844 = vadd.f32 %v5821, 1.0
        %v5845 = vadd.f32 %v5823, 1.0
        %v5846 = vadd.f32 %v5825, 1.0
        %v5847 = vadd.f32 %v5827, 1.0
        %v5848 = vadd.f32 %v5829, 1.0
        %v5849 = vadd.f32 %v5831, 1.0
        %v5850 = vadd.f32 %v5833, 1.0
        %v5851 = vadd.f32 %v5835, 1.0
        %v5852 = vrcp.pop %v5836
        %v5853 = vmul.f32 1.0, %v5852
        %v5854 = vrcp.pop %v5837
        %v5855 = vmul.f32 1.0, %v5854
        %v5856 = vrcp.pop %v5838
        %v5857 = vmul.f32 1.0, %v5856
        %v5858 = vrcp.pop %v5839
        %v5859 = vmul.f32 1.0, %v5858
        %v5860 = vrcp.pop %v5840
        %v5861 = vmul.f32 1.0, %v5860
        %v5862 = vrcp.pop %v5841
        %v5863 = vmul.f32 1.0, %v5862
        %v5864 = vrcp.pop %v5842
        %v5865 = vmul.f32 1.0, %v5864
        %v5866 = vrcp.pop %v5843
        %v5867 = vmul.f32 1.0, %v5866
        %v5868 = vrcp.pop %v5844
        %v5869 = vmul.f32 1.0, %v5868
        %v5870 = vrcp.pop %v5845
        %v5871 = vmul.f32 1.0, %v5870
        %v5872 = vrcp.pop %v5846
        %v5873 = vmul.f32 1.0, %v5872
        %v5874 = vrcp.pop %v5847
        %v5875 = vmul.f32 1.0, %v5874
        %v5876 = vrcp.pop %v5848
        %v5877 = vmul.f32 1.0, %v5876
        %v5878 = vrcp.pop %v5849
        %v5879 = vmul.f32 1.0, %v5878
        %v5880 = vrcp.pop %v5850
        %v5881 = vmul.f32 1.0, %v5880
        %v5882 = vrcp.pop %v5851
        %v5883 = vmul.f32 1.0, %v5882
        %v5884 = vmul.f32 %v5726, %v5853
        %v5885 = vmul.f32 %v5729, %v5855
        %v5886 = vmul.f32 %v5734, %v5857
        %v5887 = vmul.f32 %v5737, %v5859
        %v5888 = vmul.f32 %v5742, %v5861
        %v5889 = vmul.f32 %v5745, %v5863
        %v5890 = vmul.f32 %v5750, %v5865
        %v5891 = vmul.f32 %v5753, %v5867
        %v5892 = vmul.f32 %v5758, %v5869
        %v5893 = vmul.f32 %v5761, %v5871
        %v5894 = vmul.f32 %v5766, %v5873
        %v5895 = vmul.f32 %v5769, %v5875
        %v5896 = vmul.f32 %v5774, %v5877
        %v5897 = vmul.f32 %v5777, %v5879
        %v5898 = vmul.f32 %v5782, %v5881
        %v5899 = vmul.f32 %v5785, %v5883
        %v5900 = vpack.c.bf16 %v5885, %v5884
        %v5901 = vpack.c.bf16 %v5887, %v5886
        %v5902 = vpack.c.bf16 %v5889, %v5888
        %v5903 = vpack.c.bf16 %v5891, %v5890
        %v5904 = vpack.c.bf16 %v5893, %v5892
        %v5905 = vpack.c.bf16 %v5895, %v5894
        %v5906 = vpack.c.bf16 %v5897, %v5896
        %v5907 = vpack.c.bf16 %v5899, %v5898
        %v5916 = vunpack.c.l.b16 %v5900
        %v5917 = vunpack.c.h.b16 %v5900
        %v5918 = vunpack.c.l.b16 %v5901
        %v5919 = vunpack.c.h.b16 %v5901
        %v5920 = vunpack.c.l.b16 %v5902
        %v5921 = vunpack.c.h.b16 %v5902
        %v5922 = vunpack.c.l.b16 %v5903
        %v5923 = vunpack.c.h.b16 %v5903
        %v5924 = vunpack.c.l.b16 %v5904
        %v5925 = vunpack.c.h.b16 %v5904
        %v5926 = vunpack.c.l.b16 %v5905
        %v5927 = vunpack.c.h.b16 %v5905
        %v5928 = vunpack.c.l.b16 %v5906
        %v5929 = vunpack.c.h.b16 %v5906
        %v5930 = vunpack.c.l.b16 %v5907
        %v5931 = vunpack.c.h.b16 %v5907
        %v5932 = vpack.c.b16 %v5916, %v5916
        %v5933 = vpack.c.b16 %v5917, %v5917
        %v5934 = vpack.c.b16 %v5918, %v5918
        %v5935 = vpack.c.b16 %v5919, %v5919
        %v5936 = vpack.c.b16 %v5920, %v5920
        %v5937 = vpack.c.b16 %v5921, %v5921
        %v5938 = vpack.c.b16 %v5922, %v5922
        %v5939 = vpack.c.b16 %v5923, %v5923
        %v5940 = vpack.c.b16 %v5924, %v5924
        %v5941 = vpack.c.b16 %v5925, %v5925
        %v5942 = vpack.c.b16 %v5926, %v5926
        %v5943 = vpack.c.b16 %v5927, %v5927
        %v5944 = vpack.c.b16 %v5928, %v5928
        %v5945 = vpack.c.b16 %v5929, %v5929
        %v5946 = vpack.c.b16 %v5930, %v5930
        %v5947 = vpack.c.b16 %v5931, %v5931
        %v5949 = vshrl.u32 %v5932, 16
        %v5951 = vrot.slane %v5949, 7
        %v5952 = vshll.u32 %v5932, 16
        %v5954 = vor.u32 %v5951, %v5952
        %v5955 = vrot.slane %v5951, 4
        %v5957 = vshrl.u32 %v5933, 16
        %v5959 = vrot.slane %v5957, 7
        %v5960 = vshll.u32 %v5933, 16
        %v5962 = vor.u32 %v5959, %v5960
        %v5963 = vsel %vm738, %v5955, %v5962
        %v5964 = vrot.slane %v5959, 4
        %v5966 = vshrl.u32 %v5934, 16
        %v5968 = vrot.slane %v5966, 7
        %v5969 = vshll.u32 %v5934, 16
        %v5971 = vor.u32 %v5968, %v5969
        %v5972 = vrot.slane %v5968, 4
        %v5974 = vshrl.u32 %v5935, 16
        %v5976 = vrot.slane %v5974, 7
        %v5977 = vshll.u32 %v5935, 16
        %v5979 = vor.u32 %v5976, %v5977
        %v5980 = vsel %vm738, %v5972, %v5979
        %v5981 = vrot.slane %v5976, 4
        %v5983 = vshrl.u32 %v5936, 16
        %v5985 = vrot.slane %v5983, 7
        %v5986 = vshll.u32 %v5936, 16
        %v5988 = vor.u32 %v5985, %v5986
        %v5989 = vrot.slane %v5985, 4
        %v5991 = vshrl.u32 %v5937, 16
        %v5993 = vrot.slane %v5991, 7
        %v5994 = vshll.u32 %v5937, 16
        %v5996 = vor.u32 %v5993, %v5994
        %v5997 = vsel %vm738, %v5989, %v5996
        %v5998 = vrot.slane %v5993, 4
        %v6000 = vshrl.u32 %v5938, 16
        %v6002 = vrot.slane %v6000, 7
        %v6003 = vshll.u32 %v5938, 16
        %v6005 = vor.u32 %v6002, %v6003
        %v6006 = vrot.slane %v6002, 4
        %v6008 = vshrl.u32 %v5939, 16
        %v6010 = vrot.slane %v6008, 7
        %v6011 = vshll.u32 %v5939, 16
        %v6013 = vor.u32 %v6010, %v6011
        %v6014 = vsel %vm738, %v6006, %v6013
        %v6015 = vrot.slane %v6010, 4
        %v6017 = vshrl.u32 %v5940, 16
        %v6019 = vrot.slane %v6017, 7
        %v6020 = vshll.u32 %v5940, 16
        %v6022 = vor.u32 %v6019, %v6020
        %v6023 = vrot.slane %v6019, 4
        %v6025 = vshrl.u32 %v5941, 16
        %v6027 = vrot.slane %v6025, 7
        %v6028 = vshll.u32 %v5941, 16
        %v6030 = vor.u32 %v6027, %v6028
        %v6031 = vsel %vm738, %v6023, %v6030
        %v6032 = vrot.slane %v6027, 4
        %v6034 = vshrl.u32 %v5942, 16
        %v6036 = vrot.slane %v6034, 7
        %v6037 = vshll.u32 %v5942, 16
        %v6039 = vor.u32 %v6036, %v6037
        %v6040 = vrot.slane %v6036, 4
        %v6042 = vshrl.u32 %v5943, 16
        %v6044 = vrot.slane %v6042, 7
        %v6045 = vshll.u32 %v5943, 16
        %v6047 = vor.u32 %v6044, %v6045
        %v6048 = vsel %vm738, %v6040, %v6047
        %v6049 = vrot.slane %v6044, 4
        %v6051 = vshrl.u32 %v5944, 16
        %v6053 = vrot.slane %v6051, 7
        %v6054 = vshll.u32 %v5944, 16
        %v6056 = vor.u32 %v6053, %v6054
        %v6057 = vrot.slane %v6053, 4
        %v6059 = vshrl.u32 %v5945, 16
        %v6061 = vrot.slane %v6059, 7
        %v6062 = vshll.u32 %v5945, 16
        %v6064 = vor.u32 %v6061, %v6062
        %v6065 = vsel %vm738, %v6057, %v6064
        %v6066 = vrot.slane %v6061, 4
        %v6068 = vshrl.u32 %v5946, 16
        %v6070 = vrot.slane %v6068, 7
        %v6071 = vshll.u32 %v5946, 16
        %v6073 = vor.u32 %v6070, %v6071
        %v6074 = vrot.slane %v6070, 4
        %v6076 = vshrl.u32 %v5947, 16
        %v6078 = vrot.slane %v6076, 7
        %v6079 = vshll.u32 %v5947, 16
        %v6081 = vor.u32 %v6078, %v6079
        %v6082 = vsel %vm738, %v6074, %v6081
        %v6083 = vrot.slane %v6078, 4
        %s6108 = smul.addr %s1591, 4
        %s6109 = scalar_lea.vmem [#allocation3], %s6108
        %v6110 = vld [vmem:[%s6109] sm:$0xf]
        %v6111 = vsel %vm903, %v5954, %v6110
        %6112 = vst [vmem:[%s6109] sm:$0xf] %v6111
        %6113 = vst.msk [vmem:[%s6109 + $0x4] sm:$0xf] %vm487, %v5963
        %v6114 = vld [vmem:[%s6109 + $0x8] sm:$0x1]
        %v6115 = vsel %vm497, %v5964, %v6114
        %6116 = vst [vmem:[%s6109 + $0x8] sm:$0x1] %v6115
        %v6117 = vld [vmem:[%s6109 + $0xc] sm:$0xf]
        %v6118 = vsel %vm903, %v5971, %v6117
        %6119 = vst [vmem:[%s6109 + $0xc] sm:$0xf] %v6118
        %6120 = vst.msk [vmem:[%s6109 + $0x10] sm:$0xf] %vm487, %v5980
        %v6121 = vld [vmem:[%s6109 + $0x14] sm:$0x1]
        %v6122 = vsel %vm497, %v5981, %v6121
        %6123 = vst [vmem:[%s6109 + $0x14] sm:$0x1] %v6122
        %v6124 = vld [vmem:[%s6109 + $0x18] sm:$0xf]
        %v6125 = vsel %vm903, %v5988, %v6124
        %6126 = vst [vmem:[%s6109 + $0x18] sm:$0xf] %v6125
        %6127 = vst.msk [vmem:[%s6109 + $0x1c] sm:$0xf] %vm487, %v5997
        %v6128 = vld [vmem:[%s6109 + $0x20] sm:$0x1]
        %v6129 = vsel %vm497, %v5998, %v6128
        %6130 = vst [vmem:[%s6109 + $0x20] sm:$0x1] %v6129
        %v6131 = vld [vmem:[%s6109 + $0x24] sm:$0xf]
        %v6132 = vsel %vm903, %v6005, %v6131
        %6133 = vst [vmem:[%s6109 + $0x24] sm:$0xf] %v6132
        %6134 = vst.msk [vmem:[%s6109 + $0x28] sm:$0xf] %vm487, %v6014
        %v6135 = vld [vmem:[%s6109 + $0x2c] sm:$0x1]
        %v6136 = vsel %vm497, %v6015, %v6135
        %6137 = vst [vmem:[%s6109 + $0x2c] sm:$0x1] %v6136
        %v6138 = vld [vmem:[%s6109 + $0x30] sm:$0xf]
        %v6139 = vsel %vm903, %v6022, %v6138
        %6140 = vst [vmem:[%s6109 + $0x30] sm:$0xf] %v6139
        %6141 = vst.msk [vmem:[%s6109 + $0x34] sm:$0xf] %vm487, %v6031
        %v6142 = vld [vmem:[%s6109 + $0x38] sm:$0x1]
        %v6143 = vsel %vm497, %v6032, %v6142
        %6144 = vst [vmem:[%s6109 + $0x38] sm:$0x1] %v6143
        %v6145 = vld [vmem:[%s6109 + $0x3c] sm:$0xf]
        %v6146 = vsel %vm903, %v6039, %v6145
        %6147 = vst [vmem:[%s6109 + $0x3c] sm:$0xf] %v6146
        %6148 = vst.msk [vmem:[%s6109 + $0x40] sm:$0xf] %vm487, %v6048
        %v6149 = vld [vmem:[%s6109 + $0x44] sm:$0x1]
        %v6150 = vsel %vm497, %v6049, %v6149
        %6151 = vst [vmem:[%s6109 + $0x44] sm:$0x1] %v6150
        %v6152 = vld [vmem:[%s6109 + $0x48] sm:$0xf]
        %v6153 = vsel %vm903, %v6056, %v6152
        %6154 = vst [vmem:[%s6109 + $0x48] sm:$0xf] %v6153
        %6155 = vst.msk [vmem:[%s6109 + $0x4c] sm:$0xf] %vm487, %v6065
        %v6156 = vld [vmem:[%s6109 + $0x50] sm:$0x1]
        %v6157 = vsel %vm497, %v6066, %v6156
        %6158 = vst [vmem:[%s6109 + $0x50] sm:$0x1] %v6157
        %v6159 = vld [vmem:[%s6109 + $0x54] sm:$0xf]
        %v6160 = vsel %vm903, %v6073, %v6159
        %6161 = vst [vmem:[%s6109 + $0x54] sm:$0xf] %v6160
        %6162 = vst.msk [vmem:[%s6109 + $0x58] sm:$0xf] %vm487, %v6082
        %v6163 = vld [vmem:[%s6109 + $0x5c] sm:$0x1]
        %v6164 = vsel %vm497, %v6083, %v6163
        %6165 = vst [vmem:[%s6109 + $0x5c] sm:$0x1] %v6164
        %v6166 = vld [vmem:[#allocation15] sm:$0xf]
        %v6167 = vld [vmem:[#allocation15 + $0x4] sm:$0xf]
        %v6168 = vld [vmem:[#allocation15 + $0x8] sm:$0xf]
        %v6169 = vld [vmem:[#allocation15 + $0xc] sm:$0xf]
        %v6170 = vld [vmem:[#allocation15 + $0x10] sm:$0xf]
        %v6171 = vld [vmem:[#allocation15 + $0x14] sm:$0x3]
        %s6172 = smul.addr %s2003, 4
        %s6173 = scalar_lea.vmem [#allocation3], %s6172
        %v6174 = vld [vmem:[%s6173] sm:$0xf]
        %v6175 = vld [vmem:[%s6173 + $0x4] sm:$0xf]
        %v6176 = vld [vmem:[%s6173 + $0xc] sm:$0xf]
        %v6177 = vld [vmem:[%s6173 + $0x10] sm:$0xf]
        %v6178 = vld [vmem:[%s6173 + $0x18] sm:$0xf]
        %v6179 = vld [vmem:[%s6173 + $0x1c] sm:$0xf]
        %v6180 = vld [vmem:[%s6173 + $0x24] sm:$0xf]
        %v6181 = vld [vmem:[%s6173 + $0x28] sm:$0xf]
        %v6182 = vld [vmem:[%s6173 + $0x30] sm:$0xf]
        %v6183 = vld [vmem:[%s6173 + $0x34] sm:$0xf]
        %v6184 = vld [vmem:[%s6173 + $0x3c] sm:$0xf]
        %v6185 = vld [vmem:[%s6173 + $0x40] sm:$0xf]
        %v6186 = vld [vmem:[%s6173 + $0x48] sm:$0xf]
        %v6187 = vld [vmem:[%s6173 + $0x4c] sm:$0xf]
        %v6188 = vld [vmem:[%s6173 + $0x54] sm:$0xf]
        %v6189 = vld [vmem:[%s6173 + $0x58] sm:$0xf]
        %v6206 = vunpack.c.l.b16 %v6174
        %v6207 = vunpack.c.l.b16 %v6175
        %v6208 = vunpack.c.l.b16 %v6176
        %v6209 = vunpack.c.l.b16 %v6177
        %v6210 = vunpack.c.l.b16 %v6178
        %v6211 = vunpack.c.l.b16 %v6179
        %v6212 = vunpack.c.l.b16 %v6180
        %v6213 = vunpack.c.l.b16 %v6181
        %v6214 = vunpack.c.l.b16 %v6182
        %v6215 = vunpack.c.l.b16 %v6183
        %v6216 = vunpack.c.l.b16 %v6184
        %v6217 = vunpack.c.l.b16 %v6185
        %v6218 = vunpack.c.l.b16 %v6186
        %v6219 = vunpack.c.l.b16 %v6187
        %v6220 = vunpack.c.l.b16 %v6188
        %v6221 = vunpack.c.l.b16 %v6189
        %v6222 = vpack.c.b16 %v6207, %v6206
        %v6223 = vpack.c.b16 %v6209, %v6208
        %v6224 = vpack.c.b16 %v6211, %v6210
        %v6225 = vpack.c.b16 %v6213, %v6212
        %v6226 = vpack.c.b16 %v6215, %v6214
        %v6227 = vpack.c.b16 %v6217, %v6216
        %v6228 = vpack.c.b16 %v6219, %v6218
        %v6229 = vpack.c.b16 %v6221, %v6220
        %vm6238 = vcmask 31744
        %6239 = vst.msk [vmem:[#allocation5] sm:$0xff] %vm6238, %v6222
        %6240 = vst.msk [vmem:[#allocation5 + $0x8] sm:$0xff] %vm6238, %v6223
        %6241 = vst.msk [vmem:[#allocation5 + $0x10] sm:$0xff] %vm6238, %v6224
        %6242 = vst.msk [vmem:[#allocation5 + $0x18] sm:$0xff] %vm6238, %v6225
        %6243 = vst.msk [vmem:[#allocation5 + $0x20] sm:$0xff] %vm6238, %v6226
        %6244 = vst.msk [vmem:[#allocation5 + $0x28] sm:$0xff] %vm6238, %v6227
        %6245 = vst.msk [vmem:[#allocation5 + $0x30] sm:$0xff] %vm6238, %v6228
        %6246 = vst.msk [vmem:[#allocation5 + $0x38] sm:$0xff] %vm6238, %v6229
        %v6247 = vld [vmem:[%s6173] sm:$0xf]
        %v6248 = vld [vmem:[%s6173 + $0x4] sm:$0xf]
        %v6249 = vld [vmem:[%s6173 + $0x8] sm:$0x1]
        %v6250 = vld [vmem:[%s6173 + $0xc] sm:$0xf]
        %v6251 = vld [vmem:[%s6173 + $0x10] sm:$0xf]
        %v6252 = vld [vmem:[%s6173 + $0x14] sm:$0x1]
        %v6253 = vld [vmem:[%s6173 + $0x18] sm:$0xf]
        %v6254 = vld [vmem:[%s6173 + $0x1c] sm:$0xf]
        %v6255 = vld [vmem:[%s6173 + $0x20] sm:$0x1]
        %v6256 = vld [vmem:[%s6173 + $0x24] sm:$0xf]
        %v6257 = vld [vmem:[%s6173 + $0x28] sm:$0xf]
        %v6258 = vld [vmem:[%s6173 + $0x2c] sm:$0x1]
        %v6259 = vld [vmem:[%s6173 + $0x30] sm:$0xf]
        %v6260 = vld [vmem:[%s6173 + $0x34] sm:$0xf]
        %v6261 = vld [vmem:[%s6173 + $0x38] sm:$0x1]
        %v6262 = vld [vmem:[%s6173 + $0x3c] sm:$0xf]
        %v6263 = vld [vmem:[%s6173 + $0x40] sm:$0xf]
        %v6264 = vld [vmem:[%s6173 + $0x44] sm:$0x1]
        %v6265 = vld [vmem:[%s6173 + $0x48] sm:$0xf]
        %v6266 = vld [vmem:[%s6173 + $0x4c] sm:$0xf]
        %v6267 = vld [vmem:[%s6173 + $0x50] sm:$0x1]
        %v6268 = vld [vmem:[%s6173 + $0x54] sm:$0xf]
        %v6269 = vld [vmem:[%s6173 + $0x58] sm:$0xf]
        %v6270 = vld [vmem:[%s6173 + $0x5c] sm:$0x1]
        %v6272 = vshrl.u32 %v6247, 16
        %v6274 = vrot.slane %v6272, 4
        %v6275 = vshll.u32 %v6247, 16
        %v6277 = vrot.slane %v6275, 5
        %v6278 = vor.u32 %v6274, %v6277
        %v6279 = vrot.slane %v6278, 4
        %v6281 = vshll.u32 %v6248, 16
        %v6283 = vrot.slane %v6281, 5
        %v6284 = vsel %vm2105, %v6279, %v6283
        %v6285 = vshrl.u32 %v6248, 16
        %v6287 = vrot.slane %v6285, 4
        %v6288 = vor.u32 %v6287, %v6283
        %v6289 = vrot.slane %v6288, 4
        %v6291 = vshll.u32 %v6249, 16
        %v6293 = vrot.slane %v6291, 5
        %v6294 = vsel %vm2105, %v6289, %v6293
        %v6296 = vshrl.u32 %v6250, 16
        %v6298 = vrot.slane %v6296, 4
        %v6299 = vshll.u32 %v6250, 16
        %v6301 = vrot.slane %v6299, 5
        %v6302 = vor.u32 %v6298, %v6301
        %v6303 = vrot.slane %v6302, 4
        %v6305 = vshll.u32 %v6251, 16
        %v6307 = vrot.slane %v6305, 5
        %v6308 = vsel %vm2105, %v6303, %v6307
        %v6309 = vshrl.u32 %v6251, 16
        %v6311 = vrot.slane %v6309, 4
        %v6312 = vor.u32 %v6311, %v6307
        %v6313 = vrot.slane %v6312, 4
        %v6315 = vshll.u32 %v6252, 16
        %v6317 = vrot.slane %v6315, 5
        %v6318 = vsel %vm2105, %v6313, %v6317
        %v6320 = vshrl.u32 %v6253, 16
        %v6322 = vrot.slane %v6320, 4
        %v6323 = vshll.u32 %v6253, 16
        %v6325 = vrot.slane %v6323, 5
        %v6326 = vor.u32 %v6322, %v6325
        %v6327 = vrot.slane %v6326, 4
        %v6329 = vshll.u32 %v6254, 16
        %v6331 = vrot.slane %v6329, 5
        %v6332 = vsel %vm2105, %v6327, %v6331
        %v6333 = vshrl.u32 %v6254, 16
        %v6335 = vrot.slane %v6333, 4
        %v6336 = vor.u32 %v6335, %v6331
        %v6337 = vrot.slane %v6336, 4
        %v6339 = vshll.u32 %v6255, 16
        %v6341 = vrot.slane %v6339, 5
        %v6342 = vsel %vm2105, %v6337, %v6341
        %v6344 = vshrl.u32 %v6256, 16
        %v6346 = vrot.slane %v6344, 4
        %v6347 = vshll.u32 %v6256, 16
        %v6349 = vrot.slane %v6347, 5
        %v6350 = vor.u32 %v6346, %v6349
        %v6351 = vrot.slane %v6350, 4
        %v6353 = vshll.u32 %v6257, 16
        %v6355 = vrot.slane %v6353, 5
        %v6356 = vsel %vm2105, %v6351, %v6355
        %v6357 = vshrl.u32 %v6257, 16
        %v6359 = vrot.slane %v6357, 4
        %v6360 = vor.u32 %v6359, %v6355
        %v6361 = vrot.slane %v6360, 4
        %v6363 = vshll.u32 %v6258, 16
        %v6365 = vrot.slane %v6363, 5
        %v6366 = vsel %vm2105, %v6361, %v6365
        %v6368 = vshrl.u32 %v6259, 16
        %v6370 = vrot.slane %v6368, 4
        %v6371 = vshll.u32 %v6259, 16
        %v6373 = vrot.slane %v6371, 5
        %v6374 = vor.u32 %v6370, %v6373
        %v6375 = vrot.slane %v6374, 4
        %v6377 = vshll.u32 %v6260, 16
        %v6379 = vrot.slane %v6377, 5
        %v6380 = vsel %vm2105, %v6375, %v6379
        %v6381 = vshrl.u32 %v6260, 16
        %v6383 = vrot.slane %v6381, 4
        %v6384 = vor.u32 %v6383, %v6379
        %v6385 = vrot.slane %v6384, 4
        %v6387 = vshll.u32 %v6261, 16
        %v6389 = vrot.slane %v6387, 5
        %v6390 = vsel %vm2105, %v6385, %v6389
        %v6392 = vshrl.u32 %v6262, 16
        %v6394 = vrot.slane %v6392, 4
        %v6395 = vshll.u32 %v6262, 16
        %v6397 = vrot.slane %v6395, 5
        %v6398 = vor.u32 %v6394, %v6397
        %v6399 = vrot.slane %v6398, 4
        %v6401 = vshll.u32 %v6263, 16
        %v6403 = vrot.slane %v6401, 5
        %v6404 = vsel %vm2105, %v6399, %v6403
        %v6405 = vshrl.u32 %v6263, 16
        %v6407 = vrot.slane %v6405, 4
        %v6408 = vor.u32 %v6407, %v6403
        %v6409 = vrot.slane %v6408, 4
        %v6411 = vshll.u32 %v6264, 16
        %v6413 = vrot.slane %v6411, 5
        %v6414 = vsel %vm2105, %v6409, %v6413
        %v6416 = vshrl.u32 %v6265, 16
        %v6418 = vrot.slane %v6416, 4
        %v6419 = vshll.u32 %v6265, 16
        %v6421 = vrot.slane %v6419, 5
        %v6422 = vor.u32 %v6418, %v6421
        %v6423 = vrot.slane %v6422, 4
        %v6425 = vshll.u32 %v6266, 16
        %v6427 = vrot.slane %v6425, 5
        %v6428 = vsel %vm2105, %v6423, %v6427
        %v6429 = vshrl.u32 %v6266, 16
        %v6431 = vrot.slane %v6429, 4
        %v6432 = vor.u32 %v6431, %v6427
        %v6433 = vrot.slane %v6432, 4
        %v6435 = vshll.u32 %v6267, 16
        %v6437 = vrot.slane %v6435, 5
        %v6438 = vsel %vm2105, %v6433, %v6437
        %v6440 = vshrl.u32 %v6268, 16
        %v6442 = vrot.slane %v6440, 4
        %v6443 = vshll.u32 %v6268, 16
        %v6445 = vrot.slane %v6443, 5
        %v6446 = vor.u32 %v6442, %v6445
        %v6447 = vrot.slane %v6446, 4
        %v6449 = vshll.u32 %v6269, 16
        %v6451 = vrot.slane %v6449, 5
        %v6452 = vsel %vm2105, %v6447, %v6451
        %v6453 = vshrl.u32 %v6269, 16
        %v6455 = vrot.slane %v6453, 4
        %v6456 = vor.u32 %v6455, %v6451
        %v6457 = vrot.slane %v6456, 4
        %v6459 = vshll.u32 %v6270, 16
        %v6461 = vrot.slane %v6459, 5
        %v6462 = vsel %vm2105, %v6457, %v6461
        %v6463 = vunpack.c.l.b16 %v6284
        %v6464 = vunpack.c.l.b16 %v6294
        %v6465 = vunpack.c.l.b16 %v6308
        %v6466 = vunpack.c.l.b16 %v6318
        %v6467 = vunpack.c.l.b16 %v6332
        %v6468 = vunpack.c.l.b16 %v6342
        %v6469 = vunpack.c.l.b16 %v6356
        %v6470 = vunpack.c.l.b16 %v6366
        %v6471 = vunpack.c.l.b16 %v6380
        %v6472 = vunpack.c.l.b16 %v6390
        %v6473 = vunpack.c.l.b16 %v6404
        %v6474 = vunpack.c.l.b16 %v6414
        %v6475 = vunpack.c.l.b16 %v6428
        %v6476 = vunpack.c.l.b16 %v6438
        %v6477 = vunpack.c.l.b16 %v6452
        %v6478 = vunpack.c.l.b16 %v6462
        %v6479 = vpack.c.b16 %v6464, %v6463
        %v6480 = vpack.c.b16 %v6466, %v6465
        %v6481 = vpack.c.b16 %v6468, %v6467
        %v6482 = vpack.c.b16 %v6470, %v6469
        %v6483 = vpack.c.b16 %v6472, %v6471
        %v6484 = vpack.c.b16 %v6474, %v6473
        %v6485 = vpack.c.b16 %v6476, %v6475
        %v6486 = vpack.c.b16 %v6478, %v6477
        %6487 = vrot.lane.b32.xlu0 %v6479, 4
        %v6488 = vpop.permute.xlu0 %6487
        %6489 = vrot.lane.b32.xlu0 %v6480, 4
        %v6490 = vpop.permute.xlu0 %6489
        %6491 = vrot.lane.b32.xlu0 %v6481, 4
        %v6492 = vpop.permute.xlu0 %6491
        %6493 = vrot.lane.b32.xlu0 %v6482, 4
        %v6494 = vpop.permute.xlu0 %6493
        %6495 = vrot.lane.b32.xlu0 %v6483, 4
        %v6496 = vpop.permute.xlu0 %6495
        %6497 = vrot.lane.b32.xlu0 %v6484, 4
        %v6498 = vpop.permute.xlu0 %6497
        %6499 = vrot.lane.b32.xlu0 %v6485, 4
        %v6500 = vpop.permute.xlu0 %6499
        %6501 = vrot.lane.b32.xlu0 %v6486, 4
        %v6502 = vpop.permute.xlu0 %6501
        %vm6511 = vcmask 64544
        %6512 = vst.msk [vmem:[#allocation5] sm:$0xff] %vm6511, %v6488
        %6513 = vst.msk [vmem:[#allocation5 + $0x8] sm:$0xff] %vm6511, %v6490
        %6514 = vst.msk [vmem:[#allocation5 + $0x10] sm:$0xff] %vm6511, %v6492
        %6515 = vst.msk [vmem:[#allocation5 + $0x18] sm:$0xff] %vm6511, %v6494
        %6516 = vst.msk [vmem:[#allocation5 + $0x20] sm:$0xff] %vm6511, %v6496
        %6517 = vst.msk [vmem:[#allocation5 + $0x28] sm:$0xff] %vm6511, %v6498
        %6518 = vst.msk [vmem:[#allocation5 + $0x30] sm:$0xff] %vm6511, %v6500
        %6519 = vst.msk [vmem:[#allocation5 + $0x38] sm:$0xff] %vm6511, %v6502
        %v6520 = vld [vmem:[%s6173] sm:$0xe]
        %v6521 = vld [vmem:[%s6173 + $0x4] sm:$0xf]
        %v6522 = vld [vmem:[%s6173 + $0x8] sm:$0x1]
        %v6523 = vld [vmem:[%s6173 + $0xc] sm:$0xe]
        %v6524 = vld [vmem:[%s6173 + $0x10] sm:$0xf]
        %v6525 = vld [vmem:[%s6173 + $0x14] sm:$0x1]
        %v6526 = vld [vmem:[%s6173 + $0x18] sm:$0xe]
        %v6527 = vld [vmem:[%s6173 + $0x1c] sm:$0xf]
        %v6528 = vld [vmem:[%s6173 + $0x20] sm:$0x1]
        %v6529 = vld [vmem:[%s6173 + $0x24] sm:$0xe]
        %v6530 = vld [vmem:[%s6173 + $0x28] sm:$0xf]
        %v6531 = vld [vmem:[%s6173 + $0x2c] sm:$0x1]
        %v6532 = vld [vmem:[%s6173 + $0x30] sm:$0xe]
        %v6533 = vld [vmem:[%s6173 + $0x34] sm:$0xf]
        %v6534 = vld [vmem:[%s6173 + $0x38] sm:$0x1]
        %v6535 = vld [vmem:[%s6173 + $0x3c] sm:$0xe]
        %v6536 = vld [vmem:[%s6173 + $0x40] sm:$0xf]
        %v6537 = vld [vmem:[%s6173 + $0x44] sm:$0x1]
        %v6538 = vld [vmem:[%s6173 + $0x48] sm:$0xe]
        %v6539 = vld [vmem:[%s6173 + $0x4c] sm:$0xf]
        %v6540 = vld [vmem:[%s6173 + $0x50] sm:$0x1]
        %v6541 = vld [vmem:[%s6173 + $0x54] sm:$0xe]
        %v6542 = vld [vmem:[%s6173 + $0x58] sm:$0xf]
        %v6543 = vld [vmem:[%s6173 + $0x5c] sm:$0x1]
        %v6568 = vrot.slane %v6520, 5
        %v6569 = vrot.slane %v6568, 4
        %v6570 = vrot.slane %v6521, 5
        %v6571 = vsel %vm2405, %v6569, %v6570
        %v6572 = vrot.slane %v6570, 4
        %v6573 = vrot.slane %v6522, 5
        %v6574 = vsel %vm2405, %v6572, %v6573
        %v6575 = vrot.slane %v6523, 5
        %v6576 = vrot.slane %v6575, 4
        %v6577 = vrot.slane %v6524, 5
        %v6578 = vsel %vm2405, %v6576, %v6577
        %v6579 = vrot.slane %v6577, 4
        %v6580 = vrot.slane %v6525, 5
        %v6581 = vsel %vm2405, %v6579, %v6580
        %v6582 = vrot.slane %v6526, 5
        %v6583 = vrot.slane %v6582, 4
        %v6584 = vrot.slane %v6527, 5
        %v6585 = vsel %vm2405, %v6583, %v6584
        %v6586 = vrot.slane %v6584, 4
        %v6587 = vrot.slane %v6528, 5
        %v6588 = vsel %vm2405, %v6586, %v6587
        %v6589 = vrot.slane %v6529, 5
        %v6590 = vrot.slane %v6589, 4
        %v6591 = vrot.slane %v6530, 5
        %v6592 = vsel %vm2405, %v6590, %v6591
        %v6593 = vrot.slane %v6591, 4
        %v6594 = vrot.slane %v6531, 5
        %v6595 = vsel %vm2405, %v6593, %v6594
        %v6596 = vrot.slane %v6532, 5
        %v6597 = vrot.slane %v6596, 4
        %v6598 = vrot.slane %v6533, 5
        %v6599 = vsel %vm2405, %v6597, %v6598
        %v6600 = vrot.slane %v6598, 4
        %v6601 = vrot.slane %v6534, 5
        %v6602 = vsel %vm2405, %v6600, %v6601
        %v6603 = vrot.slane %v6535, 5
        %v6604 = vrot.slane %v6603, 4
        %v6605 = vrot.slane %v6536, 5
        %v6606 = vsel %vm2405, %v6604, %v6605
        %v6607 = vrot.slane %v6605, 4
        %v6608 = vrot.slane %v6537, 5
        %v6609 = vsel %vm2405, %v6607, %v6608
        %v6610 = vrot.slane %v6538, 5
        %v6611 = vrot.slane %v6610, 4
        %v6612 = vrot.slane %v6539, 5
        %v6613 = vsel %vm2405, %v6611, %v6612
        %v6614 = vrot.slane %v6612, 4
        %v6615 = vrot.slane %v6540, 5
        %v6616 = vsel %vm2405, %v6614, %v6615
        %v6617 = vrot.slane %v6541, 5
        %v6618 = vrot.slane %v6617, 4
        %v6619 = vrot.slane %v6542, 5
        %v6620 = vsel %vm2405, %v6618, %v6619
        %v6621 = vrot.slane %v6619, 4
        %v6622 = vrot.slane %v6543, 5
        %v6623 = vsel %vm2405, %v6621, %v6622
        %v6624 = vunpack.c.l.b16 %v6571
        %v6625 = vunpack.c.l.b16 %v6574
        %v6626 = vunpack.c.l.b16 %v6578
        %v6627 = vunpack.c.l.b16 %v6581
        %v6628 = vunpack.c.l.b16 %v6585
        %v6629 = vunpack.c.l.b16 %v6588
        %v6630 = vunpack.c.l.b16 %v6592
        %v6631 = vunpack.c.l.b16 %v6595
        %v6632 = vunpack.c.l.b16 %v6599
        %v6633 = vunpack.c.l.b16 %v6602
        %v6634 = vunpack.c.l.b16 %v6606
        %v6635 = vunpack.c.l.b16 %v6609
        %v6636 = vunpack.c.l.b16 %v6613
        %v6637 = vunpack.c.l.b16 %v6616
        %v6638 = vunpack.c.l.b16 %v6620
        %v6639 = vunpack.c.l.b16 %v6623
        %v6640 = vpack.c.b16 %v6625, %v6624
        %v6641 = vpack.c.b16 %v6627, %v6626
        %v6642 = vpack.c.b16 %v6629, %v6628
        %v6643 = vpack.c.b16 %v6631, %v6630
        %v6644 = vpack.c.b16 %v6633, %v6632
        %v6645 = vpack.c.b16 %v6635, %v6634
        %v6646 = vpack.c.b16 %v6637, %v6636
        %v6647 = vpack.c.b16 %v6639, %v6638
        %6648 = vrot.lane.b32.xlu0 %v6640, 8
        %v6649 = vpop.permute.xlu0 %6648
        %6650 = vrot.lane.b32.xlu0 %v6641, 8
        %v6651 = vpop.permute.xlu0 %6650
        %6652 = vrot.lane.b32.xlu0 %v6642, 8
        %v6653 = vpop.permute.xlu0 %6652
        %6654 = vrot.lane.b32.xlu0 %v6643, 8
        %v6655 = vpop.permute.xlu0 %6654
        %6656 = vrot.lane.b32.xlu0 %v6644, 8
        %v6657 = vpop.permute.xlu0 %6656
        %6658 = vrot.lane.b32.xlu0 %v6645, 8
        %v6659 = vpop.permute.xlu0 %6658
        %6660 = vrot.lane.b32.xlu0 %v6646, 8
        %v6661 = vpop.permute.xlu0 %6660
        %6662 = vrot.lane.b32.xlu0 %v6647, 8
        %v6663 = vpop.permute.xlu0 %6662
        %vm6672 = vcmask 97344
        %6673 = vst.msk [vmem:[#allocation5] sm:$0xff] %vm6672, %v6649
        %6674 = vst.msk [vmem:[#allocation5 + $0x8] sm:$0xff] %vm6672, %v6651
        %6675 = vst.msk [vmem:[#allocation5 + $0x10] sm:$0xff] %vm6672, %v6653
        %6676 = vst.msk [vmem:[#allocation5 + $0x18] sm:$0xff] %vm6672, %v6655
        %6677 = vst.msk [vmem:[#allocation5 + $0x20] sm:$0xff] %vm6672, %v6657
        %6678 = vst.msk [vmem:[#allocation5 + $0x28] sm:$0xff] %vm6672, %v6659
        %6679 = vst.msk [vmem:[#allocation5 + $0x30] sm:$0xff] %vm6672, %v6661
        %6680 = vst.msk [vmem:[#allocation5 + $0x38] sm:$0xff] %vm6672, %v6663
        %v6681 = vld [vmem:[%s4051] sm:$0xf]
        %v6682 = vld [vmem:[%s4051 + $0x4] sm:$0xf]
        %v6683 = vld [vmem:[%s4051 + $0xc] sm:$0xf]
        %v6684 = vld [vmem:[%s4051 + $0x10] sm:$0xf]
        %v6685 = vld [vmem:[%s4051 + $0x18] sm:$0xf]
        %v6686 = vld [vmem:[%s4051 + $0x1c] sm:$0xf]
        %v6687 = vld [vmem:[%s4051 + $0x24] sm:$0xf]
        %v6688 = vld [vmem:[%s4051 + $0x28] sm:$0xf]
        %v6689 = vld [vmem:[%s4051 + $0x30] sm:$0xf]
        %v6690 = vld [vmem:[%s4051 + $0x34] sm:$0xf]
        %v6691 = vld [vmem:[%s4051 + $0x3c] sm:$0xf]
        %v6692 = vld [vmem:[%s4051 + $0x40] sm:$0xf]
        %v6693 = vld [vmem:[%s4051 + $0x48] sm:$0xf]
        %v6694 = vld [vmem:[%s4051 + $0x4c] sm:$0xf]
        %v6695 = vld [vmem:[%s4051 + $0x54] sm:$0xf]
        %v6696 = vld [vmem:[%s4051 + $0x58] sm:$0xf]
        %v6713 = vunpack.c.l.b16 %v6681
        %v6714 = vunpack.c.l.b16 %v6682
        %v6715 = vunpack.c.l.b16 %v6683
        %v6716 = vunpack.c.l.b16 %v6684
        %v6717 = vunpack.c.l.b16 %v6685
        %v6718 = vunpack.c.l.b16 %v6686
        %v6719 = vunpack.c.l.b16 %v6687
        %v6720 = vunpack.c.l.b16 %v6688
        %v6721 = vunpack.c.l.b16 %v6689
        %v6722 = vunpack.c.l.b16 %v6690
        %v6723 = vunpack.c.l.b16 %v6691
        %v6724 = vunpack.c.l.b16 %v6692
        %v6725 = vunpack.c.l.b16 %v6693
        %v6726 = vunpack.c.l.b16 %v6694
        %v6727 = vunpack.c.l.b16 %v6695
        %v6728 = vunpack.c.l.b16 %v6696
        %v6729 = vpack.c.b16 %v6714, %v6713
        %v6730 = vpack.c.b16 %v6716, %v6715
        %v6731 = vpack.c.b16 %v6718, %v6717
        %v6732 = vpack.c.b16 %v6720, %v6719
        %v6733 = vpack.c.b16 %v6722, %v6721
        %v6734 = vpack.c.b16 %v6724, %v6723
        %v6735 = vpack.c.b16 %v6726, %v6725
        %v6736 = vpack.c.b16 %v6728, %v6727
        %6737 = vrot.lane.b32.xlu0 %v6729, 12
        %v6738 = vpop.permute.xlu0 %6737
        %6739 = vrot.lane.b32.xlu0 %v6730, 12
        %v6740 = vpop.permute.xlu0 %6739
        %6741 = vrot.lane.b32.xlu0 %v6731, 12
        %v6742 = vpop.permute.xlu0 %6741
        %6743 = vrot.lane.b32.xlu0 %v6732, 12
        %v6744 = vpop.permute.xlu0 %6743
        %6745 = vrot.lane.b32.xlu0 %v6733, 12
        %v6746 = vpop.permute.xlu0 %6745
        %6747 = vrot.lane.b32.xlu0 %v6734, 12
        %v6748 = vpop.permute.xlu0 %6747
        %6749 = vrot.lane.b32.xlu0 %v6735, 12
        %v6750 = vpop.permute.xlu0 %6749
        %6751 = vrot.lane.b32.xlu0 %v6736, 12
        %v6752 = vpop.permute.xlu0 %6751
        %vm6761 = vcmask 130144
        %6762 = vst.msk [vmem:[#allocation5] sm:$0xff] %vm6761, %v6738
        %6763 = vst.msk [vmem:[#allocation5 + $0x8] sm:$0xff] %vm6761, %v6740
        %6764 = vst.msk [vmem:[#allocation5 + $0x10] sm:$0xff] %vm6761, %v6742
        %6765 = vst.msk [vmem:[#allocation5 + $0x18] sm:$0xff] %vm6761, %v6744
        %6766 = vst.msk [vmem:[#allocation5 + $0x20] sm:$0xff] %vm6761, %v6746
        %6767 = vst.msk [vmem:[#allocation5 + $0x28] sm:$0xff] %vm6761, %v6748
        %6768 = vst.msk [vmem:[#allocation5 + $0x30] sm:$0xff] %vm6761, %v6750
        %6769 = vst.msk [vmem:[#allocation5 + $0x38] sm:$0xff] %vm6761, %v6752
        %v6770 = vld [vmem:[%s4051] sm:$0xf]
        %v6771 = vld [vmem:[%s4051 + $0x4] sm:$0xf]
        %v6772 = vld [vmem:[%s4051 + $0x8] sm:$0x1]
        %v6773 = vld [vmem:[%s4051 + $0xc] sm:$0xf]
        %v6774 = vld [vmem:[%s4051 + $0x10] sm:$0xf]
        %v6775 = vld [vmem:[%s4051 + $0x14] sm:$0x1]
        %v6776 = vld [vmem:[%s4051 + $0x18] sm:$0xf]
        %v6777 = vld [vmem:[%s4051 + $0x1c] sm:$0xf]
        %v6778 = vld [vmem:[%s4051 + $0x20] sm:$0x1]
        %v6779 = vld [vmem:[%s4051 + $0x24] sm:$0xf]
        %v6780 = vld [vmem:[%s4051 + $0x28] sm:$0xf]
        %v6781 = vld [vmem:[%s4051 + $0x2c] sm:$0x1]
        %v6782 = vld [vmem:[%s4051 + $0x30] sm:$0xf]
        %v6783 = vld [vmem:[%s4051 + $0x34] sm:$0xf]
        %v6784 = vld [vmem:[%s4051 + $0x38] sm:$0x1]
        %v6785 = vld [vmem:[%s4051 + $0x3c] sm:$0xf]
        %v6786 = vld [vmem:[%s4051 + $0x40] sm:$0xf]
        %v6787 = vld [vmem:[%s4051 + $0x44] sm:$0x1]
        %v6788 = vld [vmem:[%s4051 + $0x48] sm:$0xf]
        %v6789 = vld [vmem:[%s4051 + $0x4c] sm:$0xf]
        %v6790 = vld [vmem:[%s4051 + $0x50] sm:$0x1]
        %v6791 = vld [vmem:[%s4051 + $0x54] sm:$0xf]
        %v6792 = vld [vmem:[%s4051 + $0x58] sm:$0xf]
        %v6793 = vld [vmem:[%s4051 + $0x5c] sm:$0x1]
        %v6795 = vshrl.u32 %v6770, 16
        %v6797 = vrot.slane %v6795, 4
        %v6798 = vshll.u32 %v6770, 16
        %v6800 = vrot.slane %v6798, 5
        %v6801 = vor.u32 %v6797, %v6800
        %v6802 = vrot.slane %v6801, 4
        %v6804 = vshll.u32 %v6771, 16
        %v6806 = vrot.slane %v6804, 5
        %v6807 = vsel %vm2105, %v6802, %v6806
        %v6808 = vshrl.u32 %v6771, 16
        %v6810 = vrot.slane %v6808, 4
        %v6811 = vor.u32 %v6810, %v6806
        %v6812 = vrot.slane %v6811, 4
        %v6814 = vshll.u32 %v6772, 16
        %v6816 = vrot.slane %v6814, 5
        %v6817 = vsel %vm2105, %v6812, %v6816
        %v6819 = vshrl.u32 %v6773, 16
        %v6821 = vrot.slane %v6819, 4
        %v6822 = vshll.u32 %v6773, 16
        %v6824 = vrot.slane %v6822, 5
        %v6825 = vor.u32 %v6821, %v6824
        %v6826 = vrot.slane %v6825, 4
        %v6828 = vshll.u32 %v6774, 16
        %v6830 = vrot.slane %v6828, 5
        %v6831 = vsel %vm2105, %v6826, %v6830
        %v6832 = vshrl.u32 %v6774, 16
        %v6834 = vrot.slane %v6832, 4
        %v6835 = vor.u32 %v6834, %v6830
        %v6836 = vrot.slane %v6835, 4
        %v6838 = vshll.u32 %v6775, 16
        %v6840 = vrot.slane %v6838, 5
        %v6841 = vsel %vm2105, %v6836, %v6840
        %v6843 = vshrl.u32 %v6776, 16
        %v6845 = vrot.slane %v6843, 4
        %v6846 = vshll.u32 %v6776, 16
        %v6848 = vrot.slane %v6846, 5
        %v6849 = vor.u32 %v6845, %v6848
        %v6850 = vrot.slane %v6849, 4
        %v6852 = vshll.u32 %v6777, 16
        %v6854 = vrot.slane %v6852, 5
        %v6855 = vsel %vm2105, %v6850, %v6854
        %v6856 = vshrl.u32 %v6777, 16
        %v6858 = vrot.slane %v6856, 4
        %v6859 = vor.u32 %v6858, %v6854
        %v6860 = vrot.slane %v6859, 4
        %v6862 = vshll.u32 %v6778, 16
        %v6864 = vrot.slane %v6862, 5
        %v6865 = vsel %vm2105, %v6860, %v6864
        %v6867 = vshrl.u32 %v6779, 16
        %v6869 = vrot.slane %v6867, 4
        %v6870 = vshll.u32 %v6779, 16
        %v6872 = vrot.slane %v6870, 5
        %v6873 = vor.u32 %v6869, %v6872
        %v6874 = vrot.slane %v6873, 4
        %v6876 = vshll.u32 %v6780, 16
        %v6878 = vrot.slane %v6876, 5
        %v6879 = vsel %vm2105, %v6874, %v6878
        %v6880 = vshrl.u32 %v6780, 16
        %v6882 = vrot.slane %v6880, 4
        %v6883 = vor.u32 %v6882, %v6878
        %v6884 = vrot.slane %v6883, 4
        %v6886 = vshll.u32 %v6781, 16
        %v6888 = vrot.slane %v6886, 5
        %v6889 = vsel %vm2105, %v6884, %v6888
        %v6891 = vshrl.u32 %v6782, 16
        %v6893 = vrot.slane %v6891, 4
        %v6894 = vshll.u32 %v6782, 16
        %v6896 = vrot.slane %v6894, 5
        %v6897 = vor.u32 %v6893, %v6896
        %v6898 = vrot.slane %v6897, 4
        %v6900 = vshll.u32 %v6783, 16
        %v6902 = vrot.slane %v6900, 5
        %v6903 = vsel %vm2105, %v6898, %v6902
        %v6904 = vshrl.u32 %v6783, 16
        %v6906 = vrot.slane %v6904, 4
        %v6907 = vor.u32 %v6906, %v6902
        %v6908 = vrot.slane %v6907, 4
        %v6910 = vshll.u32 %v6784, 16
        %v6912 = vrot.slane %v6910, 5
        %v6913 = vsel %vm2105, %v6908, %v6912
        %v6915 = vshrl.u32 %v6785, 16
        %v6917 = vrot.slane %v6915, 4
        %v6918 = vshll.u32 %v6785, 16
        %v6920 = vrot.slane %v6918, 5
        %v6921 = vor.u32 %v6917, %v6920
        %v6922 = vrot.slane %v6921, 4
        %v6924 = vshll.u32 %v6786, 16
        %v6926 = vrot.slane %v6924, 5
        %v6927 = vsel %vm2105, %v6922, %v6926
        %v6928 = vshrl.u32 %v6786, 16
        %v6930 = vrot.slane %v6928, 4
        %v6931 = vor.u32 %v6930, %v6926
        %v6932 = vrot.slane %v6931, 4
        %v6934 = vshll.u32 %v6787, 16
        %v6936 = vrot.slane %v6934, 5
        %v6937 = vsel %vm2105, %v6932, %v6936
        %v6939 = vshrl.u32 %v6788, 16
        %v6941 = vrot.slane %v6939, 4
        %v6942 = vshll.u32 %v6788, 16
        %v6944 = vrot.slane %v6942, 5
        %v6945 = vor.u32 %v6941, %v6944
        %v6946 = vrot.slane %v6945, 4
        %v6948 = vshll.u32 %v6789, 16
        %v6950 = vrot.slane %v6948, 5
        %v6951 = vsel %vm2105, %v6946, %v6950
        %v6952 = vshrl.u32 %v6789, 16
        %v6954 = vrot.slane %v6952, 4
        %v6955 = vor.u32 %v6954, %v6950
        %v6956 = vrot.slane %v6955, 4
        %v6958 = vshll.u32 %v6790, 16
        %v6960 = vrot.slane %v6958, 5
        %v6961 = vsel %vm2105, %v6956, %v6960
        %v6963 = vshrl.u32 %v6791, 16
        %v6965 = vrot.slane %v6963, 4
        %v6966 = vshll.u32 %v6791, 16
        %v6968 = vrot.slane %v6966, 5
        %v6969 = vor.u32 %v6965, %v6968
        %v6970 = vrot.slane %v6969, 4
        %v6972 = vshll.u32 %v6792, 16
        %v6974 = vrot.slane %v6972, 5
        %v6975 = vsel %vm2105, %v6970, %v6974
        %v6976 = vshrl.u32 %v6792, 16
        %v6978 = vrot.slane %v6976, 4
        %v6979 = vor.u32 %v6978, %v6974
        %v6980 = vrot.slane %v6979, 4
        %v6982 = vshll.u32 %v6793, 16
        %v6984 = vrot.slane %v6982, 5
        %v6985 = vsel %vm2105, %v6980, %v6984
        %v6986 = vunpack.c.l.b16 %v6807
        %v6987 = vunpack.c.l.b16 %v6817
        %v6988 = vunpack.c.l.b16 %v6831
        %v6989 = vunpack.c.l.b16 %v6841
        %v6990 = vunpack.c.l.b16 %v6855
        %v6991 = vunpack.c.l.b16 %v6865
        %v6992 = vunpack.c.l.b16 %v6879
        %v6993 = vunpack.c.l.b16 %v6889
        %v6994 = vunpack.c.l.b16 %v6903
        %v6995 = vunpack.c.l.b16 %v6913
        %v6996 = vunpack.c.l.b16 %v6927
        %v6997 = vunpack.c.l.b16 %v6937
        %v6998 = vunpack.c.l.b16 %v6951
        %v6999 = vunpack.c.l.b16 %v6961
        %v7000 = vunpack.c.l.b16 %v6975
        %v7001 = vunpack.c.l.b16 %v6985
        %v7002 = vpack.c.b16 %v6987, %v6986
        %v7003 = vpack.c.b16 %v6989, %v6988
        %v7004 = vpack.c.b16 %v6991, %v6990
        %v7005 = vpack.c.b16 %v6993, %v6992
        %v7006 = vpack.c.b16 %v6995, %v6994
        %v7007 = vpack.c.b16 %v6997, %v6996
        %v7008 = vpack.c.b16 %v6999, %v6998
        %v7009 = vpack.c.b16 %v7001, %v7000
        %7010 = vrot.lane.b32.xlu0 %v7002, 16
        %v7011 = vpop.permute.xlu0 %7010
        %7012 = vrot.lane.b32.xlu0 %v7003, 16
        %v7013 = vpop.permute.xlu0 %7012
        %7014 = vrot.lane.b32.xlu0 %v7004, 16
        %v7015 = vpop.permute.xlu0 %7014
        %7016 = vrot.lane.b32.xlu0 %v7005, 16
        %v7017 = vpop.permute.xlu0 %7016
        %7018 = vrot.lane.b32.xlu0 %v7006, 16
        %v7019 = vpop.permute.xlu0 %7018
        %7020 = vrot.lane.b32.xlu0 %v7007, 16
        %v7021 = vpop.permute.xlu0 %7020
        %7022 = vrot.lane.b32.xlu0 %v7008, 16
        %v7023 = vpop.permute.xlu0 %7022
        %7024 = vrot.lane.b32.xlu0 %v7009, 16
        %v7025 = vpop.permute.xlu0 %7024
        %vm7034 = vcmask 162944
        %7035 = vst.msk [vmem:[#allocation5] sm:$0xff] %vm7034, %v7011
        %7036 = vst.msk [vmem:[#allocation5 + $0x8] sm:$0xff] %vm7034, %v7013
        %7037 = vst.msk [vmem:[#allocation5 + $0x10] sm:$0xff] %vm7034, %v7015
        %7038 = vst.msk [vmem:[#allocation5 + $0x18] sm:$0xff] %vm7034, %v7017
        %7039 = vst.msk [vmem:[#allocation5 + $0x20] sm:$0xff] %vm7034, %v7019
        %7040 = vst.msk [vmem:[#allocation5 + $0x28] sm:$0xff] %vm7034, %v7021
        %7041 = vst.msk [vmem:[#allocation5 + $0x30] sm:$0xff] %vm7034, %v7023
        %7042 = vst.msk [vmem:[#allocation5 + $0x38] sm:$0xff] %vm7034, %v7025
        %v7043 = vld [vmem:[%s4051] sm:$0xe]
        %v7044 = vld [vmem:[%s4051 + $0x4] sm:$0xf]
        %v7045 = vld [vmem:[%s4051 + $0x8] sm:$0x1]
        %v7046 = vld [vmem:[%s4051 + $0xc] sm:$0xe]
        %v7047 = vld [vmem:[%s4051 + $0x10] sm:$0xf]
        %v7048 = vld [vmem:[%s4051 + $0x14] sm:$0x1]
        %v7049 = vld [vmem:[%s4051 + $0x18] sm:$0xe]
        %v7050 = vld [vmem:[%s4051 + $0x1c] sm:$0xf]
        %v7051 = vld [vmem:[%s4051 + $0x20] sm:$0x1]
        %v7052 = vld [vmem:[%s4051 + $0x24] sm:$0xe]
        %v7053 = vld [vmem:[%s4051 + $0x28] sm:$0xf]
        %v7054 = vld [vmem:[%s4051 + $0x2c] sm:$0x1]
        %v7055 = vld [vmem:[%s4051 + $0x30] sm:$0xe]
        %v7056 = vld [vmem:[%s4051 + $0x34] sm:$0xf]
        %v7057 = vld [vmem:[%s4051 + $0x38] sm:$0x1]
        %v7058 = vld [vmem:[%s4051 + $0x3c] sm:$0xe]
        %v7059 = vld [vmem:[%s4051 + $0x40] sm:$0xf]
        %v7060 = vld [vmem:[%s4051 + $0x44] sm:$0x1]
        %v7061 = vld [vmem:[%s4051 + $0x48] sm:$0xe]
        %v7062 = vld [vmem:[%s4051 + $0x4c] sm:$0xf]
        %v7063 = vld [vmem:[%s4051 + $0x50] sm:$0x1]
        %v7064 = vld [vmem:[%s4051 + $0x54] sm:$0xe]
        %v7065 = vld [vmem:[%s4051 + $0x58] sm:$0xf]
        %v7066 = vld [vmem:[%s4051 + $0x5c] sm:$0x1]
        %v7091 = vrot.slane %v7043, 5
        %v7092 = vrot.slane %v7091, 4
        %v7093 = vrot.slane %v7044, 5
        %v7094 = vsel %vm2405, %v7092, %v7093
        %v7095 = vrot.slane %v7093, 4
        %v7096 = vrot.slane %v7045, 5
        %v7097 = vsel %vm2405, %v7095, %v7096
        %v7098 = vrot.slane %v7046, 5
        %v7099 = vrot.slane %v7098, 4
        %v7100 = vrot.slane %v7047, 5
        %v7101 = vsel %vm2405, %v7099, %v7100
        %v7102 = vrot.slane %v7100, 4
        %v7103 = vrot.slane %v7048, 5
        %v7104 = vsel %vm2405, %v7102, %v7103
        %v7105 = vrot.slane %v7049, 5
        %v7106 = vrot.slane %v7105, 4
        %v7107 = vrot.slane %v7050, 5
        %v7108 = vsel %vm2405, %v7106, %v7107
        %v7109 = vrot.slane %v7107, 4
        %v7110 = vrot.slane %v7051, 5
        %v7111 = vsel %vm2405, %v7109, %v7110
        %v7112 = vrot.slane %v7052, 5
        %v7113 = vrot.slane %v7112, 4
        %v7114 = vrot.slane %v7053, 5
        %v7115 = vsel %vm2405, %v7113, %v7114
        %v7116 = vrot.slane %v7114, 4
        %v7117 = vrot.slane %v7054, 5
        %v7118 = vsel %vm2405, %v7116, %v7117
        %v7119 = vrot.slane %v7055, 5
        %v7120 = vrot.slane %v7119, 4
        %v7121 = vrot.slane %v7056, 5
        %v7122 = vsel %vm2405, %v7120, %v7121
        %v7123 = vrot.slane %v7121, 4
        %v7124 = vrot.slane %v7057, 5
        %v7125 = vsel %vm2405, %v7123, %v7124
        %v7126 = vrot.slane %v7058, 5
        %v7127 = vrot.slane %v7126, 4
        %v7128 = vrot.slane %v7059, 5
        %v7129 = vsel %vm2405, %v7127, %v7128
        %v7130 = vrot.slane %v7128, 4
        %v7131 = vrot.slane %v7060, 5
        %v7132 = vsel %vm2405, %v7130, %v7131
        %v7133 = vrot.slane %v7061, 5
        %v7134 = vrot.slane %v7133, 4
        %v7135 = vrot.slane %v7062, 5
        %v7136 = vsel %vm2405, %v7134, %v7135
        %v7137 = vrot.slane %v7135, 4
        %v7138 = vrot.slane %v7063, 5
        %v7139 = vsel %vm2405, %v7137, %v7138
        %v7140 = vrot.slane %v7064, 5
        %v7141 = vrot.slane %v7140, 4
        %v7142 = vrot.slane %v7065, 5
        %v7143 = vsel %vm2405, %v7141, %v7142
        %v7144 = vrot.slane %v7142, 4
        %v7145 = vrot.slane %v7066, 5
        %v7146 = vsel %vm2405, %v7144, %v7145
        %v7147 = vunpack.c.l.b16 %v7094
        %v7148 = vunpack.c.l.b16 %v7097
        %v7149 = vunpack.c.l.b16 %v7101
        %v7150 = vunpack.c.l.b16 %v7104
        %v7151 = vunpack.c.l.b16 %v7108
        %v7152 = vunpack.c.l.b16 %v7111
        %v7153 = vunpack.c.l.b16 %v7115
        %v7154 = vunpack.c.l.b16 %v7118
        %v7155 = vunpack.c.l.b16 %v7122
        %v7156 = vunpack.c.l.b16 %v7125
        %v7157 = vunpack.c.l.b16 %v7129
        %v7158 = vunpack.c.l.b16 %v7132
        %v7159 = vunpack.c.l.b16 %v7136
        %v7160 = vunpack.c.l.b16 %v7139
        %v7161 = vunpack.c.l.b16 %v7143
        %v7162 = vunpack.c.l.b16 %v7146
        %v7163 = vpack.c.b16 %v7148, %v7147
        %v7164 = vpack.c.b16 %v7150, %v7149
        %v7165 = vpack.c.b16 %v7152, %v7151
        %v7166 = vpack.c.b16 %v7154, %v7153
        %v7167 = vpack.c.b16 %v7156, %v7155
        %v7168 = vpack.c.b16 %v7158, %v7157
        %v7169 = vpack.c.b16 %v7160, %v7159
        %v7170 = vpack.c.b16 %v7162, %v7161
        %7171 = vrot.lane.b32.xlu0 %v7163, 20
        %v7172 = vpop.permute.xlu0 %7171
        %7173 = vrot.lane.b32.xlu0 %v7164, 20
        %v7174 = vpop.permute.xlu0 %7173
        %7175 = vrot.lane.b32.xlu0 %v7165, 20
        %v7176 = vpop.permute.xlu0 %7175
        %7177 = vrot.lane.b32.xlu0 %v7166, 20
        %v7178 = vpop.permute.xlu0 %7177
        %7179 = vrot.lane.b32.xlu0 %v7167, 20
        %v7180 = vpop.permute.xlu0 %7179
        %7181 = vrot.lane.b32.xlu0 %v7168, 20
        %v7182 = vpop.permute.xlu0 %7181
        %7183 = vrot.lane.b32.xlu0 %v7169, 20
        %v7184 = vpop.permute.xlu0 %7183
        %7185 = vrot.lane.b32.xlu0 %v7170, 20
        %v7186 = vpop.permute.xlu0 %7185
        %vm7195 = vcmask 195744
        %7196 = vst.msk [vmem:[#allocation5] sm:$0xff] %vm7195, %v7172
        %7197 = vst.msk [vmem:[#allocation5 + $0x8] sm:$0xff] %vm7195, %v7174
        %7198 = vst.msk [vmem:[#allocation5 + $0x10] sm:$0xff] %vm7195, %v7176
        %7199 = vst.msk [vmem:[#allocation5 + $0x18] sm:$0xff] %vm7195, %v7178
        %7200 = vst.msk [vmem:[#allocation5 + $0x20] sm:$0xff] %vm7195, %v7180
        %7201 = vst.msk [vmem:[#allocation5 + $0x28] sm:$0xff] %vm7195, %v7182
        %7202 = vst.msk [vmem:[#allocation5 + $0x30] sm:$0xff] %vm7195, %v7184
        %7203 = vst.msk [vmem:[#allocation5 + $0x38] sm:$0xff] %vm7195, %v7186
        %s7204 = smul.addr %s3043, 4
        %s7205 = scalar_lea.vmem [#allocation3], %s7204
        %v7206 = vld [vmem:[%s7205] sm:$0xf]
        %v7207 = vld [vmem:[%s7205 + $0x4] sm:$0xf]
        %v7208 = vld [vmem:[%s7205 + $0xc] sm:$0xf]
        %v7209 = vld [vmem:[%s7205 + $0x10] sm:$0xf]
        %v7210 = vld [vmem:[%s7205 + $0x18] sm:$0xf]
        %v7211 = vld [vmem:[%s7205 + $0x1c] sm:$0xf]
        %v7212 = vld [vmem:[%s7205 + $0x24] sm:$0xf]
        %v7213 = vld [vmem:[%s7205 + $0x28] sm:$0xf]
        %v7214 = vld [vmem:[%s7205 + $0x30] sm:$0xf]
        %v7215 = vld [vmem:[%s7205 + $0x34] sm:$0xf]
        %v7216 = vld [vmem:[%s7205 + $0x3c] sm:$0xf]
        %v7217 = vld [vmem:[%s7205 + $0x40] sm:$0xf]
        %v7218 = vld [vmem:[%s7205 + $0x48] sm:$0xf]
        %v7219 = vld [vmem:[%s7205 + $0x4c] sm:$0xf]
        %v7220 = vld [vmem:[%s7205 + $0x54] sm:$0xf]
        %v7221 = vld [vmem:[%s7205 + $0x58] sm:$0xf]
        %v7238 = vunpack.c.l.b16 %v7206
        %v7239 = vunpack.c.l.b16 %v7207
        %v7240 = vunpack.c.l.b16 %v7208
        %v7241 = vunpack.c.l.b16 %v7209
        %v7242 = vunpack.c.l.b16 %v7210
        %v7243 = vunpack.c.l.b16 %v7211
        %v7244 = vunpack.c.l.b16 %v7212
        %v7245 = vunpack.c.l.b16 %v7213
        %v7246 = vunpack.c.l.b16 %v7214
        %v7247 = vunpack.c.l.b16 %v7215
        %v7248 = vunpack.c.l.b16 %v7216
        %v7249 = vunpack.c.l.b16 %v7217
        %v7250 = vunpack.c.l.b16 %v7218
        %v7251 = vunpack.c.l.b16 %v7219
        %v7252 = vunpack.c.l.b16 %v7220
        %v7253 = vunpack.c.l.b16 %v7221
        %v7254 = vpack.c.b16 %v7239, %v7238
        %v7255 = vpack.c.b16 %v7241, %v7240
        %v7256 = vpack.c.b16 %v7243, %v7242
        %v7257 = vpack.c.b16 %v7245, %v7244
        %v7258 = vpack.c.b16 %v7247, %v7246
        %v7259 = vpack.c.b16 %v7249, %v7248
        %v7260 = vpack.c.b16 %v7251, %v7250
        %v7261 = vpack.c.b16 %v7253, %v7252
        %7262 = vrot.lane.b32.xlu0 %v7254, 24
        %v7263 = vpop.permute.xlu0 %7262
        %7264 = vrot.lane.b32.xlu0 %v7255, 24
        %v7265 = vpop.permute.xlu0 %7264
        %7266 = vrot.lane.b32.xlu0 %v7256, 24
        %v7267 = vpop.permute.xlu0 %7266
        %7268 = vrot.lane.b32.xlu0 %v7257, 24
        %v7269 = vpop.permute.xlu0 %7268
        %7270 = vrot.lane.b32.xlu0 %v7258, 24
        %v7271 = vpop.permute.xlu0 %7270
        %7272 = vrot.lane.b32.xlu0 %v7259, 24
        %v7273 = vpop.permute.xlu0 %7272
        %7274 = vrot.lane.b32.xlu0 %v7260, 24
        %v7275 = vpop.permute.xlu0 %7274
        %7276 = vrot.lane.b32.xlu0 %v7261, 24
        %v7277 = vpop.permute.xlu0 %7276
        %vm7286 = vcmask 228544
        %7287 = vst.msk [vmem:[#allocation5] sm:$0xff] %vm7286, %v7263
        %7288 = vst.msk [vmem:[#allocation5 + $0x8] sm:$0xff] %vm7286, %v7265
        %7289 = vst.msk [vmem:[#allocation5 + $0x10] sm:$0xff] %vm7286, %v7267
        %7290 = vst.msk [vmem:[#allocation5 + $0x18] sm:$0xff] %vm7286, %v7269
        %7291 = vst.msk [vmem:[#allocation5 + $0x20] sm:$0xff] %vm7286, %v7271
        %7292 = vst.msk [vmem:[#allocation5 + $0x28] sm:$0xff] %vm7286, %v7273
        %7293 = vst.msk [vmem:[#allocation5 + $0x30] sm:$0xff] %vm7286, %v7275
        %7294 = vst.msk [vmem:[#allocation5 + $0x38] sm:$0xff] %vm7286, %v7277
        %v7295 = vld [vmem:[%s7205] sm:$0xf]
        %v7296 = vld [vmem:[%s7205 + $0x4] sm:$0xf]
        %v7297 = vld [vmem:[%s7205 + $0x8] sm:$0x1]
        %v7298 = vld [vmem:[%s7205 + $0xc] sm:$0xf]
        %v7299 = vld [vmem:[%s7205 + $0x10] sm:$0xf]
        %v7300 = vld [vmem:[%s7205 + $0x14] sm:$0x1]
        %v7301 = vld [vmem:[%s7205 + $0x18] sm:$0xf]
        %v7302 = vld [vmem:[%s7205 + $0x1c] sm:$0xf]
        %v7303 = vld [vmem:[%s7205 + $0x20] sm:$0x1]
        %v7304 = vld [vmem:[%s7205 + $0x24] sm:$0xf]
        %v7305 = vld [vmem:[%s7205 + $0x28] sm:$0xf]
        %v7306 = vld [vmem:[%s7205 + $0x2c] sm:$0x1]
        %v7307 = vld [vmem:[%s7205 + $0x30] sm:$0xf]
        %v7308 = vld [vmem:[%s7205 + $0x34] sm:$0xf]
        %v7309 = vld [vmem:[%s7205 + $0x38] sm:$0x1]
        %v7310 = vld [vmem:[%s7205 + $0x3c] sm:$0xf]
        %v7311 = vld [vmem:[%s7205 + $0x40] sm:$0xf]
        %v7312 = vld [vmem:[%s7205 + $0x44] sm:$0x1]
        %v7313 = vld [vmem:[%s7205 + $0x48] sm:$0xf]
        %v7314 = vld [vmem:[%s7205 + $0x4c] sm:$0xf]
        %v7315 = vld [vmem:[%s7205 + $0x50] sm:$0x1]
        %v7316 = vld [vmem:[%s7205 + $0x54] sm:$0xf]
        %v7317 = vld [vmem:[%s7205 + $0x58] sm:$0xf]
        %v7318 = vld [vmem:[%s7205 + $0x5c] sm:$0x1]
        %v7320 = vshrl.u32 %v7295, 16
        %v7322 = vrot.slane %v7320, 4
        %v7323 = vshll.u32 %v7295, 16
        %v7325 = vrot.slane %v7323, 5
        %v7326 = vor.u32 %v7322, %v7325
        %v7327 = vrot.slane %v7326, 4
        %v7329 = vshll.u32 %v7296, 16
        %v7331 = vrot.slane %v7329, 5
        %v7332 = vsel %vm2105, %v7327, %v7331
        %v7333 = vshrl.u32 %v7296, 16
        %v7335 = vrot.slane %v7333, 4
        %v7336 = vor.u32 %v7335, %v7331
        %v7337 = vrot.slane %v7336, 4
        %v7339 = vshll.u32 %v7297, 16
        %v7341 = vrot.slane %v7339, 5
        %v7342 = vsel %vm2105, %v7337, %v7341
        %v7344 = vshrl.u32 %v7298, 16
        %v7346 = vrot.slane %v7344, 4
        %v7347 = vshll.u32 %v7298, 16
        %v7349 = vrot.slane %v7347, 5
        %v7350 = vor.u32 %v7346, %v7349
        %v7351 = vrot.slane %v7350, 4
        %v7353 = vshll.u32 %v7299, 16
        %v7355 = vrot.slane %v7353, 5
        %v7356 = vsel %vm2105, %v7351, %v7355
        %v7357 = vshrl.u32 %v7299, 16
        %v7359 = vrot.slane %v7357, 4
        %v7360 = vor.u32 %v7359, %v7355
        %v7361 = vrot.slane %v7360, 4
        %v7363 = vshll.u32 %v7300, 16
        %v7365 = vrot.slane %v7363, 5
        %v7366 = vsel %vm2105, %v7361, %v7365
        %v7368 = vshrl.u32 %v7301, 16
        %v7370 = vrot.slane %v7368, 4
        %v7371 = vshll.u32 %v7301, 16
        %v7373 = vrot.slane %v7371, 5
        %v7374 = vor.u32 %v7370, %v7373
        %v7375 = vrot.slane %v7374, 4
        %v7377 = vshll.u32 %v7302, 16
        %v7379 = vrot.slane %v7377, 5
        %v7380 = vsel %vm2105, %v7375, %v7379
        %v7381 = vshrl.u32 %v7302, 16
        %v7383 = vrot.slane %v7381, 4
        %v7384 = vor.u32 %v7383, %v7379
        %v7385 = vrot.slane %v7384, 4
        %v7387 = vshll.u32 %v7303, 16
        %v7389 = vrot.slane %v7387, 5
        %v7390 = vsel %vm2105, %v7385, %v7389
        %v7392 = vshrl.u32 %v7304, 16
        %v7394 = vrot.slane %v7392, 4
        %v7395 = vshll.u32 %v7304, 16
        %v7397 = vrot.slane %v7395, 5
        %v7398 = vor.u32 %v7394, %v7397
        %v7399 = vrot.slane %v7398, 4
        %v7401 = vshll.u32 %v7305, 16
        %v7403 = vrot.slane %v7401, 5
        %v7404 = vsel %vm2105, %v7399, %v7403
        %v7405 = vshrl.u32 %v7305, 16
        %v7407 = vrot.slane %v7405, 4
        %v7408 = vor.u32 %v7407, %v7403
        %v7409 = vrot.slane %v7408, 4
        %v7411 = vshll.u32 %v7306, 16
        %v7413 = vrot.slane %v7411, 5
        %v7414 = vsel %vm2105, %v7409, %v7413
        %v7416 = vshrl.u32 %v7307, 16
        %v7418 = vrot.slane %v7416, 4
        %v7419 = vshll.u32 %v7307, 16
        %v7421 = vrot.slane %v7419, 5
        %v7422 = vor.u32 %v7418, %v7421
        %v7423 = vrot.slane %v7422, 4
        %v7425 = vshll.u32 %v7308, 16
        %v7427 = vrot.slane %v7425, 5
        %v7428 = vsel %vm2105, %v7423, %v7427
        %v7429 = vshrl.u32 %v7308, 16
        %v7431 = vrot.slane %v7429, 4
        %v7432 = vor.u32 %v7431, %v7427
        %v7433 = vrot.slane %v7432, 4
        %v7435 = vshll.u32 %v7309, 16
        %v7437 = vrot.slane %v7435, 5
        %v7438 = vsel %vm2105, %v7433, %v7437
        %v7440 = vshrl.u32 %v7310, 16
        %v7442 = vrot.slane %v7440, 4
        %v7443 = vshll.u32 %v7310, 16
        %v7445 = vrot.slane %v7443, 5
        %v7446 = vor.u32 %v7442, %v7445
        %v7447 = vrot.slane %v7446, 4
        %v7449 = vshll.u32 %v7311, 16
        %v7451 = vrot.slane %v7449, 5
        %v7452 = vsel %vm2105, %v7447, %v7451
        %v7453 = vshrl.u32 %v7311, 16
        %v7455 = vrot.slane %v7453, 4
        %v7456 = vor.u32 %v7455, %v7451
        %v7457 = vrot.slane %v7456, 4
        %v7459 = vshll.u32 %v7312, 16
        %v7461 = vrot.slane %v7459, 5
        %v7462 = vsel %vm2105, %v7457, %v7461
        %v7464 = vshrl.u32 %v7313, 16
        %v7466 = vrot.slane %v7464, 4
        %v7467 = vshll.u32 %v7313, 16
        %v7469 = vrot.slane %v7467, 5
        %v7470 = vor.u32 %v7466, %v7469
        %v7471 = vrot.slane %v7470, 4
        %v7473 = vshll.u32 %v7314, 16
        %v7475 = vrot.slane %v7473, 5
        %v7476 = vsel %vm2105, %v7471, %v7475
        %v7477 = vshrl.u32 %v7314, 16
        %v7479 = vrot.slane %v7477, 4
        %v7480 = vor.u32 %v7479, %v7475
        %v7481 = vrot.slane %v7480, 4
        %v7483 = vshll.u32 %v7315, 16
        %v7485 = vrot.slane %v7483, 5
        %v7486 = vsel %vm2105, %v7481, %v7485
        %v7488 = vshrl.u32 %v7316, 16
        %v7490 = vrot.slane %v7488, 4
        %v7491 = vshll.u32 %v7316, 16
        %v7493 = vrot.slane %v7491, 5
        %v7494 = vor.u32 %v7490, %v7493
        %v7495 = vrot.slane %v7494, 4
        %v7497 = vshll.u32 %v7317, 16
        %v7499 = vrot.slane %v7497, 5
        %v7500 = vsel %vm2105, %v7495, %v7499
        %v7501 = vshrl.u32 %v7317, 16
        %v7503 = vrot.slane %v7501, 4
        %v7504 = vor.u32 %v7503, %v7499
        %v7505 = vrot.slane %v7504, 4
        %v7507 = vshll.u32 %v7318, 16
        %v7509 = vrot.slane %v7507, 5
        %v7510 = vsel %vm2105, %v7505, %v7509
        %v7511 = vunpack.c.l.b16 %v7332
        %v7512 = vunpack.c.l.b16 %v7342
        %v7513 = vunpack.c.l.b16 %v7356
        %v7514 = vunpack.c.l.b16 %v7366
        %v7515 = vunpack.c.l.b16 %v7380
        %v7516 = vunpack.c.l.b16 %v7390
        %v7517 = vunpack.c.l.b16 %v7404
        %v7518 = vunpack.c.l.b16 %v7414
        %v7519 = vunpack.c.l.b16 %v7428
        %v7520 = vunpack.c.l.b16 %v7438
        %v7521 = vunpack.c.l.b16 %v7452
        %v7522 = vunpack.c.l.b16 %v7462
        %v7523 = vunpack.c.l.b16 %v7476
        %v7524 = vunpack.c.l.b16 %v7486
        %v7525 = vunpack.c.l.b16 %v7500
        %v7526 = vunpack.c.l.b16 %v7510
        %v7527 = vpack.c.b16 %v7512, %v7511
        %v7528 = vpack.c.b16 %v7514, %v7513
        %v7529 = vpack.c.b16 %v7516, %v7515
        %v7530 = vpack.c.b16 %v7518, %v7517
        %v7531 = vpack.c.b16 %v7520, %v7519
        %v7532 = vpack.c.b16 %v7522, %v7521
        %v7533 = vpack.c.b16 %v7524, %v7523
        %v7534 = vpack.c.b16 %v7526, %v7525
        %7535 = vrot.lane.b32.xlu0 %v7527, 28
        %v7536 = vpop.permute.xlu0 %7535
        %7537 = vrot.lane.b32.xlu0 %v7528, 28
        %v7538 = vpop.permute.xlu0 %7537
        %7539 = vrot.lane.b32.xlu0 %v7529, 28
        %v7540 = vpop.permute.xlu0 %7539
        %7541 = vrot.lane.b32.xlu0 %v7530, 28
        %v7542 = vpop.permute.xlu0 %7541
        %7543 = vrot.lane.b32.xlu0 %v7531, 28
        %v7544 = vpop.permute.xlu0 %7543
        %7545 = vrot.lane.b32.xlu0 %v7532, 28
        %v7546 = vpop.permute.xlu0 %7545
        %7547 = vrot.lane.b32.xlu0 %v7533, 28
        %v7548 = vpop.permute.xlu0 %7547
        %7549 = vrot.lane.b32.xlu0 %v7534, 28
        %v7550 = vpop.permute.xlu0 %7549
        %vm7559 = vcmask 261344
        %7560 = vst.msk [vmem:[#allocation5] sm:$0xff] %vm7559, %v7536
        %7561 = vst.msk [vmem:[#allocation5 + $0x8] sm:$0xff] %vm7559, %v7538
        %7562 = vst.msk [vmem:[#allocation5 + $0x10] sm:$0xff] %vm7559, %v7540
        %7563 = vst.msk [vmem:[#allocation5 + $0x18] sm:$0xff] %vm7559, %v7542
        %7564 = vst.msk [vmem:[#allocation5 + $0x20] sm:$0xff] %vm7559, %v7544
        %7565 = vst.msk [vmem:[#allocation5 + $0x28] sm:$0xff] %vm7559, %v7546
        %7566 = vst.msk [vmem:[#allocation5 + $0x30] sm:$0xff] %vm7559, %v7548
        %7567 = vst.msk [vmem:[#allocation5 + $0x38] sm:$0xff] %vm7559, %v7550
        %v7568 = vld [vmem:[%s7205] sm:$0xe]
        %v7569 = vld [vmem:[%s7205 + $0x4] sm:$0xf]
        %v7570 = vld [vmem:[%s7205 + $0x8] sm:$0x1]
        %v7571 = vld [vmem:[%s7205 + $0xc] sm:$0xe]
        %v7572 = vld [vmem:[%s7205 + $0x10] sm:$0xf]
        %v7573 = vld [vmem:[%s7205 + $0x14] sm:$0x1]
        %v7574 = vld [vmem:[%s7205 + $0x18] sm:$0xe]
        %v7575 = vld [vmem:[%s7205 + $0x1c] sm:$0xf]
        %v7576 = vld [vmem:[%s7205 + $0x20] sm:$0x1]
        %v7577 = vld [vmem:[%s7205 + $0x24] sm:$0xe]
        %v7578 = vld [vmem:[%s7205 + $0x28] sm:$0xf]
        %v7579 = vld [vmem:[%s7205 + $0x2c] sm:$0x1]
        %v7580 = vld [vmem:[%s7205 + $0x30] sm:$0xe]
        %v7581 = vld [vmem:[%s7205 + $0x34] sm:$0xf]
        %v7582 = vld [vmem:[%s7205 + $0x38] sm:$0x1]
        %v7583 = vld [vmem:[%s7205 + $0x3c] sm:$0xe]
        %v7584 = vld [vmem:[%s7205 + $0x40] sm:$0xf]
        %v7585 = vld [vmem:[%s7205 + $0x44] sm:$0x1]
        %v7586 = vld [vmem:[%s7205 + $0x48] sm:$0xe]
        %v7587 = vld [vmem:[%s7205 + $0x4c] sm:$0xf]
        %v7588 = vld [vmem:[%s7205 + $0x50] sm:$0x1]
        %v7589 = vld [vmem:[%s7205 + $0x54] sm:$0xe]
        %v7590 = vld [vmem:[%s7205 + $0x58] sm:$0xf]
        %v7591 = vld [vmem:[%s7205 + $0x5c] sm:$0x1]
        %v7616 = vrot.slane %v7568, 5
        %v7617 = vrot.slane %v7616, 4
        %v7618 = vrot.slane %v7569, 5
        %v7619 = vsel %vm2405, %v7617, %v7618
        %v7620 = vrot.slane %v7618, 4
        %v7621 = vrot.slane %v7570, 5
        %v7622 = vsel %vm2405, %v7620, %v7621
        %v7623 = vrot.slane %v7571, 5
        %v7624 = vrot.slane %v7623, 4
        %v7625 = vrot.slane %v7572, 5
        %v7626 = vsel %vm2405, %v7624, %v7625
        %v7627 = vrot.slane %v7625, 4
        %v7628 = vrot.slane %v7573, 5
        %v7629 = vsel %vm2405, %v7627, %v7628
        %v7630 = vrot.slane %v7574, 5
        %v7631 = vrot.slane %v7630, 4
        %v7632 = vrot.slane %v7575, 5
        %v7633 = vsel %vm2405, %v7631, %v7632
        %v7634 = vrot.slane %v7632, 4
        %v7635 = vrot.slane %v7576, 5
        %v7636 = vsel %vm2405, %v7634, %v7635
        %v7637 = vrot.slane %v7577, 5
        %v7638 = vrot.slane %v7637, 4
        %v7639 = vrot.slane %v7578, 5
        %v7640 = vsel %vm2405, %v7638, %v7639
        %v7641 = vrot.slane %v7639, 4
        %v7642 = vrot.slane %v7579, 5
        %v7643 = vsel %vm2405, %v7641, %v7642
        %v7644 = vrot.slane %v7580, 5
        %v7645 = vrot.slane %v7644, 4
        %v7646 = vrot.slane %v7581, 5
        %v7647 = vsel %vm2405, %v7645, %v7646
        %v7648 = vrot.slane %v7646, 4
        %v7649 = vrot.slane %v7582, 5
        %v7650 = vsel %vm2405, %v7648, %v7649
        %v7651 = vrot.slane %v7583, 5
        %v7652 = vrot.slane %v7651, 4
        %v7653 = vrot.slane %v7584, 5
        %v7654 = vsel %vm2405, %v7652, %v7653
        %v7655 = vrot.slane %v7653, 4
        %v7656 = vrot.slane %v7585, 5
        %v7657 = vsel %vm2405, %v7655, %v7656
        %v7658 = vrot.slane %v7586, 5
        %v7659 = vrot.slane %v7658, 4
        %v7660 = vrot.slane %v7587, 5
        %v7661 = vsel %vm2405, %v7659, %v7660
        %v7662 = vrot.slane %v7660, 4
        %v7663 = vrot.slane %v7588, 5
        %v7664 = vsel %vm2405, %v7662, %v7663
        %v7665 = vrot.slane %v7589, 5
        %v7666 = vrot.slane %v7665, 4
        %v7667 = vrot.slane %v7590, 5
        %v7668 = vsel %vm2405, %v7666, %v7667
        %v7669 = vrot.slane %v7667, 4
        %v7670 = vrot.slane %v7591, 5
        %v7671 = vsel %vm2405, %v7669, %v7670
        %v7672 = vunpack.c.l.b16 %v7619
        %v7673 = vunpack.c.l.b16 %v7622
        %v7674 = vunpack.c.l.b16 %v7626
        %v7675 = vunpack.c.l.b16 %v7629
        %v7676 = vunpack.c.l.b16 %v7633
        %v7677 = vunpack.c.l.b16 %v7636
        %v7678 = vunpack.c.l.b16 %v7640
        %v7679 = vunpack.c.l.b16 %v7643
        %v7680 = vunpack.c.l.b16 %v7647
        %v7681 = vunpack.c.l.b16 %v7650
        %v7682 = vunpack.c.l.b16 %v7654
        %v7683 = vunpack.c.l.b16 %v7657
        %v7684 = vunpack.c.l.b16 %v7661
        %v7685 = vunpack.c.l.b16 %v7664
        %v7686 = vunpack.c.l.b16 %v7668
        %v7687 = vunpack.c.l.b16 %v7671
        %v7688 = vpack.c.b16 %v7673, %v7672
        %v7689 = vpack.c.b16 %v7675, %v7674
        %v7690 = vpack.c.b16 %v7677, %v7676
        %v7691 = vpack.c.b16 %v7679, %v7678
        %v7692 = vpack.c.b16 %v7681, %v7680
        %v7693 = vpack.c.b16 %v7683, %v7682
        %v7694 = vpack.c.b16 %v7685, %v7684
        %v7695 = vpack.c.b16 %v7687, %v7686
        %7696 = vrot.lane.b32.xlu0 %v7688, 32
        %v7697 = vpop.permute.xlu0 %7696
        %7698 = vrot.lane.b32.xlu0 %v7689, 32
        %v7699 = vpop.permute.xlu0 %7698
        %7700 = vrot.lane.b32.xlu0 %v7690, 32
        %v7701 = vpop.permute.xlu0 %7700
        %7702 = vrot.lane.b32.xlu0 %v7691, 32
        %v7703 = vpop.permute.xlu0 %7702
        %7704 = vrot.lane.b32.xlu0 %v7692, 32
        %v7705 = vpop.permute.xlu0 %7704
        %7706 = vrot.lane.b32.xlu0 %v7693, 32
        %v7707 = vpop.permute.xlu0 %7706
        %7708 = vrot.lane.b32.xlu0 %v7694, 32
        %v7709 = vpop.permute.xlu0 %7708
        %7710 = vrot.lane.b32.xlu0 %v7695, 32
        %v7711 = vpop.permute.xlu0 %7710
        %vm7720 = vcmask 294144
        %7721 = vst.msk [vmem:[#allocation5] sm:$0xff] %vm7720, %v7697
        %7722 = vst.msk [vmem:[#allocation5 + $0x8] sm:$0xff] %vm7720, %v7699
        %7723 = vst.msk [vmem:[#allocation5 + $0x10] sm:$0xff] %vm7720, %v7701
        %7724 = vst.msk [vmem:[#allocation5 + $0x18] sm:$0xff] %vm7720, %v7703
        %7725 = vst.msk [vmem:[#allocation5 + $0x20] sm:$0xff] %vm7720, %v7705
        %7726 = vst.msk [vmem:[#allocation5 + $0x28] sm:$0xff] %vm7720, %v7707
        %7727 = vst.msk [vmem:[#allocation5 + $0x30] sm:$0xff] %vm7720, %v7709
        %7728 = vst.msk [vmem:[#allocation5 + $0x38] sm:$0xff] %vm7720, %v7711
        %v7729 = vld [vmem:[%s610] sm:$0xff]
        %v7730 = vld [vmem:[%s610 + $0x8] sm:$0xff]
        %v7731 = vld [vmem:[%s610 + $0x10] sm:$0xff]
        %v7732 = vld [vmem:[%s610 + $0x18] sm:$0xff]
        %v7733 = vld [vmem:[%s610 + $0x20] sm:$0xff]
        %v7734 = vld [vmem:[%s610 + $0x28] sm:$0xff]
        %v7735 = vld [vmem:[%s610 + $0x30] sm:$0xff]
        %v7736 = vld [vmem:[%s610 + $0x38] sm:$0xff]
        %v7737 = vld [vmem:[%s610 + $0x40] sm:$0xff]
        %v7738 = vld [vmem:[%s610 + $0x48] sm:$0xff]
        %v7739 = vld [vmem:[%s610 + $0x50] sm:$0xff]
        %v7740 = vld [vmem:[%s610 + $0x58] sm:$0xff]
        %v7741 = vld [vmem:[%s610 + $0x60] sm:$0xff]
        %v7742 = vld [vmem:[%s610 + $0x68] sm:$0xff]
        %v7743 = vld [vmem:[%s610 + $0x70] sm:$0xff]
        %v7744 = vld [vmem:[%s610 + $0x78] sm:$0xff]
        %v7745 = vpack.c.bf16 %v7730, %v7729
        %v7746 = vpack.c.bf16 %v7732, %v7731
        %v7747 = vpack.c.bf16 %v7734, %v7733
        %v7748 = vpack.c.bf16 %v7736, %v7735
        %v7749 = vpack.c.bf16 %v7738, %v7737
        %v7750 = vpack.c.bf16 %v7740, %v7739
        %v7751 = vpack.c.bf16 %v7742, %v7741
        %v7752 = vpack.c.bf16 %v7744, %v7743
        %7761 = vrot.lane.b32.xlu0 %v7745, 36
        %v7762 = vpop.permute.xlu0 %7761
        %7763 = vrot.lane.b32.xlu0 %v7746, 36
        %v7764 = vpop.permute.xlu0 %7763
        %7765 = vrot.lane.b32.xlu0 %v7747, 36
        %v7766 = vpop.permute.xlu0 %7765
        %7767 = vrot.lane.b32.xlu0 %v7748, 36
        %v7768 = vpop.permute.xlu0 %7767
        %7769 = vrot.lane.b32.xlu0 %v7749, 36
        %v7770 = vpop.permute.xlu0 %7769
        %7771 = vrot.lane.b32.xlu0 %v7750, 36
        %v7772 = vpop.permute.xlu0 %7771
        %7773 = vrot.lane.b32.xlu0 %v7751, 36
        %v7774 = vpop.permute.xlu0 %7773
        %7775 = vrot.lane.b32.xlu0 %v7752, 36
        %v7776 = vpop.permute.xlu0 %7775
        %vm7785 = vcmask 326944
        %7786 = vst.msk [vmem:[#allocation5] sm:$0xff] %vm7785, %v7762
        %7787 = vst.msk [vmem:[#allocation5 + $0x8] sm:$0xff] %vm7785, %v7764
        %7788 = vst.msk [vmem:[#allocation5 + $0x10] sm:$0xff] %vm7785, %v7766
        %7789 = vst.msk [vmem:[#allocation5 + $0x18] sm:$0xff] %vm7785, %v7768
        %7790 = vst.msk [vmem:[#allocation5 + $0x20] sm:$0xff] %vm7785, %v7770
        %7791 = vst.msk [vmem:[#allocation5 + $0x28] sm:$0xff] %vm7785, %v7772
        %7792 = vst.msk [vmem:[#allocation5 + $0x30] sm:$0xff] %vm7785, %v7774
        %7793 = vst.msk [vmem:[#allocation5 + $0x38] sm:$0xff] %vm7785, %v7776
        %v7794 = vld [vmem:[%s627] sm:$0xff]
        %v7795 = vld [vmem:[%s627 + $0x8] sm:$0xff]
        %v7796 = vld [vmem:[%s627 + $0x10] sm:$0xff]
        %v7797 = vld [vmem:[%s627 + $0x18] sm:$0xff]
        %v7798 = vld [vmem:[%s627 + $0x20] sm:$0xff]
        %v7799 = vld [vmem:[%s627 + $0x28] sm:$0xff]
        %v7800 = vld [vmem:[%s627 + $0x30] sm:$0xff]
        %v7801 = vld [vmem:[%s627 + $0x38] sm:$0xff]
        %v7802 = vld [vmem:[%s627 + $0x40] sm:$0xff]
        %v7803 = vld [vmem:[%s627 + $0x48] sm:$0xff]
        %v7804 = vld [vmem:[%s627 + $0x50] sm:$0xff]
        %v7805 = vld [vmem:[%s627 + $0x58] sm:$0xff]
        %v7806 = vld [vmem:[%s627 + $0x60] sm:$0xff]
        %v7807 = vld [vmem:[%s627 + $0x68] sm:$0xff]
        %v7808 = vld [vmem:[%s627 + $0x70] sm:$0xff]
        %v7809 = vld [vmem:[%s627 + $0x78] sm:$0xff]
        %v7810 = vpack.c.bf16 %v7795, %v7794
        %v7811 = vpack.c.bf16 %v7797, %v7796
        %v7812 = vpack.c.bf16 %v7799, %v7798
        %v7813 = vpack.c.bf16 %v7801, %v7800
        %v7814 = vpack.c.bf16 %v7803, %v7802
        %v7815 = vpack.c.bf16 %v7805, %v7804
        %v7816 = vpack.c.bf16 %v7807, %v7806
        %v7817 = vpack.c.bf16 %v7809, %v7808
        %7826 = vrot.lane.b32.xlu0 %v7810, 40
        %v7827 = vpop.permute.xlu0 %7826
        %7828 = vrot.lane.b32.xlu0 %v7811, 40
        %v7829 = vpop.permute.xlu0 %7828
        %7830 = vrot.lane.b32.xlu0 %v7812, 40
        %v7831 = vpop.permute.xlu0 %7830
        %7832 = vrot.lane.b32.xlu0 %v7813, 40
        %v7833 = vpop.permute.xlu0 %7832
        %7834 = vrot.lane.b32.xlu0 %v7814, 40
        %v7835 = vpop.permute.xlu0 %7834
        %7836 = vrot.lane.b32.xlu0 %v7815, 40
        %v7837 = vpop.permute.xlu0 %7836
        %7838 = vrot.lane.b32.xlu0 %v7816, 40
        %v7839 = vpop.permute.xlu0 %7838
        %7840 = vrot.lane.b32.xlu0 %v7817, 40
        %v7841 = vpop.permute.xlu0 %7840
        %vm7850 = vcmask 359744
        %7851 = vst.msk [vmem:[#allocation5] sm:$0xff] %vm7850, %v7827
        %7852 = vst.msk [vmem:[#allocation5 + $0x8] sm:$0xff] %vm7850, %v7829
        %7853 = vst.msk [vmem:[#allocation5 + $0x10] sm:$0xff] %vm7850, %v7831
        %7854 = vst.msk [vmem:[#allocation5 + $0x18] sm:$0xff] %vm7850, %v7833
        %7855 = vst.msk [vmem:[#allocation5 + $0x20] sm:$0xff] %vm7850, %v7835
        %7856 = vst.msk [vmem:[#allocation5 + $0x28] sm:$0xff] %vm7850, %v7837
        %7857 = vst.msk [vmem:[#allocation5 + $0x30] sm:$0xff] %vm7850, %v7839
        %7858 = vst.msk [vmem:[#allocation5 + $0x38] sm:$0xff] %vm7850, %v7841
        %v7859 = vld [vmem:[#allocation5] sm:$0xff]
        %v7860 = vld [vmem:[#allocation5 + $0x8] sm:$0xff]
        %v7861 = vld [vmem:[#allocation5 + $0x10] sm:$0xff]
        %v7862 = vld [vmem:[#allocation5 + $0x18] sm:$0xff]
        %v7863 = vld [vmem:[#allocation5 + $0x20] sm:$0xff]
        %v7864 = vld [vmem:[#allocation5 + $0x28] sm:$0xff]
        %v7865 = vld [vmem:[#allocation5 + $0x30] sm:$0xff]
        %v7866 = vld [vmem:[#allocation5 + $0x38] sm:$0xff]
        %v7873 = vunpack.c.l.b16 %v6166
        %v7874 = vunpack.c.l.b16 %v6167
        %v7875 = vunpack.c.l.b16 %v6168
        %v7876 = vunpack.c.l.b16 %v6169
        %v7877 = vunpack.c.l.b16 %v6170
        %v7878 = vunpack.c.l.b16 %v6171
        %v7879 = vpack.c.b16 %v7874, %v7873
        %v7880 = vpack.c.b16 %v7876, %v7875
        %v7881 = vpack.c.b16 %v7878, %v7877
        %vm7884 = vcmask 359424
        %v7886 = vsel %vm7884, %v7859, 0
        %v7889 = vsel %vm7884, %v7860, 0
        %v7892 = vsel %vm7884, %v7861, 0
        %v7895 = vsel %vm7884, %v7862, 0
        %v7898 = vsel %vm7884, %v7863, 0
        %v7901 = vsel %vm7884, %v7864, 0
        %v7904 = vsel %vm7884, %v7865, 0
        %v7907 = vsel %vm7884, %v7866, 0
        %vm7909 = vcmask 1045504
        %v7911 = vsel %vm7909, %v7881, 0
        %7913 = vmatprep.subr.bf16.mxu0 0
        %7914 = vmatpush1.bf16.msra.mxu0 %v7879
        %7915 = vmatprep.subr.bf16.mxu0 0
        %7916 = vmatpush1.bf16.msra.mxu0 %v7880
        %7917 = vmatprep.subr.bf16.mxu0 0
        %7918 = vmatpush1.bf16.msra.mxu0 %v7911
        %7919 = vmatprep.subr.bf16.mxu0 0
        %7920 = vmatpush1.bf16.msra.mxu0 0
        %7921 = vmatprep.subr.bf16.mxu0 0
        %7922 = vmatpush1.bf16.msra.mxu0 0
        %7923 = vmatprep.subr.bf16.mxu0 0
        %7924 = vmatpush1.bf16.msra.mxu0 0
        %7925 = vmatprep.subr.bf16.mxu0 0
        %7926 = vmatpush1.bf16.msra.mxu0 0
        %7927 = vmatprep.subr.bf16.mxu0 0
        %7928 = vmatpush1.bf16.msra.mxu0 0
        %7929 = vmatprep.subr.bf16.mxu0 0
        %7930 = vmatpush1.bf16.msra.mxu0 0
        %7931 = vmatprep.subr.bf16.mxu0 0
        %7932 = vmatpush1.bf16.msra.mxu0 0
        %7933 = vmatprep.subr.bf16.mxu0 0
        %7934 = vmatpush1.bf16.msra.mxu0 0
        %7935 = vmatprep.subr.bf16.mxu0 0
        %7936 = vmatpush1.bf16.msra.mxu0 0
        %7937 = vmatprep.subr.bf16.mxu0 0
        %7938 = vmatpush1.bf16.msra.mxu0 0
        %7939 = vmatprep.subr.bf16.mxu0 0
        %7940 = vmatpush1.bf16.msra.mxu0 0
        %7941 = vmatprep.subr.bf16.mxu0 0
        %7942 = vmatpush1.bf16.msra.mxu0 0
        %7943 = vmatprep.subr.bf16.mxu0 0
        %7944 = vmatpush1.bf16.msra.mxu0 0
        %7945 = vmatprep.mubr.bf16.mxu0 0
        %7946 = vmatmul.mubr.bf16.gmra.mrb[0].mxu0 %v7886
        %v7947 = vpop.f32.mrb[0].mxu0
        %v7948 = vadd.f32 0.0, %v7947
        %v7949 = vpop.f32.mrb[0].mxu0
        %v7950 = vpop.f32.mrb[0].mxu0
        %v7951 = vadd.f32 0.0, %v7950
        %v7952 = vpop.f32.mrb[0].mxu0
        %7953 = vmatprep.mubr.bf16.mxu0 0
        %7954 = vmatmul.mubr.bf16.gmra.mrb[0].mxu0 %v7889
        %v7955 = vpop.f32.mrb[0].mxu0
        %v7956 = vadd.f32 0.0, %v7955
        %v7957 = vpop.f32.mrb[0].mxu0
        %v7958 = vpop.f32.mrb[0].mxu0
        %v7959 = vadd.f32 0.0, %v7958
        %v7960 = vpop.f32.mrb[0].mxu0
        %7961 = vmatprep.mubr.bf16.mxu0 0
        %7962 = vmatmul.mubr.bf16.gmra.mrb[0].mxu0 %v7892
        %v7963 = vpop.f32.mrb[0].mxu0
        %v7964 = vadd.f32 0.0, %v7963
        %v7965 = vpop.f32.mrb[0].mxu0
        %v7966 = vpop.f32.mrb[0].mxu0
        %v7967 = vadd.f32 0.0, %v7966
        %v7968 = vpop.f32.mrb[0].mxu0
        %7969 = vmatprep.mubr.bf16.mxu0 0
        %7970 = vmatmul.mubr.bf16.gmra.mrb[0].mxu0 %v7895
        %v7971 = vpop.f32.mrb[0].mxu0
        %v7972 = vadd.f32 0.0, %v7971
        %v7973 = vpop.f32.mrb[0].mxu0
        %v7974 = vpop.f32.mrb[0].mxu0
        %v7975 = vadd.f32 0.0, %v7974
        %v7976 = vpop.f32.mrb[0].mxu0
        %7977 = vmatprep.mubr.bf16.mxu0 0
        %7978 = vmatmul.mubr.bf16.gmra.mrb[0].mxu0 %v7898
        %v7979 = vpop.f32.mrb[0].mxu0
        %v7980 = vadd.f32 0.0, %v7979
        %v7981 = vpop.f32.mrb[0].mxu0
        %v7982 = vpop.f32.mrb[0].mxu0
        %v7983 = vadd.f32 0.0, %v7982
        %v7984 = vpop.f32.mrb[0].mxu0
        %7985 = vmatprep.mubr.bf16.mxu0 0
        %7986 = vmatmul.mubr.bf16.gmra.mrb[0].mxu0 %v7901
        %v7987 = vpop.f32.mrb[0].mxu0
        %v7988 = vadd.f32 0.0, %v7987
        %v7989 = vpop.f32.mrb[0].mxu0
        %v7990 = vpop.f32.mrb[0].mxu0
        %v7991 = vadd.f32 0.0, %v7990
        %v7992 = vpop.f32.mrb[0].mxu0
        %7993 = vmatprep.mubr.bf16.mxu0 0
        %7994 = vmatmul.mubr.bf16.gmra.mrb[0].mxu0 %v7904
        %v7995 = vpop.f32.mrb[0].mxu0
        %v7996 = vadd.f32 0.0, %v7995
        %v7997 = vpop.f32.mrb[0].mxu0
        %v7998 = vpop.f32.mrb[0].mxu0
        %v7999 = vadd.f32 0.0, %v7998
        %v8000 = vpop.f32.mrb[0].mxu0
        %8001 = vmatprep.mubr.bf16.mxu0 0
        %8002 = vmatmul.mubr.bf16.gmra.mrb[0].mxu0 %v7907
        %v8003 = vpop.f32.mrb[0].mxu0
        %v8004 = vadd.f32 0.0, %v8003
        %v8005 = vpop.f32.mrb[0].mxu0
        %v8006 = vpop.f32.mrb[0].mxu0
        %v8007 = vadd.f32 0.0, %v8006
        %v8008 = vpop.f32.mrb[0].mxu0
        %8009 = vdwg.mxu0
        %s8010 = scalar_lea.vmem %s363, %s609 [#allocation17]
        %8011 = vst [vmem:[%s8010] sm:$0xff] %v7948
        %8012 = vst [vmem:[%s8010 + $0x8] sm:$0xff] %v7951
        %8013 = vst [vmem:[%s8010 + $0x10] sm:$0xff] %v7956
        %8014 = vst [vmem:[%s8010 + $0x18] sm:$0xff] %v7959
        %8015 = vst [vmem:[%s8010 + $0x20] sm:$0xff] %v7964
        %8016 = vst [vmem:[%s8010 + $0x28] sm:$0xff] %v7967
        %8017 = vst [vmem:[%s8010 + $0x30] sm:$0xff] %v7972
        %8018 = vst [vmem:[%s8010 + $0x38] sm:$0xff] %v7975
        %8019 = vst [vmem:[%s8010 + $0x40] sm:$0xff] %v7980
        %8020 = vst [vmem:[%s8010 + $0x48] sm:$0xff] %v7983
        %8021 = vst [vmem:[%s8010 + $0x50] sm:$0xff] %v7988
        %8022 = vst [vmem:[%s8010 + $0x58] sm:$0xff] %v7991
        %8023 = vst [vmem:[%s8010 + $0x60] sm:$0xff] %v7996
        %8024 = vst [vmem:[%s8010 + $0x68] sm:$0xff] %v7999
        %8025 = vst [vmem:[%s8010 + $0x70] sm:$0xff] %v8004
        %8026 = vst [vmem:[%s8010 + $0x78] sm:$0xff] %v8007
        %s8027 = smul.addr %s4108, 4
        %s8028 = scalar_lea.vmem [#allocation3], %s8027
        %v8029 = vld [vmem:[%s8028] sm:$0xf]
        %v8030 = vld [vmem:[%s8028 + $0x4] sm:$0xf]
        %v8031 = vld [vmem:[%s8028 + $0xc] sm:$0xf]
        %v8032 = vld [vmem:[%s8028 + $0x10] sm:$0xf]
        %v8033 = vld [vmem:[%s8028 + $0x18] sm:$0xf]
        %v8034 = vld [vmem:[%s8028 + $0x1c] sm:$0xf]
        %v8035 = vld [vmem:[%s8028 + $0x24] sm:$0xf]
        %v8036 = vld [vmem:[%s8028 + $0x28] sm:$0xf]
        %v8037 = vld [vmem:[%s8028 + $0x30] sm:$0xf]
        %v8038 = vld [vmem:[%s8028 + $0x34] sm:$0xf]
        %v8039 = vld [vmem:[%s8028 + $0x3c] sm:$0xf]
        %v8040 = vld [vmem:[%s8028 + $0x40] sm:$0xf]
        %v8041 = vld [vmem:[%s8028 + $0x48] sm:$0xf]
        %v8042 = vld [vmem:[%s8028 + $0x4c] sm:$0xf]
        %v8043 = vld [vmem:[%s8028 + $0x54] sm:$0xf]
        %v8044 = vld [vmem:[%s8028 + $0x58] sm:$0xf]
        %v8061 = vunpack.c.l.b16 %v8029
        %v8062 = vunpack.c.l.b16 %v8030
        %v8063 = vunpack.c.l.b16 %v8031
        %v8064 = vunpack.c.l.b16 %v8032
        %v8065 = vunpack.c.l.b16 %v8033
        %v8066 = vunpack.c.l.b16 %v8034
        %v8067 = vunpack.c.l.b16 %v8035
        %v8068 = vunpack.c.l.b16 %v8036
        %v8069 = vunpack.c.l.b16 %v8037
        %v8070 = vunpack.c.l.b16 %v8038
        %v8071 = vunpack.c.l.b16 %v8039
        %v8072 = vunpack.c.l.b16 %v8040
        %v8073 = vunpack.c.l.b16 %v8041
        %v8074 = vunpack.c.l.b16 %v8042
        %v8075 = vunpack.c.l.b16 %v8043
        %v8076 = vunpack.c.l.b16 %v8044
        %v8077 = vpack.c.b16 %v8062, %v8061
        %v8078 = vpack.c.b16 %v8064, %v8063
        %v8079 = vpack.c.b16 %v8066, %v8065
        %v8080 = vpack.c.b16 %v8068, %v8067
        %v8081 = vpack.c.b16 %v8070, %v8069
        %v8082 = vpack.c.b16 %v8072, %v8071
        %v8083 = vpack.c.b16 %v8074, %v8073
        %v8084 = vpack.c.b16 %v8076, %v8075
        %8093 = vst.msk [vmem:[#allocation5] sm:$0xff] %vm6238, %v8077
        %8094 = vst.msk [vmem:[#allocation5 + $0x8] sm:$0xff] %vm6238, %v8078
        %8095 = vst.msk [vmem:[#allocation5 + $0x10] sm:$0xff] %vm6238, %v8079
        %8096 = vst.msk [vmem:[#allocation5 + $0x18] sm:$0xff] %vm6238, %v8080
        %8097 = vst.msk [vmem:[#allocation5 + $0x20] sm:$0xff] %vm6238, %v8081
        %8098 = vst.msk [vmem:[#allocation5 + $0x28] sm:$0xff] %vm6238, %v8082
        %8099 = vst.msk [vmem:[#allocation5 + $0x30] sm:$0xff] %vm6238, %v8083
        %8100 = vst.msk [vmem:[#allocation5 + $0x38] sm:$0xff] %vm6238, %v8084
        %v8101 = vld [vmem:[%s8028] sm:$0xf]
        %v8102 = vld [vmem:[%s8028 + $0x4] sm:$0xf]
        %v8103 = vld [vmem:[%s8028 + $0x8] sm:$0x1]
        %v8104 = vld [vmem:[%s8028 + $0xc] sm:$0xf]
        %v8105 = vld [vmem:[%s8028 + $0x10] sm:$0xf]
        %v8106 = vld [vmem:[%s8028 + $0x14] sm:$0x1]
        %v8107 = vld [vmem:[%s8028 + $0x18] sm:$0xf]
        %v8108 = vld [vmem:[%s8028 + $0x1c] sm:$0xf]
        %v8109 = vld [vmem:[%s8028 + $0x20] sm:$0x1]
        %v8110 = vld [vmem:[%s8028 + $0x24] sm:$0xf]
        %v8111 = vld [vmem:[%s8028 + $0x28] sm:$0xf]
        %v8112 = vld [vmem:[%s8028 + $0x2c] sm:$0x1]
        %v8113 = vld [vmem:[%s8028 + $0x30] sm:$0xf]
        %v8114 = vld [vmem:[%s8028 + $0x34] sm:$0xf]
        %v8115 = vld [vmem:[%s8028 + $0x38] sm:$0x1]
        %v8116 = vld [vmem:[%s8028 + $0x3c] sm:$0xf]
        %v8117 = vld [vmem:[%s8028 + $0x40] sm:$0xf]
        %v8118 = vld [vmem:[%s8028 + $0x44] sm:$0x1]
        %v8119 = vld [vmem:[%s8028 + $0x48] sm:$0xf]
        %v8120 = vld [vmem:[%s8028 + $0x4c] sm:$0xf]
        %v8121 = vld [vmem:[%s8028 + $0x50] sm:$0x1]
        %v8122 = vld [vmem:[%s8028 + $0x54] sm:$0xf]
        %v8123 = vld [vmem:[%s8028 + $0x58] sm:$0xf]
        %v8124 = vld [vmem:[%s8028 + $0x5c] sm:$0x1]
        %v8126 = vshrl.u32 %v8101, 16
        %v8128 = vrot.slane %v8126, 4
        %v8129 = vshll.u32 %v8101, 16
        %v8131 = vrot.slane %v8129, 5
        %v8132 = vor.u32 %v8128, %v8131
        %v8133 = vrot.slane %v8132, 4
        %v8135 = vshll.u32 %v8102, 16
        %v8137 = vrot.slane %v8135, 5
        %v8138 = vsel %vm2105, %v8133, %v8137
        %v8139 = vshrl.u32 %v8102, 16
        %v8141 = vrot.slane %v8139, 4
        %v8142 = vor.u32 %v8141, %v8137
        %v8143 = vrot.slane %v8142, 4
        %v8145 = vshll.u32 %v8103, 16
        %v8147 = vrot.slane %v8145, 5
        %v8148 = vsel %vm2105, %v8143, %v8147
        %v8150 = vshrl.u32 %v8104, 16
        %v8152 = vrot.slane %v8150, 4
        %v8153 = vshll.u32 %v8104, 16
        %v8155 = vrot.slane %v8153, 5
        %v8156 = vor.u32 %v8152, %v8155
        %v8157 = vrot.slane %v8156, 4
        %v8159 = vshll.u32 %v8105, 16
        %v8161 = vrot.slane %v8159, 5
        %v8162 = vsel %vm2105, %v8157, %v8161
        %v8163 = vshrl.u32 %v8105, 16
        %v8165 = vrot.slane %v8163, 4
        %v8166 = vor.u32 %v8165, %v8161
        %v8167 = vrot.slane %v8166, 4
        %v8169 = vshll.u32 %v8106, 16
        %v8171 = vrot.slane %v8169, 5
        %v8172 = vsel %vm2105, %v8167, %v8171
        %v8174 = vshrl.u32 %v8107, 16
        %v8176 = vrot.slane %v8174, 4
        %v8177 = vshll.u32 %v8107, 16
        %v8179 = vrot.slane %v8177, 5
        %v8180 = vor.u32 %v8176, %v8179
        %v8181 = vrot.slane %v8180, 4
        %v8183 = vshll.u32 %v8108, 16
        %v8185 = vrot.slane %v8183, 5
        %v8186 = vsel %vm2105, %v8181, %v8185
        %v8187 = vshrl.u32 %v8108, 16
        %v8189 = vrot.slane %v8187, 4
        %v8190 = vor.u32 %v8189, %v8185
        %v8191 = vrot.slane %v8190, 4
        %v8193 = vshll.u32 %v8109, 16
        %v8195 = vrot.slane %v8193, 5
        %v8196 = vsel %vm2105, %v8191, %v8195
        %v8198 = vshrl.u32 %v8110, 16
        %v8200 = vrot.slane %v8198, 4
        %v8201 = vshll.u32 %v8110, 16
        %v8203 = vrot.slane %v8201, 5
        %v8204 = vor.u32 %v8200, %v8203
        %v8205 = vrot.slane %v8204, 4
        %v8207 = vshll.u32 %v8111, 16
        %v8209 = vrot.slane %v8207, 5
        %v8210 = vsel %vm2105, %v8205, %v8209
        %v8211 = vshrl.u32 %v8111, 16
        %v8213 = vrot.slane %v8211, 4
        %v8214 = vor.u32 %v8213, %v8209
        %v8215 = vrot.slane %v8214, 4
        %v8217 = vshll.u32 %v8112, 16
        %v8219 = vrot.slane %v8217, 5
        %v8220 = vsel %vm2105, %v8215, %v8219
        %v8222 = vshrl.u32 %v8113, 16
        %v8224 = vrot.slane %v8222, 4
        %v8225 = vshll.u32 %v8113, 16
        %v8227 = vrot.slane %v8225, 5
        %v8228 = vor.u32 %v8224, %v8227
        %v8229 = vrot.slane %v8228, 4
        %v8231 = vshll.u32 %v8114, 16
        %v8233 = vrot.slane %v8231, 5
        %v8234 = vsel %vm2105, %v8229, %v8233
        %v8235 = vshrl.u32 %v8114, 16
        %v8237 = vrot.slane %v8235, 4
        %v8238 = vor.u32 %v8237, %v8233
        %v8239 = vrot.slane %v8238, 4
        %v8241 = vshll.u32 %v8115, 16
        %v8243 = vrot.slane %v8241, 5
        %v8244 = vsel %vm2105, %v8239, %v8243
        %v8246 = vshrl.u32 %v8116, 16
        %v8248 = vrot.slane %v8246, 4
        %v8249 = vshll.u32 %v8116, 16
        %v8251 = vrot.slane %v8249, 5
        %v8252 = vor.u32 %v8248, %v8251
        %v8253 = vrot.slane %v8252, 4
        %v8255 = vshll.u32 %v8117, 16
        %v8257 = vrot.slane %v8255, 5
        %v8258 = vsel %vm2105, %v8253, %v8257
        %v8259 = vshrl.u32 %v8117, 16
        %v8261 = vrot.slane %v8259, 4
        %v8262 = vor.u32 %v8261, %v8257
        %v8263 = vrot.slane %v8262, 4
        %v8265 = vshll.u32 %v8118, 16
        %v8267 = vrot.slane %v8265, 5
        %v8268 = vsel %vm2105, %v8263, %v8267
        %v8270 = vshrl.u32 %v8119, 16
        %v8272 = vrot.slane %v8270, 4
        %v8273 = vshll.u32 %v8119, 16
        %v8275 = vrot.slane %v8273, 5
        %v8276 = vor.u32 %v8272, %v8275
        %v8277 = vrot.slane %v8276, 4
        %v8279 = vshll.u32 %v8120, 16
        %v8281 = vrot.slane %v8279, 5
        %v8282 = vsel %vm2105, %v8277, %v8281
        %v8283 = vshrl.u32 %v8120, 16
        %v8285 = vrot.slane %v8283, 4
        %v8286 = vor.u32 %v8285, %v8281
        %v8287 = vrot.slane %v8286, 4
        %v8289 = vshll.u32 %v8121, 16
        %v8291 = vrot.slane %v8289, 5
        %v8292 = vsel %vm2105, %v8287, %v8291
        %v8294 = vshrl.u32 %v8122, 16
        %v8296 = vrot.slane %v8294, 4
        %v8297 = vshll.u32 %v8122, 16
        %v8299 = vrot.slane %v8297, 5
        %v8300 = vor.u32 %v8296, %v8299
        %v8301 = vrot.slane %v8300, 4
        %v8303 = vshll.u32 %v8123, 16
        %v8305 = vrot.slane %v8303, 5
        %v8306 = vsel %vm2105, %v8301, %v8305
        %v8307 = vshrl.u32 %v8123, 16
        %v8309 = vrot.slane %v8307, 4
        %v8310 = vor.u32 %v8309, %v8305
        %v8311 = vrot.slane %v8310, 4
        %v8313 = vshll.u32 %v8124, 16
        %v8315 = vrot.slane %v8313, 5
        %v8316 = vsel %vm2105, %v8311, %v8315
        %v8317 = vunpack.c.l.b16 %v8138
        %v8318 = vunpack.c.l.b16 %v8148
        %v8319 = vunpack.c.l.b16 %v8162
        %v8320 = vunpack.c.l.b16 %v8172
        %v8321 = vunpack.c.l.b16 %v8186
        %v8322 = vunpack.c.l.b16 %v8196
        %v8323 = vunpack.c.l.b16 %v8210
        %v8324 = vunpack.c.l.b16 %v8220
        %v8325 = vunpack.c.l.b16 %v8234
        %v8326 = vunpack.c.l.b16 %v8244
        %v8327 = vunpack.c.l.b16 %v8258
        %v8328 = vunpack.c.l.b16 %v8268
        %v8329 = vunpack.c.l.b16 %v8282
        %v8330 = vunpack.c.l.b16 %v8292
        %v8331 = vunpack.c.l.b16 %v8306
        %v8332 = vunpack.c.l.b16 %v8316
        %v8333 = vpack.c.b16 %v8318, %v8317
        %v8334 = vpack.c.b16 %v8320, %v8319
        %v8335 = vpack.c.b16 %v8322, %v8321
        %v8336 = vpack.c.b16 %v8324, %v8323
        %v8337 = vpack.c.b16 %v8326, %v8325
        %v8338 = vpack.c.b16 %v8328, %v8327
        %v8339 = vpack.c.b16 %v8330, %v8329
        %v8340 = vpack.c.b16 %v8332, %v8331
        %8341 = vrot.lane.b32.xlu0 %v8333, 4
        %v8342 = vpop.permute.xlu0 %8341
        %8343 = vrot.lane.b32.xlu0 %v8334, 4
        %v8344 = vpop.permute.xlu0 %8343
        %8345 = vrot.lane.b32.xlu0 %v8335, 4
        %v8346 = vpop.permute.xlu0 %8345
        %8347 = vrot.lane.b32.xlu0 %v8336, 4
        %v8348 = vpop.permute.xlu0 %8347
        %8349 = vrot.lane.b32.xlu0 %v8337, 4
        %v8350 = vpop.permute.xlu0 %8349
        %8351 = vrot.lane.b32.xlu0 %v8338, 4
        %v8352 = vpop.permute.xlu0 %8351
        %8353 = vrot.lane.b32.xlu0 %v8339, 4
        %v8354 = vpop.permute.xlu0 %8353
        %8355 = vrot.lane.b32.xlu0 %v8340, 4
        %v8356 = vpop.permute.xlu0 %8355
        %8365 = vst.msk [vmem:[#allocation5] sm:$0xff] %vm6511, %v8342
        %8366 = vst.msk [vmem:[#allocation5 + $0x8] sm:$0xff] %vm6511, %v8344
        %8367 = vst.msk [vmem:[#allocation5 + $0x10] sm:$0xff] %vm6511, %v8346
        %8368 = vst.msk [vmem:[#allocation5 + $0x18] sm:$0xff] %vm6511, %v8348
        %8369 = vst.msk [vmem:[#allocation5 + $0x20] sm:$0xff] %vm6511, %v8350
        %8370 = vst.msk [vmem:[#allocation5 + $0x28] sm:$0xff] %vm6511, %v8352
        %8371 = vst.msk [vmem:[#allocation5 + $0x30] sm:$0xff] %vm6511, %v8354
        %8372 = vst.msk [vmem:[#allocation5 + $0x38] sm:$0xff] %vm6511, %v8356
        %v8373 = vld [vmem:[%s8028] sm:$0xe]
        %v8374 = vld [vmem:[%s8028 + $0x4] sm:$0xf]
        %v8375 = vld [vmem:[%s8028 + $0x8] sm:$0x1]
        %v8376 = vld [vmem:[%s8028 + $0xc] sm:$0xe]
        %v8377 = vld [vmem:[%s8028 + $0x10] sm:$0xf]
        %v8378 = vld [vmem:[%s8028 + $0x14] sm:$0x1]
        %v8379 = vld [vmem:[%s8028 + $0x18] sm:$0xe]
        %v8380 = vld [vmem:[%s8028 + $0x1c] sm:$0xf]
        %v8381 = vld [vmem:[%s8028 + $0x20] sm:$0x1]
        %v8382 = vld [vmem:[%s8028 + $0x24] sm:$0xe]
        %v8383 = vld [vmem:[%s8028 + $0x28] sm:$0xf]
        %v8384 = vld [vmem:[%s8028 + $0x2c] sm:$0x1]
        %v8385 = vld [vmem:[%s8028 + $0x30] sm:$0xe]
        %v8386 = vld [vmem:[%s8028 + $0x34] sm:$0xf]
        %v8387 = vld [vmem:[%s8028 + $0x38] sm:$0x1]
        %v8388 = vld [vmem:[%s8028 + $0x3c] sm:$0xe]
        %v8389 = vld [vmem:[%s8028 + $0x40] sm:$0xf]
        %v8390 = vld [vmem:[%s8028 + $0x44] sm:$0x1]
        %v8391 = vld [vmem:[%s8028 + $0x48] sm:$0xe]
        %v8392 = vld [vmem:[%s8028 + $0x4c] sm:$0xf]
        %v8393 = vld [vmem:[%s8028 + $0x50] sm:$0x1]
        %v8394 = vld [vmem:[%s8028 + $0x54] sm:$0xe]
        %v8395 = vld [vmem:[%s8028 + $0x58] sm:$0xf]
        %v8396 = vld [vmem:[%s8028 + $0x5c] sm:$0x1]
        %v8421 = vrot.slane %v8373, 5
        %v8422 = vrot.slane %v8421, 4
        %v8423 = vrot.slane %v8374, 5
        %v8424 = vsel %vm2405, %v8422, %v8423
        %v8425 = vrot.slane %v8423, 4
        %v8426 = vrot.slane %v8375, 5
        %v8427 = vsel %vm2405, %v8425, %v8426
        %v8428 = vrot.slane %v8376, 5
        %v8429 = vrot.slane %v8428, 4
        %v8430 = vrot.slane %v8377, 5
        %v8431 = vsel %vm2405, %v8429, %v8430
        %v8432 = vrot.slane %v8430, 4
        %v8433 = vrot.slane %v8378, 5
        %v8434 = vsel %vm2405, %v8432, %v8433
        %v8435 = vrot.slane %v8379, 5
        %v8436 = vrot.slane %v8435, 4
        %v8437 = vrot.slane %v8380, 5
        %v8438 = vsel %vm2405, %v8436, %v8437
        %v8439 = vrot.slane %v8437, 4
        %v8440 = vrot.slane %v8381, 5
        %v8441 = vsel %vm2405, %v8439, %v8440
        %v8442 = vrot.slane %v8382, 5
        %v8443 = vrot.slane %v8442, 4
        %v8444 = vrot.slane %v8383, 5
        %v8445 = vsel %vm2405, %v8443, %v8444
        %v8446 = vrot.slane %v8444, 4
        %v8447 = vrot.slane %v8384, 5
        %v8448 = vsel %vm2405, %v8446, %v8447
        %v8449 = vrot.slane %v8385, 5
        %v8450 = vrot.slane %v8449, 4
        %v8451 = vrot.slane %v8386, 5
        %v8452 = vsel %vm2405, %v8450, %v8451
        %v8453 = vrot.slane %v8451, 4
        %v8454 = vrot.slane %v8387, 5
        %v8455 = vsel %vm2405, %v8453, %v8454
        %v8456 = vrot.slane %v8388, 5
        %v8457 = vrot.slane %v8456, 4
        %v8458 = vrot.slane %v8389, 5
        %v8459 = vsel %vm2405, %v8457, %v8458
        %v8460 = vrot.slane %v8458, 4
        %v8461 = vrot.slane %v8390, 5
        %v8462 = vsel %vm2405, %v8460, %v8461
        %v8463 = vrot.slane %v8391, 5
        %v8464 = vrot.slane %v8463, 4
        %v8465 = vrot.slane %v8392, 5
        %v8466 = vsel %vm2405, %v8464, %v8465
        %v8467 = vrot.slane %v8465, 4
        %v8468 = vrot.slane %v8393, 5
        %v8469 = vsel %vm2405, %v8467, %v8468
        %v8470 = vrot.slane %v8394, 5
        %v8471 = vrot.slane %v8470, 4
        %v8472 = vrot.slane %v8395, 5
        %v8473 = vsel %vm2405, %v8471, %v8472
        %v8474 = vrot.slane %v8472, 4
        %v8475 = vrot.slane %v8396, 5
        %v8476 = vsel %vm2405, %v8474, %v8475
        %v8477 = vunpack.c.l.b16 %v8424
        %v8478 = vunpack.c.l.b16 %v8427
        %v8479 = vunpack.c.l.b16 %v8431
        %v8480 = vunpack.c.l.b16 %v8434
        %v8481 = vunpack.c.l.b16 %v8438
        %v8482 = vunpack.c.l.b16 %v8441
        %v8483 = vunpack.c.l.b16 %v8445
        %v8484 = vunpack.c.l.b16 %v8448
        %v8485 = vunpack.c.l.b16 %v8452
        %v8486 = vunpack.c.l.b16 %v8455
        %v8487 = vunpack.c.l.b16 %v8459
        %v8488 = vunpack.c.l.b16 %v8462
        %v8489 = vunpack.c.l.b16 %v8466
        %v8490 = vunpack.c.l.b16 %v8469
        %v8491 = vunpack.c.l.b16 %v8473
        %v8492 = vunpack.c.l.b16 %v8476
        %v8493 = vpack.c.b16 %v8478, %v8477
        %v8494 = vpack.c.b16 %v8480, %v8479
        %v8495 = vpack.c.b16 %v8482, %v8481
        %v8496 = vpack.c.b16 %v8484, %v8483
        %v8497 = vpack.c.b16 %v8486, %v8485
        %v8498 = vpack.c.b16 %v8488, %v8487
        %v8499 = vpack.c.b16 %v8490, %v8489
        %v8500 = vpack.c.b16 %v8492, %v8491
        %8501 = vrot.lane.b32.xlu0 %v8493, 8
        %v8502 = vpop.permute.xlu0 %8501
        %8503 = vrot.lane.b32.xlu0 %v8494, 8
        %v8504 = vpop.permute.xlu0 %8503
        %8505 = vrot.lane.b32.xlu0 %v8495, 8
        %v8506 = vpop.permute.xlu0 %8505
        %8507 = vrot.lane.b32.xlu0 %v8496, 8
        %v8508 = vpop.permute.xlu0 %8507
        %8509 = vrot.lane.b32.xlu0 %v8497, 8
        %v8510 = vpop.permute.xlu0 %8509
        %8511 = vrot.lane.b32.xlu0 %v8498, 8
        %v8512 = vpop.permute.xlu0 %8511
        %8513 = vrot.lane.b32.xlu0 %v8499, 8
        %v8514 = vpop.permute.xlu0 %8513
        %8515 = vrot.lane.b32.xlu0 %v8500, 8
        %v8516 = vpop.permute.xlu0 %8515
        %8525 = vst.msk [vmem:[#allocation5] sm:$0xff] %vm6672, %v8502
        %8526 = vst.msk [vmem:[#allocation5 + $0x8] sm:$0xff] %vm6672, %v8504
        %8527 = vst.msk [vmem:[#allocation5 + $0x10] sm:$0xff] %vm6672, %v8506
        %8528 = vst.msk [vmem:[#allocation5 + $0x18] sm:$0xff] %vm6672, %v8508
        %8529 = vst.msk [vmem:[#allocation5 + $0x20] sm:$0xff] %vm6672, %v8510
        %8530 = vst.msk [vmem:[#allocation5 + $0x28] sm:$0xff] %vm6672, %v8512
        %8531 = vst.msk [vmem:[#allocation5 + $0x30] sm:$0xff] %vm6672, %v8514
        %8532 = vst.msk [vmem:[#allocation5 + $0x38] sm:$0xff] %vm6672, %v8516
        %v8533 = vld [vmem:[%s6109] sm:$0xf]
        %v8534 = vld [vmem:[%s6109 + $0x4] sm:$0xf]
        %v8535 = vld [vmem:[%s6109 + $0xc] sm:$0xf]
        %v8536 = vld [vmem:[%s6109 + $0x10] sm:$0xf]
        %v8537 = vld [vmem:[%s6109 + $0x18] sm:$0xf]
        %v8538 = vld [vmem:[%s6109 + $0x1c] sm:$0xf]
        %v8539 = vld [vmem:[%s6109 + $0x24] sm:$0xf]
        %v8540 = vld [vmem:[%s6109 + $0x28] sm:$0xf]
        %v8541 = vld [vmem:[%s6109 + $0x30] sm:$0xf]
        %v8542 = vld [vmem:[%s6109 + $0x34] sm:$0xf]
        %v8543 = vld [vmem:[%s6109 + $0x3c] sm:$0xf]
        %v8544 = vld [vmem:[%s6109 + $0x40] sm:$0xf]
        %v8545 = vld [vmem:[%s6109 + $0x48] sm:$0xf]
        %v8546 = vld [vmem:[%s6109 + $0x4c] sm:$0xf]
        %v8547 = vld [vmem:[%s6109 + $0x54] sm:$0xf]
        %v8548 = vld [vmem:[%s6109 + $0x58] sm:$0xf]
        %v8565 = vunpack.c.l.b16 %v8533
        %v8566 = vunpack.c.l.b16 %v8534
        %v8567 = vunpack.c.l.b16 %v8535
        %v8568 = vunpack.c.l.b16 %v8536
        %v8569 = vunpack.c.l.b16 %v8537
        %v8570 = vunpack.c.l.b16 %v8538
        %v8571 = vunpack.c.l.b16 %v8539
        %v8572 = vunpack.c.l.b16 %v8540
        %v8573 = vunpack.c.l.b16 %v8541
        %v8574 = vunpack.c.l.b16 %v8542
        %v8575 = vunpack.c.l.b16 %v8543
        %v8576 = vunpack.c.l.b16 %v8544
        %v8577 = vunpack.c.l.b16 %v8545
        %v8578 = vunpack.c.l.b16 %v8546
        %v8579 = vunpack.c.l.b16 %v8547
        %v8580 = vunpack.c.l.b16 %v8548
        %v8581 = vpack.c.b16 %v8566, %v8565
        %v8582 = vpack.c.b16 %v8568, %v8567
        %v8583 = vpack.c.b16 %v8570, %v8569
        %v8584 = vpack.c.b16 %v8572, %v8571
        %v8585 = vpack.c.b16 %v8574, %v8573
        %v8586 = vpack.c.b16 %v8576, %v8575
        %v8587 = vpack.c.b16 %v8578, %v8577
        %v8588 = vpack.c.b16 %v8580, %v8579
        %8589 = vrot.lane.b32.xlu0 %v8581, 12
        %v8590 = vpop.permute.xlu0 %8589
        %8591 = vrot.lane.b32.xlu0 %v8582, 12
        %v8592 = vpop.permute.xlu0 %8591
        %8593 = vrot.lane.b32.xlu0 %v8583, 12
        %v8594 = vpop.permute.xlu0 %8593
        %8595 = vrot.lane.b32.xlu0 %v8584, 12
        %v8596 = vpop.permute.xlu0 %8595
        %8597 = vrot.lane.b32.xlu0 %v8585, 12
        %v8598 = vpop.permute.xlu0 %8597
        %8599 = vrot.lane.b32.xlu0 %v8586, 12
        %v8600 = vpop.permute.xlu0 %8599
        %8601 = vrot.lane.b32.xlu0 %v8587, 12
        %v8602 = vpop.permute.xlu0 %8601
        %8603 = vrot.lane.b32.xlu0 %v8588, 12
        %v8604 = vpop.permute.xlu0 %8603
        %8613 = vst.msk [vmem:[#allocation5] sm:$0xff] %vm6761, %v8590
        %8614 = vst.msk [vmem:[#allocation5 + $0x8] sm:$0xff] %vm6761, %v8592
        %8615 = vst.msk [vmem:[#allocation5 + $0x10] sm:$0xff] %vm6761, %v8594
        %8616 = vst.msk [vmem:[#allocation5 + $0x18] sm:$0xff] %vm6761, %v8596
        %8617 = vst.msk [vmem:[#allocation5 + $0x20] sm:$0xff] %vm6761, %v8598
        %8618 = vst.msk [vmem:[#allocation5 + $0x28] sm:$0xff] %vm6761, %v8600
        %8619 = vst.msk [vmem:[#allocation5 + $0x30] sm:$0xff] %vm6761, %v8602
        %8620 = vst.msk [vmem:[#allocation5 + $0x38] sm:$0xff] %vm6761, %v8604
        %v8621 = vld [vmem:[%s6109] sm:$0xf]
        %v8622 = vld [vmem:[%s6109 + $0x4] sm:$0xf]
        %v8623 = vld [vmem:[%s6109 + $0x8] sm:$0x1]
        %v8624 = vld [vmem:[%s6109 + $0xc] sm:$0xf]
        %v8625 = vld [vmem:[%s6109 + $0x10] sm:$0xf]
        %v8626 = vld [vmem:[%s6109 + $0x14] sm:$0x1]
        %v8627 = vld [vmem:[%s6109 + $0x18] sm:$0xf]
        %v8628 = vld [vmem:[%s6109 + $0x1c] sm:$0xf]
        %v8629 = vld [vmem:[%s6109 + $0x20] sm:$0x1]
        %v8630 = vld [vmem:[%s6109 + $0x24] sm:$0xf]
        %v8631 = vld [vmem:[%s6109 + $0x28] sm:$0xf]
        %v8632 = vld [vmem:[%s6109 + $0x2c] sm:$0x1]
        %v8633 = vld [vmem:[%s6109 + $0x30] sm:$0xf]
        %v8634 = vld [vmem:[%s6109 + $0x34] sm:$0xf]
        %v8635 = vld [vmem:[%s6109 + $0x38] sm:$0x1]
        %v8636 = vld [vmem:[%s6109 + $0x3c] sm:$0xf]
        %v8637 = vld [vmem:[%s6109 + $0x40] sm:$0xf]
        %v8638 = vld [vmem:[%s6109 + $0x44] sm:$0x1]
        %v8639 = vld [vmem:[%s6109 + $0x48] sm:$0xf]
        %v8640 = vld [vmem:[%s6109 + $0x4c] sm:$0xf]
        %v8641 = vld [vmem:[%s6109 + $0x50] sm:$0x1]
        %v8642 = vld [vmem:[%s6109 + $0x54] sm:$0xf]
        %v8643 = vld [vmem:[%s6109 + $0x58] sm:$0xf]
        %v8644 = vld [vmem:[%s6109 + $0x5c] sm:$0x1]
        %v8646 = vshrl.u32 %v8621, 16
        %v8648 = vrot.slane %v8646, 4
        %v8649 = vshll.u32 %v8621, 16
        %v8651 = vrot.slane %v8649, 5
        %v8652 = vor.u32 %v8648, %v8651
        %v8653 = vrot.slane %v8652, 4
        %v8655 = vshll.u32 %v8622, 16
        %v8657 = vrot.slane %v8655, 5
        %v8658 = vsel %vm2105, %v8653, %v8657
        %v8659 = vshrl.u32 %v8622, 16
        %v8661 = vrot.slane %v8659, 4
        %v8662 = vor.u32 %v8661, %v8657
        %v8663 = vrot.slane %v8662, 4
        %v8665 = vshll.u32 %v8623, 16
        %v8667 = vrot.slane %v8665, 5
        %v8668 = vsel %vm2105, %v8663, %v8667
        %v8670 = vshrl.u32 %v8624, 16
        %v8672 = vrot.slane %v8670, 4
        %v8673 = vshll.u32 %v8624, 16
        %v8675 = vrot.slane %v8673, 5
        %v8676 = vor.u32 %v8672, %v8675
        %v8677 = vrot.slane %v8676, 4
        %v8679 = vshll.u32 %v8625, 16
        %v8681 = vrot.slane %v8679, 5
        %v8682 = vsel %vm2105, %v8677, %v8681
        %v8683 = vshrl.u32 %v8625, 16
        %v8685 = vrot.slane %v8683, 4
        %v8686 = vor.u32 %v8685, %v8681
        %v8687 = vrot.slane %v8686, 4
        %v8689 = vshll.u32 %v8626, 16
        %v8691 = vrot.slane %v8689, 5
        %v8692 = vsel %vm2105, %v8687, %v8691
        %v8694 = vshrl.u32 %v8627, 16
        %v8696 = vrot.slane %v8694, 4
        %v8697 = vshll.u32 %v8627, 16
        %v8699 = vrot.slane %v8697, 5
        %v8700 = vor.u32 %v8696, %v8699
        %v8701 = vrot.slane %v8700, 4
        %v8703 = vshll.u32 %v8628, 16
        %v8705 = vrot.slane %v8703, 5
        %v8706 = vsel %vm2105, %v8701, %v8705
        %v8707 = vshrl.u32 %v8628, 16
        %v8709 = vrot.slane %v8707, 4
        %v8710 = vor.u32 %v8709, %v8705
        %v8711 = vrot.slane %v8710, 4
        %v8713 = vshll.u32 %v8629, 16
        %v8715 = vrot.slane %v8713, 5
        %v8716 = vsel %vm2105, %v8711, %v8715
        %v8718 = vshrl.u32 %v8630, 16
        %v8720 = vrot.slane %v8718, 4
        %v8721 = vshll.u32 %v8630, 16
        %v8723 = vrot.slane %v8721, 5
        %v8724 = vor.u32 %v8720, %v8723
        %v8725 = vrot.slane %v8724, 4
        %v8727 = vshll.u32 %v8631, 16
        %v8729 = vrot.slane %v8727, 5
        %v8730 = vsel %vm2105, %v8725, %v8729
        %v8731 = vshrl.u32 %v8631, 16
        %v8733 = vrot.slane %v8731, 4
        %v8734 = vor.u32 %v8733, %v8729
        %v8735 = vrot.slane %v8734, 4
        %v8737 = vshll.u32 %v8632, 16
        %v8739 = vrot.slane %v8737, 5
        %v8740 = vsel %vm2105, %v8735, %v8739
        %v8742 = vshrl.u32 %v8633, 16
        %v8744 = vrot.slane %v8742, 4
        %v8745 = vshll.u32 %v8633, 16
        %v8747 = vrot.slane %v8745, 5
        %v8748 = vor.u32 %v8744, %v8747
        %v8749 = vrot.slane %v8748, 4
        %v8751 = vshll.u32 %v8634, 16
        %v8753 = vrot.slane %v8751, 5
        %v8754 = vsel %vm2105, %v8749, %v8753
        %v8755 = vshrl.u32 %v8634, 16
        %v8757 = vrot.slane %v8755, 4
        %v8758 = vor.u32 %v8757, %v8753
        %v8759 = vrot.slane %v8758, 4
        %v8761 = vshll.u32 %v8635, 16
        %v8763 = vrot.slane %v8761, 5
        %v8764 = vsel %vm2105, %v8759, %v8763
        %v8766 = vshrl.u32 %v8636, 16
        %v8768 = vrot.slane %v8766, 4
        %v8769 = vshll.u32 %v8636, 16
        %v8771 = vrot.slane %v8769, 5
        %v8772 = vor.u32 %v8768, %v8771
        %v8773 = vrot.slane %v8772, 4
        %v8775 = vshll.u32 %v8637, 16
        %v8777 = vrot.slane %v8775, 5
        %v8778 = vsel %vm2105, %v8773, %v8777
        %v8779 = vshrl.u32 %v8637, 16
        %v8781 = vrot.slane %v8779, 4
        %v8782 = vor.u32 %v8781, %v8777
        %v8783 = vrot.slane %v8782, 4
        %v8785 = vshll.u32 %v8638, 16
        %v8787 = vrot.slane %v8785, 5
        %v8788 = vsel %vm2105, %v8783, %v8787
        %v8790 = vshrl.u32 %v8639, 16
        %v8792 = vrot.slane %v8790, 4
        %v8793 = vshll.u32 %v8639, 16
        %v8795 = vrot.slane %v8793, 5
        %v8796 = vor.u32 %v8792, %v8795
        %v8797 = vrot.slane %v8796, 4
        %v8799 = vshll.u32 %v8640, 16
        %v8801 = vrot.slane %v8799, 5
        %v8802 = vsel %vm2105, %v8797, %v8801
        %v8803 = vshrl.u32 %v8640, 16
        %v8805 = vrot.slane %v8803, 4
        %v8806 = vor.u32 %v8805, %v8801
        %v8807 = vrot.slane %v8806, 4
        %v8809 = vshll.u32 %v8641, 16
        %v8811 = vrot.slane %v8809, 5
        %v8812 = vsel %vm2105, %v8807, %v8811
        %v8814 = vshrl.u32 %v8642, 16
        %v8816 = vrot.slane %v8814, 4
        %v8817 = vshll.u32 %v8642, 16
        %v8819 = vrot.slane %v8817, 5
        %v8820 = vor.u32 %v8816, %v8819
        %v8821 = vrot.slane %v8820, 4
        %v8823 = vshll.u32 %v8643, 16
        %v8825 = vrot.slane %v8823, 5
        %v8826 = vsel %vm2105, %v8821, %v8825
        %v8827 = vshrl.u32 %v8643, 16
        %v8829 = vrot.slane %v8827, 4
        %v8830 = vor.u32 %v8829, %v8825
        %v8831 = vrot.slane %v8830, 4
        %v8833 = vshll.u32 %v8644, 16
        %v8835 = vrot.slane %v8833, 5
        %v8836 = vsel %vm2105, %v8831, %v8835
        %v8837 = vunpack.c.l.b16 %v8658
        %v8838 = vunpack.c.l.b16 %v8668
        %v8839 = vunpack.c.l.b16 %v8682
        %v8840 = vunpack.c.l.b16 %v8692
        %v8841 = vunpack.c.l.b16 %v8706
        %v8842 = vunpack.c.l.b16 %v8716
        %v8843 = vunpack.c.l.b16 %v8730
        %v8844 = vunpack.c.l.b16 %v8740
        %v8845 = vunpack.c.l.b16 %v8754
        %v8846 = vunpack.c.l.b16 %v8764
        %v8847 = vunpack.c.l.b16 %v8778
        %v8848 = vunpack.c.l.b16 %v8788
        %v8849 = vunpack.c.l.b16 %v8802
        %v8850 = vunpack.c.l.b16 %v8812
        %v8851 = vunpack.c.l.b16 %v8826
        %v8852 = vunpack.c.l.b16 %v8836
        %v8853 = vpack.c.b16 %v8838, %v8837
        %v8854 = vpack.c.b16 %v8840, %v8839
        %v8855 = vpack.c.b16 %v8842, %v8841
        %v8856 = vpack.c.b16 %v8844, %v8843
        %v8857 = vpack.c.b16 %v8846, %v8845
        %v8858 = vpack.c.b16 %v8848, %v8847
        %v8859 = vpack.c.b16 %v8850, %v8849
        %v8860 = vpack.c.b16 %v8852, %v8851
        %8861 = vrot.lane.b32.xlu0 %v8853, 16
        %v8862 = vpop.permute.xlu0 %8861
        %8863 = vrot.lane.b32.xlu0 %v8854, 16
        %v8864 = vpop.permute.xlu0 %8863
        %8865 = vrot.lane.b32.xlu0 %v8855, 16
        %v8866 = vpop.permute.xlu0 %8865
        %8867 = vrot.lane.b32.xlu0 %v8856, 16
        %v8868 = vpop.permute.xlu0 %8867
        %8869 = vrot.lane.b32.xlu0 %v8857, 16
        %v8870 = vpop.permute.xlu0 %8869
        %8871 = vrot.lane.b32.xlu0 %v8858, 16
        %v8872 = vpop.permute.xlu0 %8871
        %8873 = vrot.lane.b32.xlu0 %v8859, 16
        %v8874 = vpop.permute.xlu0 %8873
        %8875 = vrot.lane.b32.xlu0 %v8860, 16
        %v8876 = vpop.permute.xlu0 %8875
        %8885 = vst.msk [vmem:[#allocation5] sm:$0xff] %vm7034, %v8862
        %8886 = vst.msk [vmem:[#allocation5 + $0x8] sm:$0xff] %vm7034, %v8864
        %8887 = vst.msk [vmem:[#allocation5 + $0x10] sm:$0xff] %vm7034, %v8866
        %8888 = vst.msk [vmem:[#allocation5 + $0x18] sm:$0xff] %vm7034, %v8868
        %8889 = vst.msk [vmem:[#allocation5 + $0x20] sm:$0xff] %vm7034, %v8870
        %8890 = vst.msk [vmem:[#allocation5 + $0x28] sm:$0xff] %vm7034, %v8872
        %8891 = vst.msk [vmem:[#allocation5 + $0x30] sm:$0xff] %vm7034, %v8874
        %8892 = vst.msk [vmem:[#allocation5 + $0x38] sm:$0xff] %vm7034, %v8876
        %v8893 = vld [vmem:[%s6109] sm:$0xe]
        %v8894 = vld [vmem:[%s6109 + $0x4] sm:$0xf]
        %v8895 = vld [vmem:[%s6109 + $0x8] sm:$0x1]
        %v8896 = vld [vmem:[%s6109 + $0xc] sm:$0xe]
        %v8897 = vld [vmem:[%s6109 + $0x10] sm:$0xf]
        %v8898 = vld [vmem:[%s6109 + $0x14] sm:$0x1]
        %v8899 = vld [vmem:[%s6109 + $0x18] sm:$0xe]
        %v8900 = vld [vmem:[%s6109 + $0x1c] sm:$0xf]
        %v8901 = vld [vmem:[%s6109 + $0x20] sm:$0x1]
        %v8902 = vld [vmem:[%s6109 + $0x24] sm:$0xe]
        %v8903 = vld [vmem:[%s6109 + $0x28] sm:$0xf]
        %v8904 = vld [vmem:[%s6109 + $0x2c] sm:$0x1]
        %v8905 = vld [vmem:[%s6109 + $0x30] sm:$0xe]
        %v8906 = vld [vmem:[%s6109 + $0x34] sm:$0xf]
        %v8907 = vld [vmem:[%s6109 + $0x38] sm:$0x1]
        %v8908 = vld [vmem:[%s6109 + $0x3c] sm:$0xe]
        %v8909 = vld [vmem:[%s6109 + $0x40] sm:$0xf]
        %v8910 = vld [vmem:[%s6109 + $0x44] sm:$0x1]
        %v8911 = vld [vmem:[%s6109 + $0x48] sm:$0xe]
        %v8912 = vld [vmem:[%s6109 + $0x4c] sm:$0xf]
        %v8913 = vld [vmem:[%s6109 + $0x50] sm:$0x1]
        %v8914 = vld [vmem:[%s6109 + $0x54] sm:$0xe]
        %v8915 = vld [vmem:[%s6109 + $0x58] sm:$0xf]
        %v8916 = vld [vmem:[%s6109 + $0x5c] sm:$0x1]
        %v8941 = vrot.slane %v8893, 5
        %v8942 = vrot.slane %v8941, 4
        %v8943 = vrot.slane %v8894, 5
        %v8944 = vsel %vm2405, %v8942, %v8943
        %v8945 = vrot.slane %v8943, 4
        %v8946 = vrot.slane %v8895, 5
        %v8947 = vsel %vm2405, %v8945, %v8946
        %v8948 = vrot.slane %v8896, 5
        %v8949 = vrot.slane %v8948, 4
        %v8950 = vrot.slane %v8897, 5
        %v8951 = vsel %vm2405, %v8949, %v8950
        %v8952 = vrot.slane %v8950, 4
        %v8953 = vrot.slane %v8898, 5
        %v8954 = vsel %vm2405, %v8952, %v8953
        %v8955 = vrot.slane %v8899, 5
        %v8956 = vrot.slane %v8955, 4
        %v8957 = vrot.slane %v8900, 5
        %v8958 = vsel %vm2405, %v8956, %v8957
        %v8959 = vrot.slane %v8957, 4
        %v8960 = vrot.slane %v8901, 5
        %v8961 = vsel %vm2405, %v8959, %v8960
        %v8962 = vrot.slane %v8902, 5
        %v8963 = vrot.slane %v8962, 4
        %v8964 = vrot.slane %v8903, 5
        %v8965 = vsel %vm2405, %v8963, %v8964
        %v8966 = vrot.slane %v8964, 4
        %v8967 = vrot.slane %v8904, 5
        %v8968 = vsel %vm2405, %v8966, %v8967
        %v8969 = vrot.slane %v8905, 5
        %v8970 = vrot.slane %v8969, 4
        %v8971 = vrot.slane %v8906, 5
        %v8972 = vsel %vm2405, %v8970, %v8971
        %v8973 = vrot.slane %v8971, 4
        %v8974 = vrot.slane %v8907, 5
        %v8975 = vsel %vm2405, %v8973, %v8974
        %v8976 = vrot.slane %v8908, 5
        %v8977 = vrot.slane %v8976, 4
        %v8978 = vrot.slane %v8909, 5
        %v8979 = vsel %vm2405, %v8977, %v8978
        %v8980 = vrot.slane %v8978, 4
        %v8981 = vrot.slane %v8910, 5
        %v8982 = vsel %vm2405, %v8980, %v8981
        %v8983 = vrot.slane %v8911, 5
        %v8984 = vrot.slane %v8983, 4
        %v8985 = vrot.slane %v8912, 5
        %v8986 = vsel %vm2405, %v8984, %v8985
        %v8987 = vrot.slane %v8985, 4
        %v8988 = vrot.slane %v8913, 5
        %v8989 = vsel %vm2405, %v8987, %v8988
        %v8990 = vrot.slane %v8914, 5
        %v8991 = vrot.slane %v8990, 4
        %v8992 = vrot.slane %v8915, 5
        %v8993 = vsel %vm2405, %v8991, %v8992
        %v8994 = vrot.slane %v8992, 4
        %v8995 = vrot.slane %v8916, 5
        %v8996 = vsel %vm2405, %v8994, %v8995
        %v8997 = vunpack.c.l.b16 %v8944
        %v8998 = vunpack.c.l.b16 %v8947
        %v8999 = vunpack.c.l.b16 %v8951
        %v9000 = vunpack.c.l.b16 %v8954
        %v9001 = vunpack.c.l.b16 %v8958
        %v9002 = vunpack.c.l.b16 %v8961
        %v9003 = vunpack.c.l.b16 %v8965
        %v9004 = vunpack.c.l.b16 %v8968
        %v9005 = vunpack.c.l.b16 %v8972
        %v9006 = vunpack.c.l.b16 %v8975
        %v9007 = vunpack.c.l.b16 %v8979
        %v9008 = vunpack.c.l.b16 %v8982
        %v9009 = vunpack.c.l.b16 %v8986
        %v9010 = vunpack.c.l.b16 %v8989
        %v9011 = vunpack.c.l.b16 %v8993
        %v9012 = vunpack.c.l.b16 %v8996
        %v9013 = vpack.c.b16 %v8998, %v8997
        %v9014 = vpack.c.b16 %v9000, %v8999
        %v9015 = vpack.c.b16 %v9002, %v9001
        %v9016 = vpack.c.b16 %v9004, %v9003
        %v9017 = vpack.c.b16 %v9006, %v9005
        %v9018 = vpack.c.b16 %v9008, %v9007
        %v9019 = vpack.c.b16 %v9010, %v9009
        %v9020 = vpack.c.b16 %v9012, %v9011
        %9021 = vrot.lane.b32.xlu0 %v9013, 20
        %v9022 = vpop.permute.xlu0 %9021
        %9023 = vrot.lane.b32.xlu0 %v9014, 20
        %v9024 = vpop.permute.xlu0 %9023
        %9025 = vrot.lane.b32.xlu0 %v9015, 20
        %v9026 = vpop.permute.xlu0 %9025
        %9027 = vrot.lane.b32.xlu0 %v9016, 20
        %v9028 = vpop.permute.xlu0 %9027
        %9029 = vrot.lane.b32.xlu0 %v9017, 20
        %v9030 = vpop.permute.xlu0 %9029
        %9031 = vrot.lane.b32.xlu0 %v9018, 20
        %v9032 = vpop.permute.xlu0 %9031
        %9033 = vrot.lane.b32.xlu0 %v9019, 20
        %v9034 = vpop.permute.xlu0 %9033
        %9035 = vrot.lane.b32.xlu0 %v9020, 20
        %v9036 = vpop.permute.xlu0 %9035
        %9045 = vst.msk [vmem:[#allocation5] sm:$0xff] %vm7195, %v9022
        %9046 = vst.msk [vmem:[#allocation5 + $0x8] sm:$0xff] %vm7195, %v9024
        %9047 = vst.msk [vmem:[#allocation5 + $0x10] sm:$0xff] %vm7195, %v9026
        %9048 = vst.msk [vmem:[#allocation5 + $0x18] sm:$0xff] %vm7195, %v9028
        %9049 = vst.msk [vmem:[#allocation5 + $0x20] sm:$0xff] %vm7195, %v9030
        %9050 = vst.msk [vmem:[#allocation5 + $0x28] sm:$0xff] %vm7195, %v9032
        %9051 = vst.msk [vmem:[#allocation5 + $0x30] sm:$0xff] %vm7195, %v9034
        %9052 = vst.msk [vmem:[#allocation5 + $0x38] sm:$0xff] %vm7195, %v9036
        %s9053 = smul.addr %s5136, 4
        %s9054 = scalar_lea.vmem [#allocation3], %s9053
        %v9055 = vld [vmem:[%s9054] sm:$0xf]
        %v9056 = vld [vmem:[%s9054 + $0x4] sm:$0xf]
        %v9057 = vld [vmem:[%s9054 + $0xc] sm:$0xf]
        %v9058 = vld [vmem:[%s9054 + $0x10] sm:$0xf]
        %v9059 = vld [vmem:[%s9054 + $0x18] sm:$0xf]
        %v9060 = vld [vmem:[%s9054 + $0x1c] sm:$0xf]
        %v9061 = vld [vmem:[%s9054 + $0x24] sm:$0xf]
        %v9062 = vld [vmem:[%s9054 + $0x28] sm:$0xf]
        %v9063 = vld [vmem:[%s9054 + $0x30] sm:$0xf]
        %v9064 = vld [vmem:[%s9054 + $0x34] sm:$0xf]
        %v9065 = vld [vmem:[%s9054 + $0x3c] sm:$0xf]
        %v9066 = vld [vmem:[%s9054 + $0x40] sm:$0xf]
        %v9067 = vld [vmem:[%s9054 + $0x48] sm:$0xf]
        %v9068 = vld [vmem:[%s9054 + $0x4c] sm:$0xf]
        %v9069 = vld [vmem:[%s9054 + $0x54] sm:$0xf]
        %v9070 = vld [vmem:[%s9054 + $0x58] sm:$0xf]
        %v9087 = vunpack.c.l.b16 %v9055
        %v9088 = vunpack.c.l.b16 %v9056
        %v9089 = vunpack.c.l.b16 %v9057
        %v9090 = vunpack.c.l.b16 %v9058
        %v9091 = vunpack.c.l.b16 %v9059
        %v9092 = vunpack.c.l.b16 %v9060
        %v9093 = vunpack.c.l.b16 %v9061
        %v9094 = vunpack.c.l.b16 %v9062
        %v9095 = vunpack.c.l.b16 %v9063
        %v9096 = vunpack.c.l.b16 %v9064
        %v9097 = vunpack.c.l.b16 %v9065
        %v9098 = vunpack.c.l.b16 %v9066
        %v9099 = vunpack.c.l.b16 %v9067
        %v9100 = vunpack.c.l.b16 %v9068
        %v9101 = vunpack.c.l.b16 %v9069
        %v9102 = vunpack.c.l.b16 %v9070
        %v9103 = vpack.c.b16 %v9088, %v9087
        %v9104 = vpack.c.b16 %v9090, %v9089
        %v9105 = vpack.c.b16 %v9092, %v9091
        %v9106 = vpack.c.b16 %v9094, %v9093
        %v9107 = vpack.c.b16 %v9096, %v9095
        %v9108 = vpack.c.b16 %v9098, %v9097
        %v9109 = vpack.c.b16 %v9100, %v9099
        %v9110 = vpack.c.b16 %v9102, %v9101
        %9111 = vrot.lane.b32.xlu0 %v9103, 24
        %v9112 = vpop.permute.xlu0 %9111
        %9113 = vrot.lane.b32.xlu0 %v9104, 24
        %v9114 = vpop.permute.xlu0 %9113
        %9115 = vrot.lane.b32.xlu0 %v9105, 24
        %v9116 = vpop.permute.xlu0 %9115
        %9117 = vrot.lane.b32.xlu0 %v9106, 24
        %v9118 = vpop.permute.xlu0 %9117
        %9119 = vrot.lane.b32.xlu0 %v9107, 24
        %v9120 = vpop.permute.xlu0 %9119
        %9121 = vrot.lane.b32.xlu0 %v9108, 24
        %v9122 = vpop.permute.xlu0 %9121
        %9123 = vrot.lane.b32.xlu0 %v9109, 24
        %v9124 = vpop.permute.xlu0 %9123
        %9125 = vrot.lane.b32.xlu0 %v9110, 24
        %v9126 = vpop.permute.xlu0 %9125
        %9135 = vst.msk [vmem:[#allocation5] sm:$0xff] %vm7286, %v9112
        %9136 = vst.msk [vmem:[#allocation5 + $0x8] sm:$0xff] %vm7286, %v9114
        %9137 = vst.msk [vmem:[#allocation5 + $0x10] sm:$0xff] %vm7286, %v9116
        %9138 = vst.msk [vmem:[#allocation5 + $0x18] sm:$0xff] %vm7286, %v9118
        %9139 = vst.msk [vmem:[#allocation5 + $0x20] sm:$0xff] %vm7286, %v9120
        %9140 = vst.msk [vmem:[#allocation5 + $0x28] sm:$0xff] %vm7286, %v9122
        %9141 = vst.msk [vmem:[#allocation5 + $0x30] sm:$0xff] %vm7286, %v9124
        %9142 = vst.msk [vmem:[#allocation5 + $0x38] sm:$0xff] %vm7286, %v9126
        %v9143 = vld [vmem:[%s9054] sm:$0xf]
        %v9144 = vld [vmem:[%s9054 + $0x4] sm:$0xf]
        %v9145 = vld [vmem:[%s9054 + $0x8] sm:$0x1]
        %v9146 = vld [vmem:[%s9054 + $0xc] sm:$0xf]
        %v9147 = vld [vmem:[%s9054 + $0x10] sm:$0xf]
        %v9148 = vld [vmem:[%s9054 + $0x14] sm:$0x1]
        %v9149 = vld [vmem:[%s9054 + $0x18] sm:$0xf]
        %v9150 = vld [vmem:[%s9054 + $0x1c] sm:$0xf]
        %v9151 = vld [vmem:[%s9054 + $0x20] sm:$0x1]
        %v9152 = vld [vmem:[%s9054 + $0x24] sm:$0xf]
        %v9153 = vld [vmem:[%s9054 + $0x28] sm:$0xf]
        %v9154 = vld [vmem:[%s9054 + $0x2c] sm:$0x1]
        %v9155 = vld [vmem:[%s9054 + $0x30] sm:$0xf]
        %v9156 = vld [vmem:[%s9054 + $0x34] sm:$0xf]
        %v9157 = vld [vmem:[%s9054 + $0x38] sm:$0x1]
        %v9158 = vld [vmem:[%s9054 + $0x3c] sm:$0xf]
        %v9159 = vld [vmem:[%s9054 + $0x40] sm:$0xf]
        %v9160 = vld [vmem:[%s9054 + $0x44] sm:$0x1]
        %v9161 = vld [vmem:[%s9054 + $0x48] sm:$0xf]
        %v9162 = vld [vmem:[%s9054 + $0x4c] sm:$0xf]
        %v9163 = vld [vmem:[%s9054 + $0x50] sm:$0x1]
        %v9164 = vld [vmem:[%s9054 + $0x54] sm:$0xf]
        %v9165 = vld [vmem:[%s9054 + $0x58] sm:$0xf]
        %v9166 = vld [vmem:[%s9054 + $0x5c] sm:$0x1]
        %v9168 = vshrl.u32 %v9143, 16
        %v9170 = vrot.slane %v9168, 4
        %v9171 = vshll.u32 %v9143, 16
        %v9173 = vrot.slane %v9171, 5
        %v9174 = vor.u32 %v9170, %v9173
        %v9175 = vrot.slane %v9174, 4
        %v9177 = vshll.u32 %v9144, 16
        %v9179 = vrot.slane %v9177, 5
        %v9180 = vsel %vm2105, %v9175, %v9179
        %v9181 = vshrl.u32 %v9144, 16
        %v9183 = vrot.slane %v9181, 4
        %v9184 = vor.u32 %v9183, %v9179
        %v9185 = vrot.slane %v9184, 4
        %v9187 = vshll.u32 %v9145, 16
        %v9189 = vrot.slane %v9187, 5
        %v9190 = vsel %vm2105, %v9185, %v9189
        %v9192 = vshrl.u32 %v9146, 16
        %v9194 = vrot.slane %v9192, 4
        %v9195 = vshll.u32 %v9146, 16
        %v9197 = vrot.slane %v9195, 5
        %v9198 = vor.u32 %v9194, %v9197
        %v9199 = vrot.slane %v9198, 4
        %v9201 = vshll.u32 %v9147, 16
        %v9203 = vrot.slane %v9201, 5
        %v9204 = vsel %vm2105, %v9199, %v9203
        %v9205 = vshrl.u32 %v9147, 16
        %v9207 = vrot.slane %v9205, 4
        %v9208 = vor.u32 %v9207, %v9203
        %v9209 = vrot.slane %v9208, 4
        %v9211 = vshll.u32 %v9148, 16
        %v9213 = vrot.slane %v9211, 5
        %v9214 = vsel %vm2105, %v9209, %v9213
        %v9216 = vshrl.u32 %v9149, 16
        %v9218 = vrot.slane %v9216, 4
        %v9219 = vshll.u32 %v9149, 16
        %v9221 = vrot.slane %v9219, 5
        %v9222 = vor.u32 %v9218, %v9221
        %v9223 = vrot.slane %v9222, 4
        %v9225 = vshll.u32 %v9150, 16
        %v9227 = vrot.slane %v9225, 5
        %v9228 = vsel %vm2105, %v9223, %v9227
        %v9229 = vshrl.u32 %v9150, 16
        %v9231 = vrot.slane %v9229, 4
        %v9232 = vor.u32 %v9231, %v9227
        %v9233 = vrot.slane %v9232, 4
        %v9235 = vshll.u32 %v9151, 16
        %v9237 = vrot.slane %v9235, 5
        %v9238 = vsel %vm2105, %v9233, %v9237
        %v9240 = vshrl.u32 %v9152, 16
        %v9242 = vrot.slane %v9240, 4
        %v9243 = vshll.u32 %v9152, 16
        %v9245 = vrot.slane %v9243, 5
        %v9246 = vor.u32 %v9242, %v9245
        %v9247 = vrot.slane %v9246, 4
        %v9249 = vshll.u32 %v9153, 16
        %v9251 = vrot.slane %v9249, 5
        %v9252 = vsel %vm2105, %v9247, %v9251
        %v9253 = vshrl.u32 %v9153, 16
        %v9255 = vrot.slane %v9253, 4
        %v9256 = vor.u32 %v9255, %v9251
        %v9257 = vrot.slane %v9256, 4
        %v9259 = vshll.u32 %v9154, 16
        %v9261 = vrot.slane %v9259, 5
        %v9262 = vsel %vm2105, %v9257, %v9261
        %v9264 = vshrl.u32 %v9155, 16
        %v9266 = vrot.slane %v9264, 4
        %v9267 = vshll.u32 %v9155, 16
        %v9269 = vrot.slane %v9267, 5
        %v9270 = vor.u32 %v9266, %v9269
        %v9271 = vrot.slane %v9270, 4
        %v9273 = vshll.u32 %v9156, 16
        %v9275 = vrot.slane %v9273, 5
        %v9276 = vsel %vm2105, %v9271, %v9275
        %v9277 = vshrl.u32 %v9156, 16
        %v9279 = vrot.slane %v9277, 4
        %v9280 = vor.u32 %v9279, %v9275
        %v9281 = vrot.slane %v9280, 4
        %v9283 = vshll.u32 %v9157, 16
        %v9285 = vrot.slane %v9283, 5
        %v9286 = vsel %vm2105, %v9281, %v9285
        %v9288 = vshrl.u32 %v9158, 16
        %v9290 = vrot.slane %v9288, 4
        %v9291 = vshll.u32 %v9158, 16
        %v9293 = vrot.slane %v9291, 5
        %v9294 = vor.u32 %v9290, %v9293
        %v9295 = vrot.slane %v9294, 4
        %v9297 = vshll.u32 %v9159, 16
        %v9299 = vrot.slane %v9297, 5
        %v9300 = vsel %vm2105, %v9295, %v9299
        %v9301 = vshrl.u32 %v9159, 16
        %v9303 = vrot.slane %v9301, 4
        %v9304 = vor.u32 %v9303, %v9299
        %v9305 = vrot.slane %v9304, 4
        %v9307 = vshll.u32 %v9160, 16
        %v9309 = vrot.slane %v9307, 5
        %v9310 = vsel %vm2105, %v9305, %v9309
        %v9312 = vshrl.u32 %v9161, 16
        %v9314 = vrot.slane %v9312, 4
        %v9315 = vshll.u32 %v9161, 16
        %v9317 = vrot.slane %v9315, 5
        %v9318 = vor.u32 %v9314, %v9317
        %v9319 = vrot.slane %v9318, 4
        %v9321 = vshll.u32 %v9162, 16
        %v9323 = vrot.slane %v9321, 5
        %v9324 = vsel %vm2105, %v9319, %v9323
        %v9325 = vshrl.u32 %v9162, 16
        %v9327 = vrot.slane %v9325, 4
        %v9328 = vor.u32 %v9327, %v9323
        %v9329 = vrot.slane %v9328, 4
        %v9331 = vshll.u32 %v9163, 16
        %v9333 = vrot.slane %v9331, 5
        %v9334 = vsel %vm2105, %v9329, %v9333
        %v9336 = vshrl.u32 %v9164, 16
        %v9338 = vrot.slane %v9336, 4
        %v9339 = vshll.u32 %v9164, 16
        %v9341 = vrot.slane %v9339, 5
        %v9342 = vor.u32 %v9338, %v9341
        %v9343 = vrot.slane %v9342, 4
        %v9345 = vshll.u32 %v9165, 16
        %v9347 = vrot.slane %v9345, 5
        %v9348 = vsel %vm2105, %v9343, %v9347
        %v9349 = vshrl.u32 %v9165, 16
        %v9351 = vrot.slane %v9349, 4
        %v9352 = vor.u32 %v9351, %v9347
        %v9353 = vrot.slane %v9352, 4
        %v9355 = vshll.u32 %v9166, 16
        %v9357 = vrot.slane %v9355, 5
        %v9358 = vsel %vm2105, %v9353, %v9357
        %v9359 = vunpack.c.l.b16 %v9180
        %v9360 = vunpack.c.l.b16 %v9190
        %v9361 = vunpack.c.l.b16 %v9204
        %v9362 = vunpack.c.l.b16 %v9214
        %v9363 = vunpack.c.l.b16 %v9228
        %v9364 = vunpack.c.l.b16 %v9238
        %v9365 = vunpack.c.l.b16 %v9252
        %v9366 = vunpack.c.l.b16 %v9262
        %v9367 = vunpack.c.l.b16 %v9276
        %v9368 = vunpack.c.l.b16 %v9286
        %v9369 = vunpack.c.l.b16 %v9300
        %v9370 = vunpack.c.l.b16 %v9310
        %v9371 = vunpack.c.l.b16 %v9324
        %v9372 = vunpack.c.l.b16 %v9334
        %v9373 = vunpack.c.l.b16 %v9348
        %v9374 = vunpack.c.l.b16 %v9358
        %v9375 = vpack.c.b16 %v9360, %v9359
        %v9376 = vpack.c.b16 %v9362, %v9361
        %v9377 = vpack.c.b16 %v9364, %v9363
        %v9378 = vpack.c.b16 %v9366, %v9365
        %v9379 = vpack.c.b16 %v9368, %v9367
        %v9380 = vpack.c.b16 %v9370, %v9369
        %v9381 = vpack.c.b16 %v9372, %v9371
        %v9382 = vpack.c.b16 %v9374, %v9373
        %9383 = vrot.lane.b32.xlu0 %v9375, 28
        %v9384 = vpop.permute.xlu0 %9383
        %9385 = vrot.lane.b32.xlu0 %v9376, 28
        %v9386 = vpop.permute.xlu0 %9385
        %9387 = vrot.lane.b32.xlu0 %v9377, 28
        %v9388 = vpop.permute.xlu0 %9387
        %9389 = vrot.lane.b32.xlu0 %v9378, 28
        %v9390 = vpop.permute.xlu0 %9389
        %9391 = vrot.lane.b32.xlu0 %v9379, 28
        %v9392 = vpop.permute.xlu0 %9391
        %9393 = vrot.lane.b32.xlu0 %v9380, 28
        %v9394 = vpop.permute.xlu0 %9393
        %9395 = vrot.lane.b32.xlu0 %v9381, 28
        %v9396 = vpop.permute.xlu0 %9395
        %9397 = vrot.lane.b32.xlu0 %v9382, 28
        %v9398 = vpop.permute.xlu0 %9397
        %9407 = vst.msk [vmem:[#allocation5] sm:$0xff] %vm7559, %v9384
        %9408 = vst.msk [vmem:[#allocation5 + $0x8] sm:$0xff] %vm7559, %v9386
        %9409 = vst.msk [vmem:[#allocation5 + $0x10] sm:$0xff] %vm7559, %v9388
        %9410 = vst.msk [vmem:[#allocation5 + $0x18] sm:$0xff] %vm7559, %v9390
        %9411 = vst.msk [vmem:[#allocation5 + $0x20] sm:$0xff] %vm7559, %v9392
        %9412 = vst.msk [vmem:[#allocation5 + $0x28] sm:$0xff] %vm7559, %v9394
        %9413 = vst.msk [vmem:[#allocation5 + $0x30] sm:$0xff] %vm7559, %v9396
        %9414 = vst.msk [vmem:[#allocation5 + $0x38] sm:$0xff] %vm7559, %v9398
        %v9415 = vld [vmem:[%s9054] sm:$0xe]
        %v9416 = vld [vmem:[%s9054 + $0x4] sm:$0xf]
        %v9417 = vld [vmem:[%s9054 + $0x8] sm:$0x1]
        %v9418 = vld [vmem:[%s9054 + $0xc] sm:$0xe]
        %v9419 = vld [vmem:[%s9054 + $0x10] sm:$0xf]
        %v9420 = vld [vmem:[%s9054 + $0x14] sm:$0x1]
        %v9421 = vld [vmem:[%s9054 + $0x18] sm:$0xe]
        %v9422 = vld [vmem:[%s9054 + $0x1c] sm:$0xf]
        %v9423 = vld [vmem:[%s9054 + $0x20] sm:$0x1]
        %v9424 = vld [vmem:[%s9054 + $0x24] sm:$0xe]
        %v9425 = vld [vmem:[%s9054 + $0x28] sm:$0xf]
        %v9426 = vld [vmem:[%s9054 + $0x2c] sm:$0x1]
        %v9427 = vld [vmem:[%s9054 + $0x30] sm:$0xe]
        %v9428 = vld [vmem:[%s9054 + $0x34] sm:$0xf]
        %v9429 = vld [vmem:[%s9054 + $0x38] sm:$0x1]
        %v9430 = vld [vmem:[%s9054 + $0x3c] sm:$0xe]
        %v9431 = vld [vmem:[%s9054 + $0x40] sm:$0xf]
        %v9432 = vld [vmem:[%s9054 + $0x44] sm:$0x1]
        %v9433 = vld [vmem:[%s9054 + $0x48] sm:$0xe]
        %v9434 = vld [vmem:[%s9054 + $0x4c] sm:$0xf]
        %v9435 = vld [vmem:[%s9054 + $0x50] sm:$0x1]
        %v9436 = vld [vmem:[%s9054 + $0x54] sm:$0xe]
        %v9437 = vld [vmem:[%s9054 + $0x58] sm:$0xf]
        %v9438 = vld [vmem:[%s9054 + $0x5c] sm:$0x1]
        %v9463 = vrot.slane %v9415, 5
        %v9464 = vrot.slane %v9463, 4
        %v9465 = vrot.slane %v9416, 5
        %v9466 = vsel %vm2405, %v9464, %v9465
        %v9467 = vrot.slane %v9465, 4
        %v9468 = vrot.slane %v9417, 5
        %v9469 = vsel %vm2405, %v9467, %v9468
        %v9470 = vrot.slane %v9418, 5
        %v9471 = vrot.slane %v9470, 4
        %v9472 = vrot.slane %v9419, 5
        %v9473 = vsel %vm2405, %v9471, %v9472
        %v9474 = vrot.slane %v9472, 4
        %v9475 = vrot.slane %v9420, 5
        %v9476 = vsel %vm2405, %v9474, %v9475
        %v9477 = vrot.slane %v9421, 5
        %v9478 = vrot.slane %v9477, 4
        %v9479 = vrot.slane %v9422, 5
        %v9480 = vsel %vm2405, %v9478, %v9479
        %v9481 = vrot.slane %v9479, 4
        %v9482 = vrot.slane %v9423, 5
        %v9483 = vsel %vm2405, %v9481, %v9482
        %v9484 = vrot.slane %v9424, 5
        %v9485 = vrot.slane %v9484, 4
        %v9486 = vrot.slane %v9425, 5
        %v9487 = vsel %vm2405, %v9485, %v9486
        %v9488 = vrot.slane %v9486, 4
        %v9489 = vrot.slane %v9426, 5
        %v9490 = vsel %vm2405, %v9488, %v9489
        %v9491 = vrot.slane %v9427, 5
        %v9492 = vrot.slane %v9491, 4
        %v9493 = vrot.slane %v9428, 5
        %v9494 = vsel %vm2405, %v9492, %v9493
        %v9495 = vrot.slane %v9493, 4
        %v9496 = vrot.slane %v9429, 5
        %v9497 = vsel %vm2405, %v9495, %v9496
        %v9498 = vrot.slane %v9430, 5
        %v9499 = vrot.slane %v9498, 4
        %v9500 = vrot.slane %v9431, 5
        %v9501 = vsel %vm2405, %v9499, %v9500
        %v9502 = vrot.slane %v9500, 4
        %v9503 = vrot.slane %v9432, 5
        %v9504 = vsel %vm2405, %v9502, %v9503
        %v9505 = vrot.slane %v9433, 5
        %v9506 = vrot.slane %v9505, 4
        %v9507 = vrot.slane %v9434, 5
        %v9508 = vsel %vm2405, %v9506, %v9507
        %v9509 = vrot.slane %v9507, 4
        %v9510 = vrot.slane %v9435, 5
        %v9511 = vsel %vm2405, %v9509, %v9510
        %v9512 = vrot.slane %v9436, 5
        %v9513 = vrot.slane %v9512, 4
        %v9514 = vrot.slane %v9437, 5
        %v9515 = vsel %vm2405, %v9513, %v9514
        %v9516 = vrot.slane %v9514, 4
        %v9517 = vrot.slane %v9438, 5
        %v9518 = vsel %vm2405, %v9516, %v9517
        %v9519 = vunpack.c.l.b16 %v9466
        %v9520 = vunpack.c.l.b16 %v9469
        %v9521 = vunpack.c.l.b16 %v9473
        %v9522 = vunpack.c.l.b16 %v9476
        %v9523 = vunpack.c.l.b16 %v9480
        %v9524 = vunpack.c.l.b16 %v9483
        %v9525 = vunpack.c.l.b16 %v9487
        %v9526 = vunpack.c.l.b16 %v9490
        %v9527 = vunpack.c.l.b16 %v9494
        %v9528 = vunpack.c.l.b16 %v9497
        %v9529 = vunpack.c.l.b16 %v9501
        %v9530 = vunpack.c.l.b16 %v9504
        %v9531 = vunpack.c.l.b16 %v9508
        %v9532 = vunpack.c.l.b16 %v9511
        %v9533 = vunpack.c.l.b16 %v9515
        %v9534 = vunpack.c.l.b16 %v9518
        %v9535 = vpack.c.b16 %v9520, %v9519
        %v9536 = vpack.c.b16 %v9522, %v9521
        %v9537 = vpack.c.b16 %v9524, %v9523
        %v9538 = vpack.c.b16 %v9526, %v9525
        %v9539 = vpack.c.b16 %v9528, %v9527
        %v9540 = vpack.c.b16 %v9530, %v9529
        %v9541 = vpack.c.b16 %v9532, %v9531
        %v9542 = vpack.c.b16 %v9534, %v9533
        %9543 = vrot.lane.b32.xlu0 %v9535, 32
        %v9544 = vpop.permute.xlu0 %9543
        %9545 = vrot.lane.b32.xlu0 %v9536, 32
        %v9546 = vpop.permute.xlu0 %9545
        %9547 = vrot.lane.b32.xlu0 %v9537, 32
        %v9548 = vpop.permute.xlu0 %9547
        %9549 = vrot.lane.b32.xlu0 %v9538, 32
        %v9550 = vpop.permute.xlu0 %9549
        %9551 = vrot.lane.b32.xlu0 %v9539, 32
        %v9552 = vpop.permute.xlu0 %9551
        %9553 = vrot.lane.b32.xlu0 %v9540, 32
        %v9554 = vpop.permute.xlu0 %9553
        %9555 = vrot.lane.b32.xlu0 %v9541, 32
        %v9556 = vpop.permute.xlu0 %9555
        %9557 = vrot.lane.b32.xlu0 %v9542, 32
        %v9558 = vpop.permute.xlu0 %9557
        %9567 = vst.msk [vmem:[#allocation5] sm:$0xff] %vm7720, %v9544
        %9568 = vst.msk [vmem:[#allocation5 + $0x8] sm:$0xff] %vm7720, %v9546
        %9569 = vst.msk [vmem:[#allocation5 + $0x10] sm:$0xff] %vm7720, %v9548
        %9570 = vst.msk [vmem:[#allocation5 + $0x18] sm:$0xff] %vm7720, %v9550
        %9571 = vst.msk [vmem:[#allocation5 + $0x20] sm:$0xff] %vm7720, %v9552
        %9572 = vst.msk [vmem:[#allocation5 + $0x28] sm:$0xff] %vm7720, %v9554
        %9573 = vst.msk [vmem:[#allocation5 + $0x30] sm:$0xff] %vm7720, %v9556
        %9574 = vst.msk [vmem:[#allocation5 + $0x38] sm:$0xff] %vm7720, %v9558
        %v9575 = vld [vmem:[%s1316] sm:$0xff]
        %v9576 = vld [vmem:[%s1316 + $0x8] sm:$0xff]
        %v9577 = vld [vmem:[%s1316 + $0x10] sm:$0xff]
        %v9578 = vld [vmem:[%s1316 + $0x18] sm:$0xff]
        %v9579 = vld [vmem:[%s1316 + $0x20] sm:$0xff]
        %v9580 = vld [vmem:[%s1316 + $0x28] sm:$0xff]
        %v9581 = vld [vmem:[%s1316 + $0x30] sm:$0xff]
        %v9582 = vld [vmem:[%s1316 + $0x38] sm:$0xff]
        %v9583 = vld [vmem:[%s1316 + $0x40] sm:$0xff]
        %v9584 = vld [vmem:[%s1316 + $0x48] sm:$0xff]
        %v9585 = vld [vmem:[%s1316 + $0x50] sm:$0xff]
        %v9586 = vld [vmem:[%s1316 + $0x58] sm:$0xff]
        %v9587 = vld [vmem:[%s1316 + $0x60] sm:$0xff]
        %v9588 = vld [vmem:[%s1316 + $0x68] sm:$0xff]
        %v9589 = vld [vmem:[%s1316 + $0x70] sm:$0xff]
        %v9590 = vld [vmem:[%s1316 + $0x78] sm:$0xff]
        %v9591 = vpack.c.bf16 %v9576, %v9575
        %v9592 = vpack.c.bf16 %v9578, %v9577
        %v9593 = vpack.c.bf16 %v9580, %v9579
        %v9594 = vpack.c.bf16 %v9582, %v9581
        %v9595 = vpack.c.bf16 %v9584, %v9583
        %v9596 = vpack.c.bf16 %v9586, %v9585
        %v9597 = vpack.c.bf16 %v9588, %v9587
        %v9598 = vpack.c.bf16 %v9590, %v9589
        %9607 = vrot.lane.b32.xlu0 %v9591, 36
        %v9608 = vpop.permute.xlu0 %9607
        %9609 = vrot.lane.b32.xlu0 %v9592, 36
        %v9610 = vpop.permute.xlu0 %9609
        %9611 = vrot.lane.b32.xlu0 %v9593, 36
        %v9612 = vpop.permute.xlu0 %9611
        %9613 = vrot.lane.b32.xlu0 %v9594, 36
        %v9614 = vpop.permute.xlu0 %9613
        %9615 = vrot.lane.b32.xlu0 %v9595, 36
        %v9616 = vpop.permute.xlu0 %9615
        %9617 = vrot.lane.b32.xlu0 %v9596, 36
        %v9618 = vpop.permute.xlu0 %9617
        %9619 = vrot.lane.b32.xlu0 %v9597, 36
        %v9620 = vpop.permute.xlu0 %9619
        %9621 = vrot.lane.b32.xlu0 %v9598, 36
        %v9622 = vpop.permute.xlu0 %9621
        %9631 = vst.msk [vmem:[#allocation5] sm:$0xff] %vm7785, %v9608
        %9632 = vst.msk [vmem:[#allocation5 + $0x8] sm:$0xff] %vm7785, %v9610
        %9633 = vst.msk [vmem:[#allocation5 + $0x10] sm:$0xff] %vm7785, %v9612
        %9634 = vst.msk [vmem:[#allocation5 + $0x18] sm:$0xff] %vm7785, %v9614
        %9635 = vst.msk [vmem:[#allocation5 + $0x20] sm:$0xff] %vm7785, %v9616
        %9636 = vst.msk [vmem:[#allocation5 + $0x28] sm:$0xff] %vm7785, %v9618
        %9637 = vst.msk [vmem:[#allocation5 + $0x30] sm:$0xff] %vm7785, %v9620
        %9638 = vst.msk [vmem:[#allocation5 + $0x38] sm:$0xff] %vm7785, %v9622
        %v9639 = vld [vmem:[%s1333] sm:$0xff]
        %v9640 = vld [vmem:[%s1333 + $0x8] sm:$0xff]
        %v9641 = vld [vmem:[%s1333 + $0x10] sm:$0xff]
        %v9642 = vld [vmem:[%s1333 + $0x18] sm:$0xff]
        %v9643 = vld [vmem:[%s1333 + $0x20] sm:$0xff]
        %v9644 = vld [vmem:[%s1333 + $0x28] sm:$0xff]
        %v9645 = vld [vmem:[%s1333 + $0x30] sm:$0xff]
        %v9646 = vld [vmem:[%s1333 + $0x38] sm:$0xff]
        %v9647 = vld [vmem:[%s1333 + $0x40] sm:$0xff]
        %v9648 = vld [vmem:[%s1333 + $0x48] sm:$0xff]
        %v9649 = vld [vmem:[%s1333 + $0x50] sm:$0xff]
        %v9650 = vld [vmem:[%s1333 + $0x58] sm:$0xff]
        %v9651 = vld [vmem:[%s1333 + $0x60] sm:$0xff]
        %v9652 = vld [vmem:[%s1333 + $0x68] sm:$0xff]
        %v9653 = vld [vmem:[%s1333 + $0x70] sm:$0xff]
        %v9654 = vld [vmem:[%s1333 + $0x78] sm:$0xff]
        %v9655 = vpack.c.bf16 %v9640, %v9639
        %v9656 = vpack.c.bf16 %v9642, %v9641
        %v9657 = vpack.c.bf16 %v9644, %v9643
        %v9658 = vpack.c.bf16 %v9646, %v9645
        %v9659 = vpack.c.bf16 %v9648, %v9647
        %v9660 = vpack.c.bf16 %v9650, %v9649
        %v9661 = vpack.c.bf16 %v9652, %v9651
        %v9662 = vpack.c.bf16 %v9654, %v9653
        %9671 = vrot.lane.b32.xlu0 %v9655, 40
        %v9672 = vpop.permute.xlu0 %9671
        %9673 = vrot.lane.b32.xlu0 %v9656, 40
        %v9674 = vpop.permute.xlu0 %9673
        %9675 = vrot.lane.b32.xlu0 %v9657, 40
        %v9676 = vpop.permute.xlu0 %9675
        %9677 = vrot.lane.b32.xlu0 %v9658, 40
        %v9678 = vpop.permute.xlu0 %9677
        %9679 = vrot.lane.b32.xlu0 %v9659, 40
        %v9680 = vpop.permute.xlu0 %9679
        %9681 = vrot.lane.b32.xlu0 %v9660, 40
        %v9682 = vpop.permute.xlu0 %9681
        %9683 = vrot.lane.b32.xlu0 %v9661, 40
        %v9684 = vpop.permute.xlu0 %9683
        %9685 = vrot.lane.b32.xlu0 %v9662, 40
        %v9686 = vpop.permute.xlu0 %9685
        %9695 = vst.msk [vmem:[#allocation5] sm:$0xff] %vm7850, %v9672
        %9696 = vst.msk [vmem:[#allocation5 + $0x8] sm:$0xff] %vm7850, %v9674
        %9697 = vst.msk [vmem:[#allocation5 + $0x10] sm:$0xff] %vm7850, %v9676
        %9698 = vst.msk [vmem:[#allocation5 + $0x18] sm:$0xff] %vm7850, %v9678
        %9699 = vst.msk [vmem:[#allocation5 + $0x20] sm:$0xff] %vm7850, %v9680
        %9700 = vst.msk [vmem:[#allocation5 + $0x28] sm:$0xff] %vm7850, %v9682
        %9701 = vst.msk [vmem:[#allocation5 + $0x30] sm:$0xff] %vm7850, %v9684
        %9702 = vst.msk [vmem:[#allocation5 + $0x38] sm:$0xff] %vm7850, %v9686
        %v9703 = vld [vmem:[#allocation5] sm:$0xff]
        %v9704 = vld [vmem:[#allocation5 + $0x8] sm:$0xff]
        %v9705 = vld [vmem:[#allocation5 + $0x10] sm:$0xff]
        %v9706 = vld [vmem:[#allocation5 + $0x18] sm:$0xff]
        %v9707 = vld [vmem:[#allocation5 + $0x20] sm:$0xff]
        %v9708 = vld [vmem:[#allocation5 + $0x28] sm:$0xff]
        %v9709 = vld [vmem:[#allocation5 + $0x30] sm:$0xff]
        %v9710 = vld [vmem:[#allocation5 + $0x38] sm:$0xff]
        %v9712 = vsel %vm7884, %v9703, 0
        %v9715 = vsel %vm7884, %v9704, 0
        %v9718 = vsel %vm7884, %v9705, 0
        %v9721 = vsel %vm7884, %v9706, 0
        %v9724 = vsel %vm7884, %v9707, 0
        %v9727 = vsel %vm7884, %v9708, 0
        %v9730 = vsel %vm7884, %v9709, 0
        %v9733 = vsel %vm7884, %v9710, 0
        %9735 = vmatprep.subr.bf16.mxu0 0
        %9736 = vmatpush1.bf16.msra.mxu0 %v7879
        %9737 = vmatprep.subr.bf16.mxu0 0
        %9738 = vmatpush1.bf16.msra.mxu0 %v7880
        %9739 = vmatprep.subr.bf16.mxu0 0
        %9740 = vmatpush1.bf16.msra.mxu0 %v7911
        %9741 = vmatprep.subr.bf16.mxu0 0
        %9742 = vmatpush1.bf16.msra.mxu0 0
        %9743 = vmatprep.subr.bf16.mxu0 0
        %9744 = vmatpush1.bf16.msra.mxu0 0
        %9745 = vmatprep.subr.bf16.mxu0 0
        %9746 = vmatpush1.bf16.msra.mxu0 0
        %9747 = vmatprep.subr.bf16.mxu0 0
        %9748 = vmatpush1.bf16.msra.mxu0 0
        %9749 = vmatprep.subr.bf16.mxu0 0
        %9750 = vmatpush1.bf16.msra.mxu0 0
        %9751 = vmatprep.subr.bf16.mxu0 0
        %9752 = vmatpush1.bf16.msra.mxu0 0
        %9753 = vmatprep.subr.bf16.mxu0 0
        %9754 = vmatpush1.bf16.msra.mxu0 0
        %9755 = vmatprep.subr.bf16.mxu0 0
        %9756 = vmatpush1.bf16.msra.mxu0 0
        %9757 = vmatprep.subr.bf16.mxu0 0
        %9758 = vmatpush1.bf16.msra.mxu0 0
        %9759 = vmatprep.subr.bf16.mxu0 0
        %9760 = vmatpush1.bf16.msra.mxu0 0
        %9761 = vmatprep.subr.bf16.mxu0 0
        %9762 = vmatpush1.bf16.msra.mxu0 0
        %9763 = vmatprep.subr.bf16.mxu0 0
        %9764 = vmatpush1.bf16.msra.mxu0 0
        %9765 = vmatprep.subr.bf16.mxu0 0
        %9766 = vmatpush1.bf16.msra.mxu0 0
        %9767 = vmatprep.mubr.bf16.mxu0 0
        %9768 = vmatmul.mubr.bf16.gmra.mrb[0].mxu0 %v9712
        %v9769 = vpop.f32.mrb[0].mxu0
        %v9770 = vadd.f32 0.0, %v9769
        %v9771 = vpop.f32.mrb[0].mxu0
        %v9772 = vpop.f32.mrb[0].mxu0
        %v9773 = vadd.f32 0.0, %v9772
        %v9774 = vpop.f32.mrb[0].mxu0
        %9775 = vmatprep.mubr.bf16.mxu0 0
        %9776 = vmatmul.mubr.bf16.gmra.mrb[0].mxu0 %v9715
        %v9777 = vpop.f32.mrb[0].mxu0
        %v9778 = vadd.f32 0.0, %v9777
        %v9779 = vpop.f32.mrb[0].mxu0
        %v9780 = vpop.f32.mrb[0].mxu0
        %v9781 = vadd.f32 0.0, %v9780
        %v9782 = vpop.f32.mrb[0].mxu0
        %9783 = vmatprep.mubr.bf16.mxu0 0
        %9784 = vmatmul.mubr.bf16.gmra.mrb[0].mxu0 %v9718
        %v9785 = vpop.f32.mrb[0].mxu0
        %v9786 = vadd.f32 0.0, %v9785
        %v9787 = vpop.f32.mrb[0].mxu0
        %v9788 = vpop.f32.mrb[0].mxu0
        %v9789 = vadd.f32 0.0, %v9788
        %v9790 = vpop.f32.mrb[0].mxu0
        %9791 = vmatprep.mubr.bf16.mxu0 0
        %9792 = vmatmul.mubr.bf16.gmra.mrb[0].mxu0 %v9721
        %v9793 = vpop.f32.mrb[0].mxu0
        %v9794 = vadd.f32 0.0, %v9793
        %v9795 = vpop.f32.mrb[0].mxu0
        %v9796 = vpop.f32.mrb[0].mxu0
        %v9797 = vadd.f32 0.0, %v9796
        %v9798 = vpop.f32.mrb[0].mxu0
        %9799 = vmatprep.mubr.bf16.mxu0 0
        %9800 = vmatmul.mubr.bf16.gmra.mrb[0].mxu0 %v9724
        %v9801 = vpop.f32.mrb[0].mxu0
        %v9802 = vadd.f32 0.0, %v9801
        %v9803 = vpop.f32.mrb[0].mxu0
        %v9804 = vpop.f32.mrb[0].mxu0
        %v9805 = vadd.f32 0.0, %v9804
        %v9806 = vpop.f32.mrb[0].mxu0
        %9807 = vmatprep.mubr.bf16.mxu0 0
        %9808 = vmatmul.mubr.bf16.gmra.mrb[0].mxu0 %v9727
        %v9809 = vpop.f32.mrb[0].mxu0
        %v9810 = vadd.f32 0.0, %v9809
        %v9811 = vpop.f32.mrb[0].mxu0
        %v9812 = vpop.f32.mrb[0].mxu0
        %v9813 = vadd.f32 0.0, %v9812
        %v9814 = vpop.f32.mrb[0].mxu0
        %9815 = vmatprep.mubr.bf16.mxu0 0
        %9816 = vmatmul.mubr.bf16.gmra.mrb[0].mxu0 %v9730
        %v9817 = vpop.f32.mrb[0].mxu0
        %v9818 = vadd.f32 0.0, %v9817
        %v9819 = vpop.f32.mrb[0].mxu0
        %v9820 = vpop.f32.mrb[0].mxu0
        %v9821 = vadd.f32 0.0, %v9820
        %v9822 = vpop.f32.mrb[0].mxu0
        %9823 = vmatprep.mubr.bf16.mxu0 0
        %9824 = vmatmul.mubr.bf16.gmra.mrb[0].mxu0 %v9733
        %v9825 = vpop.f32.mrb[0].mxu0
        %v9826 = vadd.f32 0.0, %v9825
        %v9827 = vpop.f32.mrb[0].mxu0
        %v9828 = vpop.f32.mrb[0].mxu0
        %v9829 = vadd.f32 0.0, %v9828
        %v9830 = vpop.f32.mrb[0].mxu0
        %9831 = vdwg.mxu0
        %s9832 = scalar_lea.vmem %s363, %s1315 [#allocation17]
        %9833 = vst [vmem:[%s9832] sm:$0xff] %v9770
        %9834 = vst [vmem:[%s9832 + $0x8] sm:$0xff] %v9773
        %9835 = vst [vmem:[%s9832 + $0x10] sm:$0xff] %v9778
        %9836 = vst [vmem:[%s9832 + $0x18] sm:$0xff] %v9781
        %9837 = vst [vmem:[%s9832 + $0x20] sm:$0xff] %v9786
        %9838 = vst [vmem:[%s9832 + $0x28] sm:$0xff] %v9789
        %9839 = vst [vmem:[%s9832 + $0x30] sm:$0xff] %v9794
        %9840 = vst [vmem:[%s9832 + $0x38] sm:$0xff] %v9797
        %9841 = vst [vmem:[%s9832 + $0x40] sm:$0xff] %v9802
        %9842 = vst [vmem:[%s9832 + $0x48] sm:$0xff] %v9805
        %9843 = vst [vmem:[%s9832 + $0x50] sm:$0xff] %v9810
        %9844 = vst [vmem:[%s9832 + $0x58] sm:$0xff] %v9813
        %9845 = vst [vmem:[%s9832 + $0x60] sm:$0xff] %v9818
        %9846 = vst [vmem:[%s9832 + $0x68] sm:$0xff] %v9821
        %9847 = vst [vmem:[%s9832 + $0x70] sm:$0xff] %v9826
        %9848 = vst [vmem:[%s9832 + $0x78] sm:$0xff] %v9829
        %s9849 = sand.u32 %s172, 1
        %s9850 = scalar_lea.sflag [#allocation8], %s9849
        %s9851 = sand.u32 %s172, 1
        %s9852 = smul.addr %s9851, 256
        %s9853 = scalar_lea.vmem [#allocation17], %s9852
        // Predicated region
        $region69: #{upblock_forward.2} parent=43 // pred_check
          %p9854 = pneg %p182
        $region70: #{upblock_forward.2} parent=43 // pred_check_branch
          %9856 = sbr.rel (%p9854) target = $region72
        $region71: #{upblock_forward.2} parent=43 // pred_region
          %s9858 = ssub.s32 4096, 4096
          %9859 = vsyncadd %s9850, %s9858
          %s9860 = smul.addr %s28, 32
          %s9861 = smul.addr %s9860, 128
          %s9862 = scalar_lea.hbm %s6, %s9861
          %s9863 = sshll.u32 %s9853, 4
          %s9864 = int_to_ptr.vmem [resolvable:$true] %s9863
          %9869 = dma.vmem_to_hbm [thread:$0]  %s9864, 4096, %s9862, %s9850, 128, 128, 8
        $region72: #{upblock_forward.2} parent=43 // pred_fallthru
          _
      $region44: #{upblock_forward.2} parent=5 // pred_fallthru
        _
      %p9870 = scmp.le.s32.totalorder 2, %s23
      // Predicated region
      $region73: #{upblock_forward.2} parent=5 // pred_check
        %p9871 = pneg %p9870
      $region74: #{upblock_forward.2} parent=5 // pred_check_branch
        %9873 = sbr.rel (%p9871) target = $region76
      $region75: #{upblock_forward.2} parent=5 // pred_region
        %s9874 = ssub.s32 %s23, 2
        // Predicated region
        $region77: #{upblock_forward.2} parent=75 // pred_check
          %p9875 = pneg %p188
        $region78: #{upblock_forward.2} parent=75 // pred_check_branch
          %9877 = sbr.rel (%p9875) target = $region80
        $region79: #{upblock_forward.2} parent=75 // pred_region
          %s9878 = sand.u32 %s173, 1
          %s9879 = scalar_lea.sflag [#allocation8], %s9878
          %s9880 = sand.u32 %s173, 1
          %s9881 = smul.addr %s9880, 256
          %s9882 = scalar_lea.vmem [#allocation17], %s9881
          %9883 = dma.done %s9879, 4096
        $region80: #{upblock_forward.2} parent=75 // pred_fallthru
          _
      $region76: #{upblock_forward.2} parent=5 // pred_fallthru
        _
    $region6: #{upblock_forward.2} parent=1 // loop_footer
      %s27 = sadd.s32 1, %s23
    $region7: #{upblock_forward.2} parent=1 // loop_footer_branch
      %22 = sbr.rel target = $region3
    $region8: #{upblock_forward.2} parent=1 // loop_exit
      _
    %9884 = vsyncpa [#allocation7], 1
    %s9885 = scalar_lea.sflag [#allocation7], 1
    %9886 = vsyncpa %s9885, 1
    %9887 = vsyncpa [#allocation10], 1
    %s9888 = scalar_lea.sflag [#allocation10], 1
    %9889 = vsyncpa %s9888, 1
    %9890 = vsyncpa [#allocation13], 1
    %9891 = vsyncpa [#allocation16], 1
    %9892 = vsyncpa [#allocation8], 1
    %s9893 = scalar_lea.sflag [#allocation8], 1
    %9894 = vsyncpa %s9893, 1

</llo_original>
